<compile_context>
chip_gen: v7x
topology: tpu7x:2x2x1
jax: 0.10.0
libtpu: 0.0.40
codegen_flags: <defaults>
</compile_context>

<pallas_src>
import functools

import jax
import jax.numpy as jnp
import numpy as np
from jax.experimental import pallas as pl
from jax.experimental.pallas import tpu as pltpu

ATT_SLOPE = 0.2     # GATv2Conv attention LeakyReLU negative_slope (PyG default)
ACT_SLOPE = 0.01    # nn.LeakyReLU() default (module-level self.relu)


def _leaky(x, slope):
    return jnp.where(x > 0, x, slope * x)


def _vmem_limit_bytes():
    """Generation-aware scoped-VMEM budget: ~96 MiB on 128-MiB chips (v5e/v6e),
    ~48 MiB on v7x (64 MiB physical).  Falls back conservatively."""
    cap = 0
    try:
        cap = int(getattr(pltpu.get_tpu_info(), "vmem_capacity_bytes"))
    except Exception:
        cap = 0
    if cap <= 0:
        cap = 64 * 1024 * 1024          # conservative: v7x physical VMEM
    return min(cap * 3 // 4, 96 * 1024 * 1024)


VMEM_LIMIT = _vmem_limit_bytes()
_BIG_VMEM = VMEM_LIMIT >= 64 * 1024 * 1024      # 128-MiB VMEM chips (v5e / v6e)


def _tile(dim, multiple, cap):
    """Largest power-of-two multiple of `multiple` dividing `dim`, capped.
    Falls back to the full extent (block == full dim is always legal); note that
    for prime-ish `dim` this gives a single, possibly large block."""
    best = None
    t = multiple
    while t <= min(cap, dim):
        if dim % t == 0:
            best = t
        t *= 2
    return best if best is not None else dim


# -----------------------------------------------------------------------------
# Fused lin_l|lin_r:  Y = X @ [Wl | Wr] + [bl | br]   (bf16 in / bf16 out)
# -----------------------------------------------------------------------------
def _linear_kernel(x_ref, w_ref, b_ref, o_ref):
    y = jnp.dot(x_ref[...].astype(jnp.bfloat16), w_ref[...],
                preferred_element_type=jnp.float32)
    o_ref[...] = (y + b_ref[...]).astype(o_ref.dtype)


def pallas_linear(x, w_bf16, b):
    m, k = x.shape
    kw, n = w_bf16.shape
    assert kw == k
    tm = _tile(m, 32, 512 if _BIG_VMEM else 256)
    return pl.pallas_call(
        _linear_kernel,
        out_shape=jax.ShapeDtypeStruct((m, n), jnp.bfloat16),
        grid_spec=pltpu.PrefetchScalarGridSpec(
            num_scalar_prefetch=0,
            grid=(m // tm,),
            in_specs=[
                pl.BlockSpec((tm, k), lambda i: (i, 0)),   # row block, streamed
                pl.BlockSpec((k, n), lambda i: (0, 0)),    # bf16 weight, resident
                pl.BlockSpec((1, n), lambda i: (0, 0)),    # f32 bias, resident
            ],
            out_specs=pl.BlockSpec((tm, n), lambda i: (i, 0)),
        ),
        compiler_params=pltpu.CompilerParams(
            dimension_semantics=("parallel",),
            vmem_limit_bytes=VMEM_LIMIT),
    )(x, w_bf16, b)


# -----------------------------------------------------------------------------
# Dense masked GATv2 attention, source-tiled with online softmax.
#   grid = (target row blocks [parallel], source col blocks [arbitrary])
# -----------------------------------------------------------------------------
def _gatv2_attn_kernel(adj_ref, gl_ref, glT_ref, gr_ref, aglT_ref, agr_ref,
                       att_ref, bias_ref, o_ref, m_sc, l_sc, acc_sc, *,
                       heads, ch):
    s = pl.program_id(1)

    @pl.when(s == 0)
    def _():
        m_sc[...] = jnp.full(m_sc.shape, -1e30, m_sc.dtype)
        l_sc[...] = jnp.zeros(l_sc.shape, l_sc.dtype)
        acc_sc[...] = jnp.zeros(acc_sc.shape, acc_sc.dtype)

    mask = adj_ref[...] != 0                        # [TM, TN] from int8 0/1
    glT = glT_ref[...].astype(jnp.float32)          # [hc, TN] sources, N lane-dense
    gr = gr_ref[...].astype(jnp.float32)            # [TM, hc] targets
    aglT = aglT_ref[...]                            # [heads, TN] f32, a . (Wl x_j)
    agr = agr_ref[...]                              # [TM, heads] f32, a . (Wr x_i)
    gl = gl_ref[...]                                # [TN, hc] bf16 (weighted-sum operand)

    for h in range(heads):                          # heads is small & static
        base = h * ch
        # Positive part of the GATv2 score, accumulated channel-by-channel so the
        # big temporary is only [TM, TN] (source axis on lanes):
        #   e_pos[i, j] = sum_c a_hc * max(gl[j, c] + gr[i, c], 0)
        e_pos = jnp.zeros(mask.shape, jnp.float32)
        for c in range(ch):
            z = gr[:, base + c:base + c + 1] + glT[base + c:base + c + 1, :]
            e_pos = e_pos + att_ref[h, c] * jnp.maximum(z, 0.0)
        # a . LeakyReLU(z) = slope*(a.gl_j + a.gr_i) + (1 - slope)*e_pos
        e = ATT_SLOPE * (agr[:, h:h + 1] + aglT[h:h + 1, :]) \
            + (1.0 - ATT_SLOPE) * e_pos
        e = jnp.where(mask, e, -1e30)

        # online (flash-style) softmax over the source axis
        m_prev = m_sc[:, h:h + 1]
        m_new = jnp.maximum(m_prev, jnp.max(e, axis=-1, keepdims=True))
        corr = jnp.exp(m_prev - m_new)
        p = jnp.where(mask, jnp.exp(e - m_new), 0.0)
        l_sc[:, h:h + 1] = corr * l_sc[:, h:h + 1] + jnp.sum(p, axis=-1,
                                                             keepdims=True)
        acc_sc[:, base:base + ch] = (
            corr * acc_sc[:, base:base + ch]
            + jnp.dot(p.astype(jnp.bfloat16), gl[:, base:base + ch],
                      preferred_element_type=jnp.float32))
        m_sc[:, h:h + 1] = m_new

    @pl.when(s == pl.num_programs(1) - 1)
    def _():
        # self-loops guarantee every target row has >= 1 valid source (l > 0)
        inv_l = 1.0 / l_sc[...]
        parts = [acc_sc[:, h * ch:(h + 1) * ch] * inv_l[:, h:h + 1]
                 for h in range(heads)]
        y = parts[0] if heads == 1 else jnp.concatenate(parts, axis=-1)
        y = y + bias_ref[...]
        # module-level self.relu (LeakyReLU) applied right after each conv
        o_ref[...] = _leaky(y, ACT_SLOPE).astype(o_ref.dtype)


def gatv2_layer(adj_i8, gl, glT, gr, aglT, agr, att, bias, *, heads, ch):
    n, hc = gl.shape
    assert hc == heads * ch
    tm = _tile(n, 32, 256 if _BIG_VMEM else 128)    # target rows per step
    tn = _tile(n, 128, 512)                         # source cols per step (lanes)
    # NOTE: if the adjacency DMA ever becomes exposed (v5e), consider
    # pipeline_mode=pl.Buffered(3) on the adjacency BlockSpec.
    flops = int(n) * int(n) * heads * (4 * ch + 10) + 2 * int(n) * int(n) * hc
    bytes_acc = (int(n) * int(n)                    # int8 adjacency
                 + 3 * int(n) * hc * 2              # gl, glT, gr (bf16)
                 + 2 * int(n) * heads * 4           # a.gl, a.gr (f32)
                 + int(n) * hc * 2)                 # output (bf16)
    return pl.pallas_call(
        functools.partial(_gatv2_attn_kernel, heads=heads, ch=ch),
        out_shape=jax.ShapeDtypeStruct((n, hc), jnp.bfloat16),
        grid_spec=pltpu.PrefetchScalarGridSpec(
            num_scalar_prefetch=0,
            grid=(n // tm, n // tn),
            in_specs=[
                pl.BlockSpec((tm, tn), lambda i, s: (i, s)),      # adjacency, int8
                pl.BlockSpec((tn, hc), lambda i, s: (s, 0)),      # gl (sources, bf16)
                pl.BlockSpec((hc, tn), lambda i, s: (0, s)),      # gl^T (bf16, N on lanes)
                pl.BlockSpec((tm, hc), lambda i, s: (i, 0)),      # gr (targets, bf16)
                pl.BlockSpec((heads, tn), lambda i, s: (0, s)),   # a . gl  (f32)
                pl.BlockSpec((tm, heads), lambda i, s: (i, 0)),   # a . gr  (f32)
                pl.BlockSpec(memory_space=pltpu.MemorySpace.SMEM),  # att scalars
                pl.BlockSpec((1, hc), lambda i, s: (0, 0)),       # conv bias, resident
            ],
            out_specs=pl.BlockSpec((tm, hc), lambda i, s: (i, 0)),
            scratch_shapes=[
                pltpu.VMEM((tm, heads), jnp.float32),   # running max
                pltpu.VMEM((tm, heads), jnp.float32),   # running denom
                pltpu.VMEM((tm, hc), jnp.float32),      # running weighted sum
            ],
        ),
        compiler_params=pltpu.CompilerParams(
            dimension_semantics=("parallel", "arbitrary"),
            vmem_limit_bytes=VMEM_LIMIT),
        cost_estimate=pl.CostEstimate(
            flops=int(flops), transcendentals=int(n) * int(n) * heads,
            bytes_accessed=int(bytes_acc)),
    )(adj_i8, gl, glT, gr, aglT, agr, att, bias)


# -----------------------------------------------------------------------------
# global_mean_pool + fc1 + LeakyReLU + fc2, reduction-tiled over node blocks.
# -----------------------------------------------------------------------------
def _pool_mlp_kernel(p_ref, h_ref, w1_ref, b1_ref, w2_ref, b2_ref, o_ref, acc_ref):
    k = pl.program_id(0)

    @pl.when(k == 0)
    def _():
        acc_ref[...] = jnp.zeros(acc_ref.shape, acc_ref.dtype)

    acc_ref[...] += jnp.dot(p_ref[...].astype(jnp.bfloat16), h_ref[...],
                            preferred_element_type=jnp.float32)

    @pl.when(k == pl.num_programs(0) - 1)
    def _():
        g = acc_ref[...]
        g = jnp.dot(g, w1_ref[...], preferred_element_type=jnp.float32) + b1_ref[...]
        g = _leaky(g, ACT_SLOPE)
        o_ref[...] = jnp.dot(g, w2_ref[...],
                             preferred_element_type=jnp.float32) + b2_ref[...]


def pool_and_mlp(pool_mat, h, w1, b1, w2, b2):
    bsz, n = pool_mat.shape
    nh = h.shape[1]
    nout = w2.shape[1]
    tk = _tile(n, 128, 512)
    return pl.pallas_call(
        _pool_mlp_kernel,
        out_shape=jax.ShapeDtypeStruct((bsz, nout), jnp.float32),
        grid_spec=pltpu.PrefetchScalarGridSpec(
            num_scalar_prefetch=0,
            grid=(n // tk,),
            in_specs=[
                pl.BlockSpec((bsz, tk), lambda k: (0, k)),    # P column block, streamed
                pl.BlockSpec((tk, nh), lambda k: (k, 0)),     # H row block (bf16), streamed
                pl.BlockSpec((nh, nh), lambda k: (0, 0)),     # fc1 W, resident
                pl.BlockSpec((1, nh), lambda k: (0, 0)),
                pl.BlockSpec((nh, nout), lambda k: (0, 0)),   # fc2 W, resident
                pl.BlockSpec((1, nout), lambda k: (0, 0)),
            ],
            out_specs=pl.BlockSpec((bsz, nout), lambda k: (0, 0)),
            scratch_shapes=[pltpu.VMEM((bsz, nh), jnp.float32)],
        ),
        compiler_params=pltpu.CompilerParams(
            dimension_semantics=("arbitrary",),   # reduction over node blocks
            vmem_limit_bytes=VMEM_LIMIT),
    )(pool_mat, h, w1, b1, w2, b2)


# -----------------------------------------------------------------------------
# Full GATPerso forward
# -----------------------------------------------------------------------------
def gat_perso_forward(x, adj_i8, pool_mat, params, *, n_heads, nhid):
    (wl1, bl1, wr1, br1, att1, bo1,
     wl2, bl2, wr2, br2, att2, bo2,
     wf1, bf1, wf2, bf2) = params

    def conv_inputs(xin, wl, bl, wr, br, att, heads, ch):
        # lin_l and lin_r fused into one streamed matmul (Wl|Wr concatenated).
        wcat = jnp.concatenate([wl, wr], axis=1).astype(jnp.bfloat16)
        bcat = jnp.concatenate([bl, br], axis=1)
        g = pallas_linear(xin, wcat, bcat)                 # [N, 2*hc] bf16
        hc = heads * ch
        gl, gr = g[:, :hc], g[:, hc:]
        glT = gl.T                                         # [hc, N], N lane-dense
        a = att.reshape(heads, ch)
        # linear part of  a . LeakyReLU(gl_j + gr_i)  (tiny matvecs, done once)
        aglT = jnp.einsum("hc,nhc->hn", a,
                          gl.reshape(-1, heads, ch).astype(jnp.float32))
        agr = jnp.einsum("hc,nhc->nh", a,
                         gr.reshape(-1, heads, ch).astype(jnp.float32))
        return gl, glT, gr, aglT, agr, a

    # conv1 (GATv2, n_heads, concat) + LeakyReLU (fused in the kernel epilogue)
    gl1, glT1, gr1, aglT1, agr1, a1 = conv_inputs(x, wl1, bl1, wr1, br1, att1,
                                                  n_heads, nhid)
    h1 = gatv2_layer(adj_i8, gl1, glT1, gr1, aglT1, agr1, a1, bo1,
                     heads=n_heads, ch=nhid)
    # conv2 (GATv2, 1 head) + LeakyReLU
    gl2, glT2, gr2, aglT2, agr2, a2 = conv_inputs(h1, wl2, bl2, wr2, br2, att2,
                                                  1, nhid)
    h2 = gatv2_layer(adj_i8, gl2, glT2, gr2, aglT2, agr2, a2, bo2,
                     heads=1, ch=nhid)
    # global_mean_pool -> fc1 -> LeakyReLU -> fc2
    return pool_and_mlp(pool_mat, h2, wf1, bf1, wf2, bf2)


if __name__ == "__main__":
    # Module hyper-parameters (small, consistent with GATPerso's signature).
    n_in, nhid, n_heads, nout = 8, 32, 4, 16
    dropout = 0.1                       # inference no-op
    num_graphs, nodes_per_graph = 2, 8
    N = num_graphs * nodes_per_graph    # 16 nodes total

    # Deterministic synthetic batch: one ring per graph (undirected edges).
    src, dst, batch = [], [], []
    for g in range(num_graphs):
        base = g * nodes_per_graph
        for i in range(nodes_per_graph):
            j = (i + 1) % nodes_per_graph
            src += [base + i, base + j]
            dst += [base + j, base + i]
        batch += [g] * nodes_per_graph
    src = np.array(src); dst = np.array(dst); batch = np.array(batch)

    # Dense adjacency A[i, j] = 1 iff edge j -> i (+ self loops), int8 (exact 0/1).
    adj_np = np.zeros((N, N), dtype=np.int8)
    adj_np[dst, src] = 1
    np.fill_diagonal(adj_np, 1)
    adj_i8 = jnp.asarray(adj_np)

    # Mean-pool matrix P[b, n] = 1/|graph_b| for node n in graph b.
    pool_np = np.zeros((num_graphs, N), dtype=np.float32)
    for b in range(num_graphs):
        idx = np.where(batch == b)[0]
        pool_np[b, idx] = 1.0 / len(idx)
    pool_mat = jnp.asarray(pool_np)

    # Deterministic synthetic parameters.
    key = jax.random.PRNGKey(0)
    ks = jax.random.split(key, 16)

    def glorot(k, shape):
        s = np.sqrt(6.0 / (shape[0] + shape[1]))
        return jax.random.uniform(k, shape, jnp.float32, -s, s)

    hc = n_heads * nhid
    x = jax.random.normal(ks[0], (N, n_in), jnp.float32)

    wl1 = glorot(ks[1], (n_in, hc));  bl1 = 0.1 * jax.random.normal(ks[2], (1, hc), jnp.float32)
    wr1 = glorot(ks[3], (n_in, hc));  br1 = 0.1 * jax.random.normal(ks[4], (1, hc), jnp.float32)
    att1 = glorot(ks[5], (n_heads, nhid)); bo1 = 0.1 * jax.random.normal(ks[6], (1, hc), jnp.float32)

    wl2 = glorot(ks[7], (hc, nhid));  bl2 = 0.1 * jax.random.normal(ks[8], (1, nhid), jnp.float32)
    wr2 = glorot(ks[9], (hc, nhid));  br2 = 0.1 * jax.random.normal(ks[10], (1, nhid), jnp.float32)
    att2 = glorot(ks[11], (1, nhid)); bo2 = 0.1 * jax.random.normal(ks[12], (1, nhid), jnp.float32)

    wf1 = glorot(ks[13], (nhid, nhid)); bf1 = jnp.zeros((1, nhid), jnp.float32)
    wf2 = glorot(ks[14], (nhid, nout)); bf2 = 0.1 * jax.random.normal(ks[15], (1, nout), jnp.float32)

    params = (wl1, bl1, wr1, br1, att1, bo1,
              wl2, bl2, wr2, br2, att2, bo2,
              wf1, bf1, wf2, bf2)

    fwd = jax.jit(functools.partial(gat_perso_forward, n_heads=n_heads, nhid=nhid))
    out = jax.block_until_ready(fwd(x, adj_i8, pool_mat, params))
    assert out.shape == (num_graphs, nout)

    # Pure-JAX f32 reference (highest matmul precision).
    def ref_forward(xin0):
        mask = jnp.asarray(adj_np) > 0                      # [target, source]

        def gat(xin, wl, bl, wr, br, att, bo, heads, ch):
            gl = (xin @ wl + bl).reshape(N, heads, ch)
            gr = (xin @ wr + br).reshape(N, heads, ch)
            z = gr[:, None] + gl[None, :]                   # [tgt, src, H, C]
            z = jnp.where(z > 0, z, ATT_SLOPE * z)
            e = jnp.einsum("ijhc,hc->ijh", z, att)
            e = jnp.where(mask[:, :, None], e, -1e30)
            p = jnp.where(mask[:, :, None],
                          jnp.exp(e - e.max(axis=1, keepdims=True)), 0.0)
            alpha = p / p.sum(axis=1, keepdims=True)
            y = jnp.einsum("ijh,jhc->ihc", alpha, gl).reshape(N, heads * ch) + bo
            return jnp.where(y > 0, y, ACT_SLOPE * y)

        h1 = gat(xin0, wl1, bl1, wr1, br1, att1, bo1, n_heads, nhid)
        h2 = gat(h1, wl2, bl2, wr2, br2, att2, bo2, 1, nhid)
        g = jnp.asarray(pool_np) @ h2
        g = g @ wf1 + bf1
        g = jnp.where(g > 0, g, ACT_SLOPE * g)
        return g @ wf2 + bf2

    with jax.default_matmul_precision("highest"):
        expected = jax.block_until_ready(ref_forward(x))

    # The Pallas path keeps activations / MXU operands in bfloat16 (per TPU perf
    # guidance); the reference is pure f32 -> tolerance reflects bf16 end-to-end.
    np.testing.assert_allclose(np.asarray(out), np.asarray(expected),
                               rtol=5e-2, atol=5e-2)
    print("KERNEL_OK")
</pallas_src>

<mosaic_0001>
module attributes {stable_mosaic.version = 11 : i64} {
  func.func @_linear_kernel(%arg0: i32, %arg1: memref<16x8xf32, #tpu.memory_space<vmem>>, %arg2: memref<8x256xbf16, #tpu.memory_space<vmem>>, %arg3: memref<1x256xf32, #tpu.memory_space<vmem>>, %arg4: memref<16x256xbf16, #tpu.memory_space<vmem>>) attributes {dimension_semantics = [#tpu.dimension_semantics<parallel>], iteration_bounds = array<i64: 1>, scalar_prefetch = 0 : i64, scratch_operands = 0 : i64, tpu.core_type = #tpu.core_type<tc>, window_params = [{transform_indices = @transform_0, window_bounds = array<i64: 16, 8>}, {pipeline_mode = #tpu.pipeline_mode<synchronous>, transform_indices = @transform_1, window_bounds = array<i64: 8, 256>}, {pipeline_mode = #tpu.pipeline_mode<synchronous>, transform_indices = @transform_2, window_bounds = array<i64: 1, 256>}, {transform_indices = @transform_3, window_bounds = array<i64: 16, 256>}]} {
    %c0 = arith.constant 0 : index
    %c0_0 = arith.constant 0 : index
    %0 = vector.load %arg1[%c0, %c0_0] : memref<16x8xf32, #tpu.memory_space<vmem>>, vector<16x8xf32>
    %1 = arith.truncf %0 : vector<16x8xf32> to vector<16x8xbf16>
    %c0_1 = arith.constant 0 : index
    %c0_2 = arith.constant 0 : index
    %2 = vector.load %arg2[%c0_1, %c0_2] : memref<8x256xbf16, #tpu.memory_space<vmem>>, vector<8x256xbf16>
    %cst = arith.constant dense<0.000000e+00> : vector<16x256xf32>
    %3 = tpu.matmul %1, %2, %cst {dimension_numbers = #tpu.dot_dimension_numbers<[1], [0], [0], [1], [0, 0, 1, 1], [], []>} : vector<16x8xbf16>, vector<8x256xbf16>, vector<16x256xf32> -> vector<16x256xf32>
    %c0_3 = arith.constant 0 : index
    %c0_4 = arith.constant 0 : index
    %4 = vector.load %arg3[%c0_3, %c0_4] : memref<1x256xf32, #tpu.memory_space<vmem>>, vector<1x256xf32>
    %5 = vector.broadcast %4 : vector<1x256xf32> to vector<16x256xf32>
    %6 = arith.addf %3, %5 : vector<16x256xf32>
    %7 = arith.truncf %6 : vector<16x256xf32> to vector<16x256xbf16>
    %c0_5 = arith.constant 0 : index
    %c0_6 = arith.constant 0 : index
    %8 = vector.load %arg4[%c0_5, %c0_6] : memref<16x256xbf16, #tpu.memory_space<vmem>>, vector<16x256xbf16>
    tpu.vector_store %arg4[%c0_5, %c0_6], %7 {strides = array<i32>} : memref<16x256xbf16, #tpu.memory_space<vmem>>, vector<16x256xbf16>,
    return
  }
  func.func @transform_0(%arg0: i32) -> (i32, i32) {
    %c0_i32 = arith.constant 0 : i32
    %c0_i32_0 = arith.constant 0 : i32
    return %arg0, %c0_i32 : i32, i32
  }
  func.func @transform_1(%arg0: i32) -> (i32, i32) {
    %c0_i32 = arith.constant 0 : i32
    %c0_i32_0 = arith.constant 0 : i32
    %c0_i32_1 = arith.constant 0 : i32
    return %c0_i32, %c0_i32_0 : i32, i32
  }
  func.func @transform_2(%arg0: i32) -> (i32, i32) {
    %c0_i32 = arith.constant 0 : i32
    %c0_i32_0 = arith.constant 0 : i32
    %c0_i32_1 = arith.constant 0 : i32
    return %c0_i32, %c0_i32_0 : i32, i32
  }
  func.func @transform_3(%arg0: i32) -> (i32, i32) {
    %c0_i32 = arith.constant 0 : i32
    %c0_i32_0 = arith.constant 0 : i32
    return %arg0, %c0_i32 : i32, i32
  }
}

module attributes {stable_mosaic.version = 11 : i64} {
  func.func @_linear_kernel(%arg0: i32, %arg1: memref<16x128xbf16, #tpu.memory_space<vmem>>, %arg2: memref<128x64xbf16, #tpu.memory_space<vmem>>, %arg3: memref<1x64xf32, #tpu.memory_space<vmem>>, %arg4: memref<16x64xbf16, #tpu.memory_space<vmem>>) attributes {dimension_semantics = [#tpu.dimension_semantics<parallel>], iteration_bounds = array<i64: 1>, scalar_prefetch = 0 : i64, scratch_operands = 0 : i64, tpu.core_type = #tpu.core_type<tc>, window_params = [{transform_indices = @transform_0, window_bounds = array<i64: 16, 128>}, {pipeline_mode = #tpu.pipeline_mode<synchronous>, transform_indices = @transform_1, window_bounds = array<i64: 128, 64>}, {pipeline_mode = #tpu.pipeline_mode<synchronous>, transform_indices = @transform_2, window_bounds = array<i64: 1, 64>}, {transform_indices = @transform_3, window_bounds = array<i64: 16, 64>}]} {
    %c0 = arith.constant 0 : index
    %c0_0 = arith.constant 0 : index
    %0 = vector.load %arg1[%c0, %c0_0] : memref<16x128xbf16, #tpu.memory_space<vmem>>, vector<16x128xbf16>
    %c0_1 = arith.constant 0 : index
    %c0_2 = arith.constant 0 : index
    %1 = vector.load %arg2[%c0_1, %c0_2] : memref<128x64xbf16, #tpu.memory_space<vmem>>, vector<128x64xbf16>
    %cst = arith.constant dense<0.000000e+00> : vector<16x64xf32>
    %2 = tpu.matmul %0, %1, %cst {dimension_numbers = #tpu.dot_dimension_numbers<[1], [0], [0], [1], [0, 0, 1, 1], [], []>} : vector<16x128xbf16>, vector<128x64xbf16>, vector<16x64xf32> -> vector<16x64xf32>
    %c0_3 = arith.constant 0 : index
    %c0_4 = arith.constant 0 : index
    %3 = vector.load %arg3[%c0_3, %c0_4] : memref<1x64xf32, #tpu.memory_space<vmem>>, vector<1x64xf32>
    %4 = vector.broadcast %3 : vector<1x64xf32> to vector<16x64xf32>
    %5 = arith.addf %2, %4 : vector<16x64xf32>
    %6 = arith.truncf %5 : vector<16x64xf32> to vector<16x64xbf16>
    %c0_5 = arith.constant 0 : index
    %c0_6 = arith.constant 0 : index
    %7 = vector.load %arg4[%c0_5, %c0_6] : memref<16x64xbf16, #tpu.memory_space<vmem>>, vector<16x64xbf16>
    tpu.vector_store %arg4[%c0_5, %c0_6], %6 {strides = array<i32>} : memref<16x64xbf16, #tpu.memory_space<vmem>>, vector<16x64xbf16>,
    return
  }
  func.func @transform_0(%arg0: i32) -> (i32, i32) {
    %c0_i32 = arith.constant 0 : i32
    %c0_i32_0 = arith.constant 0 : i32
    return %arg0, %c0_i32 : i32, i32
  }
  func.func @transform_1(%arg0: i32) -> (i32, i32) {
    %c0_i32 = arith.constant 0 : i32
    %c0_i32_0 = arith.constant 0 : i32
    %c0_i32_1 = arith.constant 0 : i32
    return %c0_i32, %c0_i32_0 : i32, i32
  }
  func.func @transform_2(%arg0: i32) -> (i32, i32) {
    %c0_i32 = arith.constant 0 : i32
    %c0_i32_0 = arith.constant 0 : i32
    %c0_i32_1 = arith.constant 0 : i32
    return %c0_i32, %c0_i32_0 : i32, i32
  }
  func.func @transform_3(%arg0: i32) -> (i32, i32) {
    %c0_i32 = arith.constant 0 : i32
    %c0_i32_0 = arith.constant 0 : i32
    return %arg0, %c0_i32 : i32, i32
  }
}

module attributes {stable_mosaic.version = 11 : i64} {
  func.func @_gatv2_attn_kernel(%arg0: i32, %arg1: i32, %arg2: memref<16x16xi8, #tpu.memory_space<vmem>>, %arg3: memref<16x128xbf16, #tpu.memory_space<vmem>>, %arg4: memref<128x16xbf16, #tpu.memory_space<vmem>>, %arg5: memref<16x128xbf16, #tpu.memory_space<vmem>>, %arg6: memref<4x16xf32, #tpu.memory_space<vmem>>, %arg7: memref<16x4xf32, #tpu.memory_space<vmem>>, %arg8: memref<4x32xf32, #tpu.memory_space<smem>>, %arg9: memref<1x128xf32, #tpu.memory_space<vmem>>, %arg10: memref<16x128xbf16, #tpu.memory_space<vmem>>, %arg11: memref<16x4xf32, #tpu.memory_space<vmem>>, %arg12: memref<16x4xf32, #tpu.memory_space<vmem>>, %arg13: memref<16x128xf32, #tpu.memory_space<vmem>>) attributes {dimension_semantics = [#tpu.dimension_semantics<parallel>, #tpu.dimension_semantics<arbitrary>], iteration_bounds = array<i64: 1, 1>, scalar_prefetch = 0 : i64, scratch_operands = 3 : i64, tpu.core_type = #tpu.core_type<tc>, window_params = [{transform_indices = @transform_0, window_bounds = array<i64: 16, 16>}, {transform_indices = @transform_1, window_bounds = array<i64: 16, 128>}, {transform_indices = @transform_2, window_bounds = array<i64: 128, 16>}, {transform_indices = @transform_3, window_bounds = array<i64: 16, 128>}, {transform_indices = @transform_4, window_bounds = array<i64: 4, 16>}, {transform_indices = @transform_5, window_bounds = array<i64: 16, 4>}, {transform_indices = @transform_6, window_bounds = array<i64: 4, 32>}, {pipeline_mode = #tpu.pipeline_mode<synchronous>, transform_indices = @transform_7, window_bounds = array<i64: 1, 128>}, {transform_indices = @transform_8, window_bounds = array<i64: 16, 128>}]} {
    %c0_i32 = arith.constant 0 : i32
    %0 = arith.cmpi eq, %arg1, %c0_i32 : i32
    %1 = arith.extui %0 : i1 to i32
    %c0_i32_0 = arith.constant 0 : i32
    %2 = arith.cmpi ne, %1, %c0_i32_0 : i32
    scf.if %2 {
      %cst_443 = arith.constant -1.000000e+30 : f32
      %1580 = vector.broadcast %cst_443 : f32 to vector<16x4xf32>
      %c0_444 = arith.constant 0 : index
      %c0_445 = arith.constant 0 : index
      %1581 = vector.load %arg11[%c0_444, %c0_445] : memref<16x4xf32, #tpu.memory_space<vmem>>, vector<16x4xf32>
      tpu.vector_store %arg11[%c0_444, %c0_445], %1580 {strides = array<i32>} : memref<16x4xf32, #tpu.memory_space<vmem>>, vector<16x4xf32>,
      %cst_446 = arith.constant 0.000000e+00 : f32
      %1582 = vector.broadcast %cst_446 : f32 to vector<16x4xf32>
      %c0_447 = arith.constant 0 : index
      %c0_448 = arith.constant 0 : index
      %1583 = vector.load %arg12[%c0_447, %c0_448] : memref<16x4xf32, #tpu.memory_space<vmem>>, vector<16x4xf32>
      tpu.vector_store %arg12[%c0_447, %c0_448], %1582 {strides = array<i32>} : memref<16x4xf32, #tpu.memory_space<vmem>>, vector<16x4xf32>,
      %cst_449 = arith.constant 0.000000e+00 : f32
      %1584 = vector.broadcast %cst_449 : f32 to vector<16x128xf32>
      %c0_450 = arith.constant 0 : index
      %c0_451 = arith.constant 0 : index
      %1585 = vector.load %arg13[%c0_450, %c0_451] : memref<16x128xf32, #tpu.memory_space<vmem>>, vector<16x128xf32>
      tpu.vector_store %arg13[%c0_450, %c0_451], %1584 {strides = array<i32>} : memref<16x128xf32, #tpu.memory_space<vmem>>, vector<16x128xf32>,
    } else {
    }
    %c0 = arith.constant 0 : index
    %c0_1 = arith.constant 0 : index
    %3 = vector.load %arg2[%c0, %c0_1] : memref<16x16xi8, #tpu.memory_space<vmem>>, vector<16x16xi8>
    %c0_i8 = arith.constant 0 : i8
    %4 = vector.broadcast %c0_i8 : i8 to vector<16x16xi8>
    %5 = arith.cmpi ne, %3, %4 : vector<16x16xi8>
    %c0_2 = arith.constant 0 : index
    %c0_3 = arith.constant 0 : index
    %6 = vector.load %arg4[%c0_2, %c0_3] : memref<128x16xbf16, #tpu.memory_space<vmem>>, vector<128x16xbf16>
    %7 = arith.extf %6 : vector<128x16xbf16> to vector<128x16xf32>
    %c0_4 = arith.constant 0 : index
    %c0_5 = arith.constant 0 : index
    %8 = vector.load %arg5[%c0_4, %c0_5] : memref<16x128xbf16, #tpu.memory_space<vmem>>, vector<16x128xbf16>
    %9 = arith.extf %8 : vector<16x128xbf16> to vector<16x128xf32>
    %c0_6 = arith.constant 0 : index
    %c0_7 = arith.constant 0 : index
    %10 = vector.load %arg6[%c0_6, %c0_7] : memref<4x16xf32, #tpu.memory_space<vmem>>, vector<4x16xf32>
    %c0_8 = arith.constant 0 : index
    %c0_9 = arith.constant 0 : index
    %11 = vector.load %arg7[%c0_8, %c0_9] : memref<16x4xf32, #tpu.memory_space<vmem>>, vector<16x4xf32>
    %c0_10 = arith.constant 0 : index
    %c0_11 = arith.constant 0 : index
    %12 = vector.load %arg3[%c0_10, %c0_11] : memref<16x128xbf16, #tpu.memory_space<vmem>>, vector<16x128xbf16>
    %cst = arith.constant 0.000000e+00 : f32
    %13 = vector.broadcast %cst : f32 to vector<16x16xf32>
    %14 = vector.extract_strided_slice %9 {offsets = [0, 0], sizes = [16, 1], strides = [1, 1]} : vector<16x128xf32> to vector<16x1xf32>
    %15 = vector.extract_strided_slice %7 {offsets = [0, 0], sizes = [1, 16], strides = [1, 1]} : vector<128x16xf32> to vector<1x16xf32>
    %16 = vector.broadcast %14 : vector<16x1xf32> to vector<16x16xf32>
    %17 = vector.broadcast %15 : vector<1x16xf32> to vector<16x16xf32>
    %18 = arith.addf %16, %17 : vector<16x16xf32>
    %c0_12 = arith.constant 0 : index
    %c0_13 = arith.constant 0 : index
    %19 = memref.load %arg8[%c0_12, %c0_13] : memref<4x32xf32, #tpu.memory_space<smem>>
    %cst_14 = arith.constant 0.000000e+00 : f32
    %20 = vector.broadcast %cst_14 : f32 to vector<16x16xf32>
    %21 = arith.maximumf %18, %20 : vector<16x16xf32>
    %22 = vector.broadcast %19 : f32 to vector<16x16xf32>
    %23 = arith.mulf %22, %21 : vector<16x16xf32>
    %24 = arith.addf %13, %23 : vector<16x16xf32>
    %25 = vector.extract_strided_slice %9 {offsets = [0, 1], sizes = [16, 1], strides = [1, 1]} : vector<16x128xf32> to vector<16x1xf32>
    %26 = vector.extract_strided_slice %7 {offsets = [1, 0], sizes = [1, 16], strides = [1, 1]} : vector<128x16xf32> to vector<1x16xf32>
    %27 = vector.broadcast %25 : vector<16x1xf32> to vector<16x16xf32>
    %28 = vector.broadcast %26 : vector<1x16xf32> to vector<16x16xf32>
    %29 = arith.addf %27, %28 : vector<16x16xf32>
    %c0_15 = arith.constant 0 : index
    %c1 = arith.constant 1 : index
    %30 = memref.load %arg8[%c0_15, %c1] : memref<4x32xf32, #tpu.memory_space<smem>>
    %cst_16 = arith.constant 0.000000e+00 : f32
    %31 = vector.broadcast %cst_16 : f32 to vector<16x16xf32>
    %32 = arith.maximumf %29, %31 : vector<16x16xf32>
    %33 = vector.broadcast %30 : f32 to vector<16x16xf32>
    %34 = arith.mulf %33, %32 : vector<16x16xf32>
    %35 = arith.addf %24, %34 : vector<16x16xf32>
    %36 = vector.extract_strided_slice %9 {offsets = [0, 2], sizes = [16, 1], strides = [1, 1]} : vector<16x128xf32> to vector<16x1xf32>
    %37 = vector.extract_strided_slice %7 {offsets = [2, 0], sizes = [1, 16], strides = [1, 1]} : vector<128x16xf32> to vector<1x16xf32>
    %38 = vector.broadcast %36 : vector<16x1xf32> to vector<16x16xf32>
    %39 = vector.broadcast %37 : vector<1x16xf32> to vector<16x16xf32>
    %40 = arith.addf %38, %39 : vector<16x16xf32>
    %c0_17 = arith.constant 0 : index
    %c2 = arith.constant 2 : index
    %41 = memref.load %arg8[%c0_17, %c2] : memref<4x32xf32, #tpu.memory_space<smem>>
    %cst_18 = arith.constant 0.000000e+00 : f32
    %42 = vector.broadcast %cst_18 : f32 to vector<16x16xf32>
    %43 = arith.maximumf %40, %42 : vector<16x16xf32>
    %44 = vector.broadcast %41 : f32 to vector<16x16xf32>
    %45 = arith.mulf %44, %43 : vector<16x16xf32>
    %46 = arith.addf %35, %45 : vector<16x16xf32>
    %47 = vector.extract_strided_slice %9 {offsets = [0, 3], sizes = [16, 1], strides = [1, 1]} : vector<16x128xf32> to vector<16x1xf32>
    %48 = vector.extract_strided_slice %7 {offsets = [3, 0], sizes = [1, 16], strides = [1, 1]} : vector<128x16xf32> to vector<1x16xf32>
    %49 = vector.broadcast %47 : vector<16x1xf32> to vector<16x16xf32>
    %50 = vector.broadcast %48 : vector<1x16xf32> to vector<16x16xf32>
    %51 = arith.addf %49, %50 : vector<16x16xf32>
    %c0_19 = arith.constant 0 : index
    %c3 = arith.constant 3 : index
    %52 = memref.load %arg8[%c0_19, %c3] : memref<4x32xf32, #tpu.memory_space<smem>>
    %cst_20 = arith.constant 0.000000e+00 : f32
    %53 = vector.broadcast %cst_20 : f32 to vector<16x16xf32>
    %54 = arith.maximumf %51, %53 : vector<16x16xf32>
    %55 = vector.broadcast %52 : f32 to vector<16x16xf32>
    %56 = arith.mulf %55, %54 : vector<16x16xf32>
    %57 = arith.addf %46, %56 : vector<16x16xf32>
    %58 = vector.extract_strided_slice %9 {offsets = [0, 4], sizes = [16, 1], strides = [1, 1]} : vector<16x128xf32> to vector<16x1xf32>
    %59 = vector.extract_strided_slice %7 {offsets = [4, 0], sizes = [1, 16], strides = [1, 1]} : vector<128x16xf32> to vector<1x16xf32>
    %60 = vector.broadcast %58 : vector<16x1xf32> to vector<16x16xf32>
    %61 = vector.broadcast %59 : vector<1x16xf32> to vector<16x16xf32>
    %62 = arith.addf %60, %61 : vector<16x16xf32>
    %c0_21 = arith.constant 0 : index
    %c4 = arith.constant 4 : index
    %63 = memref.load %arg8[%c0_21, %c4] : memref<4x32xf32, #tpu.memory_space<smem>>
    %cst_22 = arith.constant 0.000000e+00 : f32
    %64 = vector.broadcast %cst_22 : f32 to vector<16x16xf32>
    %65 = arith.maximumf %62, %64 : vector<16x16xf32>
    %66 = vector.broadcast %63 : f32 to vector<16x16xf32>
    %67 = arith.mulf %66, %65 : vector<16x16xf32>
    %68 = arith.addf %57, %67 : vector<16x16xf32>
    %69 = vector.extract_strided_slice %9 {offsets = [0, 5], sizes = [16, 1], strides = [1, 1]} : vector<16x128xf32> to vector<16x1xf32>
    %70 = vector.extract_strided_slice %7 {offsets = [5, 0], sizes = [1, 16], strides = [1, 1]} : vector<128x16xf32> to vector<1x16xf32>
    %71 = vector.broadcast %69 : vector<16x1xf32> to vector<16x16xf32>
    %72 = vector.broadcast %70 : vector<1x16xf32> to vector<16x16xf32>
    %73 = arith.addf %71, %72 : vector<16x16xf32>
    %c0_23 = arith.constant 0 : index
    %c5 = arith.constant 5 : index
    %74 = memref.load %arg8[%c0_23, %c5] : memref<4x32xf32, #tpu.memory_space<smem>>
    %cst_24 = arith.constant 0.000000e+00 : f32
    %75 = vector.broadcast %cst_24 : f32 to vector<16x16xf32>
    %76 = arith.maximumf %73, %75 : vector<16x16xf32>
    %77 = vector.broadcast %74 : f32 to vector<16x16xf32>
    %78 = arith.mulf %77, %76 : vector<16x16xf32>
    %79 = arith.addf %68, %78 : vector<16x16xf32>
    %80 = vector.extract_strided_slice %9 {offsets = [0, 6], sizes = [16, 1], strides = [1, 1]} : vector<16x128xf32> to vector<16x1xf32>
    %81 = vector.extract_strided_slice %7 {offsets = [6, 0], sizes = [1, 16], strides = [1, 1]} : vector<128x16xf32> to vector<1x16xf32>
    %82 = vector.broadcast %80 : vector<16x1xf32> to vector<16x16xf32>
    %83 = vector.broadcast %81 : vector<1x16xf32> to vector<16x16xf32>
    %84 = arith.addf %82, %83 : vector<16x16xf32>
    %c0_25 = arith.constant 0 : index
    %c6 = arith.constant 6 : index
    %85 = memref.load %arg8[%c0_25, %c6] : memref<4x32xf32, #tpu.memory_space<smem>>
    %cst_26 = arith.constant 0.000000e+00 : f32
    %86 = vector.broadcast %cst_26 : f32 to vector<16x16xf32>
    %87 = arith.maximumf %84, %86 : vector<16x16xf32>
    %88 = vector.broadcast %85 : f32 to vector<16x16xf32>
    %89 = arith.mulf %88, %87 : vector<16x16xf32>
    %90 = arith.addf %79, %89 : vector<16x16xf32>
    %91 = vector.extract_strided_slice %9 {offsets = [0, 7], sizes = [16, 1], strides = [1, 1]} : vector<16x128xf32> to vector<16x1xf32>
    %92 = vector.extract_strided_slice %7 {offsets = [7, 0], sizes = [1, 16], strides = [1, 1]} : vector<128x16xf32> to vector<1x16xf32>
    %93 = vector.broadcast %91 : vector<16x1xf32> to vector<16x16xf32>
    %94 = vector.broadcast %92 : vector<1x16xf32> to vector<16x16xf32>
    %95 = arith.addf %93, %94 : vector<16x16xf32>
    %c0_27 = arith.constant 0 : index
    %c7 = arith.constant 7 : index
    %96 = memref.load %arg8[%c0_27, %c7] : memref<4x32xf32, #tpu.memory_space<smem>>
    %cst_28 = arith.constant 0.000000e+00 : f32
    %97 = vector.broadcast %cst_28 : f32 to vector<16x16xf32>
    %98 = arith.maximumf %95, %97 : vector<16x16xf32>
    %99 = vector.broadcast %96 : f32 to vector<16x16xf32>
    %100 = arith.mulf %99, %98 : vector<16x16xf32>
    %101 = arith.addf %90, %100 : vector<16x16xf32>
    %102 = vector.extract_strided_slice %9 {offsets = [0, 8], sizes = [16, 1], strides = [1, 1]} : vector<16x128xf32> to vector<16x1xf32>
    %103 = vector.extract_strided_slice %7 {offsets = [8, 0], sizes = [1, 16], strides = [1, 1]} : vector<128x16xf32> to vector<1x16xf32>
    %104 = vector.broadcast %102 : vector<16x1xf32> to vector<16x16xf32>
    %105 = vector.broadcast %103 : vector<1x16xf32> to vector<16x16xf32>
    %106 = arith.addf %104, %105 : vector<16x16xf32>
    %c0_29 = arith.constant 0 : index
    %c8 = arith.constant 8 : index
    %107 = memref.load %arg8[%c0_29, %c8] : memref<4x32xf32, #tpu.memory_space<smem>>
    %cst_30 = arith.constant 0.000000e+00 : f32
    %108 = vector.broadcast %cst_30 : f32 to vector<16x16xf32>
    %109 = arith.maximumf %106, %108 : vector<16x16xf32>
    %110 = vector.broadcast %107 : f32 to vector<16x16xf32>
    %111 = arith.mulf %110, %109 : vector<16x16xf32>
    %112 = arith.addf %101, %111 : vector<16x16xf32>
    %113 = vector.extract_strided_slice %9 {offsets = [0, 9], sizes = [16, 1], strides = [1, 1]} : vector<16x128xf32> to vector<16x1xf32>
    %114 = vector.extract_strided_slice %7 {offsets = [9, 0], sizes = [1, 16], strides = [1, 1]} : vector<128x16xf32> to vector<1x16xf32>
    %115 = vector.broadcast %113 : vector<16x1xf32> to vector<16x16xf32>
    %116 = vector.broadcast %114 : vector<1x16xf32> to vector<16x16xf32>
    %117 = arith.addf %115, %116 : vector<16x16xf32>
    %c0_31 = arith.constant 0 : index
    %c9 = arith.constant 9 : index
    %118 = memref.load %arg8[%c0_31, %c9] : memref<4x32xf32, #tpu.memory_space<smem>>
    %cst_32 = arith.constant 0.000000e+00 : f32
    %119 = vector.broadcast %cst_32 : f32 to vector<16x16xf32>
    %120 = arith.maximumf %117, %119 : vector<16x16xf32>
    %121 = vector.broadcast %118 : f32 to vector<16x16xf32>
    %122 = arith.mulf %121, %120 : vector<16x16xf32>
    %123 = arith.addf %112, %122 : vector<16x16xf32>
    %124 = vector.extract_strided_slice %9 {offsets = [0, 10], sizes = [16, 1], strides = [1, 1]} : vector<16x128xf32> to vector<16x1xf32>
    %125 = vector.extract_strided_slice %7 {offsets = [10, 0], sizes = [1, 16], strides = [1, 1]} : vector<128x16xf32> to vector<1x16xf32>
    %126 = vector.broadcast %124 : vector<16x1xf32> to vector<16x16xf32>
    %127 = vector.broadcast %125 : vector<1x16xf32> to vector<16x16xf32>
    %128 = arith.addf %126, %127 : vector<16x16xf32>
    %c0_33 = arith.constant 0 : index
    %c10 = arith.constant 10 : index
    %129 = memref.load %arg8[%c0_33, %c10] : memref<4x32xf32, #tpu.memory_space<smem>>
    %cst_34 = arith.constant 0.000000e+00 : f32
    %130 = vector.broadcast %cst_34 : f32 to vector<16x16xf32>
    %131 = arith.maximumf %128, %130 : vector<16x16xf32>
    %132 = vector.broadcast %129 : f32 to vector<16x16xf32>
    %133 = arith.mulf %132, %131 : vector<16x16xf32>
    %134 = arith.addf %123, %133 : vector<16x16xf32>
    %135 = vector.extract_strided_slice %9 {offsets = [0, 11], sizes = [16, 1], strides = [1, 1]} : vector<16x128xf32> to vector<16x1xf32>
    %136 = vector.extract_strided_slice %7 {offsets = [11, 0], sizes = [1, 16], strides = [1, 1]} : vector<128x16xf32> to vector<1x16xf32>
    %137 = vector.broadcast %135 : vector<16x1xf32> to vector<16x16xf32>
    %138 = vector.broadcast %136 : vector<1x16xf32> to vector<16x16xf32>
    %139 = arith.addf %137, %138 : vector<16x16xf32>
    %c0_35 = arith.constant 0 : index
    %c11 = arith.constant 11 : index
    %140 = memref.load %arg8[%c0_35, %c11] : memref<4x32xf32, #tpu.memory_space<smem>>
    %cst_36 = arith.constant 0.000000e+00 : f32
    %141 = vector.broadcast %cst_36 : f32 to vector<16x16xf32>
    %142 = arith.maximumf %139, %141 : vector<16x16xf32>
    %143 = vector.broadcast %140 : f32 to vector<16x16xf32>
    %144 = arith.mulf %143, %142 : vector<16x16xf32>
    %145 = arith.addf %134, %144 : vector<16x16xf32>
    %146 = vector.extract_strided_slice %9 {offsets = [0, 12], sizes = [16, 1], strides = [1, 1]} : vector<16x128xf32> to vector<16x1xf32>
    %147 = vector.extract_strided_slice %7 {offsets = [12, 0], sizes = [1, 16], strides = [1, 1]} : vector<128x16xf32> to vector<1x16xf32>
    %148 = vector.broadcast %146 : vector<16x1xf32> to vector<16x16xf32>
    %149 = vector.broadcast %147 : vector<1x16xf32> to vector<16x16xf32>
    %150 = arith.addf %148, %149 : vector<16x16xf32>
    %c0_37 = arith.constant 0 : index
    %c12 = arith.constant 12 : index
    %151 = memref.load %arg8[%c0_37, %c12] : memref<4x32xf32, #tpu.memory_space<smem>>
    %cst_38 = arith.constant 0.000000e+00 : f32
    %152 = vector.broadcast %cst_38 : f32 to vector<16x16xf32>
    %153 = arith.maximumf %150, %152 : vector<16x16xf32>
    %154 = vector.broadcast %151 : f32 to vector<16x16xf32>
    %155 = arith.mulf %154, %153 : vector<16x16xf32>
    %156 = arith.addf %145, %155 : vector<16x16xf32>
    %157 = vector.extract_strided_slice %9 {offsets = [0, 13], sizes = [16, 1], strides = [1, 1]} : vector<16x128xf32> to vector<16x1xf32>
    %158 = vector.extract_strided_slice %7 {offsets = [13, 0], sizes = [1, 16], strides = [1, 1]} : vector<128x16xf32> to vector<1x16xf32>
    %159 = vector.broadcast %157 : vector<16x1xf32> to vector<16x16xf32>
    %160 = vector.broadcast %158 : vector<1x16xf32> to vector<16x16xf32>
    %161 = arith.addf %159, %160 : vector<16x16xf32>
    %c0_39 = arith.constant 0 : index
    %c13 = arith.constant 13 : index
    %162 = memref.load %arg8[%c0_39, %c13] : memref<4x32xf32, #tpu.memory_space<smem>>
    %cst_40 = arith.constant 0.000000e+00 : f32
    %163 = vector.broadcast %cst_40 : f32 to vector<16x16xf32>
    %164 = arith.maximumf %161, %163 : vector<16x16xf32>
    %165 = vector.broadcast %162 : f32 to vector<16x16xf32>
    %166 = arith.mulf %165, %164 : vector<16x16xf32>
    %167 = arith.addf %156, %166 : vector<16x16xf32>
    %168 = vector.extract_strided_slice %9 {offsets = [0, 14], sizes = [16, 1], strides = [1, 1]} : vector<16x128xf32> to vector<16x1xf32>
    %169 = vector.extract_strided_slice %7 {offsets = [14, 0], sizes = [1, 16], strides = [1, 1]} : vector<128x16xf32> to vector<1x16xf32>
    %170 = vector.broadcast %168 : vector<16x1xf32> to vector<16x16xf32>
    %171 = vector.broadcast %169 : vector<1x16xf32> to vector<16x16xf32>
    %172 = arith.addf %170, %171 : vector<16x16xf32>
    %c0_41 = arith.constant 0 : index
    %c14 = arith.constant 14 : index
    %173 = memref.load %arg8[%c0_41, %c14] : memref<4x32xf32, #tpu.memory_space<smem>>
    %cst_42 = arith.constant 0.000000e+00 : f32
    %174 = vector.broadcast %cst_42 : f32 to vector<16x16xf32>
    %175 = arith.maximumf %172, %174 : vector<16x16xf32>
    %176 = vector.broadcast %173 : f32 to vector<16x16xf32>
    %177 = arith.mulf %176, %175 : vector<16x16xf32>
    %178 = arith.addf %167, %177 : vector<16x16xf32>
    %179 = vector.extract_strided_slice %9 {offsets = [0, 15], sizes = [16, 1], strides = [1, 1]} : vector<16x128xf32> to vector<16x1xf32>
    %180 = vector.extract_strided_slice %7 {offsets = [15, 0], sizes = [1, 16], strides = [1, 1]} : vector<128x16xf32> to vector<1x16xf32>
    %181 = vector.broadcast %179 : vector<16x1xf32> to vector<16x16xf32>
    %182 = vector.broadcast %180 : vector<1x16xf32> to vector<16x16xf32>
    %183 = arith.addf %181, %182 : vector<16x16xf32>
    %c0_43 = arith.constant 0 : index
    %c15 = arith.constant 15 : index
    %184 = memref.load %arg8[%c0_43, %c15] : memref<4x32xf32, #tpu.memory_space<smem>>
    %cst_44 = arith.constant 0.000000e+00 : f32
    %185 = vector.broadcast %cst_44 : f32 to vector<16x16xf32>
    %186 = arith.maximumf %183, %185 : vector<16x16xf32>
    %187 = vector.broadcast %184 : f32 to vector<16x16xf32>
    %188 = arith.mulf %187, %186 : vector<16x16xf32>
    %189 = arith.addf %178, %188 : vector<16x16xf32>
    %190 = vector.extract_strided_slice %9 {offsets = [0, 16], sizes = [16, 1], strides = [1, 1]} : vector<16x128xf32> to vector<16x1xf32>
    %191 = vector.extract_strided_slice %7 {offsets = [16, 0], sizes = [1, 16], strides = [1, 1]} : vector<128x16xf32> to vector<1x16xf32>
    %192 = vector.broadcast %190 : vector<16x1xf32> to vector<16x16xf32>
    %193 = vector.broadcast %191 : vector<1x16xf32> to vector<16x16xf32>
    %194 = arith.addf %192, %193 : vector<16x16xf32>
    %c0_45 = arith.constant 0 : index
    %c16 = arith.constant 16 : index
    %195 = memref.load %arg8[%c0_45, %c16] : memref<4x32xf32, #tpu.memory_space<smem>>
    %cst_46 = arith.constant 0.000000e+00 : f32
    %196 = vector.broadcast %cst_46 : f32 to vector<16x16xf32>
    %197 = arith.maximumf %194, %196 : vector<16x16xf32>
    %198 = vector.broadcast %195 : f32 to vector<16x16xf32>
    %199 = arith.mulf %198, %197 : vector<16x16xf32>
    %200 = arith.addf %189, %199 : vector<16x16xf32>
    %201 = vector.extract_strided_slice %9 {offsets = [0, 17], sizes = [16, 1], strides = [1, 1]} : vector<16x128xf32> to vector<16x1xf32>
    %202 = vector.extract_strided_slice %7 {offsets = [17, 0], sizes = [1, 16], strides = [1, 1]} : vector<128x16xf32> to vector<1x16xf32>
    %203 = vector.broadcast %201 : vector<16x1xf32> to vector<16x16xf32>
    %204 = vector.broadcast %202 : vector<1x16xf32> to vector<16x16xf32>
    %205 = arith.addf %203, %204 : vector<16x16xf32>
    %c0_47 = arith.constant 0 : index
    %c17 = arith.constant 17 : index
    %206 = memref.load %arg8[%c0_47, %c17] : memref<4x32xf32, #tpu.memory_space<smem>>
    %cst_48 = arith.constant 0.000000e+00 : f32
    %207 = vector.broadcast %cst_48 : f32 to vector<16x16xf32>
    %208 = arith.maximumf %205, %207 : vector<16x16xf32>
    %209 = vector.broadcast %206 : f32 to vector<16x16xf32>
    %210 = arith.mulf %209, %208 : vector<16x16xf32>
    %211 = arith.addf %200, %210 : vector<16x16xf32>
    %212 = vector.extract_strided_slice %9 {offsets = [0, 18], sizes = [16, 1], strides = [1, 1]} : vector<16x128xf32> to vector<16x1xf32>
    %213 = vector.extract_strided_slice %7 {offsets = [18, 0], sizes = [1, 16], strides = [1, 1]} : vector<128x16xf32> to vector<1x16xf32>
    %214 = vector.broadcast %212 : vector<16x1xf32> to vector<16x16xf32>
    %215 = vector.broadcast %213 : vector<1x16xf32> to vector<16x16xf32>
    %216 = arith.addf %214, %215 : vector<16x16xf32>
    %c0_49 = arith.constant 0 : index
    %c18 = arith.constant 18 : index
    %217 = memref.load %arg8[%c0_49, %c18] : memref<4x32xf32, #tpu.memory_space<smem>>
    %cst_50 = arith.constant 0.000000e+00 : f32
    %218 = vector.broadcast %cst_50 : f32 to vector<16x16xf32>
    %219 = arith.maximumf %216, %218 : vector<16x16xf32>
    %220 = vector.broadcast %217 : f32 to vector<16x16xf32>
    %221 = arith.mulf %220, %219 : vector<16x16xf32>
    %222 = arith.addf %211, %221 : vector<16x16xf32>
    %223 = vector.extract_strided_slice %9 {offsets = [0, 19], sizes = [16, 1], strides = [1, 1]} : vector<16x128xf32> to vector<16x1xf32>
    %224 = vector.extract_strided_slice %7 {offsets = [19, 0], sizes = [1, 16], strides = [1, 1]} : vector<128x16xf32> to vector<1x16xf32>
    %225 = vector.broadcast %223 : vector<16x1xf32> to vector<16x16xf32>
    %226 = vector.broadcast %224 : vector<1x16xf32> to vector<16x16xf32>
    %227 = arith.addf %225, %226 : vector<16x16xf32>
    %c0_51 = arith.constant 0 : index
    %c19 = arith.constant 19 : index
    %228 = memref.load %arg8[%c0_51, %c19] : memref<4x32xf32, #tpu.memory_space<smem>>
    %cst_52 = arith.constant 0.000000e+00 : f32
    %229 = vector.broadcast %cst_52 : f32 to vector<16x16xf32>
    %230 = arith.maximumf %227, %229 : vector<16x16xf32>
    %231 = vector.broadcast %228 : f32 to vector<16x16xf32>
    %232 = arith.mulf %231, %230 : vector<16x16xf32>
    %233 = arith.addf %222, %232 : vector<16x16xf32>
    %234 = vector.extract_strided_slice %9 {offsets = [0, 20], sizes = [16, 1], strides = [1, 1]} : vector<16x128xf32> to vector<16x1xf32>
    %235 = vector.extract_strided_slice %7 {offsets = [20, 0], sizes = [1, 16], strides = [1, 1]} : vector<128x16xf32> to vector<1x16xf32>
    %236 = vector.broadcast %234 : vector<16x1xf32> to vector<16x16xf32>
    %237 = vector.broadcast %235 : vector<1x16xf32> to vector<16x16xf32>
    %238 = arith.addf %236, %237 : vector<16x16xf32>
    %c0_53 = arith.constant 0 : index
    %c20 = arith.constant 20 : index
    %239 = memref.load %arg8[%c0_53, %c20] : memref<4x32xf32, #tpu.memory_space<smem>>
    %cst_54 = arith.constant 0.000000e+00 : f32
    %240 = vector.broadcast %cst_54 : f32 to vector<16x16xf32>
    %241 = arith.maximumf %238, %240 : vector<16x16xf32>
    %242 = vector.broadcast %239 : f32 to vector<16x16xf32>
    %243 = arith.mulf %242, %241 : vector<16x16xf32>
    %244 = arith.addf %233, %243 : vector<16x16xf32>
    %245 = vector.extract_strided_slice %9 {offsets = [0, 21], sizes = [16, 1], strides = [1, 1]} : vector<16x128xf32> to vector<16x1xf32>
    %246 = vector.extract_strided_slice %7 {offsets = [21, 0], sizes = [1, 16], strides = [1, 1]} : vector<128x16xf32> to vector<1x16xf32>
    %247 = vector.broadcast %245 : vector<16x1xf32> to vector<16x16xf32>
    %248 = vector.broadcast %246 : vector<1x16xf32> to vector<16x16xf32>
    %249 = arith.addf %247, %248 : vector<16x16xf32>
    %c0_55 = arith.constant 0 : index
    %c21 = arith.constant 21 : index
    %250 = memref.load %arg8[%c0_55, %c21] : memref<4x32xf32, #tpu.memory_space<smem>>
    %cst_56 = arith.constant 0.000000e+00 : f32
    %251 = vector.broadcast %cst_56 : f32 to vector<16x16xf32>
    %252 = arith.maximumf %249, %251 : vector<16x16xf32>
    %253 = vector.broadcast %250 : f32 to vector<16x16xf32>
    %254 = arith.mulf %253, %252 : vector<16x16xf32>
    %255 = arith.addf %244, %254 : vector<16x16xf32>
    %256 = vector.extract_strided_slice %9 {offsets = [0, 22], sizes = [16, 1], strides = [1, 1]} : vector<16x128xf32> to vector<16x1xf32>
    %257 = vector.extract_strided_slice %7 {offsets = [22, 0], sizes = [1, 16], strides = [1, 1]} : vector<128x16xf32> to vector<1x16xf32>
    %258 = vector.broadcast %256 : vector<16x1xf32> to vector<16x16xf32>
    %259 = vector.broadcast %257 : vector<1x16xf32> to vector<16x16xf32>
    %260 = arith.addf %258, %259 : vector<16x16xf32>
    %c0_57 = arith.constant 0 : index
    %c22 = arith.constant 22 : index
    %261 = memref.load %arg8[%c0_57, %c22] : memref<4x32xf32, #tpu.memory_space<smem>>
    %cst_58 = arith.constant 0.000000e+00 : f32
    %262 = vector.broadcast %cst_58 : f32 to vector<16x16xf32>
    %263 = arith.maximumf %260, %262 : vector<16x16xf32>
    %264 = vector.broadcast %261 : f32 to vector<16x16xf32>
    %265 = arith.mulf %264, %263 : vector<16x16xf32>
    %266 = arith.addf %255, %265 : vector<16x16xf32>
    %267 = vector.extract_strided_slice %9 {offsets = [0, 23], sizes = [16, 1], strides = [1, 1]} : vector<16x128xf32> to vector<16x1xf32>
    %268 = vector.extract_strided_slice %7 {offsets = [23, 0], sizes = [1, 16], strides = [1, 1]} : vector<128x16xf32> to vector<1x16xf32>
    %269 = vector.broadcast %267 : vector<16x1xf32> to vector<16x16xf32>
    %270 = vector.broadcast %268 : vector<1x16xf32> to vector<16x16xf32>
    %271 = arith.addf %269, %270 : vector<16x16xf32>
    %c0_59 = arith.constant 0 : index
    %c23 = arith.constant 23 : index
    %272 = memref.load %arg8[%c0_59, %c23] : memref<4x32xf32, #tpu.memory_space<smem>>
    %cst_60 = arith.constant 0.000000e+00 : f32
    %273 = vector.broadcast %cst_60 : f32 to vector<16x16xf32>
    %274 = arith.maximumf %271, %273 : vector<16x16xf32>
    %275 = vector.broadcast %272 : f32 to vector<16x16xf32>
    %276 = arith.mulf %275, %274 : vector<16x16xf32>
    %277 = arith.addf %266, %276 : vector<16x16xf32>
    %278 = vector.extract_strided_slice %9 {offsets = [0, 24], sizes = [16, 1], strides = [1, 1]} : vector<16x128xf32> to vector<16x1xf32>
    %279 = vector.extract_strided_slice %7 {offsets = [24, 0], sizes = [1, 16], strides = [1, 1]} : vector<128x16xf32> to vector<1x16xf32>
    %280 = vector.broadcast %278 : vector<16x1xf32> to vector<16x16xf32>
    %281 = vector.broadcast %279 : vector<1x16xf32> to vector<16x16xf32>
    %282 = arith.addf %280, %281 : vector<16x16xf32>
    %c0_61 = arith.constant 0 : index
    %c24 = arith.constant 24 : index
    %283 = memref.load %arg8[%c0_61, %c24] : memref<4x32xf32, #tpu.memory_space<smem>>
    %cst_62 = arith.constant 0.000000e+00 : f32
    %284 = vector.broadcast %cst_62 : f32 to vector<16x16xf32>
    %285 = arith.maximumf %282, %284 : vector<16x16xf32>
    %286 = vector.broadcast %283 : f32 to vector<16x16xf32>
    %287 = arith.mulf %286, %285 : vector<16x16xf32>
    %288 = arith.addf %277, %287 : vector<16x16xf32>
    %289 = vector.extract_strided_slice %9 {offsets = [0, 25], sizes = [16, 1], strides = [1, 1]} : vector<16x128xf32> to vector<16x1xf32>
    %290 = vector.extract_strided_slice %7 {offsets = [25, 0], sizes = [1, 16], strides = [1, 1]} : vector<128x16xf32> to vector<1x16xf32>
    %291 = vector.broadcast %289 : vector<16x1xf32> to vector<16x16xf32>
    %292 = vector.broadcast %290 : vector<1x16xf32> to vector<16x16xf32>
    %293 = arith.addf %291, %292 : vector<16x16xf32>
    %c0_63 = arith.constant 0 : index
    %c25 = arith.constant 25 : index
    %294 = memref.load %arg8[%c0_63, %c25] : memref<4x32xf32, #tpu.memory_space<smem>>
    %cst_64 = arith.constant 0.000000e+00 : f32
    %295 = vector.broadcast %cst_64 : f32 to vector<16x16xf32>
    %296 = arith.maximumf %293, %295 : vector<16x16xf32>
    %297 = vector.broadcast %294 : f32 to vector<16x16xf32>
    %298 = arith.mulf %297, %296 : vector<16x16xf32>
    %299 = arith.addf %288, %298 : vector<16x16xf32>
    %300 = vector.extract_strided_slice %9 {offsets = [0, 26], sizes = [16, 1], strides = [1, 1]} : vector<16x128xf32> to vector<16x1xf32>
    %301 = vector.extract_strided_slice %7 {offsets = [26, 0], sizes = [1, 16], strides = [1, 1]} : vector<128x16xf32> to vector<1x16xf32>
    %302 = vector.broadcast %300 : vector<16x1xf32> to vector<16x16xf32>
    %303 = vector.broadcast %301 : vector<1x16xf32> to vector<16x16xf32>
    %304 = arith.addf %302, %303 : vector<16x16xf32>
    %c0_65 = arith.constant 0 : index
    %c26 = arith.constant 26 : index
    %305 = memref.load %arg8[%c0_65, %c26] : memref<4x32xf32, #tpu.memory_space<smem>>
    %cst_66 = arith.constant 0.000000e+00 : f32
    %306 = vector.broadcast %cst_66 : f32 to vector<16x16xf32>
    %307 = arith.maximumf %304, %306 : vector<16x16xf32>
    %308 = vector.broadcast %305 : f32 to vector<16x16xf32>
    %309 = arith.mulf %308, %307 : vector<16x16xf32>
    %310 = arith.addf %299, %309 : vector<16x16xf32>
    %311 = vector.extract_strided_slice %9 {offsets = [0, 27], sizes = [16, 1], strides = [1, 1]} : vector<16x128xf32> to vector<16x1xf32>
    %312 = vector.extract_strided_slice %7 {offsets = [27, 0], sizes = [1, 16], strides = [1, 1]} : vector<128x16xf32> to vector<1x16xf32>
    %313 = vector.broadcast %311 : vector<16x1xf32> to vector<16x16xf32>
    %314 = vector.broadcast %312 : vector<1x16xf32> to vector<16x16xf32>
    %315 = arith.addf %313, %314 : vector<16x16xf32>
    %c0_67 = arith.constant 0 : index
    %c27 = arith.constant 27 : index
    %316 = memref.load %arg8[%c0_67, %c27] : memref<4x32xf32, #tpu.memory_space<smem>>
    %cst_68 = arith.constant 0.000000e+00 : f32
    %317 = vector.broadcast %cst_68 : f32 to vector<16x16xf32>
    %318 = arith.maximumf %315, %317 : vector<16x16xf32>
    %319 = vector.broadcast %316 : f32 to vector<16x16xf32>
    %320 = arith.mulf %319, %318 : vector<16x16xf32>
    %321 = arith.addf %310, %320 : vector<16x16xf32>
    %322 = vector.extract_strided_slice %9 {offsets = [0, 28], sizes = [16, 1], strides = [1, 1]} : vector<16x128xf32> to vector<16x1xf32>
    %323 = vector.extract_strided_slice %7 {offsets = [28, 0], sizes = [1, 16], strides = [1, 1]} : vector<128x16xf32> to vector<1x16xf32>
    %324 = vector.broadcast %322 : vector<16x1xf32> to vector<16x16xf32>
    %325 = vector.broadcast %323 : vector<1x16xf32> to vector<16x16xf32>
    %326 = arith.addf %324, %325 : vector<16x16xf32>
    %c0_69 = arith.constant 0 : index
    %c28 = arith.constant 28 : index
    %327 = memref.load %arg8[%c0_69, %c28] : memref<4x32xf32, #tpu.memory_space<smem>>
    %cst_70 = arith.constant 0.000000e+00 : f32
    %328 = vector.broadcast %cst_70 : f32 to vector<16x16xf32>
    %329 = arith.maximumf %326, %328 : vector<16x16xf32>
    %330 = vector.broadcast %327 : f32 to vector<16x16xf32>
    %331 = arith.mulf %330, %329 : vector<16x16xf32>
    %332 = arith.addf %321, %331 : vector<16x16xf32>
    %333 = vector.extract_strided_slice %9 {offsets = [0, 29], sizes = [16, 1], strides = [1, 1]} : vector<16x128xf32> to vector<16x1xf32>
    %334 = vector.extract_strided_slice %7 {offsets = [29, 0], sizes = [1, 16], strides = [1, 1]} : vector<128x16xf32> to vector<1x16xf32>
    %335 = vector.broadcast %333 : vector<16x1xf32> to vector<16x16xf32>
    %336 = vector.broadcast %334 : vector<1x16xf32> to vector<16x16xf32>
    %337 = arith.addf %335, %336 : vector<16x16xf32>
    %c0_71 = arith.constant 0 : index
    %c29 = arith.constant 29 : index
    %338 = memref.load %arg8[%c0_71, %c29] : memref<4x32xf32, #tpu.memory_space<smem>>
    %cst_72 = arith.constant 0.000000e+00 : f32
    %339 = vector.broadcast %cst_72 : f32 to vector<16x16xf32>
    %340 = arith.maximumf %337, %339 : vector<16x16xf32>
    %341 = vector.broadcast %338 : f32 to vector<16x16xf32>
    %342 = arith.mulf %341, %340 : vector<16x16xf32>
    %343 = arith.addf %332, %342 : vector<16x16xf32>
    %344 = vector.extract_strided_slice %9 {offsets = [0, 30], sizes = [16, 1], strides = [1, 1]} : vector<16x128xf32> to vector<16x1xf32>
    %345 = vector.extract_strided_slice %7 {offsets = [30, 0], sizes = [1, 16], strides = [1, 1]} : vector<128x16xf32> to vector<1x16xf32>
    %346 = vector.broadcast %344 : vector<16x1xf32> to vector<16x16xf32>
    %347 = vector.broadcast %345 : vector<1x16xf32> to vector<16x16xf32>
    %348 = arith.addf %346, %347 : vector<16x16xf32>
    %c0_73 = arith.constant 0 : index
    %c30 = arith.constant 30 : index
    %349 = memref.load %arg8[%c0_73, %c30] : memref<4x32xf32, #tpu.memory_space<smem>>
    %cst_74 = arith.constant 0.000000e+00 : f32
    %350 = vector.broadcast %cst_74 : f32 to vector<16x16xf32>
    %351 = arith.maximumf %348, %350 : vector<16x16xf32>
    %352 = vector.broadcast %349 : f32 to vector<16x16xf32>
    %353 = arith.mulf %352, %351 : vector<16x16xf32>
    %354 = arith.addf %343, %353 : vector<16x16xf32>
    %355 = vector.extract_strided_slice %9 {offsets = [0, 31], sizes = [16, 1], strides = [1, 1]} : vector<16x128xf32> to vector<16x1xf32>
    %356 = vector.extract_strided_slice %7 {offsets = [31, 0], sizes = [1, 16], strides = [1, 1]} : vector<128x16xf32> to vector<1x16xf32>
    %357 = vector.broadcast %355 : vector<16x1xf32> to vector<16x16xf32>
    %358 = vector.broadcast %356 : vector<1x16xf32> to vector<16x16xf32>
    %359 = arith.addf %357, %358 : vector<16x16xf32>
    %c0_75 = arith.constant 0 : index
    %c31 = arith.constant 31 : index
    %360 = memref.load %arg8[%c0_75, %c31] : memref<4x32xf32, #tpu.memory_space<smem>>
    %cst_76 = arith.constant 0.000000e+00 : f32
    %361 = vector.broadcast %cst_76 : f32 to vector<16x16xf32>
    %362 = arith.maximumf %359, %361 : vector<16x16xf32>
    %363 = vector.broadcast %360 : f32 to vector<16x16xf32>
    %364 = arith.mulf %363, %362 : vector<16x16xf32>
    %365 = arith.addf %354, %364 : vector<16x16xf32>
    %366 = vector.extract_strided_slice %11 {offsets = [0, 0], sizes = [16, 1], strides = [1, 1]} : vector<16x4xf32> to vector<16x1xf32>
    %367 = vector.extract_strided_slice %10 {offsets = [0, 0], sizes = [1, 16], strides = [1, 1]} : vector<4x16xf32> to vector<1x16xf32>
    %368 = vector.broadcast %366 : vector<16x1xf32> to vector<16x16xf32>
    %369 = vector.broadcast %367 : vector<1x16xf32> to vector<16x16xf32>
    %370 = arith.addf %368, %369 : vector<16x16xf32>
    %cst_77 = arith.constant 2.000000e-01 : f32
    %371 = vector.broadcast %cst_77 : f32 to vector<16x16xf32>
    %372 = arith.mulf %371, %370 : vector<16x16xf32>
    %cst_78 = arith.constant 8.000000e-01 : f32
    %373 = vector.broadcast %cst_78 : f32 to vector<16x16xf32>
    %374 = arith.mulf %373, %365 : vector<16x16xf32>
    %375 = arith.addf %372, %374 : vector<16x16xf32>
    %cst_79 = arith.constant -1.000000e+30 : f32
    %376 = vector.broadcast %cst_79 : f32 to vector<16x16xf32>
    %377 = arith.select %5, %375, %376 : vector<16x16xi1>, vector<16x16xf32>
    %c0_80 = arith.constant 0 : index
    %c0_81 = arith.constant 0 : index
    %378 = vector.load %arg11[%c0_80, %c0_81] : memref<16x4xf32, #tpu.memory_space<vmem>>, vector<16x1xf32>
    %cst_82 = arith.constant dense<0xFF800000> : vector<16xf32>
    %379 = vector.multi_reduction <maximumf>, %377, %cst_82 [1] : vector<16x16xf32> to vector<16xf32>
    %380 = vector.shape_cast %379 : vector<16xf32> to vector<16x1xf32>
    %381 = arith.maximumf %378, %380 : vector<16x1xf32>
    %382 = arith.subf %378, %381 : vector<16x1xf32>
    %383 = math.exp %382 : vector<16x1xf32>
    %384 = vector.broadcast %381 : vector<16x1xf32> to vector<16x16xf32>
    %385 = arith.subf %377, %384 : vector<16x16xf32>
    %386 = math.exp %385 : vector<16x16xf32>
    %cst_83 = arith.constant 0.000000e+00 : f32
    %387 = vector.broadcast %cst_83 : f32 to vector<16x16xf32>
    %388 = arith.select %5, %386, %387 : vector<16x16xi1>, vector<16x16xf32>
    %c0_84 = arith.constant 0 : index
    %c0_85 = arith.constant 0 : index
    %389 = vector.load %arg12[%c0_84, %c0_85] : memref<16x4xf32, #tpu.memory_space<vmem>>, vector<16x1xf32>
    %390 = arith.mulf %383, %389 : vector<16x1xf32>
    %cst_86 = arith.constant dense<0.000000e+00> : vector<16xf32>
    %391 = vector.multi_reduction <add>, %388, %cst_86 [1] : vector<16x16xf32> to vector<16xf32>
    %392 = vector.shape_cast %391 : vector<16xf32> to vector<16x1xf32>
    %393 = arith.addf %390, %392 : vector<16x1xf32>
    %c0_87 = arith.constant 0 : index
    %c0_88 = arith.constant 0 : index
    %394 = vector.load %arg12[%c0_87, %c0_88] : memref<16x4xf32, #tpu.memory_space<vmem>>, vector<16x1xf32>
    tpu.vector_store %arg12[%c0_87, %c0_88], %393 {strides = array<i32>} : memref<16x4xf32, #tpu.memory_space<vmem>>, vector<16x1xf32>,
    %c0_89 = arith.constant 0 : index
    %c0_90 = arith.constant 0 : index
    %395 = vector.load %arg13[%c0_89, %c0_90] : memref<16x128xf32, #tpu.memory_space<vmem>>, vector<16x32xf32>
    %396 = vector.broadcast %383 : vector<16x1xf32> to vector<16x32xf32>
    %397 = arith.mulf %396, %395 : vector<16x32xf32>
    %398 = arith.truncf %388 : vector<16x16xf32> to vector<16x16xbf16>
    %399 = vector.extract_strided_slice %12 {offsets = [0, 0], sizes = [16, 32], strides = [1, 1]} : vector<16x128xbf16> to vector<16x32xbf16>
    %cst_91 = arith.constant dense<0.000000e+00> : vector<16x32xf32>
    %400 = tpu.matmul %398, %399, %cst_91 {dimension_numbers = #tpu.dot_dimension_numbers<[1], [0], [0], [1], [0, 0, 1, 1], [], []>} : vector<16x16xbf16>, vector<16x32xbf16>, vector<16x32xf32> -> vector<16x32xf32>
    %401 = arith.addf %397, %400 : vector<16x32xf32>
    %c0_92 = arith.constant 0 : index
    %c0_93 = arith.constant 0 : index
    %402 = vector.load %arg13[%c0_92, %c0_93] : memref<16x128xf32, #tpu.memory_space<vmem>>, vector<16x32xf32>
    tpu.vector_store %arg13[%c0_92, %c0_93], %401 {strides = array<i32>} : memref<16x128xf32, #tpu.memory_space<vmem>>, vector<16x32xf32>,
    %c0_94 = arith.constant 0 : index
    %c0_95 = arith.constant 0 : index
    %403 = vector.load %arg11[%c0_94, %c0_95] : memref<16x4xf32, #tpu.memory_space<vmem>>, vector<16x1xf32>
    tpu.vector_store %arg11[%c0_94, %c0_95], %381 {strides = array<i32>} : memref<16x4xf32, #tpu.memory_space<vmem>>, vector<16x1xf32>,
    %cst_96 = arith.constant 0.000000e+00 : f32
    %404 = vector.broadcast %cst_96 : f32 to vector<16x16xf32>
    %405 = vector.extract_strided_slice %9 {offsets = [0, 32], sizes = [16, 1], strides = [1, 1]} : vector<16x128xf32> to vector<16x1xf32>
    %406 = vector.extract_strided_slice %7 {offsets = [32, 0], sizes = [1, 16], strides = [1, 1]} : vector<128x16xf32> to vector<1x16xf32>
    %407 = vector.broadcast %405 : vector<16x1xf32> to vector<16x16xf32>
    %408 = vector.broadcast %406 : vector<1x16xf32> to vector<16x16xf32>
    %409 = arith.addf %407, %408 : vector<16x16xf32>
    %c1_97 = arith.constant 1 : index
    %c0_98 = arith.constant 0 : index
    %410 = memref.load %arg8[%c1_97, %c0_98] : memref<4x32xf32, #tpu.memory_space<smem>>
    %cst_99 = arith.constant 0.000000e+00 : f32
    %411 = vector.broadcast %cst_99 : f32 to vector<16x16xf32>
    %412 = arith.maximumf %409, %411 : vector<16x16xf32>
    %413 = vector.broadcast %410 : f32 to vector<16x16xf32>
    %414 = arith.mulf %413, %412 : vector<16x16xf32>
    %415 = arith.addf %404, %414 : vector<16x16xf32>
    %416 = vector.extract_strided_slice %9 {offsets = [0, 33], sizes = [16, 1], strides = [1, 1]} : vector<16x128xf32> to vector<16x1xf32>
    %417 = vector.extract_strided_slice %7 {offsets = [33, 0], sizes = [1, 16], strides = [1, 1]} : vector<128x16xf32> to vector<1x16xf32>
    %418 = vector.broadcast %416 : vector<16x1xf32> to vector<16x16xf32>
    %419 = vector.broadcast %417 : vector<1x16xf32> to vector<16x16xf32>
    %420 = arith.addf %418, %419 : vector<16x16xf32>
    %c1_100 = arith.constant 1 : index
    %c1_101 = arith.constant 1 : index
    %421 = memref.load %arg8[%c1_100, %c1_101] : memref<4x32xf32, #tpu.memory_space<smem>>
    %cst_102 = arith.constant 0.000000e+00 : f32
    %422 = vector.broadcast %cst_102 : f32 to vector<16x16xf32>
    %423 = arith.maximumf %420, %422 : vector<16x16xf32>
    %424 = vector.broadcast %421 : f32 to vector<16x16xf32>
    %425 = arith.mulf %424, %423 : vector<16x16xf32>
    %426 = arith.addf %415, %425 : vector<16x16xf32>
    %427 = vector.extract_strided_slice %9 {offsets = [0, 34], sizes = [16, 1], strides = [1, 1]} : vector<16x128xf32> to vector<16x1xf32>
    %428 = vector.extract_strided_slice %7 {offsets = [34, 0], sizes = [1, 16], strides = [1, 1]} : vector<128x16xf32> to vector<1x16xf32>
    %429 = vector.broadcast %427 : vector<16x1xf32> to vector<16x16xf32>
    %430 = vector.broadcast %428 : vector<1x16xf32> to vector<16x16xf32>
    %431 = arith.addf %429, %430 : vector<16x16xf32>
    %c1_103 = arith.constant 1 : index
    %c2_104 = arith.constant 2 : index
    %432 = memref.load %arg8[%c1_103, %c2_104] : memref<4x32xf32, #tpu.memory_space<smem>>
    %cst_105 = arith.constant 0.000000e+00 : f32
    %433 = vector.broadcast %cst_105 : f32 to vector<16x16xf32>
    %434 = arith.maximumf %431, %433 : vector<16x16xf32>
    %435 = vector.broadcast %432 : f32 to vector<16x16xf32>
    %436 = arith.mulf %435, %434 : vector<16x16xf32>
    %437 = arith.addf %426, %436 : vector<16x16xf32>
    %438 = vector.extract_strided_slice %9 {offsets = [0, 35], sizes = [16, 1], strides = [1, 1]} : vector<16x128xf32> to vector<16x1xf32>
    %439 = vector.extract_strided_slice %7 {offsets = [35, 0], sizes = [1, 16], strides = [1, 1]} : vector<128x16xf32> to vector<1x16xf32>
    %440 = vector.broadcast %438 : vector<16x1xf32> to vector<16x16xf32>
    %441 = vector.broadcast %439 : vector<1x16xf32> to vector<16x16xf32>
    %442 = arith.addf %440, %441 : vector<16x16xf32>
    %c1_106 = arith.constant 1 : index
    %c3_107 = arith.constant 3 : index
    %443 = memref.load %arg8[%c1_106, %c3_107] : memref<4x32xf32, #tpu.memory_space<smem>>
    %cst_108 = arith.constant 0.000000e+00 : f32
    %444 = vector.broadcast %cst_108 : f32 to vector<16x16xf32>
    %445 = arith.maximumf %442, %444 : vector<16x16xf32>
    %446 = vector.broadcast %443 : f32 to vector<16x16xf32>
    %447 = arith.mulf %446, %445 : vector<16x16xf32>
    %448 = arith.addf %437, %447 : vector<16x16xf32>
    %449 = vector.extract_strided_slice %9 {offsets = [0, 36], sizes = [16, 1], strides = [1, 1]} : vector<16x128xf32> to vector<16x1xf32>
    %450 = vector.extract_strided_slice %7 {offsets = [36, 0], sizes = [1, 16], strides = [1, 1]} : vector<128x16xf32> to vector<1x16xf32>
    %451 = vector.broadcast %449 : vector<16x1xf32> to vector<16x16xf32>
    %452 = vector.broadcast %450 : vector<1x16xf32> to vector<16x16xf32>
    %453 = arith.addf %451, %452 : vector<16x16xf32>
    %c1_109 = arith.constant 1 : index
    %c4_110 = arith.constant 4 : index
    %454 = memref.load %arg8[%c1_109, %c4_110] : memref<4x32xf32, #tpu.memory_space<smem>>
    %cst_111 = arith.constant 0.000000e+00 : f32
    %455 = vector.broadcast %cst_111 : f32 to vector<16x16xf32>
    %456 = arith.maximumf %453, %455 : vector<16x16xf32>
    %457 = vector.broadcast %454 : f32 to vector<16x16xf32>
    %458 = arith.mulf %457, %456 : vector<16x16xf32>
    %459 = arith.addf %448, %458 : vector<16x16xf32>
    %460 = vector.extract_strided_slice %9 {offsets = [0, 37], sizes = [16, 1], strides = [1, 1]} : vector<16x128xf32> to vector<16x1xf32>
    %461 = vector.extract_strided_slice %7 {offsets = [37, 0], sizes = [1, 16], strides = [1, 1]} : vector<128x16xf32> to vector<1x16xf32>
    %462 = vector.broadcast %460 : vector<16x1xf32> to vector<16x16xf32>
    %463 = vector.broadcast %461 : vector<1x16xf32> to vector<16x16xf32>
    %464 = arith.addf %462, %463 : vector<16x16xf32>
    %c1_112 = arith.constant 1 : index
    %c5_113 = arith.constant 5 : index
    %465 = memref.load %arg8[%c1_112, %c5_113] : memref<4x32xf32, #tpu.memory_space<smem>>
    %cst_114 = arith.constant 0.000000e+00 : f32
    %466 = vector.broadcast %cst_114 : f32 to vector<16x16xf32>
    %467 = arith.maximumf %464, %466 : vector<16x16xf32>
    %468 = vector.broadcast %465 : f32 to vector<16x16xf32>
    %469 = arith.mulf %468, %467 : vector<16x16xf32>
    %470 = arith.addf %459, %469 : vector<16x16xf32>
    %471 = vector.extract_strided_slice %9 {offsets = [0, 38], sizes = [16, 1], strides = [1, 1]} : vector<16x128xf32> to vector<16x1xf32>
    %472 = vector.extract_strided_slice %7 {offsets = [38, 0], sizes = [1, 16], strides = [1, 1]} : vector<128x16xf32> to vector<1x16xf32>
    %473 = vector.broadcast %471 : vector<16x1xf32> to vector<16x16xf32>
    %474 = vector.broadcast %472 : vector<1x16xf32> to vector<16x16xf32>
    %475 = arith.addf %473, %474 : vector<16x16xf32>
    %c1_115 = arith.constant 1 : index
    %c6_116 = arith.constant 6 : index
    %476 = memref.load %arg8[%c1_115, %c6_116] : memref<4x32xf32, #tpu.memory_space<smem>>
    %cst_117 = arith.constant 0.000000e+00 : f32
    %477 = vector.broadcast %cst_117 : f32 to vector<16x16xf32>
    %478 = arith.maximumf %475, %477 : vector<16x16xf32>
    %479 = vector.broadcast %476 : f32 to vector<16x16xf32>
    %480 = arith.mulf %479, %478 : vector<16x16xf32>
    %481 = arith.addf %470, %480 : vector<16x16xf32>
    %482 = vector.extract_strided_slice %9 {offsets = [0, 39], sizes = [16, 1], strides = [1, 1]} : vector<16x128xf32> to vector<16x1xf32>
    %483 = vector.extract_strided_slice %7 {offsets = [39, 0], sizes = [1, 16], strides = [1, 1]} : vector<128x16xf32> to vector<1x16xf32>
    %484 = vector.broadcast %482 : vector<16x1xf32> to vector<16x16xf32>
    %485 = vector.broadcast %483 : vector<1x16xf32> to vector<16x16xf32>
    %486 = arith.addf %484, %485 : vector<16x16xf32>
    %c1_118 = arith.constant 1 : index
    %c7_119 = arith.constant 7 : index
    %487 = memref.load %arg8[%c1_118, %c7_119] : memref<4x32xf32, #tpu.memory_space<smem>>
    %cst_120 = arith.constant 0.000000e+00 : f32
    %488 = vector.broadcast %cst_120 : f32 to vector<16x16xf32>
    %489 = arith.maximumf %486, %488 : vector<16x16xf32>
    %490 = vector.broadcast %487 : f32 to vector<16x16xf32>
    %491 = arith.mulf %490, %489 : vector<16x16xf32>
    %492 = arith.addf %481, %491 : vector<16x16xf32>
    %493 = vector.extract_strided_slice %9 {offsets = [0, 40], sizes = [16, 1], strides = [1, 1]} : vector<16x128xf32> to vector<16x1xf32>
    %494 = vector.extract_strided_slice %7 {offsets = [40, 0], sizes = [1, 16], strides = [1, 1]} : vector<128x16xf32> to vector<1x16xf32>
    %495 = vector.broadcast %493 : vector<16x1xf32> to vector<16x16xf32>
    %496 = vector.broadcast %494 : vector<1x16xf32> to vector<16x16xf32>
    %497 = arith.addf %495, %496 : vector<16x16xf32>
    %c1_121 = arith.constant 1 : index
    %c8_122 = arith.constant 8 : index
    %498 = memref.load %arg8[%c1_121, %c8_122] : memref<4x32xf32, #tpu.memory_space<smem>>
    %cst_123 = arith.constant 0.000000e+00 : f32
    %499 = vector.broadcast %cst_123 : f32 to vector<16x16xf32>
    %500 = arith.maximumf %497, %499 : vector<16x16xf32>
    %501 = vector.broadcast %498 : f32 to vector<16x16xf32>
    %502 = arith.mulf %501, %500 : vector<16x16xf32>
    %503 = arith.addf %492, %502 : vector<16x16xf32>
    %504 = vector.extract_strided_slice %9 {offsets = [0, 41], sizes = [16, 1], strides = [1, 1]} : vector<16x128xf32> to vector<16x1xf32>
    %505 = vector.extract_strided_slice %7 {offsets = [41, 0], sizes = [1, 16], strides = [1, 1]} : vector<128x16xf32> to vector<1x16xf32>
    %506 = vector.broadcast %504 : vector<16x1xf32> to vector<16x16xf32>
    %507 = vector.broadcast %505 : vector<1x16xf32> to vector<16x16xf32>
    %508 = arith.addf %506, %507 : vector<16x16xf32>
    %c1_124 = arith.constant 1 : index
    %c9_125 = arith.constant 9 : index
    %509 = memref.load %arg8[%c1_124, %c9_125] : memref<4x32xf32, #tpu.memory_space<smem>>
    %cst_126 = arith.constant 0.000000e+00 : f32
    %510 = vector.broadcast %cst_126 : f32 to vector<16x16xf32>
    %511 = arith.maximumf %508, %510 : vector<16x16xf32>
    %512 = vector.broadcast %509 : f32 to vector<16x16xf32>
    %513 = arith.mulf %512, %511 : vector<16x16xf32>
    %514 = arith.addf %503, %513 : vector<16x16xf32>
    %515 = vector.extract_strided_slice %9 {offsets = [0, 42], sizes = [16, 1], strides = [1, 1]} : vector<16x128xf32> to vector<16x1xf32>
    %516 = vector.extract_strided_slice %7 {offsets = [42, 0], sizes = [1, 16], strides = [1, 1]} : vector<128x16xf32> to vector<1x16xf32>
    %517 = vector.broadcast %515 : vector<16x1xf32> to vector<16x16xf32>
    %518 = vector.broadcast %516 : vector<1x16xf32> to vector<16x16xf32>
    %519 = arith.addf %517, %518 : vector<16x16xf32>
    %c1_127 = arith.constant 1 : index
    %c10_128 = arith.constant 10 : index
    %520 = memref.load %arg8[%c1_127, %c10_128] : memref<4x32xf32, #tpu.memory_space<smem>>
    %cst_129 = arith.constant 0.000000e+00 : f32
    %521 = vector.broadcast %cst_129 : f32 to vector<16x16xf32>
    %522 = arith.maximumf %519, %521 : vector<16x16xf32>
    %523 = vector.broadcast %520 : f32 to vector<16x16xf32>
    %524 = arith.mulf %523, %522 : vector<16x16xf32>
    %525 = arith.addf %514, %524 : vector<16x16xf32>
    %526 = vector.extract_strided_slice %9 {offsets = [0, 43], sizes = [16, 1], strides = [1, 1]} : vector<16x128xf32> to vector<16x1xf32>
    %527 = vector.extract_strided_slice %7 {offsets = [43, 0], sizes = [1, 16], strides = [1, 1]} : vector<128x16xf32> to vector<1x16xf32>
    %528 = vector.broadcast %526 : vector<16x1xf32> to vector<16x16xf32>
    %529 = vector.broadcast %527 : vector<1x16xf32> to vector<16x16xf32>
    %530 = arith.addf %528, %529 : vector<16x16xf32>
    %c1_130 = arith.constant 1 : index
    %c11_131 = arith.constant 11 : index
    %531 = memref.load %arg8[%c1_130, %c11_131] : memref<4x32xf32, #tpu.memory_space<smem>>
    %cst_132 = arith.constant 0.000000e+00 : f32
    %532 = vector.broadcast %cst_132 : f32 to vector<16x16xf32>
    %533 = arith.maximumf %530, %532 : vector<16x16xf32>
    %534 = vector.broadcast %531 : f32 to vector<16x16xf32>
    %535 = arith.mulf %534, %533 : vector<16x16xf32>
    %536 = arith.addf %525, %535 : vector<16x16xf32>
    %537 = vector.extract_strided_slice %9 {offsets = [0, 44], sizes = [16, 1], strides = [1, 1]} : vector<16x128xf32> to vector<16x1xf32>
    %538 = vector.extract_strided_slice %7 {offsets = [44, 0], sizes = [1, 16], strides = [1, 1]} : vector<128x16xf32> to vector<1x16xf32>
    %539 = vector.broadcast %537 : vector<16x1xf32> to vector<16x16xf32>
    %540 = vector.broadcast %538 : vector<1x16xf32> to vector<16x16xf32>
    %541 = arith.addf %539, %540 : vector<16x16xf32>
    %c1_133 = arith.constant 1 : index
    %c12_134 = arith.constant 12 : index
    %542 = memref.load %arg8[%c1_133, %c12_134] : memref<4x32xf32, #tpu.memory_space<smem>>
    %cst_135 = arith.constant 0.000000e+00 : f32
    %543 = vector.broadcast %cst_135 : f32 to vector<16x16xf32>
    %544 = arith.maximumf %541, %543 : vector<16x16xf32>
    %545 = vector.broadcast %542 : f32 to vector<16x16xf32>
    %546 = arith.mulf %545, %544 : vector<16x16xf32>
    %547 = arith.addf %536, %546 : vector<16x16xf32>
    %548 = vector.extract_strided_slice %9 {offsets = [0, 45], sizes = [16, 1], strides = [1, 1]} : vector<16x128xf32> to vector<16x1xf32>
    %549 = vector.extract_strided_slice %7 {offsets = [45, 0], sizes = [1, 16], strides = [1, 1]} : vector<128x16xf32> to vector<1x16xf32>
    %550 = vector.broadcast %548 : vector<16x1xf32> to vector<16x16xf32>
    %551 = vector.broadcast %549 : vector<1x16xf32> to vector<16x16xf32>
    %552 = arith.addf %550, %551 : vector<16x16xf32>
    %c1_136 = arith.constant 1 : index
    %c13_137 = arith.constant 13 : index
    %553 = memref.load %arg8[%c1_136, %c13_137] : memref<4x32xf32, #tpu.memory_space<smem>>
    %cst_138 = arith.constant 0.000000e+00 : f32
    %554 = vector.broadcast %cst_138 : f32 to vector<16x16xf32>
    %555 = arith.maximumf %552, %554 : vector<16x16xf32>
    %556 = vector.broadcast %553 : f32 to vector<16x16xf32>
    %557 = arith.mulf %556, %555 : vector<16x16xf32>
    %558 = arith.addf %547, %557 : vector<16x16xf32>
    %559 = vector.extract_strided_slice %9 {offsets = [0, 46], sizes = [16, 1], strides = [1, 1]} : vector<16x128xf32> to vector<16x1xf32>
    %560 = vector.extract_strided_slice %7 {offsets = [46, 0], sizes = [1, 16], strides = [1, 1]} : vector<128x16xf32> to vector<1x16xf32>
    %561 = vector.broadcast %559 : vector<16x1xf32> to vector<16x16xf32>
    %562 = vector.broadcast %560 : vector<1x16xf32> to vector<16x16xf32>
    %563 = arith.addf %561, %562 : vector<16x16xf32>
    %c1_139 = arith.constant 1 : index
    %c14_140 = arith.constant 14 : index
    %564 = memref.load %arg8[%c1_139, %c14_140] : memref<4x32xf32, #tpu.memory_space<smem>>
    %cst_141 = arith.constant 0.000000e+00 : f32
    %565 = vector.broadcast %cst_141 : f32 to vector<16x16xf32>
    %566 = arith.maximumf %563, %565 : vector<16x16xf32>
    %567 = vector.broadcast %564 : f32 to vector<16x16xf32>
    %568 = arith.mulf %567, %566 : vector<16x16xf32>
    %569 = arith.addf %558, %568 : vector<16x16xf32>
    %570 = vector.extract_strided_slice %9 {offsets = [0, 47], sizes = [16, 1], strides = [1, 1]} : vector<16x128xf32> to vector<16x1xf32>
    %571 = vector.extract_strided_slice %7 {offsets = [47, 0], sizes = [1, 16], strides = [1, 1]} : vector<128x16xf32> to vector<1x16xf32>
    %572 = vector.broadcast %570 : vector<16x1xf32> to vector<16x16xf32>
    %573 = vector.broadcast %571 : vector<1x16xf32> to vector<16x16xf32>
    %574 = arith.addf %572, %573 : vector<16x16xf32>
    %c1_142 = arith.constant 1 : index
    %c15_143 = arith.constant 15 : index
    %575 = memref.load %arg8[%c1_142, %c15_143] : memref<4x32xf32, #tpu.memory_space<smem>>
    %cst_144 = arith.constant 0.000000e+00 : f32
    %576 = vector.broadcast %cst_144 : f32 to vector<16x16xf32>
    %577 = arith.maximumf %574, %576 : vector<16x16xf32>
    %578 = vector.broadcast %575 : f32 to vector<16x16xf32>
    %579 = arith.mulf %578, %577 : vector<16x16xf32>
    %580 = arith.addf %569, %579 : vector<16x16xf32>
    %581 = vector.extract_strided_slice %9 {offsets = [0, 48], sizes = [16, 1], strides = [1, 1]} : vector<16x128xf32> to vector<16x1xf32>
    %582 = vector.extract_strided_slice %7 {offsets = [48, 0], sizes = [1, 16], strides = [1, 1]} : vector<128x16xf32> to vector<1x16xf32>
    %583 = vector.broadcast %581 : vector<16x1xf32> to vector<16x16xf32>
    %584 = vector.broadcast %582 : vector<1x16xf32> to vector<16x16xf32>
    %585 = arith.addf %583, %584 : vector<16x16xf32>
    %c1_145 = arith.constant 1 : index
    %c16_146 = arith.constant 16 : index
    %586 = memref.load %arg8[%c1_145, %c16_146] : memref<4x32xf32, #tpu.memory_space<smem>>
    %cst_147 = arith.constant 0.000000e+00 : f32
    %587 = vector.broadcast %cst_147 : f32 to vector<16x16xf32>
    %588 = arith.maximumf %585, %587 : vector<16x16xf32>
    %589 = vector.broadcast %586 : f32 to vector<16x16xf32>
    %590 = arith.mulf %589, %588 : vector<16x16xf32>
    %591 = arith.addf %580, %590 : vector<16x16xf32>
    %592 = vector.extract_strided_slice %9 {offsets = [0, 49], sizes = [16, 1], strides = [1, 1]} : vector<16x128xf32> to vector<16x1xf32>
    %593 = vector.extract_strided_slice %7 {offsets = [49, 0], sizes = [1, 16], strides = [1, 1]} : vector<128x16xf32> to vector<1x16xf32>
    %594 = vector.broadcast %592 : vector<16x1xf32> to vector<16x16xf32>
    %595 = vector.broadcast %593 : vector<1x16xf32> to vector<16x16xf32>
    %596 = arith.addf %594, %595 : vector<16x16xf32>
    %c1_148 = arith.constant 1 : index
    %c17_149 = arith.constant 17 : index
    %597 = memref.load %arg8[%c1_148, %c17_149] : memref<4x32xf32, #tpu.memory_space<smem>>
    %cst_150 = arith.constant 0.000000e+00 : f32
    %598 = vector.broadcast %cst_150 : f32 to vector<16x16xf32>
    %599 = arith.maximumf %596, %598 : vector<16x16xf32>
    %600 = vector.broadcast %597 : f32 to vector<16x16xf32>
    %601 = arith.mulf %600, %599 : vector<16x16xf32>
    %602 = arith.addf %591, %601 : vector<16x16xf32>
    %603 = vector.extract_strided_slice %9 {offsets = [0, 50], sizes = [16, 1], strides = [1, 1]} : vector<16x128xf32> to vector<16x1xf32>
    %604 = vector.extract_strided_slice %7 {offsets = [50, 0], sizes = [1, 16], strides = [1, 1]} : vector<128x16xf32> to vector<1x16xf32>
    %605 = vector.broadcast %603 : vector<16x1xf32> to vector<16x16xf32>
    %606 = vector.broadcast %604 : vector<1x16xf32> to vector<16x16xf32>
    %607 = arith.addf %605, %606 : vector<16x16xf32>
    %c1_151 = arith.constant 1 : index
    %c18_152 = arith.constant 18 : index
    %608 = memref.load %arg8[%c1_151, %c18_152] : memref<4x32xf32, #tpu.memory_space<smem>>
    %cst_153 = arith.constant 0.000000e+00 : f32
    %609 = vector.broadcast %cst_153 : f32 to vector<16x16xf32>
    %610 = arith.maximumf %607, %609 : vector<16x16xf32>
    %611 = vector.broadcast %608 : f32 to vector<16x16xf32>
    %612 = arith.mulf %611, %610 : vector<16x16xf32>
    %613 = arith.addf %602, %612 : vector<16x16xf32>
    %614 = vector.extract_strided_slice %9 {offsets = [0, 51], sizes = [16, 1], strides = [1, 1]} : vector<16x128xf32> to vector<16x1xf32>
    %615 = vector.extract_strided_slice %7 {offsets = [51, 0], sizes = [1, 16], strides = [1, 1]} : vector<128x16xf32> to vector<1x16xf32>
    %616 = vector.broadcast %614 : vector<16x1xf32> to vector<16x16xf32>
    %617 = vector.broadcast %615 : vector<1x16xf32> to vector<16x16xf32>
    %618 = arith.addf %616, %617 : vector<16x16xf32>
    %c1_154 = arith.constant 1 : index
    %c19_155 = arith.constant 19 : index
    %619 = memref.load %arg8[%c1_154, %c19_155] : memref<4x32xf32, #tpu.memory_space<smem>>
    %cst_156 = arith.constant 0.000000e+00 : f32
    %620 = vector.broadcast %cst_156 : f32 to vector<16x16xf32>
    %621 = arith.maximumf %618, %620 : vector<16x16xf32>
    %622 = vector.broadcast %619 : f32 to vector<16x16xf32>
    %623 = arith.mulf %622, %621 : vector<16x16xf32>
    %624 = arith.addf %613, %623 : vector<16x16xf32>
    %625 = vector.extract_strided_slice %9 {offsets = [0, 52], sizes = [16, 1], strides = [1, 1]} : vector<16x128xf32> to vector<16x1xf32>
    %626 = vector.extract_strided_slice %7 {offsets = [52, 0], sizes = [1, 16], strides = [1, 1]} : vector<128x16xf32> to vector<1x16xf32>
    %627 = vector.broadcast %625 : vector<16x1xf32> to vector<16x16xf32>
    %628 = vector.broadcast %626 : vector<1x16xf32> to vector<16x16xf32>
    %629 = arith.addf %627, %628 : vector<16x16xf32>
    %c1_157 = arith.constant 1 : index
    %c20_158 = arith.constant 20 : index
    %630 = memref.load %arg8[%c1_157, %c20_158] : memref<4x32xf32, #tpu.memory_space<smem>>
    %cst_159 = arith.constant 0.000000e+00 : f32
    %631 = vector.broadcast %cst_159 : f32 to vector<16x16xf32>
    %632 = arith.maximumf %629, %631 : vector<16x16xf32>
    %633 = vector.broadcast %630 : f32 to vector<16x16xf32>
    %634 = arith.mulf %633, %632 : vector<16x16xf32>
    %635 = arith.addf %624, %634 : vector<16x16xf32>
    %636 = vector.extract_strided_slice %9 {offsets = [0, 53], sizes = [16, 1], strides = [1, 1]} : vector<16x128xf32> to vector<16x1xf32>
    %637 = vector.extract_strided_slice %7 {offsets = [53, 0], sizes = [1, 16], strides = [1, 1]} : vector<128x16xf32> to vector<1x16xf32>
    %638 = vector.broadcast %636 : vector<16x1xf32> to vector<16x16xf32>
    %639 = vector.broadcast %637 : vector<1x16xf32> to vector<16x16xf32>
    %640 = arith.addf %638, %639 : vector<16x16xf32>
    %c1_160 = arith.constant 1 : index
    %c21_161 = arith.constant 21 : index
    %641 = memref.load %arg8[%c1_160, %c21_161] : memref<4x32xf32, #tpu.memory_space<smem>>
    %cst_162 = arith.constant 0.000000e+00 : f32
    %642 = vector.broadcast %cst_162 : f32 to vector<16x16xf32>
    %643 = arith.maximumf %640, %642 : vector<16x16xf32>
    %644 = vector.broadcast %641 : f32 to vector<16x16xf32>
    %645 = arith.mulf %644, %643 : vector<16x16xf32>
    %646 = arith.addf %635, %645 : vector<16x16xf32>
    %647 = vector.extract_strided_slice %9 {offsets = [0, 54], sizes = [16, 1], strides = [1, 1]} : vector<16x128xf32> to vector<16x1xf32>
    %648 = vector.extract_strided_slice %7 {offsets = [54, 0], sizes = [1, 16], strides = [1, 1]} : vector<128x16xf32> to vector<1x16xf32>
    %649 = vector.broadcast %647 : vector<16x1xf32> to vector<16x16xf32>
    %650 = vector.broadcast %648 : vector<1x16xf32> to vector<16x16xf32>
    %651 = arith.addf %649, %650 : vector<16x16xf32>
    %c1_163 = arith.constant 1 : index
    %c22_164 = arith.constant 22 : index
    %652 = memref.load %arg8[%c1_163, %c22_164] : memref<4x32xf32, #tpu.memory_space<smem>>
    %cst_165 = arith.constant 0.000000e+00 : f32
    %653 = vector.broadcast %cst_165 : f32 to vector<16x16xf32>
    %654 = arith.maximumf %651, %653 : vector<16x16xf32>
    %655 = vector.broadcast %652 : f32 to vector<16x16xf32>
    %656 = arith.mulf %655, %654 : vector<16x16xf32>
    %657 = arith.addf %646, %656 : vector<16x16xf32>
    %658 = vector.extract_strided_slice %9 {offsets = [0, 55], sizes = [16, 1], strides = [1, 1]} : vector<16x128xf32> to vector<16x1xf32>
    %659 = vector.extract_strided_slice %7 {offsets = [55, 0], sizes = [1, 16], strides = [1, 1]} : vector<128x16xf32> to vector<1x16xf32>
    %660 = vector.broadcast %658 : vector<16x1xf32> to vector<16x16xf32>
    %661 = vector.broadcast %659 : vector<1x16xf32> to vector<16x16xf32>
    %662 = arith.addf %660, %661 : vector<16x16xf32>
    %c1_166 = arith.constant 1 : index
    %c23_167 = arith.constant 23 : index
    %663 = memref.load %arg8[%c1_166, %c23_167] : memref<4x32xf32, #tpu.memory_space<smem>>
    %cst_168 = arith.constant 0.000000e+00 : f32
    %664 = vector.broadcast %cst_168 : f32 to vector<16x16xf32>
    %665 = arith.maximumf %662, %664 : vector<16x16xf32>
    %666 = vector.broadcast %663 : f32 to vector<16x16xf32>
    %667 = arith.mulf %666, %665 : vector<16x16xf32>
    %668 = arith.addf %657, %667 : vector<16x16xf32>
    %669 = vector.extract_strided_slice %9 {offsets = [0, 56], sizes = [16, 1], strides = [1, 1]} : vector<16x128xf32> to vector<16x1xf32>
    %670 = vector.extract_strided_slice %7 {offsets = [56, 0], sizes = [1, 16], strides = [1, 1]} : vector<128x16xf32> to vector<1x16xf32>
    %671 = vector.broadcast %669 : vector<16x1xf32> to vector<16x16xf32>
    %672 = vector.broadcast %670 : vector<1x16xf32> to vector<16x16xf32>
    %673 = arith.addf %671, %672 : vector<16x16xf32>
    %c1_169 = arith.constant 1 : index
    %c24_170 = arith.constant 24 : index
    %674 = memref.load %arg8[%c1_169, %c24_170] : memref<4x32xf32, #tpu.memory_space<smem>>
    %cst_171 = arith.constant 0.000000e+00 : f32
    %675 = vector.broadcast %cst_171 : f32 to vector<16x16xf32>
    %676 = arith.maximumf %673, %675 : vector<16x16xf32>
    %677 = vector.broadcast %674 : f32 to vector<16x16xf32>
    %678 = arith.mulf %677, %676 : vector<16x16xf32>
    %679 = arith.addf %668, %678 : vector<16x16xf32>
    %680 = vector.extract_strided_slice %9 {offsets = [0, 57], sizes = [16, 1], strides = [1, 1]} : vector<16x128xf32> to vector<16x1xf32>
    %681 = vector.extract_strided_slice %7 {offsets = [57, 0], sizes = [1, 16], strides = [1, 1]} : vector<128x16xf32> to vector<1x16xf32>
    %682 = vector.broadcast %680 : vector<16x1xf32> to vector<16x16xf32>
    %683 = vector.broadcast %681 : vector<1x16xf32> to vector<16x16xf32>
    %684 = arith.addf %682, %683 : vector<16x16xf32>
    %c1_172 = arith.constant 1 : index
    %c25_173 = arith.constant 25 : index
    %685 = memref.load %arg8[%c1_172, %c25_173] : memref<4x32xf32, #tpu.memory_space<smem>>
    %cst_174 = arith.constant 0.000000e+00 : f32
    %686 = vector.broadcast %cst_174 : f32 to vector<16x16xf32>
    %687 = arith.maximumf %684, %686 : vector<16x16xf32>
    %688 = vector.broadcast %685 : f32 to vector<16x16xf32>
    %689 = arith.mulf %688, %687 : vector<16x16xf32>
    %690 = arith.addf %679, %689 : vector<16x16xf32>
    %691 = vector.extract_strided_slice %9 {offsets = [0, 58], sizes = [16, 1], strides = [1, 1]} : vector<16x128xf32> to vector<16x1xf32>
    %692 = vector.extract_strided_slice %7 {offsets = [58, 0], sizes = [1, 16], strides = [1, 1]} : vector<128x16xf32> to vector<1x16xf32>
    %693 = vector.broadcast %691 : vector<16x1xf32> to vector<16x16xf32>
    %694 = vector.broadcast %692 : vector<1x16xf32> to vector<16x16xf32>
    %695 = arith.addf %693, %694 : vector<16x16xf32>
    %c1_175 = arith.constant 1 : index
    %c26_176 = arith.constant 26 : index
    %696 = memref.load %arg8[%c1_175, %c26_176] : memref<4x32xf32, #tpu.memory_space<smem>>
    %cst_177 = arith.constant 0.000000e+00 : f32
    %697 = vector.broadcast %cst_177 : f32 to vector<16x16xf32>
    %698 = arith.maximumf %695, %697 : vector<16x16xf32>
    %699 = vector.broadcast %696 : f32 to vector<16x16xf32>
    %700 = arith.mulf %699, %698 : vector<16x16xf32>
    %701 = arith.addf %690, %700 : vector<16x16xf32>
    %702 = vector.extract_strided_slice %9 {offsets = [0, 59], sizes = [16, 1], strides = [1, 1]} : vector<16x128xf32> to vector<16x1xf32>
    %703 = vector.extract_strided_slice %7 {offsets = [59, 0], sizes = [1, 16], strides = [1, 1]} : vector<128x16xf32> to vector<1x16xf32>
    %704 = vector.broadcast %702 : vector<16x1xf32> to vector<16x16xf32>
    %705 = vector.broadcast %703 : vector<1x16xf32> to vector<16x16xf32>
    %706 = arith.addf %704, %705 : vector<16x16xf32>
    %c1_178 = arith.constant 1 : index
    %c27_179 = arith.constant 27 : index
    %707 = memref.load %arg8[%c1_178, %c27_179] : memref<4x32xf32, #tpu.memory_space<smem>>
    %cst_180 = arith.constant 0.000000e+00 : f32
    %708 = vector.broadcast %cst_180 : f32 to vector<16x16xf32>
    %709 = arith.maximumf %706, %708 : vector<16x16xf32>
    %710 = vector.broadcast %707 : f32 to vector<16x16xf32>
    %711 = arith.mulf %710, %709 : vector<16x16xf32>
    %712 = arith.addf %701, %711 : vector<16x16xf32>
    %713 = vector.extract_strided_slice %9 {offsets = [0, 60], sizes = [16, 1], strides = [1, 1]} : vector<16x128xf32> to vector<16x1xf32>
    %714 = vector.extract_strided_slice %7 {offsets = [60, 0], sizes = [1, 16], strides = [1, 1]} : vector<128x16xf32> to vector<1x16xf32>
    %715 = vector.broadcast %713 : vector<16x1xf32> to vector<16x16xf32>
    %716 = vector.broadcast %714 : vector<1x16xf32> to vector<16x16xf32>
    %717 = arith.addf %715, %716 : vector<16x16xf32>
    %c1_181 = arith.constant 1 : index
    %c28_182 = arith.constant 28 : index
    %718 = memref.load %arg8[%c1_181, %c28_182] : memref<4x32xf32, #tpu.memory_space<smem>>
    %cst_183 = arith.constant 0.000000e+00 : f32
    %719 = vector.broadcast %cst_183 : f32 to vector<16x16xf32>
    %720 = arith.maximumf %717, %719 : vector<16x16xf32>
    %721 = vector.broadcast %718 : f32 to vector<16x16xf32>
    %722 = arith.mulf %721, %720 : vector<16x16xf32>
    %723 = arith.addf %712, %722 : vector<16x16xf32>
    %724 = vector.extract_strided_slice %9 {offsets = [0, 61], sizes = [16, 1], strides = [1, 1]} : vector<16x128xf32> to vector<16x1xf32>
    %725 = vector.extract_strided_slice %7 {offsets = [61, 0], sizes = [1, 16], strides = [1, 1]} : vector<128x16xf32> to vector<1x16xf32>
    %726 = vector.broadcast %724 : vector<16x1xf32> to vector<16x16xf32>
    %727 = vector.broadcast %725 : vector<1x16xf32> to vector<16x16xf32>
    %728 = arith.addf %726, %727 : vector<16x16xf32>
    %c1_184 = arith.constant 1 : index
    %c29_185 = arith.constant 29 : index
    %729 = memref.load %arg8[%c1_184, %c29_185] : memref<4x32xf32, #tpu.memory_space<smem>>
    %cst_186 = arith.constant 0.000000e+00 : f32
    %730 = vector.broadcast %cst_186 : f32 to vector<16x16xf32>
    %731 = arith.maximumf %728, %730 : vector<16x16xf32>
    %732 = vector.broadcast %729 : f32 to vector<16x16xf32>
    %733 = arith.mulf %732, %731 : vector<16x16xf32>
    %734 = arith.addf %723, %733 : vector<16x16xf32>
    %735 = vector.extract_strided_slice %9 {offsets = [0, 62], sizes = [16, 1], strides = [1, 1]} : vector<16x128xf32> to vector<16x1xf32>
    %736 = vector.extract_strided_slice %7 {offsets = [62, 0], sizes = [1, 16], strides = [1, 1]} : vector<128x16xf32> to vector<1x16xf32>
    %737 = vector.broadcast %735 : vector<16x1xf32> to vector<16x16xf32>
    %738 = vector.broadcast %736 : vector<1x16xf32> to vector<16x16xf32>
    %739 = arith.addf %737, %738 : vector<16x16xf32>
    %c1_187 = arith.constant 1 : index
    %c30_188 = arith.constant 30 : index
    %740 = memref.load %arg8[%c1_187, %c30_188] : memref<4x32xf32, #tpu.memory_space<smem>>
    %cst_189 = arith.constant 0.000000e+00 : f32
    %741 = vector.broadcast %cst_189 : f32 to vector<16x16xf32>
    %742 = arith.maximumf %739, %741 : vector<16x16xf32>
    %743 = vector.broadcast %740 : f32 to vector<16x16xf32>
    %744 = arith.mulf %743, %742 : vector<16x16xf32>
    %745 = arith.addf %734, %744 : vector<16x16xf32>
    %746 = vector.extract_strided_slice %9 {offsets = [0, 63], sizes = [16, 1], strides = [1, 1]} : vector<16x128xf32> to vector<16x1xf32>
    %747 = vector.extract_strided_slice %7 {offsets = [63, 0], sizes = [1, 16], strides = [1, 1]} : vector<128x16xf32> to vector<1x16xf32>
    %748 = vector.broadcast %746 : vector<16x1xf32> to vector<16x16xf32>
    %749 = vector.broadcast %747 : vector<1x16xf32> to vector<16x16xf32>
    %750 = arith.addf %748, %749 : vector<16x16xf32>
    %c1_190 = arith.constant 1 : index
    %c31_191 = arith.constant 31 : index
    %751 = memref.load %arg8[%c1_190, %c31_191] : memref<4x32xf32, #tpu.memory_space<smem>>
    %cst_192 = arith.constant 0.000000e+00 : f32
    %752 = vector.broadcast %cst_192 : f32 to vector<16x16xf32>
    %753 = arith.maximumf %750, %752 : vector<16x16xf32>
    %754 = vector.broadcast %751 : f32 to vector<16x16xf32>
    %755 = arith.mulf %754, %753 : vector<16x16xf32>
    %756 = arith.addf %745, %755 : vector<16x16xf32>
    %757 = vector.extract_strided_slice %11 {offsets = [0, 1], sizes = [16, 1], strides = [1, 1]} : vector<16x4xf32> to vector<16x1xf32>
    %758 = vector.extract_strided_slice %10 {offsets = [1, 0], sizes = [1, 16], strides = [1, 1]} : vector<4x16xf32> to vector<1x16xf32>
    %759 = vector.broadcast %757 : vector<16x1xf32> to vector<16x16xf32>
    %760 = vector.broadcast %758 : vector<1x16xf32> to vector<16x16xf32>
    %761 = arith.addf %759, %760 : vector<16x16xf32>
    %cst_193 = arith.constant 2.000000e-01 : f32
    %762 = vector.broadcast %cst_193 : f32 to vector<16x16xf32>
    %763 = arith.mulf %762, %761 : vector<16x16xf32>
    %cst_194 = arith.constant 8.000000e-01 : f32
    %764 = vector.broadcast %cst_194 : f32 to vector<16x16xf32>
    %765 = arith.mulf %764, %756 : vector<16x16xf32>
    %766 = arith.addf %763, %765 : vector<16x16xf32>
    %cst_195 = arith.constant -1.000000e+30 : f32
    %767 = vector.broadcast %cst_195 : f32 to vector<16x16xf32>
    %768 = arith.select %5, %766, %767 : vector<16x16xi1>, vector<16x16xf32>
    %c0_196 = arith.constant 0 : index
    %c1_197 = arith.constant 1 : index
    %769 = vector.load %arg11[%c0_196, %c1_197] : memref<16x4xf32, #tpu.memory_space<vmem>>, vector<16x1xf32>
    %cst_198 = arith.constant dense<0xFF800000> : vector<16xf32>
    %770 = vector.multi_reduction <maximumf>, %768, %cst_198 [1] : vector<16x16xf32> to vector<16xf32>
    %771 = vector.shape_cast %770 : vector<16xf32> to vector<16x1xf32>
    %772 = arith.maximumf %769, %771 : vector<16x1xf32>
    %773 = arith.subf %769, %772 : vector<16x1xf32>
    %774 = math.exp %773 : vector<16x1xf32>
    %775 = vector.broadcast %772 : vector<16x1xf32> to vector<16x16xf32>
    %776 = arith.subf %768, %775 : vector<16x16xf32>
    %777 = math.exp %776 : vector<16x16xf32>
    %cst_199 = arith.constant 0.000000e+00 : f32
    %778 = vector.broadcast %cst_199 : f32 to vector<16x16xf32>
    %779 = arith.select %5, %777, %778 : vector<16x16xi1>, vector<16x16xf32>
    %c0_200 = arith.constant 0 : index
    %c1_201 = arith.constant 1 : index
    %780 = vector.load %arg12[%c0_200, %c1_201] : memref<16x4xf32, #tpu.memory_space<vmem>>, vector<16x1xf32>
    %781 = arith.mulf %774, %780 : vector<16x1xf32>
    %cst_202 = arith.constant dense<0.000000e+00> : vector<16xf32>
    %782 = vector.multi_reduction <add>, %779, %cst_202 [1] : vector<16x16xf32> to vector<16xf32>
    %783 = vector.shape_cast %782 : vector<16xf32> to vector<16x1xf32>
    %784 = arith.addf %781, %783 : vector<16x1xf32>
    %c0_203 = arith.constant 0 : index
    %c1_204 = arith.constant 1 : index
    %785 = vector.load %arg12[%c0_203, %c1_204] : memref<16x4xf32, #tpu.memory_space<vmem>>, vector<16x1xf32>
    tpu.vector_store %arg12[%c0_203, %c1_204], %784 {strides = array<i32>} : memref<16x4xf32, #tpu.memory_space<vmem>>, vector<16x1xf32>,
    %c0_205 = arith.constant 0 : index
    %c32 = arith.constant 32 : index
    %786 = vector.load %arg13[%c0_205, %c32] : memref<16x128xf32, #tpu.memory_space<vmem>>, vector<16x32xf32>
    %787 = vector.broadcast %774 : vector<16x1xf32> to vector<16x32xf32>
    %788 = arith.mulf %787, %786 : vector<16x32xf32>
    %789 = arith.truncf %779 : vector<16x16xf32> to vector<16x16xbf16>
    %790 = vector.extract_strided_slice %12 {offsets = [0, 32], sizes = [16, 32], strides = [1, 1]} : vector<16x128xbf16> to vector<16x32xbf16>
    %cst_206 = arith.constant dense<0.000000e+00> : vector<16x32xf32>
    %791 = tpu.matmul %789, %790, %cst_206 {dimension_numbers = #tpu.dot_dimension_numbers<[1], [0], [0], [1], [0, 0, 1, 1], [], []>} : vector<16x16xbf16>, vector<16x32xbf16>, vector<16x32xf32> -> vector<16x32xf32>
    %792 = arith.addf %788, %791 : vector<16x32xf32>
    %c0_207 = arith.constant 0 : index
    %c32_208 = arith.constant 32 : index
    %793 = vector.load %arg13[%c0_207, %c32_208] : memref<16x128xf32, #tpu.memory_space<vmem>>, vector<16x32xf32>
    tpu.vector_store %arg13[%c0_207, %c32_208], %792 {strides = array<i32>} : memref<16x128xf32, #tpu.memory_space<vmem>>, vector<16x32xf32>,
    %c0_209 = arith.constant 0 : index
    %c1_210 = arith.constant 1 : index
    %794 = vector.load %arg11[%c0_209, %c1_210] : memref<16x4xf32, #tpu.memory_space<vmem>>, vector<16x1xf32>
    tpu.vector_store %arg11[%c0_209, %c1_210], %772 {strides = array<i32>} : memref<16x4xf32, #tpu.memory_space<vmem>>, vector<16x1xf32>,
    %cst_211 = arith.constant 0.000000e+00 : f32
    %795 = vector.broadcast %cst_211 : f32 to vector<16x16xf32>
    %796 = vector.extract_strided_slice %9 {offsets = [0, 64], sizes = [16, 1], strides = [1, 1]} : vector<16x128xf32> to vector<16x1xf32>
    %797 = vector.extract_strided_slice %7 {offsets = [64, 0], sizes = [1, 16], strides = [1, 1]} : vector<128x16xf32> to vector<1x16xf32>
    %798 = vector.broadcast %796 : vector<16x1xf32> to vector<16x16xf32>
    %799 = vector.broadcast %797 : vector<1x16xf32> to vector<16x16xf32>
    %800 = arith.addf %798, %799 : vector<16x16xf32>
    %c2_212 = arith.constant 2 : index
    %c0_213 = arith.constant 0 : index
    %801 = memref.load %arg8[%c2_212, %c0_213] : memref<4x32xf32, #tpu.memory_space<smem>>
    %cst_214 = arith.constant 0.000000e+00 : f32
    %802 = vector.broadcast %cst_214 : f32 to vector<16x16xf32>
    %803 = arith.maximumf %800, %802 : vector<16x16xf32>
    %804 = vector.broadcast %801 : f32 to vector<16x16xf32>
    %805 = arith.mulf %804, %803 : vector<16x16xf32>
    %806 = arith.addf %795, %805 : vector<16x16xf32>
    %807 = vector.extract_strided_slice %9 {offsets = [0, 65], sizes = [16, 1], strides = [1, 1]} : vector<16x128xf32> to vector<16x1xf32>
    %808 = vector.extract_strided_slice %7 {offsets = [65, 0], sizes = [1, 16], strides = [1, 1]} : vector<128x16xf32> to vector<1x16xf32>
    %809 = vector.broadcast %807 : vector<16x1xf32> to vector<16x16xf32>
    %810 = vector.broadcast %808 : vector<1x16xf32> to vector<16x16xf32>
    %811 = arith.addf %809, %810 : vector<16x16xf32>
    %c2_215 = arith.constant 2 : index
    %c1_216 = arith.constant 1 : index
    %812 = memref.load %arg8[%c2_215, %c1_216] : memref<4x32xf32, #tpu.memory_space<smem>>
    %cst_217 = arith.constant 0.000000e+00 : f32
    %813 = vector.broadcast %cst_217 : f32 to vector<16x16xf32>
    %814 = arith.maximumf %811, %813 : vector<16x16xf32>
    %815 = vector.broadcast %812 : f32 to vector<16x16xf32>
    %816 = arith.mulf %815, %814 : vector<16x16xf32>
    %817 = arith.addf %806, %816 : vector<16x16xf32>
    %818 = vector.extract_strided_slice %9 {offsets = [0, 66], sizes = [16, 1], strides = [1, 1]} : vector<16x128xf32> to vector<16x1xf32>
    %819 = vector.extract_strided_slice %7 {offsets = [66, 0], sizes = [1, 16], strides = [1, 1]} : vector<128x16xf32> to vector<1x16xf32>
    %820 = vector.broadcast %818 : vector<16x1xf32> to vector<16x16xf32>
    %821 = vector.broadcast %819 : vector<1x16xf32> to vector<16x16xf32>
    %822 = arith.addf %820, %821 : vector<16x16xf32>
    %c2_218 = arith.constant 2 : index
    %c2_219 = arith.constant 2 : index
    %823 = memref.load %arg8[%c2_218, %c2_219] : memref<4x32xf32, #tpu.memory_space<smem>>
    %cst_220 = arith.constant 0.000000e+00 : f32
    %824 = vector.broadcast %cst_220 : f32 to vector<16x16xf32>
    %825 = arith.maximumf %822, %824 : vector<16x16xf32>
    %826 = vector.broadcast %823 : f32 to vector<16x16xf32>
    %827 = arith.mulf %826, %825 : vector<16x16xf32>
    %828 = arith.addf %817, %827 : vector<16x16xf32>
    %829 = vector.extract_strided_slice %9 {offsets = [0, 67], sizes = [16, 1], strides = [1, 1]} : vector<16x128xf32> to vector<16x1xf32>
    %830 = vector.extract_strided_slice %7 {offsets = [67, 0], sizes = [1, 16], strides = [1, 1]} : vector<128x16xf32> to vector<1x16xf32>
    %831 = vector.broadcast %829 : vector<16x1xf32> to vector<16x16xf32>
    %832 = vector.broadcast %830 : vector<1x16xf32> to vector<16x16xf32>
    %833 = arith.addf %831, %832 : vector<16x16xf32>
    %c2_221 = arith.constant 2 : index
    %c3_222 = arith.constant 3 : index
    %834 = memref.load %arg8[%c2_221, %c3_222] : memref<4x32xf32, #tpu.memory_space<smem>>
    %cst_223 = arith.constant 0.000000e+00 : f32
    %835 = vector.broadcast %cst_223 : f32 to vector<16x16xf32>
    %836 = arith.maximumf %833, %835 : vector<16x16xf32>
    %837 = vector.broadcast %834 : f32 to vector<16x16xf32>
    %838 = arith.mulf %837, %836 : vector<16x16xf32>
    %839 = arith.addf %828, %838 : vector<16x16xf32>
    %840 = vector.extract_strided_slice %9 {offsets = [0, 68], sizes = [16, 1], strides = [1, 1]} : vector<16x128xf32> to vector<16x1xf32>
    %841 = vector.extract_strided_slice %7 {offsets = [68, 0], sizes = [1, 16], strides = [1, 1]} : vector<128x16xf32> to vector<1x16xf32>
    %842 = vector.broadcast %840 : vector<16x1xf32> to vector<16x16xf32>
    %843 = vector.broadcast %841 : vector<1x16xf32> to vector<16x16xf32>
    %844 = arith.addf %842, %843 : vector<16x16xf32>
    %c2_224 = arith.constant 2 : index
    %c4_225 = arith.constant 4 : index
    %845 = memref.load %arg8[%c2_224, %c4_225] : memref<4x32xf32, #tpu.memory_space<smem>>
    %cst_226 = arith.constant 0.000000e+00 : f32
    %846 = vector.broadcast %cst_226 : f32 to vector<16x16xf32>
    %847 = arith.maximumf %844, %846 : vector<16x16xf32>
    %848 = vector.broadcast %845 : f32 to vector<16x16xf32>
    %849 = arith.mulf %848, %847 : vector<16x16xf32>
    %850 = arith.addf %839, %849 : vector<16x16xf32>
    %851 = vector.extract_strided_slice %9 {offsets = [0, 69], sizes = [16, 1], strides = [1, 1]} : vector<16x128xf32> to vector<16x1xf32>
    %852 = vector.extract_strided_slice %7 {offsets = [69, 0], sizes = [1, 16], strides = [1, 1]} : vector<128x16xf32> to vector<1x16xf32>
    %853 = vector.broadcast %851 : vector<16x1xf32> to vector<16x16xf32>
    %854 = vector.broadcast %852 : vector<1x16xf32> to vector<16x16xf32>
    %855 = arith.addf %853, %854 : vector<16x16xf32>
    %c2_227 = arith.constant 2 : index
    %c5_228 = arith.constant 5 : index
    %856 = memref.load %arg8[%c2_227, %c5_228] : memref<4x32xf32, #tpu.memory_space<smem>>
    %cst_229 = arith.constant 0.000000e+00 : f32
    %857 = vector.broadcast %cst_229 : f32 to vector<16x16xf32>
    %858 = arith.maximumf %855, %857 : vector<16x16xf32>
    %859 = vector.broadcast %856 : f32 to vector<16x16xf32>
    %860 = arith.mulf %859, %858 : vector<16x16xf32>
    %861 = arith.addf %850, %860 : vector<16x16xf32>
    %862 = vector.extract_strided_slice %9 {offsets = [0, 70], sizes = [16, 1], strides = [1, 1]} : vector<16x128xf32> to vector<16x1xf32>
    %863 = vector.extract_strided_slice %7 {offsets = [70, 0], sizes = [1, 16], strides = [1, 1]} : vector<128x16xf32> to vector<1x16xf32>
    %864 = vector.broadcast %862 : vector<16x1xf32> to vector<16x16xf32>
    %865 = vector.broadcast %863 : vector<1x16xf32> to vector<16x16xf32>
    %866 = arith.addf %864, %865 : vector<16x16xf32>
    %c2_230 = arith.constant 2 : index
    %c6_231 = arith.constant 6 : index
    %867 = memref.load %arg8[%c2_230, %c6_231] : memref<4x32xf32, #tpu.memory_space<smem>>
    %cst_232 = arith.constant 0.000000e+00 : f32
    %868 = vector.broadcast %cst_232 : f32 to vector<16x16xf32>
    %869 = arith.maximumf %866, %868 : vector<16x16xf32>
    %870 = vector.broadcast %867 : f32 to vector<16x16xf32>
    %871 = arith.mulf %870, %869 : vector<16x16xf32>
    %872 = arith.addf %861, %871 : vector<16x16xf32>
    %873 = vector.extract_strided_slice %9 {offsets = [0, 71], sizes = [16, 1], strides = [1, 1]} : vector<16x128xf32> to vector<16x1xf32>
    %874 = vector.extract_strided_slice %7 {offsets = [71, 0], sizes = [1, 16], strides = [1, 1]} : vector<128x16xf32> to vector<1x16xf32>
    %875 = vector.broadcast %873 : vector<16x1xf32> to vector<16x16xf32>
    %876 = vector.broadcast %874 : vector<1x16xf32> to vector<16x16xf32>
    %877 = arith.addf %875, %876 : vector<16x16xf32>
    %c2_233 = arith.constant 2 : index
    %c7_234 = arith.constant 7 : index
    %878 = memref.load %arg8[%c2_233, %c7_234] : memref<4x32xf32, #tpu.memory_space<smem>>
    %cst_235 = arith.constant 0.000000e+00 : f32
    %879 = vector.broadcast %cst_235 : f32 to vector<16x16xf32>
    %880 = arith.maximumf %877, %879 : vector<16x16xf32>
    %881 = vector.broadcast %878 : f32 to vector<16x16xf32>
    %882 = arith.mulf %881, %880 : vector<16x16xf32>
    %883 = arith.addf %872, %882 : vector<16x16xf32>
    %884 = vector.extract_strided_slice %9 {offsets = [0, 72], sizes = [16, 1], strides = [1, 1]} : vector<16x128xf32> to vector<16x1xf32>
    %885 = vector.extract_strided_slice %7 {offsets = [72, 0], sizes = [1, 16], strides = [1, 1]} : vector<128x16xf32> to vector<1x16xf32>
    %886 = vector.broadcast %884 : vector<16x1xf32> to vector<16x16xf32>
    %887 = vector.broadcast %885 : vector<1x16xf32> to vector<16x16xf32>
    %888 = arith.addf %886, %887 : vector<16x16xf32>
    %c2_236 = arith.constant 2 : index
    %c8_237 = arith.constant 8 : index
    %889 = memref.load %arg8[%c2_236, %c8_237] : memref<4x32xf32, #tpu.memory_space<smem>>
    %cst_238 = arith.constant 0.000000e+00 : f32
    %890 = vector.broadcast %cst_238 : f32 to vector<16x16xf32>
    %891 = arith.maximumf %888, %890 : vector<16x16xf32>
    %892 = vector.broadcast %889 : f32 to vector<16x16xf32>
    %893 = arith.mulf %892, %891 : vector<16x16xf32>
    %894 = arith.addf %883, %893 : vector<16x16xf32>
    %895 = vector.extract_strided_slice %9 {offsets = [0, 73], sizes = [16, 1], strides = [1, 1]} : vector<16x128xf32> to vector<16x1xf32>
    %896 = vector.extract_strided_slice %7 {offsets = [73, 0], sizes = [1, 16], strides = [1, 1]} : vector<128x16xf32> to vector<1x16xf32>
    %897 = vector.broadcast %895 : vector<16x1xf32> to vector<16x16xf32>
    %898 = vector.broadcast %896 : vector<1x16xf32> to vector<16x16xf32>
    %899 = arith.addf %897, %898 : vector<16x16xf32>
    %c2_239 = arith.constant 2 : index
    %c9_240 = arith.constant 9 : index
    %900 = memref.load %arg8[%c2_239, %c9_240] : memref<4x32xf32, #tpu.memory_space<smem>>
    %cst_241 = arith.constant 0.000000e+00 : f32
    %901 = vector.broadcast %cst_241 : f32 to vector<16x16xf32>
    %902 = arith.maximumf %899, %901 : vector<16x16xf32>
    %903 = vector.broadcast %900 : f32 to vector<16x16xf32>
    %904 = arith.mulf %903, %902 : vector<16x16xf32>
    %905 = arith.addf %894, %904 : vector<16x16xf32>
    %906 = vector.extract_strided_slice %9 {offsets = [0, 74], sizes = [16, 1], strides = [1, 1]} : vector<16x128xf32> to vector<16x1xf32>
    %907 = vector.extract_strided_slice %7 {offsets = [74, 0], sizes = [1, 16], strides = [1, 1]} : vector<128x16xf32> to vector<1x16xf32>
    %908 = vector.broadcast %906 : vector<16x1xf32> to vector<16x16xf32>
    %909 = vector.broadcast %907 : vector<1x16xf32> to vector<16x16xf32>
    %910 = arith.addf %908, %909 : vector<16x16xf32>
    %c2_242 = arith.constant 2 : index
    %c10_243 = arith.constant 10 : index
    %911 = memref.load %arg8[%c2_242, %c10_243] : memref<4x32xf32, #tpu.memory_space<smem>>
    %cst_244 = arith.constant 0.000000e+00 : f32
    %912 = vector.broadcast %cst_244 : f32 to vector<16x16xf32>
    %913 = arith.maximumf %910, %912 : vector<16x16xf32>
    %914 = vector.broadcast %911 : f32 to vector<16x16xf32>
    %915 = arith.mulf %914, %913 : vector<16x16xf32>
    %916 = arith.addf %905, %915 : vector<16x16xf32>
    %917 = vector.extract_strided_slice %9 {offsets = [0, 75], sizes = [16, 1], strides = [1, 1]} : vector<16x128xf32> to vector<16x1xf32>
    %918 = vector.extract_strided_slice %7 {offsets = [75, 0], sizes = [1, 16], strides = [1, 1]} : vector<128x16xf32> to vector<1x16xf32>
    %919 = vector.broadcast %917 : vector<16x1xf32> to vector<16x16xf32>
    %920 = vector.broadcast %918 : vector<1x16xf32> to vector<16x16xf32>
    %921 = arith.addf %919, %920 : vector<16x16xf32>
    %c2_245 = arith.constant 2 : index
    %c11_246 = arith.constant 11 : index
    %922 = memref.load %arg8[%c2_245, %c11_246] : memref<4x32xf32, #tpu.memory_space<smem>>
    %cst_247 = arith.constant 0.000000e+00 : f32
    %923 = vector.broadcast %cst_247 : f32 to vector<16x16xf32>
    %924 = arith.maximumf %921, %923 : vector<16x16xf32>
    %925 = vector.broadcast %922 : f32 to vector<16x16xf32>
    %926 = arith.mulf %925, %924 : vector<16x16xf32>
    %927 = arith.addf %916, %926 : vector<16x16xf32>
    %928 = vector.extract_strided_slice %9 {offsets = [0, 76], sizes = [16, 1], strides = [1, 1]} : vector<16x128xf32> to vector<16x1xf32>
    %929 = vector.extract_strided_slice %7 {offsets = [76, 0], sizes = [1, 16], strides = [1, 1]} : vector<128x16xf32> to vector<1x16xf32>
    %930 = vector.broadcast %928 : vector<16x1xf32> to vector<16x16xf32>
    %931 = vector.broadcast %929 : vector<1x16xf32> to vector<16x16xf32>
    %932 = arith.addf %930, %931 : vector<16x16xf32>
    %c2_248 = arith.constant 2 : index
    %c12_249 = arith.constant 12 : index
    %933 = memref.load %arg8[%c2_248, %c12_249] : memref<4x32xf32, #tpu.memory_space<smem>>
    %cst_250 = arith.constant 0.000000e+00 : f32
    %934 = vector.broadcast %cst_250 : f32 to vector<16x16xf32>
    %935 = arith.maximumf %932, %934 : vector<16x16xf32>
    %936 = vector.broadcast %933 : f32 to vector<16x16xf32>
    %937 = arith.mulf %936, %935 : vector<16x16xf32>
    %938 = arith.addf %927, %937 : vector<16x16xf32>
    %939 = vector.extract_strided_slice %9 {offsets = [0, 77], sizes = [16, 1], strides = [1, 1]} : vector<16x128xf32> to vector<16x1xf32>
    %940 = vector.extract_strided_slice %7 {offsets = [77, 0], sizes = [1, 16], strides = [1, 1]} : vector<128x16xf32> to vector<1x16xf32>
    %941 = vector.broadcast %939 : vector<16x1xf32> to vector<16x16xf32>
    %942 = vector.broadcast %940 : vector<1x16xf32> to vector<16x16xf32>
    %943 = arith.addf %941, %942 : vector<16x16xf32>
    %c2_251 = arith.constant 2 : index
    %c13_252 = arith.constant 13 : index
    %944 = memref.load %arg8[%c2_251, %c13_252] : memref<4x32xf32, #tpu.memory_space<smem>>
    %cst_253 = arith.constant 0.000000e+00 : f32
    %945 = vector.broadcast %cst_253 : f32 to vector<16x16xf32>
    %946 = arith.maximumf %943, %945 : vector<16x16xf32>
    %947 = vector.broadcast %944 : f32 to vector<16x16xf32>
    %948 = arith.mulf %947, %946 : vector<16x16xf32>
    %949 = arith.addf %938, %948 : vector<16x16xf32>
    %950 = vector.extract_strided_slice %9 {offsets = [0, 78], sizes = [16, 1], strides = [1, 1]} : vector<16x128xf32> to vector<16x1xf32>
    %951 = vector.extract_strided_slice %7 {offsets = [78, 0], sizes = [1, 16], strides = [1, 1]} : vector<128x16xf32> to vector<1x16xf32>
    %952 = vector.broadcast %950 : vector<16x1xf32> to vector<16x16xf32>
    %953 = vector.broadcast %951 : vector<1x16xf32> to vector<16x16xf32>
    %954 = arith.addf %952, %953 : vector<16x16xf32>
    %c2_254 = arith.constant 2 : index
    %c14_255 = arith.constant 14 : index
    %955 = memref.load %arg8[%c2_254, %c14_255] : memref<4x32xf32, #tpu.memory_space<smem>>
    %cst_256 = arith.constant 0.000000e+00 : f32
    %956 = vector.broadcast %cst_256 : f32 to vector<16x16xf32>
    %957 = arith.maximumf %954, %956 : vector<16x16xf32>
    %958 = vector.broadcast %955 : f32 to vector<16x16xf32>
    %959 = arith.mulf %958, %957 : vector<16x16xf32>
    %960 = arith.addf %949, %959 : vector<16x16xf32>
    %961 = vector.extract_strided_slice %9 {offsets = [0, 79], sizes = [16, 1], strides = [1, 1]} : vector<16x128xf32> to vector<16x1xf32>
    %962 = vector.extract_strided_slice %7 {offsets = [79, 0], sizes = [1, 16], strides = [1, 1]} : vector<128x16xf32> to vector<1x16xf32>
    %963 = vector.broadcast %961 : vector<16x1xf32> to vector<16x16xf32>
    %964 = vector.broadcast %962 : vector<1x16xf32> to vector<16x16xf32>
    %965 = arith.addf %963, %964 : vector<16x16xf32>
    %c2_257 = arith.constant 2 : index
    %c15_258 = arith.constant 15 : index
    %966 = memref.load %arg8[%c2_257, %c15_258] : memref<4x32xf32, #tpu.memory_space<smem>>
    %cst_259 = arith.constant 0.000000e+00 : f32
    %967 = vector.broadcast %cst_259 : f32 to vector<16x16xf32>
    %968 = arith.maximumf %965, %967 : vector<16x16xf32>
    %969 = vector.broadcast %966 : f32 to vector<16x16xf32>
    %970 = arith.mulf %969, %968 : vector<16x16xf32>
    %971 = arith.addf %960, %970 : vector<16x16xf32>
    %972 = vector.extract_strided_slice %9 {offsets = [0, 80], sizes = [16, 1], strides = [1, 1]} : vector<16x128xf32> to vector<16x1xf32>
    %973 = vector.extract_strided_slice %7 {offsets = [80, 0], sizes = [1, 16], strides = [1, 1]} : vector<128x16xf32> to vector<1x16xf32>
    %974 = vector.broadcast %972 : vector<16x1xf32> to vector<16x16xf32>
    %975 = vector.broadcast %973 : vector<1x16xf32> to vector<16x16xf32>
    %976 = arith.addf %974, %975 : vector<16x16xf32>
    %c2_260 = arith.constant 2 : index
    %c16_261 = arith.constant 16 : index
    %977 = memref.load %arg8[%c2_260, %c16_261] : memref<4x32xf32, #tpu.memory_space<smem>>
    %cst_262 = arith.constant 0.000000e+00 : f32
    %978 = vector.broadcast %cst_262 : f32 to vector<16x16xf32>
    %979 = arith.maximumf %976, %978 : vector<16x16xf32>
    %980 = vector.broadcast %977 : f32 to vector<16x16xf32>
    %981 = arith.mulf %980, %979 : vector<16x16xf32>
    %982 = arith.addf %971, %981 : vector<16x16xf32>
    %983 = vector.extract_strided_slice %9 {offsets = [0, 81], sizes = [16, 1], strides = [1, 1]} : vector<16x128xf32> to vector<16x1xf32>
    %984 = vector.extract_strided_slice %7 {offsets = [81, 0], sizes = [1, 16], strides = [1, 1]} : vector<128x16xf32> to vector<1x16xf32>
    %985 = vector.broadcast %983 : vector<16x1xf32> to vector<16x16xf32>
    %986 = vector.broadcast %984 : vector<1x16xf32> to vector<16x16xf32>
    %987 = arith.addf %985, %986 : vector<16x16xf32>
    %c2_263 = arith.constant 2 : index
    %c17_264 = arith.constant 17 : index
    %988 = memref.load %arg8[%c2_263, %c17_264] : memref<4x32xf32, #tpu.memory_space<smem>>
    %cst_265 = arith.constant 0.000000e+00 : f32
    %989 = vector.broadcast %cst_265 : f32 to vector<16x16xf32>
    %990 = arith.maximumf %987, %989 : vector<16x16xf32>
    %991 = vector.broadcast %988 : f32 to vector<16x16xf32>
    %992 = arith.mulf %991, %990 : vector<16x16xf32>
    %993 = arith.addf %982, %992 : vector<16x16xf32>
    %994 = vector.extract_strided_slice %9 {offsets = [0, 82], sizes = [16, 1], strides = [1, 1]} : vector<16x128xf32> to vector<16x1xf32>
    %995 = vector.extract_strided_slice %7 {offsets = [82, 0], sizes = [1, 16], strides = [1, 1]} : vector<128x16xf32> to vector<1x16xf32>
    %996 = vector.broadcast %994 : vector<16x1xf32> to vector<16x16xf32>
    %997 = vector.broadcast %995 : vector<1x16xf32> to vector<16x16xf32>
    %998 = arith.addf %996, %997 : vector<16x16xf32>
    %c2_266 = arith.constant 2 : index
    %c18_267 = arith.constant 18 : index
    %999 = memref.load %arg8[%c2_266, %c18_267] : memref<4x32xf32, #tpu.memory_space<smem>>
    %cst_268 = arith.constant 0.000000e+00 : f32
    %1000 = vector.broadcast %cst_268 : f32 to vector<16x16xf32>
    %1001 = arith.maximumf %998, %1000 : vector<16x16xf32>
    %1002 = vector.broadcast %999 : f32 to vector<16x16xf32>
    %1003 = arith.mulf %1002, %1001 : vector<16x16xf32>
    %1004 = arith.addf %993, %1003 : vector<16x16xf32>
    %1005 = vector.extract_strided_slice %9 {offsets = [0, 83], sizes = [16, 1], strides = [1, 1]} : vector<16x128xf32> to vector<16x1xf32>
    %1006 = vector.extract_strided_slice %7 {offsets = [83, 0], sizes = [1, 16], strides = [1, 1]} : vector<128x16xf32> to vector<1x16xf32>
    %1007 = vector.broadcast %1005 : vector<16x1xf32> to vector<16x16xf32>
    %1008 = vector.broadcast %1006 : vector<1x16xf32> to vector<16x16xf32>
    %1009 = arith.addf %1007, %1008 : vector<16x16xf32>
    %c2_269 = arith.constant 2 : index
    %c19_270 = arith.constant 19 : index
    %1010 = memref.load %arg8[%c2_269, %c19_270] : memref<4x32xf32, #tpu.memory_space<smem>>
    %cst_271 = arith.constant 0.000000e+00 : f32
    %1011 = vector.broadcast %cst_271 : f32 to vector<16x16xf32>
    %1012 = arith.maximumf %1009, %1011 : vector<16x16xf32>
    %1013 = vector.broadcast %1010 : f32 to vector<16x16xf32>
    %1014 = arith.mulf %1013, %1012 : vector<16x16xf32>
    %1015 = arith.addf %1004, %1014 : vector<16x16xf32>
    %1016 = vector.extract_strided_slice %9 {offsets = [0, 84], sizes = [16, 1], strides = [1, 1]} : vector<16x128xf32> to vector<16x1xf32>
    %1017 = vector.extract_strided_slice %7 {offsets = [84, 0], sizes = [1, 16], strides = [1, 1]} : vector<128x16xf32> to vector<1x16xf32>
    %1018 = vector.broadcast %1016 : vector<16x1xf32> to vector<16x16xf32>
    %1019 = vector.broadcast %1017 : vector<1x16xf32> to vector<16x16xf32>
    %1020 = arith.addf %1018, %1019 : vector<16x16xf32>
    %c2_272 = arith.constant 2 : index
    %c20_273 = arith.constant 20 : index
    %1021 = memref.load %arg8[%c2_272, %c20_273] : memref<4x32xf32, #tpu.memory_space<smem>>
    %cst_274 = arith.constant 0.000000e+00 : f32
    %1022 = vector.broadcast %cst_274 : f32 to vector<16x16xf32>
    %1023 = arith.maximumf %1020, %1022 : vector<16x16xf32>
    %1024 = vector.broadcast %1021 : f32 to vector<16x16xf32>
    %1025 = arith.mulf %1024, %1023 : vector<16x16xf32>
    %1026 = arith.addf %1015, %1025 : vector<16x16xf32>
    %1027 = vector.extract_strided_slice %9 {offsets = [0, 85], sizes = [16, 1], strides = [1, 1]} : vector<16x128xf32> to vector<16x1xf32>
    %1028 = vector.extract_strided_slice %7 {offsets = [85, 0], sizes = [1, 16], strides = [1, 1]} : vector<128x16xf32> to vector<1x16xf32>
    %1029 = vector.broadcast %1027 : vector<16x1xf32> to vector<16x16xf32>
    %1030 = vector.broadcast %1028 : vector<1x16xf32> to vector<16x16xf32>
    %1031 = arith.addf %1029, %1030 : vector<16x16xf32>
    %c2_275 = arith.constant 2 : index
    %c21_276 = arith.constant 21 : index
    %1032 = memref.load %arg8[%c2_275, %c21_276] : memref<4x32xf32, #tpu.memory_space<smem>>
    %cst_277 = arith.constant 0.000000e+00 : f32
    %1033 = vector.broadcast %cst_277 : f32 to vector<16x16xf32>
    %1034 = arith.maximumf %1031, %1033 : vector<16x16xf32>
    %1035 = vector.broadcast %1032 : f32 to vector<16x16xf32>
    %1036 = arith.mulf %1035, %1034 : vector<16x16xf32>
    %1037 = arith.addf %1026, %1036 : vector<16x16xf32>
    %1038 = vector.extract_strided_slice %9 {offsets = [0, 86], sizes = [16, 1], strides = [1, 1]} : vector<16x128xf32> to vector<16x1xf32>
    %1039 = vector.extract_strided_slice %7 {offsets = [86, 0], sizes = [1, 16], strides = [1, 1]} : vector<128x16xf32> to vector<1x16xf32>
    %1040 = vector.broadcast %1038 : vector<16x1xf32> to vector<16x16xf32>
    %1041 = vector.broadcast %1039 : vector<1x16xf32> to vector<16x16xf32>
    %1042 = arith.addf %1040, %1041 : vector<16x16xf32>
    %c2_278 = arith.constant 2 : index
    %c22_279 = arith.constant 22 : index
    %1043 = memref.load %arg8[%c2_278, %c22_279] : memref<4x32xf32, #tpu.memory_space<smem>>
    %cst_280 = arith.constant 0.000000e+00 : f32
    %1044 = vector.broadcast %cst_280 : f32 to vector<16x16xf32>
    %1045 = arith.maximumf %1042, %1044 : vector<16x16xf32>
    %1046 = vector.broadcast %1043 : f32 to vector<16x16xf32>
    %1047 = arith.mulf %1046, %1045 : vector<16x16xf32>
    %1048 = arith.addf %1037, %1047 : vector<16x16xf32>
    %1049 = vector.extract_strided_slice %9 {offsets = [0, 87], sizes = [16, 1], strides = [1, 1]} : vector<16x128xf32> to vector<16x1xf32>
    %1050 = vector.extract_strided_slice %7 {offsets = [87, 0], sizes = [1, 16], strides = [1, 1]} : vector<128x16xf32> to vector<1x16xf32>
    %1051 = vector.broadcast %1049 : vector<16x1xf32> to vector<16x16xf32>
    %1052 = vector.broadcast %1050 : vector<1x16xf32> to vector<16x16xf32>
    %1053 = arith.addf %1051, %1052 : vector<16x16xf32>
    %c2_281 = arith.constant 2 : index
    %c23_282 = arith.constant 23 : index
    %1054 = memref.load %arg8[%c2_281, %c23_282] : memref<4x32xf32, #tpu.memory_space<smem>>
    %cst_283 = arith.constant 0.000000e+00 : f32
    %1055 = vector.broadcast %cst_283 : f32 to vector<16x16xf32>
    %1056 = arith.maximumf %1053, %1055 : vector<16x16xf32>
    %1057 = vector.broadcast %1054 : f32 to vector<16x16xf32>
    %1058 = arith.mulf %1057, %1056 : vector<16x16xf32>
    %1059 = arith.addf %1048, %1058 : vector<16x16xf32>
    %1060 = vector.extract_strided_slice %9 {offsets = [0, 88], sizes = [16, 1], strides = [1, 1]} : vector<16x128xf32> to vector<16x1xf32>
    %1061 = vector.extract_strided_slice %7 {offsets = [88, 0], sizes = [1, 16], strides = [1, 1]} : vector<128x16xf32> to vector<1x16xf32>
    %1062 = vector.broadcast %1060 : vector<16x1xf32> to vector<16x16xf32>
    %1063 = vector.broadcast %1061 : vector<1x16xf32> to vector<16x16xf32>
    %1064 = arith.addf %1062, %1063 : vector<16x16xf32>
    %c2_284 = arith.constant 2 : index
    %c24_285 = arith.constant 24 : index
    %1065 = memref.load %arg8[%c2_284, %c24_285] : memref<4x32xf32, #tpu.memory_space<smem>>
    %cst_286 = arith.constant 0.000000e+00 : f32
    %1066 = vector.broadcast %cst_286 : f32 to vector<16x16xf32>
    %1067 = arith.maximumf %1064, %1066 : vector<16x16xf32>
    %1068 = vector.broadcast %1065 : f32 to vector<16x16xf32>
    %1069 = arith.mulf %1068, %1067 : vector<16x16xf32>
    %1070 = arith.addf %1059, %1069 : vector<16x16xf32>
    %1071 = vector.extract_strided_slice %9 {offsets = [0, 89], sizes = [16, 1], strides = [1, 1]} : vector<16x128xf32> to vector<16x1xf32>
    %1072 = vector.extract_strided_slice %7 {offsets = [89, 0], sizes = [1, 16], strides = [1, 1]} : vector<128x16xf32> to vector<1x16xf32>
    %1073 = vector.broadcast %1071 : vector<16x1xf32> to vector<16x16xf32>
    %1074 = vector.broadcast %1072 : vector<1x16xf32> to vector<16x16xf32>
    %1075 = arith.addf %1073, %1074 : vector<16x16xf32>
    %c2_287 = arith.constant 2 : index
    %c25_288 = arith.constant 25 : index
    %1076 = memref.load %arg8[%c2_287, %c25_288] : memref<4x32xf32, #tpu.memory_space<smem>>
    %cst_289 = arith.constant 0.000000e+00 : f32
    %1077 = vector.broadcast %cst_289 : f32 to vector<16x16xf32>
    %1078 = arith.maximumf %1075, %1077 : vector<16x16xf32>
    %1079 = vector.broadcast %1076 : f32 to vector<16x16xf32>
    %1080 = arith.mulf %1079, %1078 : vector<16x16xf32>
    %1081 = arith.addf %1070, %1080 : vector<16x16xf32>
    %1082 = vector.extract_strided_slice %9 {offsets = [0, 90], sizes = [16, 1], strides = [1, 1]} : vector<16x128xf32> to vector<16x1xf32>
    %1083 = vector.extract_strided_slice %7 {offsets = [90, 0], sizes = [1, 16], strides = [1, 1]} : vector<128x16xf32> to vector<1x16xf32>
    %1084 = vector.broadcast %1082 : vector<16x1xf32> to vector<16x16xf32>
    %1085 = vector.broadcast %1083 : vector<1x16xf32> to vector<16x16xf32>
    %1086 = arith.addf %1084, %1085 : vector<16x16xf32>
    %c2_290 = arith.constant 2 : index
    %c26_291 = arith.constant 26 : index
    %1087 = memref.load %arg8[%c2_290, %c26_291] : memref<4x32xf32, #tpu.memory_space<smem>>
    %cst_292 = arith.constant 0.000000e+00 : f32
    %1088 = vector.broadcast %cst_292 : f32 to vector<16x16xf32>
    %1089 = arith.maximumf %1086, %1088 : vector<16x16xf32>
    %1090 = vector.broadcast %1087 : f32 to vector<16x16xf32>
    %1091 = arith.mulf %1090, %1089 : vector<16x16xf32>
    %1092 = arith.addf %1081, %1091 : vector<16x16xf32>
    %1093 = vector.extract_strided_slice %9 {offsets = [0, 91], sizes = [16, 1], strides = [1, 1]} : vector<16x128xf32> to vector<16x1xf32>
    %1094 = vector.extract_strided_slice %7 {offsets = [91, 0], sizes = [1, 16], strides = [1, 1]} : vector<128x16xf32> to vector<1x16xf32>
    %1095 = vector.broadcast %1093 : vector<16x1xf32> to vector<16x16xf32>
    %1096 = vector.broadcast %1094 : vector<1x16xf32> to vector<16x16xf32>
    %1097 = arith.addf %1095, %1096 : vector<16x16xf32>
    %c2_293 = arith.constant 2 : index
    %c27_294 = arith.constant 27 : index
    %1098 = memref.load %arg8[%c2_293, %c27_294] : memref<4x32xf32, #tpu.memory_space<smem>>
    %cst_295 = arith.constant 0.000000e+00 : f32
    %1099 = vector.broadcast %cst_295 : f32 to vector<16x16xf32>
    %1100 = arith.maximumf %1097, %1099 : vector<16x16xf32>
    %1101 = vector.broadcast %1098 : f32 to vector<16x16xf32>
    %1102 = arith.mulf %1101, %1100 : vector<16x16xf32>
    %1103 = arith.addf %1092, %1102 : vector<16x16xf32>
    %1104 = vector.extract_strided_slice %9 {offsets = [0, 92], sizes = [16, 1], strides = [1, 1]} : vector<16x128xf32> to vector<16x1xf32>
    %1105 = vector.extract_strided_slice %7 {offsets = [92, 0], sizes = [1, 16], strides = [1, 1]} : vector<128x16xf32> to vector<1x16xf32>
    %1106 = vector.broadcast %1104 : vector<16x1xf32> to vector<16x16xf32>
    %1107 = vector.broadcast %1105 : vector<1x16xf32> to vector<16x16xf32>
    %1108 = arith.addf %1106, %1107 : vector<16x16xf32>
    %c2_296 = arith.constant 2 : index
    %c28_297 = arith.constant 28 : index
    %1109 = memref.load %arg8[%c2_296, %c28_297] : memref<4x32xf32, #tpu.memory_space<smem>>
    %cst_298 = arith.constant 0.000000e+00 : f32
    %1110 = vector.broadcast %cst_298 : f32 to vector<16x16xf32>
    %1111 = arith.maximumf %1108, %1110 : vector<16x16xf32>
    %1112 = vector.broadcast %1109 : f32 to vector<16x16xf32>
    %1113 = arith.mulf %1112, %1111 : vector<16x16xf32>
    %1114 = arith.addf %1103, %1113 : vector<16x16xf32>
    %1115 = vector.extract_strided_slice %9 {offsets = [0, 93], sizes = [16, 1], strides = [1, 1]} : vector<16x128xf32> to vector<16x1xf32>
    %1116 = vector.extract_strided_slice %7 {offsets = [93, 0], sizes = [1, 16], strides = [1, 1]} : vector<128x16xf32> to vector<1x16xf32>
    %1117 = vector.broadcast %1115 : vector<16x1xf32> to vector<16x16xf32>
    %1118 = vector.broadcast %1116 : vector<1x16xf32> to vector<16x16xf32>
    %1119 = arith.addf %1117, %1118 : vector<16x16xf32>
    %c2_299 = arith.constant 2 : index
    %c29_300 = arith.constant 29 : index
    %1120 = memref.load %arg8[%c2_299, %c29_300] : memref<4x32xf32, #tpu.memory_space<smem>>
    %cst_301 = arith.constant 0.000000e+00 : f32
    %1121 = vector.broadcast %cst_301 : f32 to vector<16x16xf32>
    %1122 = arith.maximumf %1119, %1121 : vector<16x16xf32>
    %1123 = vector.broadcast %1120 : f32 to vector<16x16xf32>
    %1124 = arith.mulf %1123, %1122 : vector<16x16xf32>
    %1125 = arith.addf %1114, %1124 : vector<16x16xf32>
    %1126 = vector.extract_strided_slice %9 {offsets = [0, 94], sizes = [16, 1], strides = [1, 1]} : vector<16x128xf32> to vector<16x1xf32>
    %1127 = vector.extract_strided_slice %7 {offsets = [94, 0], sizes = [1, 16], strides = [1, 1]} : vector<128x16xf32> to vector<1x16xf32>
    %1128 = vector.broadcast %1126 : vector<16x1xf32> to vector<16x16xf32>
    %1129 = vector.broadcast %1127 : vector<1x16xf32> to vector<16x16xf32>
    %1130 = arith.addf %1128, %1129 : vector<16x16xf32>
    %c2_302 = arith.constant 2 : index
    %c30_303 = arith.constant 30 : index
    %1131 = memref.load %arg8[%c2_302, %c30_303] : memref<4x32xf32, #tpu.memory_space<smem>>
    %cst_304 = arith.constant 0.000000e+00 : f32
    %1132 = vector.broadcast %cst_304 : f32 to vector<16x16xf32>
    %1133 = arith.maximumf %1130, %1132 : vector<16x16xf32>
    %1134 = vector.broadcast %1131 : f32 to vector<16x16xf32>
    %1135 = arith.mulf %1134, %1133 : vector<16x16xf32>
    %1136 = arith.addf %1125, %1135 : vector<16x16xf32>
    %1137 = vector.extract_strided_slice %9 {offsets = [0, 95], sizes = [16, 1], strides = [1, 1]} : vector<16x128xf32> to vector<16x1xf32>
    %1138 = vector.extract_strided_slice %7 {offsets = [95, 0], sizes = [1, 16], strides = [1, 1]} : vector<128x16xf32> to vector<1x16xf32>
    %1139 = vector.broadcast %1137 : vector<16x1xf32> to vector<16x16xf32>
    %1140 = vector.broadcast %1138 : vector<1x16xf32> to vector<16x16xf32>
    %1141 = arith.addf %1139, %1140 : vector<16x16xf32>
    %c2_305 = arith.constant 2 : index
    %c31_306 = arith.constant 31 : index
    %1142 = memref.load %arg8[%c2_305, %c31_306] : memref<4x32xf32, #tpu.memory_space<smem>>
    %cst_307 = arith.constant 0.000000e+00 : f32
    %1143 = vector.broadcast %cst_307 : f32 to vector<16x16xf32>
    %1144 = arith.maximumf %1141, %1143 : vector<16x16xf32>
    %1145 = vector.broadcast %1142 : f32 to vector<16x16xf32>
    %1146 = arith.mulf %1145, %1144 : vector<16x16xf32>
    %1147 = arith.addf %1136, %1146 : vector<16x16xf32>
    %1148 = vector.extract_strided_slice %11 {offsets = [0, 2], sizes = [16, 1], strides = [1, 1]} : vector<16x4xf32> to vector<16x1xf32>
    %1149 = vector.extract_strided_slice %10 {offsets = [2, 0], sizes = [1, 16], strides = [1, 1]} : vector<4x16xf32> to vector<1x16xf32>
    %1150 = vector.broadcast %1148 : vector<16x1xf32> to vector<16x16xf32>
    %1151 = vector.broadcast %1149 : vector<1x16xf32> to vector<16x16xf32>
    %1152 = arith.addf %1150, %1151 : vector<16x16xf32>
    %cst_308 = arith.constant 2.000000e-01 : f32
    %1153 = vector.broadcast %cst_308 : f32 to vector<16x16xf32>
    %1154 = arith.mulf %1153, %1152 : vector<16x16xf32>
    %cst_309 = arith.constant 8.000000e-01 : f32
    %1155 = vector.broadcast %cst_309 : f32 to vector<16x16xf32>
    %1156 = arith.mulf %1155, %1147 : vector<16x16xf32>
    %1157 = arith.addf %1154, %1156 : vector<16x16xf32>
    %cst_310 = arith.constant -1.000000e+30 : f32
    %1158 = vector.broadcast %cst_310 : f32 to vector<16x16xf32>
    %1159 = arith.select %5, %1157, %1158 : vector<16x16xi1>, vector<16x16xf32>
    %c0_311 = arith.constant 0 : index
    %c2_312 = arith.constant 2 : index
    %1160 = vector.load %arg11[%c0_311, %c2_312] : memref<16x4xf32, #tpu.memory_space<vmem>>, vector<16x1xf32>
    %cst_313 = arith.constant dense<0xFF800000> : vector<16xf32>
    %1161 = vector.multi_reduction <maximumf>, %1159, %cst_313 [1] : vector<16x16xf32> to vector<16xf32>
    %1162 = vector.shape_cast %1161 : vector<16xf32> to vector<16x1xf32>
    %1163 = arith.maximumf %1160, %1162 : vector<16x1xf32>
    %1164 = arith.subf %1160, %1163 : vector<16x1xf32>
    %1165 = math.exp %1164 : vector<16x1xf32>
    %1166 = vector.broadcast %1163 : vector<16x1xf32> to vector<16x16xf32>
    %1167 = arith.subf %1159, %1166 : vector<16x16xf32>
    %1168 = math.exp %1167 : vector<16x16xf32>
    %cst_314 = arith.constant 0.000000e+00 : f32
    %1169 = vector.broadcast %cst_314 : f32 to vector<16x16xf32>
    %1170 = arith.select %5, %1168, %1169 : vector<16x16xi1>, vector<16x16xf32>
    %c0_315 = arith.constant 0 : index
    %c2_316 = arith.constant 2 : index
    %1171 = vector.load %arg12[%c0_315, %c2_316] : memref<16x4xf32, #tpu.memory_space<vmem>>, vector<16x1xf32>
    %1172 = arith.mulf %1165, %1171 : vector<16x1xf32>
    %cst_317 = arith.constant dense<0.000000e+00> : vector<16xf32>
    %1173 = vector.multi_reduction <add>, %1170, %cst_317 [1] : vector<16x16xf32> to vector<16xf32>
    %1174 = vector.shape_cast %1173 : vector<16xf32> to vector<16x1xf32>
    %1175 = arith.addf %1172, %1174 : vector<16x1xf32>
    %c0_318 = arith.constant 0 : index
    %c2_319 = arith.constant 2 : index
    %1176 = vector.load %arg12[%c0_318, %c2_319] : memref<16x4xf32, #tpu.memory_space<vmem>>, vector<16x1xf32>
    tpu.vector_store %arg12[%c0_318, %c2_319], %1175 {strides = array<i32>} : memref<16x4xf32, #tpu.memory_space<vmem>>, vector<16x1xf32>,
    %c0_320 = arith.constant 0 : index
    %c64 = arith.constant 64 : index
    %1177 = vector.load %arg13[%c0_320, %c64] : memref<16x128xf32, #tpu.memory_space<vmem>>, vector<16x32xf32>
    %1178 = vector.broadcast %1165 : vector<16x1xf32> to vector<16x32xf32>
    %1179 = arith.mulf %1178, %1177 : vector<16x32xf32>
    %1180 = arith.truncf %1170 : vector<16x16xf32> to vector<16x16xbf16>
    %1181 = vector.extract_strided_slice %12 {offsets = [0, 64], sizes = [16, 32], strides = [1, 1]} : vector<16x128xbf16> to vector<16x32xbf16>
    %cst_321 = arith.constant dense<0.000000e+00> : vector<16x32xf32>
    %1182 = tpu.matmul %1180, %1181, %cst_321 {dimension_numbers = #tpu.dot_dimension_numbers<[1], [0], [0], [1], [0, 0, 1, 1], [], []>} : vector<16x16xbf16>, vector<16x32xbf16>, vector<16x32xf32> -> vector<16x32xf32>
    %1183 = arith.addf %1179, %1182 : vector<16x32xf32>
    %c0_322 = arith.constant 0 : index
    %c64_323 = arith.constant 64 : index
    %1184 = vector.load %arg13[%c0_322, %c64_323] : memref<16x128xf32, #tpu.memory_space<vmem>>, vector<16x32xf32>
    tpu.vector_store %arg13[%c0_322, %c64_323], %1183 {strides = array<i32>} : memref<16x128xf32, #tpu.memory_space<vmem>>, vector<16x32xf32>,
    %c0_324 = arith.constant 0 : index
    %c2_325 = arith.constant 2 : index
    %1185 = vector.load %arg11[%c0_324, %c2_325] : memref<16x4xf32, #tpu.memory_space<vmem>>, vector<16x1xf32>
    tpu.vector_store %arg11[%c0_324, %c2_325], %1163 {strides = array<i32>} : memref<16x4xf32, #tpu.memory_space<vmem>>, vector<16x1xf32>,
    %cst_326 = arith.constant 0.000000e+00 : f32
    %1186 = vector.broadcast %cst_326 : f32 to vector<16x16xf32>
    %1187 = vector.extract_strided_slice %9 {offsets = [0, 96], sizes = [16, 1], strides = [1, 1]} : vector<16x128xf32> to vector<16x1xf32>
    %1188 = vector.extract_strided_slice %7 {offsets = [96, 0], sizes = [1, 16], strides = [1, 1]} : vector<128x16xf32> to vector<1x16xf32>
    %1189 = vector.broadcast %1187 : vector<16x1xf32> to vector<16x16xf32>
    %1190 = vector.broadcast %1188 : vector<1x16xf32> to vector<16x16xf32>
    %1191 = arith.addf %1189, %1190 : vector<16x16xf32>
    %c3_327 = arith.constant 3 : index
    %c0_328 = arith.constant 0 : index
    %1192 = memref.load %arg8[%c3_327, %c0_328] : memref<4x32xf32, #tpu.memory_space<smem>>
    %cst_329 = arith.constant 0.000000e+00 : f32
    %1193 = vector.broadcast %cst_329 : f32 to vector<16x16xf32>
    %1194 = arith.maximumf %1191, %1193 : vector<16x16xf32>
    %1195 = vector.broadcast %1192 : f32 to vector<16x16xf32>
    %1196 = arith.mulf %1195, %1194 : vector<16x16xf32>
    %1197 = arith.addf %1186, %1196 : vector<16x16xf32>
    %1198 = vector.extract_strided_slice %9 {offsets = [0, 97], sizes = [16, 1], strides = [1, 1]} : vector<16x128xf32> to vector<16x1xf32>
    %1199 = vector.extract_strided_slice %7 {offsets = [97, 0], sizes = [1, 16], strides = [1, 1]} : vector<128x16xf32> to vector<1x16xf32>
    %1200 = vector.broadcast %1198 : vector<16x1xf32> to vector<16x16xf32>
    %1201 = vector.broadcast %1199 : vector<1x16xf32> to vector<16x16xf32>
    %1202 = arith.addf %1200, %1201 : vector<16x16xf32>
    %c3_330 = arith.constant 3 : index
    %c1_331 = arith.constant 1 : index
    %1203 = memref.load %arg8[%c3_330, %c1_331] : memref<4x32xf32, #tpu.memory_space<smem>>
    %cst_332 = arith.constant 0.000000e+00 : f32
    %1204 = vector.broadcast %cst_332 : f32 to vector<16x16xf32>
    %1205 = arith.maximumf %1202, %1204 : vector<16x16xf32>
    %1206 = vector.broadcast %1203 : f32 to vector<16x16xf32>
    %1207 = arith.mulf %1206, %1205 : vector<16x16xf32>
    %1208 = arith.addf %1197, %1207 : vector<16x16xf32>
    %1209 = vector.extract_strided_slice %9 {offsets = [0, 98], sizes = [16, 1], strides = [1, 1]} : vector<16x128xf32> to vector<16x1xf32>
    %1210 = vector.extract_strided_slice %7 {offsets = [98, 0], sizes = [1, 16], strides = [1, 1]} : vector<128x16xf32> to vector<1x16xf32>
    %1211 = vector.broadcast %1209 : vector<16x1xf32> to vector<16x16xf32>
    %1212 = vector.broadcast %1210 : vector<1x16xf32> to vector<16x16xf32>
    %1213 = arith.addf %1211, %1212 : vector<16x16xf32>
    %c3_333 = arith.constant 3 : index
    %c2_334 = arith.constant 2 : index
    %1214 = memref.load %arg8[%c3_333, %c2_334] : memref<4x32xf32, #tpu.memory_space<smem>>
    %cst_335 = arith.constant 0.000000e+00 : f32
    %1215 = vector.broadcast %cst_335 : f32 to vector<16x16xf32>
    %1216 = arith.maximumf %1213, %1215 : vector<16x16xf32>
    %1217 = vector.broadcast %1214 : f32 to vector<16x16xf32>
    %1218 = arith.mulf %1217, %1216 : vector<16x16xf32>
    %1219 = arith.addf %1208, %1218 : vector<16x16xf32>
    %1220 = vector.extract_strided_slice %9 {offsets = [0, 99], sizes = [16, 1], strides = [1, 1]} : vector<16x128xf32> to vector<16x1xf32>
    %1221 = vector.extract_strided_slice %7 {offsets = [99, 0], sizes = [1, 16], strides = [1, 1]} : vector<128x16xf32> to vector<1x16xf32>
    %1222 = vector.broadcast %1220 : vector<16x1xf32> to vector<16x16xf32>
    %1223 = vector.broadcast %1221 : vector<1x16xf32> to vector<16x16xf32>
    %1224 = arith.addf %1222, %1223 : vector<16x16xf32>
    %c3_336 = arith.constant 3 : index
    %c3_337 = arith.constant 3 : index
    %1225 = memref.load %arg8[%c3_336, %c3_337] : memref<4x32xf32, #tpu.memory_space<smem>>
    %cst_338 = arith.constant 0.000000e+00 : f32
    %1226 = vector.broadcast %cst_338 : f32 to vector<16x16xf32>
    %1227 = arith.maximumf %1224, %1226 : vector<16x16xf32>
    %1228 = vector.broadcast %1225 : f32 to vector<16x16xf32>
    %1229 = arith.mulf %1228, %1227 : vector<16x16xf32>
    %1230 = arith.addf %1219, %1229 : vector<16x16xf32>
    %1231 = vector.extract_strided_slice %9 {offsets = [0, 100], sizes = [16, 1], strides = [1, 1]} : vector<16x128xf32> to vector<16x1xf32>
    %1232 = vector.extract_strided_slice %7 {offsets = [100, 0], sizes = [1, 16], strides = [1, 1]} : vector<128x16xf32> to vector<1x16xf32>
    %1233 = vector.broadcast %1231 : vector<16x1xf32> to vector<16x16xf32>
    %1234 = vector.broadcast %1232 : vector<1x16xf32> to vector<16x16xf32>
    %1235 = arith.addf %1233, %1234 : vector<16x16xf32>
    %c3_339 = arith.constant 3 : index
    %c4_340 = arith.constant 4 : index
    %1236 = memref.load %arg8[%c3_339, %c4_340] : memref<4x32xf32, #tpu.memory_space<smem>>
    %cst_341 = arith.constant 0.000000e+00 : f32
    %1237 = vector.broadcast %cst_341 : f32 to vector<16x16xf32>
    %1238 = arith.maximumf %1235, %1237 : vector<16x16xf32>
    %1239 = vector.broadcast %1236 : f32 to vector<16x16xf32>
    %1240 = arith.mulf %1239, %1238 : vector<16x16xf32>
    %1241 = arith.addf %1230, %1240 : vector<16x16xf32>
    %1242 = vector.extract_strided_slice %9 {offsets = [0, 101], sizes = [16, 1], strides = [1, 1]} : vector<16x128xf32> to vector<16x1xf32>
    %1243 = vector.extract_strided_slice %7 {offsets = [101, 0], sizes = [1, 16], strides = [1, 1]} : vector<128x16xf32> to vector<1x16xf32>
    %1244 = vector.broadcast %1242 : vector<16x1xf32> to vector<16x16xf32>
    %1245 = vector.broadcast %1243 : vector<1x16xf32> to vector<16x16xf32>
    %1246 = arith.addf %1244, %1245 : vector<16x16xf32>
    %c3_342 = arith.constant 3 : index
    %c5_343 = arith.constant 5 : index
    %1247 = memref.load %arg8[%c3_342, %c5_343] : memref<4x32xf32, #tpu.memory_space<smem>>
    %cst_344 = arith.constant 0.000000e+00 : f32
    %1248 = vector.broadcast %cst_344 : f32 to vector<16x16xf32>
    %1249 = arith.maximumf %1246, %1248 : vector<16x16xf32>
    %1250 = vector.broadcast %1247 : f32 to vector<16x16xf32>
    %1251 = arith.mulf %1250, %1249 : vector<16x16xf32>
    %1252 = arith.addf %1241, %1251 : vector<16x16xf32>
    %1253 = vector.extract_strided_slice %9 {offsets = [0, 102], sizes = [16, 1], strides = [1, 1]} : vector<16x128xf32> to vector<16x1xf32>
    %1254 = vector.extract_strided_slice %7 {offsets = [102, 0], sizes = [1, 16], strides = [1, 1]} : vector<128x16xf32> to vector<1x16xf32>
    %1255 = vector.broadcast %1253 : vector<16x1xf32> to vector<16x16xf32>
    %1256 = vector.broadcast %1254 : vector<1x16xf32> to vector<16x16xf32>
    %1257 = arith.addf %1255, %1256 : vector<16x16xf32>
    %c3_345 = arith.constant 3 : index
    %c6_346 = arith.constant 6 : index
    %1258 = memref.load %arg8[%c3_345, %c6_346] : memref<4x32xf32, #tpu.memory_space<smem>>
    %cst_347 = arith.constant 0.000000e+00 : f32
    %1259 = vector.broadcast %cst_347 : f32 to vector<16x16xf32>
    %1260 = arith.maximumf %1257, %1259 : vector<16x16xf32>
    %1261 = vector.broadcast %1258 : f32 to vector<16x16xf32>
    %1262 = arith.mulf %1261, %1260 : vector<16x16xf32>
    %1263 = arith.addf %1252, %1262 : vector<16x16xf32>
    %1264 = vector.extract_strided_slice %9 {offsets = [0, 103], sizes = [16, 1], strides = [1, 1]} : vector<16x128xf32> to vector<16x1xf32>
    %1265 = vector.extract_strided_slice %7 {offsets = [103, 0], sizes = [1, 16], strides = [1, 1]} : vector<128x16xf32> to vector<1x16xf32>
    %1266 = vector.broadcast %1264 : vector<16x1xf32> to vector<16x16xf32>
    %1267 = vector.broadcast %1265 : vector<1x16xf32> to vector<16x16xf32>
    %1268 = arith.addf %1266, %1267 : vector<16x16xf32>
    %c3_348 = arith.constant 3 : index
    %c7_349 = arith.constant 7 : index
    %1269 = memref.load %arg8[%c3_348, %c7_349] : memref<4x32xf32, #tpu.memory_space<smem>>
    %cst_350 = arith.constant 0.000000e+00 : f32
    %1270 = vector.broadcast %cst_350 : f32 to vector<16x16xf32>
    %1271 = arith.maximumf %1268, %1270 : vector<16x16xf32>
    %1272 = vector.broadcast %1269 : f32 to vector<16x16xf32>
    %1273 = arith.mulf %1272, %1271 : vector<16x16xf32>
    %1274 = arith.addf %1263, %1273 : vector<16x16xf32>
    %1275 = vector.extract_strided_slice %9 {offsets = [0, 104], sizes = [16, 1], strides = [1, 1]} : vector<16x128xf32> to vector<16x1xf32>
    %1276 = vector.extract_strided_slice %7 {offsets = [104, 0], sizes = [1, 16], strides = [1, 1]} : vector<128x16xf32> to vector<1x16xf32>
    %1277 = vector.broadcast %1275 : vector<16x1xf32> to vector<16x16xf32>
    %1278 = vector.broadcast %1276 : vector<1x16xf32> to vector<16x16xf32>
    %1279 = arith.addf %1277, %1278 : vector<16x16xf32>
    %c3_351 = arith.constant 3 : index
    %c8_352 = arith.constant 8 : index
    %1280 = memref.load %arg8[%c3_351, %c8_352] : memref<4x32xf32, #tpu.memory_space<smem>>
    %cst_353 = arith.constant 0.000000e+00 : f32
    %1281 = vector.broadcast %cst_353 : f32 to vector<16x16xf32>
    %1282 = arith.maximumf %1279, %1281 : vector<16x16xf32>
    %1283 = vector.broadcast %1280 : f32 to vector<16x16xf32>
    %1284 = arith.mulf %1283, %1282 : vector<16x16xf32>
    %1285 = arith.addf %1274, %1284 : vector<16x16xf32>
    %1286 = vector.extract_strided_slice %9 {offsets = [0, 105], sizes = [16, 1], strides = [1, 1]} : vector<16x128xf32> to vector<16x1xf32>
    %1287 = vector.extract_strided_slice %7 {offsets = [105, 0], sizes = [1, 16], strides = [1, 1]} : vector<128x16xf32> to vector<1x16xf32>
    %1288 = vector.broadcast %1286 : vector<16x1xf32> to vector<16x16xf32>
    %1289 = vector.broadcast %1287 : vector<1x16xf32> to vector<16x16xf32>
    %1290 = arith.addf %1288, %1289 : vector<16x16xf32>
    %c3_354 = arith.constant 3 : index
    %c9_355 = arith.constant 9 : index
    %1291 = memref.load %arg8[%c3_354, %c9_355] : memref<4x32xf32, #tpu.memory_space<smem>>
    %cst_356 = arith.constant 0.000000e+00 : f32
    %1292 = vector.broadcast %cst_356 : f32 to vector<16x16xf32>
    %1293 = arith.maximumf %1290, %1292 : vector<16x16xf32>
    %1294 = vector.broadcast %1291 : f32 to vector<16x16xf32>
    %1295 = arith.mulf %1294, %1293 : vector<16x16xf32>
    %1296 = arith.addf %1285, %1295 : vector<16x16xf32>
    %1297 = vector.extract_strided_slice %9 {offsets = [0, 106], sizes = [16, 1], strides = [1, 1]} : vector<16x128xf32> to vector<16x1xf32>
    %1298 = vector.extract_strided_slice %7 {offsets = [106, 0], sizes = [1, 16], strides = [1, 1]} : vector<128x16xf32> to vector<1x16xf32>
    %1299 = vector.broadcast %1297 : vector<16x1xf32> to vector<16x16xf32>
    %1300 = vector.broadcast %1298 : vector<1x16xf32> to vector<16x16xf32>
    %1301 = arith.addf %1299, %1300 : vector<16x16xf32>
    %c3_357 = arith.constant 3 : index
    %c10_358 = arith.constant 10 : index
    %1302 = memref.load %arg8[%c3_357, %c10_358] : memref<4x32xf32, #tpu.memory_space<smem>>
    %cst_359 = arith.constant 0.000000e+00 : f32
    %1303 = vector.broadcast %cst_359 : f32 to vector<16x16xf32>
    %1304 = arith.maximumf %1301, %1303 : vector<16x16xf32>
    %1305 = vector.broadcast %1302 : f32 to vector<16x16xf32>
    %1306 = arith.mulf %1305, %1304 : vector<16x16xf32>
    %1307 = arith.addf %1296, %1306 : vector<16x16xf32>
    %1308 = vector.extract_strided_slice %9 {offsets = [0, 107], sizes = [16, 1], strides = [1, 1]} : vector<16x128xf32> to vector<16x1xf32>
    %1309 = vector.extract_strided_slice %7 {offsets = [107, 0], sizes = [1, 16], strides = [1, 1]} : vector<128x16xf32> to vector<1x16xf32>
    %1310 = vector.broadcast %1308 : vector<16x1xf32> to vector<16x16xf32>
    %1311 = vector.broadcast %1309 : vector<1x16xf32> to vector<16x16xf32>
    %1312 = arith.addf %1310, %1311 : vector<16x16xf32>
    %c3_360 = arith.constant 3 : index
    %c11_361 = arith.constant 11 : index
    %1313 = memref.load %arg8[%c3_360, %c11_361] : memref<4x32xf32, #tpu.memory_space<smem>>
    %cst_362 = arith.constant 0.000000e+00 : f32
    %1314 = vector.broadcast %cst_362 : f32 to vector<16x16xf32>
    %1315 = arith.maximumf %1312, %1314 : vector<16x16xf32>
    %1316 = vector.broadcast %1313 : f32 to vector<16x16xf32>
    %1317 = arith.mulf %1316, %1315 : vector<16x16xf32>
    %1318 = arith.addf %1307, %1317 : vector<16x16xf32>
    %1319 = vector.extract_strided_slice %9 {offsets = [0, 108], sizes = [16, 1], strides = [1, 1]} : vector<16x128xf32> to vector<16x1xf32>
    %1320 = vector.extract_strided_slice %7 {offsets = [108, 0], sizes = [1, 16], strides = [1, 1]} : vector<128x16xf32> to vector<1x16xf32>
    %1321 = vector.broadcast %1319 : vector<16x1xf32> to vector<16x16xf32>
    %1322 = vector.broadcast %1320 : vector<1x16xf32> to vector<16x16xf32>
    %1323 = arith.addf %1321, %1322 : vector<16x16xf32>
    %c3_363 = arith.constant 3 : index
    %c12_364 = arith.constant 12 : index
    %1324 = memref.load %arg8[%c3_363, %c12_364] : memref<4x32xf32, #tpu.memory_space<smem>>
    %cst_365 = arith.constant 0.000000e+00 : f32
    %1325 = vector.broadcast %cst_365 : f32 to vector<16x16xf32>
    %1326 = arith.maximumf %1323, %1325 : vector<16x16xf32>
    %1327 = vector.broadcast %1324 : f32 to vector<16x16xf32>
    %1328 = arith.mulf %1327, %1326 : vector<16x16xf32>
    %1329 = arith.addf %1318, %1328 : vector<16x16xf32>
    %1330 = vector.extract_strided_slice %9 {offsets = [0, 109], sizes = [16, 1], strides = [1, 1]} : vector<16x128xf32> to vector<16x1xf32>
    %1331 = vector.extract_strided_slice %7 {offsets = [109, 0], sizes = [1, 16], strides = [1, 1]} : vector<128x16xf32> to vector<1x16xf32>
    %1332 = vector.broadcast %1330 : vector<16x1xf32> to vector<16x16xf32>
    %1333 = vector.broadcast %1331 : vector<1x16xf32> to vector<16x16xf32>
    %1334 = arith.addf %1332, %1333 : vector<16x16xf32>
    %c3_366 = arith.constant 3 : index
    %c13_367 = arith.constant 13 : index
    %1335 = memref.load %arg8[%c3_366, %c13_367] : memref<4x32xf32, #tpu.memory_space<smem>>
    %cst_368 = arith.constant 0.000000e+00 : f32
    %1336 = vector.broadcast %cst_368 : f32 to vector<16x16xf32>
    %1337 = arith.maximumf %1334, %1336 : vector<16x16xf32>
    %1338 = vector.broadcast %1335 : f32 to vector<16x16xf32>
    %1339 = arith.mulf %1338, %1337 : vector<16x16xf32>
    %1340 = arith.addf %1329, %1339 : vector<16x16xf32>
    %1341 = vector.extract_strided_slice %9 {offsets = [0, 110], sizes = [16, 1], strides = [1, 1]} : vector<16x128xf32> to vector<16x1xf32>
    %1342 = vector.extract_strided_slice %7 {offsets = [110, 0], sizes = [1, 16], strides = [1, 1]} : vector<128x16xf32> to vector<1x16xf32>
    %1343 = vector.broadcast %1341 : vector<16x1xf32> to vector<16x16xf32>
    %1344 = vector.broadcast %1342 : vector<1x16xf32> to vector<16x16xf32>
    %1345 = arith.addf %1343, %1344 : vector<16x16xf32>
    %c3_369 = arith.constant 3 : index
    %c14_370 = arith.constant 14 : index
    %1346 = memref.load %arg8[%c3_369, %c14_370] : memref<4x32xf32, #tpu.memory_space<smem>>
    %cst_371 = arith.constant 0.000000e+00 : f32
    %1347 = vector.broadcast %cst_371 : f32 to vector<16x16xf32>
    %1348 = arith.maximumf %1345, %1347 : vector<16x16xf32>
    %1349 = vector.broadcast %1346 : f32 to vector<16x16xf32>
    %1350 = arith.mulf %1349, %1348 : vector<16x16xf32>
    %1351 = arith.addf %1340, %1350 : vector<16x16xf32>
    %1352 = vector.extract_strided_slice %9 {offsets = [0, 111], sizes = [16, 1], strides = [1, 1]} : vector<16x128xf32> to vector<16x1xf32>
    %1353 = vector.extract_strided_slice %7 {offsets = [111, 0], sizes = [1, 16], strides = [1, 1]} : vector<128x16xf32> to vector<1x16xf32>
    %1354 = vector.broadcast %1352 : vector<16x1xf32> to vector<16x16xf32>
    %1355 = vector.broadcast %1353 : vector<1x16xf32> to vector<16x16xf32>
    %1356 = arith.addf %1354, %1355 : vector<16x16xf32>
    %c3_372 = arith.constant 3 : index
    %c15_373 = arith.constant 15 : index
    %1357 = memref.load %arg8[%c3_372, %c15_373] : memref<4x32xf32, #tpu.memory_space<smem>>
    %cst_374 = arith.constant 0.000000e+00 : f32
    %1358 = vector.broadcast %cst_374 : f32 to vector<16x16xf32>
    %1359 = arith.maximumf %1356, %1358 : vector<16x16xf32>
    %1360 = vector.broadcast %1357 : f32 to vector<16x16xf32>
    %1361 = arith.mulf %1360, %1359 : vector<16x16xf32>
    %1362 = arith.addf %1351, %1361 : vector<16x16xf32>
    %1363 = vector.extract_strided_slice %9 {offsets = [0, 112], sizes = [16, 1], strides = [1, 1]} : vector<16x128xf32> to vector<16x1xf32>
    %1364 = vector.extract_strided_slice %7 {offsets = [112, 0], sizes = [1, 16], strides = [1, 1]} : vector<128x16xf32> to vector<1x16xf32>
    %1365 = vector.broadcast %1363 : vector<16x1xf32> to vector<16x16xf32>
    %1366 = vector.broadcast %1364 : vector<1x16xf32> to vector<16x16xf32>
    %1367 = arith.addf %1365, %1366 : vector<16x16xf32>
    %c3_375 = arith.constant 3 : index
    %c16_376 = arith.constant 16 : index
    %1368 = memref.load %arg8[%c3_375, %c16_376] : memref<4x32xf32, #tpu.memory_space<smem>>
    %cst_377 = arith.constant 0.000000e+00 : f32
    %1369 = vector.broadcast %cst_377 : f32 to vector<16x16xf32>
    %1370 = arith.maximumf %1367, %1369 : vector<16x16xf32>
    %1371 = vector.broadcast %1368 : f32 to vector<16x16xf32>
    %1372 = arith.mulf %1371, %1370 : vector<16x16xf32>
    %1373 = arith.addf %1362, %1372 : vector<16x16xf32>
    %1374 = vector.extract_strided_slice %9 {offsets = [0, 113], sizes = [16, 1], strides = [1, 1]} : vector<16x128xf32> to vector<16x1xf32>
    %1375 = vector.extract_strided_slice %7 {offsets = [113, 0], sizes = [1, 16], strides = [1, 1]} : vector<128x16xf32> to vector<1x16xf32>
    %1376 = vector.broadcast %1374 : vector<16x1xf32> to vector<16x16xf32>
    %1377 = vector.broadcast %1375 : vector<1x16xf32> to vector<16x16xf32>
    %1378 = arith.addf %1376, %1377 : vector<16x16xf32>
    %c3_378 = arith.constant 3 : index
    %c17_379 = arith.constant 17 : index
    %1379 = memref.load %arg8[%c3_378, %c17_379] : memref<4x32xf32, #tpu.memory_space<smem>>
    %cst_380 = arith.constant 0.000000e+00 : f32
    %1380 = vector.broadcast %cst_380 : f32 to vector<16x16xf32>
    %1381 = arith.maximumf %1378, %1380 : vector<16x16xf32>
    %1382 = vector.broadcast %1379 : f32 to vector<16x16xf32>
    %1383 = arith.mulf %1382, %1381 : vector<16x16xf32>
    %1384 = arith.addf %1373, %1383 : vector<16x16xf32>
    %1385 = vector.extract_strided_slice %9 {offsets = [0, 114], sizes = [16, 1], strides = [1, 1]} : vector<16x128xf32> to vector<16x1xf32>
    %1386 = vector.extract_strided_slice %7 {offsets = [114, 0], sizes = [1, 16], strides = [1, 1]} : vector<128x16xf32> to vector<1x16xf32>
    %1387 = vector.broadcast %1385 : vector<16x1xf32> to vector<16x16xf32>
    %1388 = vector.broadcast %1386 : vector<1x16xf32> to vector<16x16xf32>
    %1389 = arith.addf %1387, %1388 : vector<16x16xf32>
    %c3_381 = arith.constant 3 : index
    %c18_382 = arith.constant 18 : index
    %1390 = memref.load %arg8[%c3_381, %c18_382] : memref<4x32xf32, #tpu.memory_space<smem>>
    %cst_383 = arith.constant 0.000000e+00 : f32
    %1391 = vector.broadcast %cst_383 : f32 to vector<16x16xf32>
    %1392 = arith.maximumf %1389, %1391 : vector<16x16xf32>
    %1393 = vector.broadcast %1390 : f32 to vector<16x16xf32>
    %1394 = arith.mulf %1393, %1392 : vector<16x16xf32>
    %1395 = arith.addf %1384, %1394 : vector<16x16xf32>
    %1396 = vector.extract_strided_slice %9 {offsets = [0, 115], sizes = [16, 1], strides = [1, 1]} : vector<16x128xf32> to vector<16x1xf32>
    %1397 = vector.extract_strided_slice %7 {offsets = [115, 0], sizes = [1, 16], strides = [1, 1]} : vector<128x16xf32> to vector<1x16xf32>
    %1398 = vector.broadcast %1396 : vector<16x1xf32> to vector<16x16xf32>
    %1399 = vector.broadcast %1397 : vector<1x16xf32> to vector<16x16xf32>
    %1400 = arith.addf %1398, %1399 : vector<16x16xf32>
    %c3_384 = arith.constant 3 : index
    %c19_385 = arith.constant 19 : index
    %1401 = memref.load %arg8[%c3_384, %c19_385] : memref<4x32xf32, #tpu.memory_space<smem>>
    %cst_386 = arith.constant 0.000000e+00 : f32
    %1402 = vector.broadcast %cst_386 : f32 to vector<16x16xf32>
    %1403 = arith.maximumf %1400, %1402 : vector<16x16xf32>
    %1404 = vector.broadcast %1401 : f32 to vector<16x16xf32>
    %1405 = arith.mulf %1404, %1403 : vector<16x16xf32>
    %1406 = arith.addf %1395, %1405 : vector<16x16xf32>
    %1407 = vector.extract_strided_slice %9 {offsets = [0, 116], sizes = [16, 1], strides = [1, 1]} : vector<16x128xf32> to vector<16x1xf32>
    %1408 = vector.extract_strided_slice %7 {offsets = [116, 0], sizes = [1, 16], strides = [1, 1]} : vector<128x16xf32> to vector<1x16xf32>
    %1409 = vector.broadcast %1407 : vector<16x1xf32> to vector<16x16xf32>
    %1410 = vector.broadcast %1408 : vector<1x16xf32> to vector<16x16xf32>
    %1411 = arith.addf %1409, %1410 : vector<16x16xf32>
    %c3_387 = arith.constant 3 : index
    %c20_388 = arith.constant 20 : index
    %1412 = memref.load %arg8[%c3_387, %c20_388] : memref<4x32xf32, #tpu.memory_space<smem>>
    %cst_389 = arith.constant 0.000000e+00 : f32
    %1413 = vector.broadcast %cst_389 : f32 to vector<16x16xf32>
    %1414 = arith.maximumf %1411, %1413 : vector<16x16xf32>
    %1415 = vector.broadcast %1412 : f32 to vector<16x16xf32>
    %1416 = arith.mulf %1415, %1414 : vector<16x16xf32>
    %1417 = arith.addf %1406, %1416 : vector<16x16xf32>
    %1418 = vector.extract_strided_slice %9 {offsets = [0, 117], sizes = [16, 1], strides = [1, 1]} : vector<16x128xf32> to vector<16x1xf32>
    %1419 = vector.extract_strided_slice %7 {offsets = [117, 0], sizes = [1, 16], strides = [1, 1]} : vector<128x16xf32> to vector<1x16xf32>
    %1420 = vector.broadcast %1418 : vector<16x1xf32> to vector<16x16xf32>
    %1421 = vector.broadcast %1419 : vector<1x16xf32> to vector<16x16xf32>
    %1422 = arith.addf %1420, %1421 : vector<16x16xf32>
    %c3_390 = arith.constant 3 : index
    %c21_391 = arith.constant 21 : index
    %1423 = memref.load %arg8[%c3_390, %c21_391] : memref<4x32xf32, #tpu.memory_space<smem>>
    %cst_392 = arith.constant 0.000000e+00 : f32
    %1424 = vector.broadcast %cst_392 : f32 to vector<16x16xf32>
    %1425 = arith.maximumf %1422, %1424 : vector<16x16xf32>
    %1426 = vector.broadcast %1423 : f32 to vector<16x16xf32>
    %1427 = arith.mulf %1426, %1425 : vector<16x16xf32>
    %1428 = arith.addf %1417, %1427 : vector<16x16xf32>
    %1429 = vector.extract_strided_slice %9 {offsets = [0, 118], sizes = [16, 1], strides = [1, 1]} : vector<16x128xf32> to vector<16x1xf32>
    %1430 = vector.extract_strided_slice %7 {offsets = [118, 0], sizes = [1, 16], strides = [1, 1]} : vector<128x16xf32> to vector<1x16xf32>
    %1431 = vector.broadcast %1429 : vector<16x1xf32> to vector<16x16xf32>
    %1432 = vector.broadcast %1430 : vector<1x16xf32> to vector<16x16xf32>
    %1433 = arith.addf %1431, %1432 : vector<16x16xf32>
    %c3_393 = arith.constant 3 : index
    %c22_394 = arith.constant 22 : index
    %1434 = memref.load %arg8[%c3_393, %c22_394] : memref<4x32xf32, #tpu.memory_space<smem>>
    %cst_395 = arith.constant 0.000000e+00 : f32
    %1435 = vector.broadcast %cst_395 : f32 to vector<16x16xf32>
    %1436 = arith.maximumf %1433, %1435 : vector<16x16xf32>
    %1437 = vector.broadcast %1434 : f32 to vector<16x16xf32>
    %1438 = arith.mulf %1437, %1436 : vector<16x16xf32>
    %1439 = arith.addf %1428, %1438 : vector<16x16xf32>
    %1440 = vector.extract_strided_slice %9 {offsets = [0, 119], sizes = [16, 1], strides = [1, 1]} : vector<16x128xf32> to vector<16x1xf32>
    %1441 = vector.extract_strided_slice %7 {offsets = [119, 0], sizes = [1, 16], strides = [1, 1]} : vector<128x16xf32> to vector<1x16xf32>
    %1442 = vector.broadcast %1440 : vector<16x1xf32> to vector<16x16xf32>
    %1443 = vector.broadcast %1441 : vector<1x16xf32> to vector<16x16xf32>
    %1444 = arith.addf %1442, %1443 : vector<16x16xf32>
    %c3_396 = arith.constant 3 : index
    %c23_397 = arith.constant 23 : index
    %1445 = memref.load %arg8[%c3_396, %c23_397] : memref<4x32xf32, #tpu.memory_space<smem>>
    %cst_398 = arith.constant 0.000000e+00 : f32
    %1446 = vector.broadcast %cst_398 : f32 to vector<16x16xf32>
    %1447 = arith.maximumf %1444, %1446 : vector<16x16xf32>
    %1448 = vector.broadcast %1445 : f32 to vector<16x16xf32>
    %1449 = arith.mulf %1448, %1447 : vector<16x16xf32>
    %1450 = arith.addf %1439, %1449 : vector<16x16xf32>
    %1451 = vector.extract_strided_slice %9 {offsets = [0, 120], sizes = [16, 1], strides = [1, 1]} : vector<16x128xf32> to vector<16x1xf32>
    %1452 = vector.extract_strided_slice %7 {offsets = [120, 0], sizes = [1, 16], strides = [1, 1]} : vector<128x16xf32> to vector<1x16xf32>
    %1453 = vector.broadcast %1451 : vector<16x1xf32> to vector<16x16xf32>
    %1454 = vector.broadcast %1452 : vector<1x16xf32> to vector<16x16xf32>
    %1455 = arith.addf %1453, %1454 : vector<16x16xf32>
    %c3_399 = arith.constant 3 : index
    %c24_400 = arith.constant 24 : index
    %1456 = memref.load %arg8[%c3_399, %c24_400] : memref<4x32xf32, #tpu.memory_space<smem>>
    %cst_401 = arith.constant 0.000000e+00 : f32
    %1457 = vector.broadcast %cst_401 : f32 to vector<16x16xf32>
    %1458 = arith.maximumf %1455, %1457 : vector<16x16xf32>
    %1459 = vector.broadcast %1456 : f32 to vector<16x16xf32>
    %1460 = arith.mulf %1459, %1458 : vector<16x16xf32>
    %1461 = arith.addf %1450, %1460 : vector<16x16xf32>
    %1462 = vector.extract_strided_slice %9 {offsets = [0, 121], sizes = [16, 1], strides = [1, 1]} : vector<16x128xf32> to vector<16x1xf32>
    %1463 = vector.extract_strided_slice %7 {offsets = [121, 0], sizes = [1, 16], strides = [1, 1]} : vector<128x16xf32> to vector<1x16xf32>
    %1464 = vector.broadcast %1462 : vector<16x1xf32> to vector<16x16xf32>
    %1465 = vector.broadcast %1463 : vector<1x16xf32> to vector<16x16xf32>
    %1466 = arith.addf %1464, %1465 : vector<16x16xf32>
    %c3_402 = arith.constant 3 : index
    %c25_403 = arith.constant 25 : index
    %1467 = memref.load %arg8[%c3_402, %c25_403] : memref<4x32xf32, #tpu.memory_space<smem>>
    %cst_404 = arith.constant 0.000000e+00 : f32
    %1468 = vector.broadcast %cst_404 : f32 to vector<16x16xf32>
    %1469 = arith.maximumf %1466, %1468 : vector<16x16xf32>
    %1470 = vector.broadcast %1467 : f32 to vector<16x16xf32>
    %1471 = arith.mulf %1470, %1469 : vector<16x16xf32>
    %1472 = arith.addf %1461, %1471 : vector<16x16xf32>
    %1473 = vector.extract_strided_slice %9 {offsets = [0, 122], sizes = [16, 1], strides = [1, 1]} : vector<16x128xf32> to vector<16x1xf32>
    %1474 = vector.extract_strided_slice %7 {offsets = [122, 0], sizes = [1, 16], strides = [1, 1]} : vector<128x16xf32> to vector<1x16xf32>
    %1475 = vector.broadcast %1473 : vector<16x1xf32> to vector<16x16xf32>
    %1476 = vector.broadcast %1474 : vector<1x16xf32> to vector<16x16xf32>
    %1477 = arith.addf %1475, %1476 : vector<16x16xf32>
    %c3_405 = arith.constant 3 : index
    %c26_406 = arith.constant 26 : index
    %1478 = memref.load %arg8[%c3_405, %c26_406] : memref<4x32xf32, #tpu.memory_space<smem>>
    %cst_407 = arith.constant 0.000000e+00 : f32
    %1479 = vector.broadcast %cst_407 : f32 to vector<16x16xf32>
    %1480 = arith.maximumf %1477, %1479 : vector<16x16xf32>
    %1481 = vector.broadcast %1478 : f32 to vector<16x16xf32>
    %1482 = arith.mulf %1481, %1480 : vector<16x16xf32>
    %1483 = arith.addf %1472, %1482 : vector<16x16xf32>
    %1484 = vector.extract_strided_slice %9 {offsets = [0, 123], sizes = [16, 1], strides = [1, 1]} : vector<16x128xf32> to vector<16x1xf32>
    %1485 = vector.extract_strided_slice %7 {offsets = [123, 0], sizes = [1, 16], strides = [1, 1]} : vector<128x16xf32> to vector<1x16xf32>
    %1486 = vector.broadcast %1484 : vector<16x1xf32> to vector<16x16xf32>
    %1487 = vector.broadcast %1485 : vector<1x16xf32> to vector<16x16xf32>
    %1488 = arith.addf %1486, %1487 : vector<16x16xf32>
    %c3_408 = arith.constant 3 : index
    %c27_409 = arith.constant 27 : index
    %1489 = memref.load %arg8[%c3_408, %c27_409] : memref<4x32xf32, #tpu.memory_space<smem>>
    %cst_410 = arith.constant 0.000000e+00 : f32
    %1490 = vector.broadcast %cst_410 : f32 to vector<16x16xf32>
    %1491 = arith.maximumf %1488, %1490 : vector<16x16xf32>
    %1492 = vector.broadcast %1489 : f32 to vector<16x16xf32>
    %1493 = arith.mulf %1492, %1491 : vector<16x16xf32>
    %1494 = arith.addf %1483, %1493 : vector<16x16xf32>
    %1495 = vector.extract_strided_slice %9 {offsets = [0, 124], sizes = [16, 1], strides = [1, 1]} : vector<16x128xf32> to vector<16x1xf32>
    %1496 = vector.extract_strided_slice %7 {offsets = [124, 0], sizes = [1, 16], strides = [1, 1]} : vector<128x16xf32> to vector<1x16xf32>
    %1497 = vector.broadcast %1495 : vector<16x1xf32> to vector<16x16xf32>
    %1498 = vector.broadcast %1496 : vector<1x16xf32> to vector<16x16xf32>
    %1499 = arith.addf %1497, %1498 : vector<16x16xf32>
    %c3_411 = arith.constant 3 : index
    %c28_412 = arith.constant 28 : index
    %1500 = memref.load %arg8[%c3_411, %c28_412] : memref<4x32xf32, #tpu.memory_space<smem>>
    %cst_413 = arith.constant 0.000000e+00 : f32
    %1501 = vector.broadcast %cst_413 : f32 to vector<16x16xf32>
    %1502 = arith.maximumf %1499, %1501 : vector<16x16xf32>
    %1503 = vector.broadcast %1500 : f32 to vector<16x16xf32>
    %1504 = arith.mulf %1503, %1502 : vector<16x16xf32>
    %1505 = arith.addf %1494, %1504 : vector<16x16xf32>
    %1506 = vector.extract_strided_slice %9 {offsets = [0, 125], sizes = [16, 1], strides = [1, 1]} : vector<16x128xf32> to vector<16x1xf32>
    %1507 = vector.extract_strided_slice %7 {offsets = [125, 0], sizes = [1, 16], strides = [1, 1]} : vector<128x16xf32> to vector<1x16xf32>
    %1508 = vector.broadcast %1506 : vector<16x1xf32> to vector<16x16xf32>
    %1509 = vector.broadcast %1507 : vector<1x16xf32> to vector<16x16xf32>
    %1510 = arith.addf %1508, %1509 : vector<16x16xf32>
    %c3_414 = arith.constant 3 : index
    %c29_415 = arith.constant 29 : index
    %1511 = memref.load %arg8[%c3_414, %c29_415] : memref<4x32xf32, #tpu.memory_space<smem>>
    %cst_416 = arith.constant 0.000000e+00 : f32
    %1512 = vector.broadcast %cst_416 : f32 to vector<16x16xf32>
    %1513 = arith.maximumf %1510, %1512 : vector<16x16xf32>
    %1514 = vector.broadcast %1511 : f32 to vector<16x16xf32>
    %1515 = arith.mulf %1514, %1513 : vector<16x16xf32>
    %1516 = arith.addf %1505, %1515 : vector<16x16xf32>
    %1517 = vector.extract_strided_slice %9 {offsets = [0, 126], sizes = [16, 1], strides = [1, 1]} : vector<16x128xf32> to vector<16x1xf32>
    %1518 = vector.extract_strided_slice %7 {offsets = [126, 0], sizes = [1, 16], strides = [1, 1]} : vector<128x16xf32> to vector<1x16xf32>
    %1519 = vector.broadcast %1517 : vector<16x1xf32> to vector<16x16xf32>
    %1520 = vector.broadcast %1518 : vector<1x16xf32> to vector<16x16xf32>
    %1521 = arith.addf %1519, %1520 : vector<16x16xf32>
    %c3_417 = arith.constant 3 : index
    %c30_418 = arith.constant 30 : index
    %1522 = memref.load %arg8[%c3_417, %c30_418] : memref<4x32xf32, #tpu.memory_space<smem>>
    %cst_419 = arith.constant 0.000000e+00 : f32
    %1523 = vector.broadcast %cst_419 : f32 to vector<16x16xf32>
    %1524 = arith.maximumf %1521, %1523 : vector<16x16xf32>
    %1525 = vector.broadcast %1522 : f32 to vector<16x16xf32>
    %1526 = arith.mulf %1525, %1524 : vector<16x16xf32>
    %1527 = arith.addf %1516, %1526 : vector<16x16xf32>
    %1528 = vector.extract_strided_slice %9 {offsets = [0, 127], sizes = [16, 1], strides = [1, 1]} : vector<16x128xf32> to vector<16x1xf32>
    %1529 = vector.extract_strided_slice %7 {offsets = [127, 0], sizes = [1, 16], strides = [1, 1]} : vector<128x16xf32> to vector<1x16xf32>
    %1530 = vector.broadcast %1528 : vector<16x1xf32> to vector<16x16xf32>
    %1531 = vector.broadcast %1529 : vector<1x16xf32> to vector<16x16xf32>
    %1532 = arith.addf %1530, %1531 : vector<16x16xf32>
    %c3_420 = arith.constant 3 : index
    %c31_421 = arith.constant 31 : index
    %1533 = memref.load %arg8[%c3_420, %c31_421] : memref<4x32xf32, #tpu.memory_space<smem>>
    %cst_422 = arith.constant 0.000000e+00 : f32
    %1534 = vector.broadcast %cst_422 : f32 to vector<16x16xf32>
    %1535 = arith.maximumf %1532, %1534 : vector<16x16xf32>
    %1536 = vector.broadcast %1533 : f32 to vector<16x16xf32>
    %1537 = arith.mulf %1536, %1535 : vector<16x16xf32>
    %1538 = arith.addf %1527, %1537 : vector<16x16xf32>
    %1539 = vector.extract_strided_slice %11 {offsets = [0, 3], sizes = [16, 1], strides = [1, 1]} : vector<16x4xf32> to vector<16x1xf32>
    %1540 = vector.extract_strided_slice %10 {offsets = [3, 0], sizes = [1, 16], strides = [1, 1]} : vector<4x16xf32> to vector<1x16xf32>
    %1541 = vector.broadcast %1539 : vector<16x1xf32> to vector<16x16xf32>
    %1542 = vector.broadcast %1540 : vector<1x16xf32> to vector<16x16xf32>
    %1543 = arith.addf %1541, %1542 : vector<16x16xf32>
    %cst_423 = arith.constant 2.000000e-01 : f32
    %1544 = vector.broadcast %cst_423 : f32 to vector<16x16xf32>
    %1545 = arith.mulf %1544, %1543 : vector<16x16xf32>
    %cst_424 = arith.constant 8.000000e-01 : f32
    %1546 = vector.broadcast %cst_424 : f32 to vector<16x16xf32>
    %1547 = arith.mulf %1546, %1538 : vector<16x16xf32>
    %1548 = arith.addf %1545, %1547 : vector<16x16xf32>
    %cst_425 = arith.constant -1.000000e+30 : f32
    %1549 = vector.broadcast %cst_425 : f32 to vector<16x16xf32>
    %1550 = arith.select %5, %1548, %1549 : vector<16x16xi1>, vector<16x16xf32>
    %c0_426 = arith.constant 0 : index
    %c3_427 = arith.constant 3 : index
    %1551 = vector.load %arg11[%c0_426, %c3_427] : memref<16x4xf32, #tpu.memory_space<vmem>>, vector<16x1xf32>
    %cst_428 = arith.constant dense<0xFF800000> : vector<16xf32>
    %1552 = vector.multi_reduction <maximumf>, %1550, %cst_428 [1] : vector<16x16xf32> to vector<16xf32>
    %1553 = vector.shape_cast %1552 : vector<16xf32> to vector<16x1xf32>
    %1554 = arith.maximumf %1551, %1553 : vector<16x1xf32>
    %1555 = arith.subf %1551, %1554 : vector<16x1xf32>
    %1556 = math.exp %1555 : vector<16x1xf32>
    %1557 = vector.broadcast %1554 : vector<16x1xf32> to vector<16x16xf32>
    %1558 = arith.subf %1550, %1557 : vector<16x16xf32>
    %1559 = math.exp %1558 : vector<16x16xf32>
    %cst_429 = arith.constant 0.000000e+00 : f32
    %1560 = vector.broadcast %cst_429 : f32 to vector<16x16xf32>
    %1561 = arith.select %5, %1559, %1560 : vector<16x16xi1>, vector<16x16xf32>
    %c0_430 = arith.constant 0 : index
    %c3_431 = arith.constant 3 : index
    %1562 = vector.load %arg12[%c0_430, %c3_431] : memref<16x4xf32, #tpu.memory_space<vmem>>, vector<16x1xf32>
    %1563 = arith.mulf %1556, %1562 : vector<16x1xf32>
    %cst_432 = arith.constant dense<0.000000e+00> : vector<16xf32>
    %1564 = vector.multi_reduction <add>, %1561, %cst_432 [1] : vector<16x16xf32> to vector<16xf32>
    %1565 = vector.shape_cast %1564 : vector<16xf32> to vector<16x1xf32>
    %1566 = arith.addf %1563, %1565 : vector<16x1xf32>
    %c0_433 = arith.constant 0 : index
    %c3_434 = arith.constant 3 : index
    %1567 = vector.load %arg12[%c0_433, %c3_434] : memref<16x4xf32, #tpu.memory_space<vmem>>, vector<16x1xf32>
    tpu.vector_store %arg12[%c0_433, %c3_434], %1566 {strides = array<i32>} : memref<16x4xf32, #tpu.memory_space<vmem>>, vector<16x1xf32>,
    %c0_435 = arith.constant 0 : index
    %c96 = arith.constant 96 : index
    %1568 = vector.load %arg13[%c0_435, %c96] : memref<16x128xf32, #tpu.memory_space<vmem>>, vector<16x32xf32>
    %1569 = vector.broadcast %1556 : vector<16x1xf32> to vector<16x32xf32>
    %1570 = arith.mulf %1569, %1568 : vector<16x32xf32>
    %1571 = arith.truncf %1561 : vector<16x16xf32> to vector<16x16xbf16>
    %1572 = vector.extract_strided_slice %12 {offsets = [0, 96], sizes = [16, 32], strides = [1, 1]} : vector<16x128xbf16> to vector<16x32xbf16>
    %cst_436 = arith.constant dense<0.000000e+00> : vector<16x32xf32>
    %1573 = tpu.matmul %1571, %1572, %cst_436 {dimension_numbers = #tpu.dot_dimension_numbers<[1], [0], [0], [1], [0, 0, 1, 1], [], []>} : vector<16x16xbf16>, vector<16x32xbf16>, vector<16x32xf32> -> vector<16x32xf32>
    %1574 = arith.addf %1570, %1573 : vector<16x32xf32>
    %c0_437 = arith.constant 0 : index
    %c96_438 = arith.constant 96 : index
    %1575 = vector.load %arg13[%c0_437, %c96_438] : memref<16x128xf32, #tpu.memory_space<vmem>>, vector<16x32xf32>
    tpu.vector_store %arg13[%c0_437, %c96_438], %1574 {strides = array<i32>} : memref<16x128xf32, #tpu.memory_space<vmem>>, vector<16x32xf32>,
    %c0_439 = arith.constant 0 : index
    %c3_440 = arith.constant 3 : index
    %1576 = vector.load %arg11[%c0_439, %c3_440] : memref<16x4xf32, #tpu.memory_space<vmem>>, vector<16x1xf32>
    tpu.vector_store %arg11[%c0_439, %c3_440], %1554 {strides = array<i32>} : memref<16x4xf32, #tpu.memory_space<vmem>>, vector<16x1xf32>,
    %c0_i32_441 = arith.constant 0 : i32
    %1577 = arith.cmpi eq, %arg1, %c0_i32_441 : i32
    %1578 = arith.extui %1577 : i1 to i32
    %c0_i32_442 = arith.constant 0 : i32
    %1579 = arith.cmpi ne, %1578, %c0_i32_442 : i32
    scf.if %1579 {
      %c0_443 = arith.constant 0 : index
      %c0_444 = arith.constant 0 : index
      %1580 = vector.load %arg12[%c0_443, %c0_444] : memref<16x4xf32, #tpu.memory_space<vmem>>, vector<16x4xf32>
      %cst_445 = arith.constant 1.000000e+00 : f32
      %1581 = vector.broadcast %cst_445 : f32 to vector<16x4xf32>
      %1582 = arith.divf %1581, %1580 : vector<16x4xf32>
      %c0_446 = arith.constant 0 : index
      %c0_447 = arith.constant 0 : index
      %1583 = vector.load %arg13[%c0_446, %c0_447] : memref<16x128xf32, #tpu.memory_space<vmem>>, vector<16x32xf32>
      %1584 = vector.extract_strided_slice %1582 {offsets = [0, 0], sizes = [16, 1], strides = [1, 1]} : vector<16x4xf32> to vector<16x1xf32>
      %1585 = vector.broadcast %1584 : vector<16x1xf32> to vector<16x32xf32>
      %1586 = arith.mulf %1583, %1585 : vector<16x32xf32>
      %c0_448 = arith.constant 0 : index
      %c32_449 = arith.constant 32 : index
      %1587 = vector.load %arg13[%c0_448, %c32_449] : memref<16x128xf32, #tpu.memory_space<vmem>>, vector<16x32xf32>
      %1588 = vector.extract_strided_slice %1582 {offsets = [0, 1], sizes = [16, 1], strides = [1, 1]} : vector<16x4xf32> to vector<16x1xf32>
      %1589 = vector.broadcast %1588 : vector<16x1xf32> to vector<16x32xf32>
      %1590 = arith.mulf %1587, %1589 : vector<16x32xf32>
      %c0_450 = arith.constant 0 : index
      %c64_451 = arith.constant 64 : index
      %1591 = vector.load %arg13[%c0_450, %c64_451] : memref<16x128xf32, #tpu.memory_space<vmem>>, vector<16x32xf32>
      %1592 = vector.extract_strided_slice %1582 {offsets = [0, 2], sizes = [16, 1], strides = [1, 1]} : vector<16x4xf32> to vector<16x1xf32>
      %1593 = vector.broadcast %1592 : vector<16x1xf32> to vector<16x32xf32>
      %1594 = arith.mulf %1591, %1593 : vector<16x32xf32>
      %c0_452 = arith.constant 0 : index
      %c96_453 = arith.constant 96 : index
      %1595 = vector.load %arg13[%c0_452, %c96_453] : memref<16x128xf32, #tpu.memory_space<vmem>>, vector<16x32xf32>
      %1596 = vector.extract_strided_slice %1582 {offsets = [0, 3], sizes = [16, 1], strides = [1, 1]} : vector<16x4xf32> to vector<16x1xf32>
      %1597 = vector.broadcast %1596 : vector<16x1xf32> to vector<16x32xf32>
      %1598 = arith.mulf %1595, %1597 : vector<16x32xf32>
      %1599 = tpu.concatenate %1586, %1590, %1594, %1598 in 1 : vector<16x32xf32>, vector<16x32xf32>, vector<16x32xf32>, vector<16x32xf32> -> vector<16x128xf32>
      %c0_454 = arith.constant 0 : index
      %c0_455 = arith.constant 0 : index
      %1600 = vector.load %arg9[%c0_454, %c0_455] : memref<1x128xf32, #tpu.memory_space<vmem>>, vector<1x128xf32>
      %1601 = vector.broadcast %1600 : vector<1x128xf32> to vector<16x128xf32>
      %1602 = arith.addf %1599, %1601 : vector<16x128xf32>
      %cst_456 = arith.constant 0.000000e+00 : f32
      %1603 = vector.broadcast %cst_456 : f32 to vector<16x128xf32>
      %1604 = arith.cmpf ogt, %1602, %1603 : vector<16x128xf32>
      %cst_457 = arith.constant 0.00999999977 : f32
      %1605 = vector.broadcast %cst_457 : f32 to vector<16x128xf32>
      %1606 = arith.mulf %1605, %1602 : vector<16x128xf32>
      %1607 = arith.select %1604, %1602, %1606 : vector<16x128xi1>, vector<16x128xf32>
      %1608 = arith.truncf %1607 : vector<16x128xf32> to vector<16x128xbf16>
      %c0_458 = arith.constant 0 : index
      %c0_459 = arith.constant 0 : index
      %1609 = vector.load %arg10[%c0_458, %c0_459] : memref<16x128xbf16, #tpu.memory_space<vmem>>, vector<16x128xbf16>
      tpu.vector_store %arg10[%c0_458, %c0_459], %1608 {strides = array<i32>} : memref<16x128xbf16, #tpu.memory_space<vmem>>, vector<16x128xbf16>,
    } else {
    }
    return
  }
  func.func @transform_0(%arg0: i32, %arg1: i32) -> (i32, i32) {
    %c0_i32 = arith.constant 0 : i32
    return %arg0, %arg1 : i32, i32
  }
  func.func @transform_1(%arg0: i32, %arg1: i32) -> (i32, i32) {
    %c0_i32 = arith.constant 0 : i32
    %c0_i32_0 = arith.constant 0 : i32
    return %arg1, %c0_i32 : i32, i32
  }
  func.func @transform_2(%arg0: i32, %arg1: i32) -> (i32, i32) {
    %c0_i32 = arith.constant 0 : i32
    %c0_i32_0 = arith.constant 0 : i32
    return %c0_i32, %arg1 : i32, i32
  }
  func.func @transform_3(%arg0: i32, %arg1: i32) -> (i32, i32) {
    %c0_i32 = arith.constant 0 : i32
    %c0_i32_0 = arith.constant 0 : i32
    return %arg0, %c0_i32 : i32, i32
  }
  func.func @transform_4(%arg0: i32, %arg1: i32) -> (i32, i32) {
    %c0_i32 = arith.constant 0 : i32
    %c0_i32_0 = arith.constant 0 : i32
    return %c0_i32, %arg1 : i32, i32
  }
  func.func @transform_5(%arg0: i32, %arg1: i32) -> (i32, i32) {
    %c0_i32 = arith.constant 0 : i32
    %c0_i32_0 = arith.constant 0 : i32
    return %arg0, %c0_i32 : i32, i32
  }
  func.func @transform_6(%arg0: i32, %arg1: i32) -> (i32, i32) {
    %c0_i32 = arith.constant 0 : i32
    %c0_i32_0 = arith.constant 0 : i32
    %c0_i32_1 = arith.constant 0 : i32
    return %c0_i32, %c0_i32_0 : i32, i32
  }
  func.func @transform_7(%arg0: i32, %arg1: i32) -> (i32, i32) {
    %c0_i32 = arith.constant 0 : i32
    %c0_i32_0 = arith.constant 0 : i32
    %c0_i32_1 = arith.constant 0 : i32
    return %c0_i32, %c0_i32_0 : i32, i32
  }
  func.func @transform_8(%arg0: i32, %arg1: i32) -> (i32, i32) {
    %c0_i32 = arith.constant 0 : i32
    %c0_i32_0 = arith.constant 0 : i32
    return %arg0, %c0_i32 : i32, i32
  }
}

module attributes {stable_mosaic.version = 11 : i64} {
  func.func @_gatv2_attn_kernel(%arg0: i32, %arg1: i32, %arg2: memref<16x16xi8, #tpu.memory_space<vmem>>, %arg3: memref<16x32xbf16, #tpu.memory_space<vmem>>, %arg4: memref<32x16xbf16, #tpu.memory_space<vmem>>, %arg5: memref<16x32xbf16, #tpu.memory_space<vmem>>, %arg6: memref<1x16xf32, #tpu.memory_space<vmem>>, %arg7: memref<16x1xf32, #tpu.memory_space<vmem>>, %arg8: memref<1x32xf32, #tpu.memory_space<smem>>, %arg9: memref<1x32xf32, #tpu.memory_space<vmem>>, %arg10: memref<16x32xbf16, #tpu.memory_space<vmem>>, %arg11: memref<16x1xf32, #tpu.memory_space<vmem>>, %arg12: memref<16x1xf32, #tpu.memory_space<vmem>>, %arg13: memref<16x32xf32, #tpu.memory_space<vmem>>) attributes {dimension_semantics = [#tpu.dimension_semantics<parallel>, #tpu.dimension_semantics<arbitrary>], iteration_bounds = array<i64: 1, 1>, scalar_prefetch = 0 : i64, scratch_operands = 3 : i64, tpu.core_type = #tpu.core_type<tc>, window_params = [{transform_indices = @transform_0, window_bounds = array<i64: 16, 16>}, {transform_indices = @transform_1, window_bounds = array<i64: 16, 32>}, {transform_indices = @transform_2, window_bounds = array<i64: 32, 16>}, {transform_indices = @transform_3, window_bounds = array<i64: 16, 32>}, {transform_indices = @transform_4, window_bounds = array<i64: 1, 16>}, {transform_indices = @transform_5, window_bounds = array<i64: 16, 1>}, {transform_indices = @transform_6, window_bounds = array<i64: 1, 32>}, {pipeline_mode = #tpu.pipeline_mode<synchronous>, transform_indices = @transform_7, window_bounds = array<i64: 1, 32>}, {transform_indices = @transform_8, window_bounds = array<i64: 16, 32>}]} {
    %c0_i32 = arith.constant 0 : i32
    %0 = arith.cmpi eq, %arg1, %c0_i32 : i32
    %1 = arith.extui %0 : i1 to i32
    %c0_i32_0 = arith.constant 0 : i32
    %2 = arith.cmpi ne, %1, %c0_i32_0 : i32
    scf.if %2 {
      %cst_98 = arith.constant -1.000000e+30 : f32
      %404 = vector.broadcast %cst_98 : f32 to vector<16x1xf32>
      %c0_99 = arith.constant 0 : index
      %c0_100 = arith.constant 0 : index
      %405 = vector.load %arg11[%c0_99, %c0_100] : memref<16x1xf32, #tpu.memory_space<vmem>>, vector<16x1xf32>
      tpu.vector_store %arg11[%c0_99, %c0_100], %404 {strides = array<i32>} : memref<16x1xf32, #tpu.memory_space<vmem>>, vector<16x1xf32>,
      %cst_101 = arith.constant 0.000000e+00 : f32
      %406 = vector.broadcast %cst_101 : f32 to vector<16x1xf32>
      %c0_102 = arith.constant 0 : index
      %c0_103 = arith.constant 0 : index
      %407 = vector.load %arg12[%c0_102, %c0_103] : memref<16x1xf32, #tpu.memory_space<vmem>>, vector<16x1xf32>
      tpu.vector_store %arg12[%c0_102, %c0_103], %406 {strides = array<i32>} : memref<16x1xf32, #tpu.memory_space<vmem>>, vector<16x1xf32>,
      %cst_104 = arith.constant 0.000000e+00 : f32
      %408 = vector.broadcast %cst_104 : f32 to vector<16x32xf32>
      %c0_105 = arith.constant 0 : index
      %c0_106 = arith.constant 0 : index
      %409 = vector.load %arg13[%c0_105, %c0_106] : memref<16x32xf32, #tpu.memory_space<vmem>>, vector<16x32xf32>
      tpu.vector_store %arg13[%c0_105, %c0_106], %408 {strides = array<i32>} : memref<16x32xf32, #tpu.memory_space<vmem>>, vector<16x32xf32>,
    } else {
    }
    %c0 = arith.constant 0 : index
    %c0_1 = arith.constant 0 : index
    %3 = vector.load %arg2[%c0, %c0_1] : memref<16x16xi8, #tpu.memory_space<vmem>>, vector<16x16xi8>
    %c0_i8 = arith.constant 0 : i8
    %4 = vector.broadcast %c0_i8 : i8 to vector<16x16xi8>
    %5 = arith.cmpi ne, %3, %4 : vector<16x16xi8>
    %c0_2 = arith.constant 0 : index
    %c0_3 = arith.constant 0 : index
    %6 = vector.load %arg4[%c0_2, %c0_3] : memref<32x16xbf16, #tpu.memory_space<vmem>>, vector<32x16xbf16>
    %7 = arith.extf %6 : vector<32x16xbf16> to vector<32x16xf32>
    %c0_4 = arith.constant 0 : index
    %c0_5 = arith.constant 0 : index
    %8 = vector.load %arg5[%c0_4, %c0_5] : memref<16x32xbf16, #tpu.memory_space<vmem>>, vector<16x32xbf16>
    %9 = arith.extf %8 : vector<16x32xbf16> to vector<16x32xf32>
    %c0_6 = arith.constant 0 : index
    %c0_7 = arith.constant 0 : index
    %10 = vector.load %arg6[%c0_6, %c0_7] : memref<1x16xf32, #tpu.memory_space<vmem>>, vector<1x16xf32>
    %c0_8 = arith.constant 0 : index
    %c0_9 = arith.constant 0 : index
    %11 = vector.load %arg7[%c0_8, %c0_9] : memref<16x1xf32, #tpu.memory_space<vmem>>, vector<16x1xf32>
    %c0_10 = arith.constant 0 : index
    %c0_11 = arith.constant 0 : index
    %12 = vector.load %arg3[%c0_10, %c0_11] : memref<16x32xbf16, #tpu.memory_space<vmem>>, vector<16x32xbf16>
    %cst = arith.constant 0.000000e+00 : f32
    %13 = vector.broadcast %cst : f32 to vector<16x16xf32>
    %14 = vector.extract_strided_slice %9 {offsets = [0, 0], sizes = [16, 1], strides = [1, 1]} : vector<16x32xf32> to vector<16x1xf32>
    %15 = vector.extract_strided_slice %7 {offsets = [0, 0], sizes = [1, 16], strides = [1, 1]} : vector<32x16xf32> to vector<1x16xf32>
    %16 = vector.broadcast %14 : vector<16x1xf32> to vector<16x16xf32>
    %17 = vector.broadcast %15 : vector<1x16xf32> to vector<16x16xf32>
    %18 = arith.addf %16, %17 : vector<16x16xf32>
    %c0_12 = arith.constant 0 : index
    %c0_13 = arith.constant 0 : index
    %19 = memref.load %arg8[%c0_12, %c0_13] : memref<1x32xf32, #tpu.memory_space<smem>>
    %cst_14 = arith.constant 0.000000e+00 : f32
    %20 = vector.broadcast %cst_14 : f32 to vector<16x16xf32>
    %21 = arith.maximumf %18, %20 : vector<16x16xf32>
    %22 = vector.broadcast %19 : f32 to vector<16x16xf32>
    %23 = arith.mulf %22, %21 : vector<16x16xf32>
    %24 = arith.addf %13, %23 : vector<16x16xf32>
    %25 = vector.extract_strided_slice %9 {offsets = [0, 1], sizes = [16, 1], strides = [1, 1]} : vector<16x32xf32> to vector<16x1xf32>
    %26 = vector.extract_strided_slice %7 {offsets = [1, 0], sizes = [1, 16], strides = [1, 1]} : vector<32x16xf32> to vector<1x16xf32>
    %27 = vector.broadcast %25 : vector<16x1xf32> to vector<16x16xf32>
    %28 = vector.broadcast %26 : vector<1x16xf32> to vector<16x16xf32>
    %29 = arith.addf %27, %28 : vector<16x16xf32>
    %c0_15 = arith.constant 0 : index
    %c1 = arith.constant 1 : index
    %30 = memref.load %arg8[%c0_15, %c1] : memref<1x32xf32, #tpu.memory_space<smem>>
    %cst_16 = arith.constant 0.000000e+00 : f32
    %31 = vector.broadcast %cst_16 : f32 to vector<16x16xf32>
    %32 = arith.maximumf %29, %31 : vector<16x16xf32>
    %33 = vector.broadcast %30 : f32 to vector<16x16xf32>
    %34 = arith.mulf %33, %32 : vector<16x16xf32>
    %35 = arith.addf %24, %34 : vector<16x16xf32>
    %36 = vector.extract_strided_slice %9 {offsets = [0, 2], sizes = [16, 1], strides = [1, 1]} : vector<16x32xf32> to vector<16x1xf32>
    %37 = vector.extract_strided_slice %7 {offsets = [2, 0], sizes = [1, 16], strides = [1, 1]} : vector<32x16xf32> to vector<1x16xf32>
    %38 = vector.broadcast %36 : vector<16x1xf32> to vector<16x16xf32>
    %39 = vector.broadcast %37 : vector<1x16xf32> to vector<16x16xf32>
    %40 = arith.addf %38, %39 : vector<16x16xf32>
    %c0_17 = arith.constant 0 : index
    %c2 = arith.constant 2 : index
    %41 = memref.load %arg8[%c0_17, %c2] : memref<1x32xf32, #tpu.memory_space<smem>>
    %cst_18 = arith.constant 0.000000e+00 : f32
    %42 = vector.broadcast %cst_18 : f32 to vector<16x16xf32>
    %43 = arith.maximumf %40, %42 : vector<16x16xf32>
    %44 = vector.broadcast %41 : f32 to vector<16x16xf32>
    %45 = arith.mulf %44, %43 : vector<16x16xf32>
    %46 = arith.addf %35, %45 : vector<16x16xf32>
    %47 = vector.extract_strided_slice %9 {offsets = [0, 3], sizes = [16, 1], strides = [1, 1]} : vector<16x32xf32> to vector<16x1xf32>
    %48 = vector.extract_strided_slice %7 {offsets = [3, 0], sizes = [1, 16], strides = [1, 1]} : vector<32x16xf32> to vector<1x16xf32>
    %49 = vector.broadcast %47 : vector<16x1xf32> to vector<16x16xf32>
    %50 = vector.broadcast %48 : vector<1x16xf32> to vector<16x16xf32>
    %51 = arith.addf %49, %50 : vector<16x16xf32>
    %c0_19 = arith.constant 0 : index
    %c3 = arith.constant 3 : index
    %52 = memref.load %arg8[%c0_19, %c3] : memref<1x32xf32, #tpu.memory_space<smem>>
    %cst_20 = arith.constant 0.000000e+00 : f32
    %53 = vector.broadcast %cst_20 : f32 to vector<16x16xf32>
    %54 = arith.maximumf %51, %53 : vector<16x16xf32>
    %55 = vector.broadcast %52 : f32 to vector<16x16xf32>
    %56 = arith.mulf %55, %54 : vector<16x16xf32>
    %57 = arith.addf %46, %56 : vector<16x16xf32>
    %58 = vector.extract_strided_slice %9 {offsets = [0, 4], sizes = [16, 1], strides = [1, 1]} : vector<16x32xf32> to vector<16x1xf32>
    %59 = vector.extract_strided_slice %7 {offsets = [4, 0], sizes = [1, 16], strides = [1, 1]} : vector<32x16xf32> to vector<1x16xf32>
    %60 = vector.broadcast %58 : vector<16x1xf32> to vector<16x16xf32>
    %61 = vector.broadcast %59 : vector<1x16xf32> to vector<16x16xf32>
    %62 = arith.addf %60, %61 : vector<16x16xf32>
    %c0_21 = arith.constant 0 : index
    %c4 = arith.constant 4 : index
    %63 = memref.load %arg8[%c0_21, %c4] : memref<1x32xf32, #tpu.memory_space<smem>>
    %cst_22 = arith.constant 0.000000e+00 : f32
    %64 = vector.broadcast %cst_22 : f32 to vector<16x16xf32>
    %65 = arith.maximumf %62, %64 : vector<16x16xf32>
    %66 = vector.broadcast %63 : f32 to vector<16x16xf32>
    %67 = arith.mulf %66, %65 : vector<16x16xf32>
    %68 = arith.addf %57, %67 : vector<16x16xf32>
    %69 = vector.extract_strided_slice %9 {offsets = [0, 5], sizes = [16, 1], strides = [1, 1]} : vector<16x32xf32> to vector<16x1xf32>
    %70 = vector.extract_strided_slice %7 {offsets = [5, 0], sizes = [1, 16], strides = [1, 1]} : vector<32x16xf32> to vector<1x16xf32>
    %71 = vector.broadcast %69 : vector<16x1xf32> to vector<16x16xf32>
    %72 = vector.broadcast %70 : vector<1x16xf32> to vector<16x16xf32>
    %73 = arith.addf %71, %72 : vector<16x16xf32>
    %c0_23 = arith.constant 0 : index
    %c5 = arith.constant 5 : index
    %74 = memref.load %arg8[%c0_23, %c5] : memref<1x32xf32, #tpu.memory_space<smem>>
    %cst_24 = arith.constant 0.000000e+00 : f32
    %75 = vector.broadcast %cst_24 : f32 to vector<16x16xf32>
    %76 = arith.maximumf %73, %75 : vector<16x16xf32>
    %77 = vector.broadcast %74 : f32 to vector<16x16xf32>
    %78 = arith.mulf %77, %76 : vector<16x16xf32>
    %79 = arith.addf %68, %78 : vector<16x16xf32>
    %80 = vector.extract_strided_slice %9 {offsets = [0, 6], sizes = [16, 1], strides = [1, 1]} : vector<16x32xf32> to vector<16x1xf32>
    %81 = vector.extract_strided_slice %7 {offsets = [6, 0], sizes = [1, 16], strides = [1, 1]} : vector<32x16xf32> to vector<1x16xf32>
    %82 = vector.broadcast %80 : vector<16x1xf32> to vector<16x16xf32>
    %83 = vector.broadcast %81 : vector<1x16xf32> to vector<16x16xf32>
    %84 = arith.addf %82, %83 : vector<16x16xf32>
    %c0_25 = arith.constant 0 : index
    %c6 = arith.constant 6 : index
    %85 = memref.load %arg8[%c0_25, %c6] : memref<1x32xf32, #tpu.memory_space<smem>>
    %cst_26 = arith.constant 0.000000e+00 : f32
    %86 = vector.broadcast %cst_26 : f32 to vector<16x16xf32>
    %87 = arith.maximumf %84, %86 : vector<16x16xf32>
    %88 = vector.broadcast %85 : f32 to vector<16x16xf32>
    %89 = arith.mulf %88, %87 : vector<16x16xf32>
    %90 = arith.addf %79, %89 : vector<16x16xf32>
    %91 = vector.extract_strided_slice %9 {offsets = [0, 7], sizes = [16, 1], strides = [1, 1]} : vector<16x32xf32> to vector<16x1xf32>
    %92 = vector.extract_strided_slice %7 {offsets = [7, 0], sizes = [1, 16], strides = [1, 1]} : vector<32x16xf32> to vector<1x16xf32>
    %93 = vector.broadcast %91 : vector<16x1xf32> to vector<16x16xf32>
    %94 = vector.broadcast %92 : vector<1x16xf32> to vector<16x16xf32>
    %95 = arith.addf %93, %94 : vector<16x16xf32>
    %c0_27 = arith.constant 0 : index
    %c7 = arith.constant 7 : index
    %96 = memref.load %arg8[%c0_27, %c7] : memref<1x32xf32, #tpu.memory_space<smem>>
    %cst_28 = arith.constant 0.000000e+00 : f32
    %97 = vector.broadcast %cst_28 : f32 to vector<16x16xf32>
    %98 = arith.maximumf %95, %97 : vector<16x16xf32>
    %99 = vector.broadcast %96 : f32 to vector<16x16xf32>
    %100 = arith.mulf %99, %98 : vector<16x16xf32>
    %101 = arith.addf %90, %100 : vector<16x16xf32>
    %102 = vector.extract_strided_slice %9 {offsets = [0, 8], sizes = [16, 1], strides = [1, 1]} : vector<16x32xf32> to vector<16x1xf32>
    %103 = vector.extract_strided_slice %7 {offsets = [8, 0], sizes = [1, 16], strides = [1, 1]} : vector<32x16xf32> to vector<1x16xf32>
    %104 = vector.broadcast %102 : vector<16x1xf32> to vector<16x16xf32>
    %105 = vector.broadcast %103 : vector<1x16xf32> to vector<16x16xf32>
    %106 = arith.addf %104, %105 : vector<16x16xf32>
    %c0_29 = arith.constant 0 : index
    %c8 = arith.constant 8 : index
    %107 = memref.load %arg8[%c0_29, %c8] : memref<1x32xf32, #tpu.memory_space<smem>>
    %cst_30 = arith.constant 0.000000e+00 : f32
    %108 = vector.broadcast %cst_30 : f32 to vector<16x16xf32>
    %109 = arith.maximumf %106, %108 : vector<16x16xf32>
    %110 = vector.broadcast %107 : f32 to vector<16x16xf32>
    %111 = arith.mulf %110, %109 : vector<16x16xf32>
    %112 = arith.addf %101, %111 : vector<16x16xf32>
    %113 = vector.extract_strided_slice %9 {offsets = [0, 9], sizes = [16, 1], strides = [1, 1]} : vector<16x32xf32> to vector<16x1xf32>
    %114 = vector.extract_strided_slice %7 {offsets = [9, 0], sizes = [1, 16], strides = [1, 1]} : vector<32x16xf32> to vector<1x16xf32>
    %115 = vector.broadcast %113 : vector<16x1xf32> to vector<16x16xf32>
    %116 = vector.broadcast %114 : vector<1x16xf32> to vector<16x16xf32>
    %117 = arith.addf %115, %116 : vector<16x16xf32>
    %c0_31 = arith.constant 0 : index
    %c9 = arith.constant 9 : index
    %118 = memref.load %arg8[%c0_31, %c9] : memref<1x32xf32, #tpu.memory_space<smem>>
    %cst_32 = arith.constant 0.000000e+00 : f32
    %119 = vector.broadcast %cst_32 : f32 to vector<16x16xf32>
    %120 = arith.maximumf %117, %119 : vector<16x16xf32>
    %121 = vector.broadcast %118 : f32 to vector<16x16xf32>
    %122 = arith.mulf %121, %120 : vector<16x16xf32>
    %123 = arith.addf %112, %122 : vector<16x16xf32>
    %124 = vector.extract_strided_slice %9 {offsets = [0, 10], sizes = [16, 1], strides = [1, 1]} : vector<16x32xf32> to vector<16x1xf32>
    %125 = vector.extract_strided_slice %7 {offsets = [10, 0], sizes = [1, 16], strides = [1, 1]} : vector<32x16xf32> to vector<1x16xf32>
    %126 = vector.broadcast %124 : vector<16x1xf32> to vector<16x16xf32>
    %127 = vector.broadcast %125 : vector<1x16xf32> to vector<16x16xf32>
    %128 = arith.addf %126, %127 : vector<16x16xf32>
    %c0_33 = arith.constant 0 : index
    %c10 = arith.constant 10 : index
    %129 = memref.load %arg8[%c0_33, %c10] : memref<1x32xf32, #tpu.memory_space<smem>>
    %cst_34 = arith.constant 0.000000e+00 : f32
    %130 = vector.broadcast %cst_34 : f32 to vector<16x16xf32>
    %131 = arith.maximumf %128, %130 : vector<16x16xf32>
    %132 = vector.broadcast %129 : f32 to vector<16x16xf32>
    %133 = arith.mulf %132, %131 : vector<16x16xf32>
    %134 = arith.addf %123, %133 : vector<16x16xf32>
    %135 = vector.extract_strided_slice %9 {offsets = [0, 11], sizes = [16, 1], strides = [1, 1]} : vector<16x32xf32> to vector<16x1xf32>
    %136 = vector.extract_strided_slice %7 {offsets = [11, 0], sizes = [1, 16], strides = [1, 1]} : vector<32x16xf32> to vector<1x16xf32>
    %137 = vector.broadcast %135 : vector<16x1xf32> to vector<16x16xf32>
    %138 = vector.broadcast %136 : vector<1x16xf32> to vector<16x16xf32>
    %139 = arith.addf %137, %138 : vector<16x16xf32>
    %c0_35 = arith.constant 0 : index
    %c11 = arith.constant 11 : index
    %140 = memref.load %arg8[%c0_35, %c11] : memref<1x32xf32, #tpu.memory_space<smem>>
    %cst_36 = arith.constant 0.000000e+00 : f32
    %141 = vector.broadcast %cst_36 : f32 to vector<16x16xf32>
    %142 = arith.maximumf %139, %141 : vector<16x16xf32>
    %143 = vector.broadcast %140 : f32 to vector<16x16xf32>
    %144 = arith.mulf %143, %142 : vector<16x16xf32>
    %145 = arith.addf %134, %144 : vector<16x16xf32>
    %146 = vector.extract_strided_slice %9 {offsets = [0, 12], sizes = [16, 1], strides = [1, 1]} : vector<16x32xf32> to vector<16x1xf32>
    %147 = vector.extract_strided_slice %7 {offsets = [12, 0], sizes = [1, 16], strides = [1, 1]} : vector<32x16xf32> to vector<1x16xf32>
    %148 = vector.broadcast %146 : vector<16x1xf32> to vector<16x16xf32>
    %149 = vector.broadcast %147 : vector<1x16xf32> to vector<16x16xf32>
    %150 = arith.addf %148, %149 : vector<16x16xf32>
    %c0_37 = arith.constant 0 : index
    %c12 = arith.constant 12 : index
    %151 = memref.load %arg8[%c0_37, %c12] : memref<1x32xf32, #tpu.memory_space<smem>>
    %cst_38 = arith.constant 0.000000e+00 : f32
    %152 = vector.broadcast %cst_38 : f32 to vector<16x16xf32>
    %153 = arith.maximumf %150, %152 : vector<16x16xf32>
    %154 = vector.broadcast %151 : f32 to vector<16x16xf32>
    %155 = arith.mulf %154, %153 : vector<16x16xf32>
    %156 = arith.addf %145, %155 : vector<16x16xf32>
    %157 = vector.extract_strided_slice %9 {offsets = [0, 13], sizes = [16, 1], strides = [1, 1]} : vector<16x32xf32> to vector<16x1xf32>
    %158 = vector.extract_strided_slice %7 {offsets = [13, 0], sizes = [1, 16], strides = [1, 1]} : vector<32x16xf32> to vector<1x16xf32>
    %159 = vector.broadcast %157 : vector<16x1xf32> to vector<16x16xf32>
    %160 = vector.broadcast %158 : vector<1x16xf32> to vector<16x16xf32>
    %161 = arith.addf %159, %160 : vector<16x16xf32>
    %c0_39 = arith.constant 0 : index
    %c13 = arith.constant 13 : index
    %162 = memref.load %arg8[%c0_39, %c13] : memref<1x32xf32, #tpu.memory_space<smem>>
    %cst_40 = arith.constant 0.000000e+00 : f32
    %163 = vector.broadcast %cst_40 : f32 to vector<16x16xf32>
    %164 = arith.maximumf %161, %163 : vector<16x16xf32>
    %165 = vector.broadcast %162 : f32 to vector<16x16xf32>
    %166 = arith.mulf %165, %164 : vector<16x16xf32>
    %167 = arith.addf %156, %166 : vector<16x16xf32>
    %168 = vector.extract_strided_slice %9 {offsets = [0, 14], sizes = [16, 1], strides = [1, 1]} : vector<16x32xf32> to vector<16x1xf32>
    %169 = vector.extract_strided_slice %7 {offsets = [14, 0], sizes = [1, 16], strides = [1, 1]} : vector<32x16xf32> to vector<1x16xf32>
    %170 = vector.broadcast %168 : vector<16x1xf32> to vector<16x16xf32>
    %171 = vector.broadcast %169 : vector<1x16xf32> to vector<16x16xf32>
    %172 = arith.addf %170, %171 : vector<16x16xf32>
    %c0_41 = arith.constant 0 : index
    %c14 = arith.constant 14 : index
    %173 = memref.load %arg8[%c0_41, %c14] : memref<1x32xf32, #tpu.memory_space<smem>>
    %cst_42 = arith.constant 0.000000e+00 : f32
    %174 = vector.broadcast %cst_42 : f32 to vector<16x16xf32>
    %175 = arith.maximumf %172, %174 : vector<16x16xf32>
    %176 = vector.broadcast %173 : f32 to vector<16x16xf32>
    %177 = arith.mulf %176, %175 : vector<16x16xf32>
    %178 = arith.addf %167, %177 : vector<16x16xf32>
    %179 = vector.extract_strided_slice %9 {offsets = [0, 15], sizes = [16, 1], strides = [1, 1]} : vector<16x32xf32> to vector<16x1xf32>
    %180 = vector.extract_strided_slice %7 {offsets = [15, 0], sizes = [1, 16], strides = [1, 1]} : vector<32x16xf32> to vector<1x16xf32>
    %181 = vector.broadcast %179 : vector<16x1xf32> to vector<16x16xf32>
    %182 = vector.broadcast %180 : vector<1x16xf32> to vector<16x16xf32>
    %183 = arith.addf %181, %182 : vector<16x16xf32>
    %c0_43 = arith.constant 0 : index
    %c15 = arith.constant 15 : index
    %184 = memref.load %arg8[%c0_43, %c15] : memref<1x32xf32, #tpu.memory_space<smem>>
    %cst_44 = arith.constant 0.000000e+00 : f32
    %185 = vector.broadcast %cst_44 : f32 to vector<16x16xf32>
    %186 = arith.maximumf %183, %185 : vector<16x16xf32>
    %187 = vector.broadcast %184 : f32 to vector<16x16xf32>
    %188 = arith.mulf %187, %186 : vector<16x16xf32>
    %189 = arith.addf %178, %188 : vector<16x16xf32>
    %190 = vector.extract_strided_slice %9 {offsets = [0, 16], sizes = [16, 1], strides = [1, 1]} : vector<16x32xf32> to vector<16x1xf32>
    %191 = vector.extract_strided_slice %7 {offsets = [16, 0], sizes = [1, 16], strides = [1, 1]} : vector<32x16xf32> to vector<1x16xf32>
    %192 = vector.broadcast %190 : vector<16x1xf32> to vector<16x16xf32>
    %193 = vector.broadcast %191 : vector<1x16xf32> to vector<16x16xf32>
    %194 = arith.addf %192, %193 : vector<16x16xf32>
    %c0_45 = arith.constant 0 : index
    %c16 = arith.constant 16 : index
    %195 = memref.load %arg8[%c0_45, %c16] : memref<1x32xf32, #tpu.memory_space<smem>>
    %cst_46 = arith.constant 0.000000e+00 : f32
    %196 = vector.broadcast %cst_46 : f32 to vector<16x16xf32>
    %197 = arith.maximumf %194, %196 : vector<16x16xf32>
    %198 = vector.broadcast %195 : f32 to vector<16x16xf32>
    %199 = arith.mulf %198, %197 : vector<16x16xf32>
    %200 = arith.addf %189, %199 : vector<16x16xf32>
    %201 = vector.extract_strided_slice %9 {offsets = [0, 17], sizes = [16, 1], strides = [1, 1]} : vector<16x32xf32> to vector<16x1xf32>
    %202 = vector.extract_strided_slice %7 {offsets = [17, 0], sizes = [1, 16], strides = [1, 1]} : vector<32x16xf32> to vector<1x16xf32>
    %203 = vector.broadcast %201 : vector<16x1xf32> to vector<16x16xf32>
    %204 = vector.broadcast %202 : vector<1x16xf32> to vector<16x16xf32>
    %205 = arith.addf %203, %204 : vector<16x16xf32>
    %c0_47 = arith.constant 0 : index
    %c17 = arith.constant 17 : index
    %206 = memref.load %arg8[%c0_47, %c17] : memref<1x32xf32, #tpu.memory_space<smem>>
    %cst_48 = arith.constant 0.000000e+00 : f32
    %207 = vector.broadcast %cst_48 : f32 to vector<16x16xf32>
    %208 = arith.maximumf %205, %207 : vector<16x16xf32>
    %209 = vector.broadcast %206 : f32 to vector<16x16xf32>
    %210 = arith.mulf %209, %208 : vector<16x16xf32>
    %211 = arith.addf %200, %210 : vector<16x16xf32>
    %212 = vector.extract_strided_slice %9 {offsets = [0, 18], sizes = [16, 1], strides = [1, 1]} : vector<16x32xf32> to vector<16x1xf32>
    %213 = vector.extract_strided_slice %7 {offsets = [18, 0], sizes = [1, 16], strides = [1, 1]} : vector<32x16xf32> to vector<1x16xf32>
    %214 = vector.broadcast %212 : vector<16x1xf32> to vector<16x16xf32>
    %215 = vector.broadcast %213 : vector<1x16xf32> to vector<16x16xf32>
    %216 = arith.addf %214, %215 : vector<16x16xf32>
    %c0_49 = arith.constant 0 : index
    %c18 = arith.constant 18 : index
    %217 = memref.load %arg8[%c0_49, %c18] : memref<1x32xf32, #tpu.memory_space<smem>>
    %cst_50 = arith.constant 0.000000e+00 : f32
    %218 = vector.broadcast %cst_50 : f32 to vector<16x16xf32>
    %219 = arith.maximumf %216, %218 : vector<16x16xf32>
    %220 = vector.broadcast %217 : f32 to vector<16x16xf32>
    %221 = arith.mulf %220, %219 : vector<16x16xf32>
    %222 = arith.addf %211, %221 : vector<16x16xf32>
    %223 = vector.extract_strided_slice %9 {offsets = [0, 19], sizes = [16, 1], strides = [1, 1]} : vector<16x32xf32> to vector<16x1xf32>
    %224 = vector.extract_strided_slice %7 {offsets = [19, 0], sizes = [1, 16], strides = [1, 1]} : vector<32x16xf32> to vector<1x16xf32>
    %225 = vector.broadcast %223 : vector<16x1xf32> to vector<16x16xf32>
    %226 = vector.broadcast %224 : vector<1x16xf32> to vector<16x16xf32>
    %227 = arith.addf %225, %226 : vector<16x16xf32>
    %c0_51 = arith.constant 0 : index
    %c19 = arith.constant 19 : index
    %228 = memref.load %arg8[%c0_51, %c19] : memref<1x32xf32, #tpu.memory_space<smem>>
    %cst_52 = arith.constant 0.000000e+00 : f32
    %229 = vector.broadcast %cst_52 : f32 to vector<16x16xf32>
    %230 = arith.maximumf %227, %229 : vector<16x16xf32>
    %231 = vector.broadcast %228 : f32 to vector<16x16xf32>
    %232 = arith.mulf %231, %230 : vector<16x16xf32>
    %233 = arith.addf %222, %232 : vector<16x16xf32>
    %234 = vector.extract_strided_slice %9 {offsets = [0, 20], sizes = [16, 1], strides = [1, 1]} : vector<16x32xf32> to vector<16x1xf32>
    %235 = vector.extract_strided_slice %7 {offsets = [20, 0], sizes = [1, 16], strides = [1, 1]} : vector<32x16xf32> to vector<1x16xf32>
    %236 = vector.broadcast %234 : vector<16x1xf32> to vector<16x16xf32>
    %237 = vector.broadcast %235 : vector<1x16xf32> to vector<16x16xf32>
    %238 = arith.addf %236, %237 : vector<16x16xf32>
    %c0_53 = arith.constant 0 : index
    %c20 = arith.constant 20 : index
    %239 = memref.load %arg8[%c0_53, %c20] : memref<1x32xf32, #tpu.memory_space<smem>>
    %cst_54 = arith.constant 0.000000e+00 : f32
    %240 = vector.broadcast %cst_54 : f32 to vector<16x16xf32>
    %241 = arith.maximumf %238, %240 : vector<16x16xf32>
    %242 = vector.broadcast %239 : f32 to vector<16x16xf32>
    %243 = arith.mulf %242, %241 : vector<16x16xf32>
    %244 = arith.addf %233, %243 : vector<16x16xf32>
    %245 = vector.extract_strided_slice %9 {offsets = [0, 21], sizes = [16, 1], strides = [1, 1]} : vector<16x32xf32> to vector<16x1xf32>
    %246 = vector.extract_strided_slice %7 {offsets = [21, 0], sizes = [1, 16], strides = [1, 1]} : vector<32x16xf32> to vector<1x16xf32>
    %247 = vector.broadcast %245 : vector<16x1xf32> to vector<16x16xf32>
    %248 = vector.broadcast %246 : vector<1x16xf32> to vector<16x16xf32>
    %249 = arith.addf %247, %248 : vector<16x16xf32>
    %c0_55 = arith.constant 0 : index
    %c21 = arith.constant 21 : index
    %250 = memref.load %arg8[%c0_55, %c21] : memref<1x32xf32, #tpu.memory_space<smem>>
    %cst_56 = arith.constant 0.000000e+00 : f32
    %251 = vector.broadcast %cst_56 : f32 to vector<16x16xf32>
    %252 = arith.maximumf %249, %251 : vector<16x16xf32>
    %253 = vector.broadcast %250 : f32 to vector<16x16xf32>
    %254 = arith.mulf %253, %252 : vector<16x16xf32>
    %255 = arith.addf %244, %254 : vector<16x16xf32>
    %256 = vector.extract_strided_slice %9 {offsets = [0, 22], sizes = [16, 1], strides = [1, 1]} : vector<16x32xf32> to vector<16x1xf32>
    %257 = vector.extract_strided_slice %7 {offsets = [22, 0], sizes = [1, 16], strides = [1, 1]} : vector<32x16xf32> to vector<1x16xf32>
    %258 = vector.broadcast %256 : vector<16x1xf32> to vector<16x16xf32>
    %259 = vector.broadcast %257 : vector<1x16xf32> to vector<16x16xf32>
    %260 = arith.addf %258, %259 : vector<16x16xf32>
    %c0_57 = arith.constant 0 : index
    %c22 = arith.constant 22 : index
    %261 = memref.load %arg8[%c0_57, %c22] : memref<1x32xf32, #tpu.memory_space<smem>>
    %cst_58 = arith.constant 0.000000e+00 : f32
    %262 = vector.broadcast %cst_58 : f32 to vector<16x16xf32>
    %263 = arith.maximumf %260, %262 : vector<16x16xf32>
    %264 = vector.broadcast %261 : f32 to vector<16x16xf32>
    %265 = arith.mulf %264, %263 : vector<16x16xf32>
    %266 = arith.addf %255, %265 : vector<16x16xf32>
    %267 = vector.extract_strided_slice %9 {offsets = [0, 23], sizes = [16, 1], strides = [1, 1]} : vector<16x32xf32> to vector<16x1xf32>
    %268 = vector.extract_strided_slice %7 {offsets = [23, 0], sizes = [1, 16], strides = [1, 1]} : vector<32x16xf32> to vector<1x16xf32>
    %269 = vector.broadcast %267 : vector<16x1xf32> to vector<16x16xf32>
    %270 = vector.broadcast %268 : vector<1x16xf32> to vector<16x16xf32>
    %271 = arith.addf %269, %270 : vector<16x16xf32>
    %c0_59 = arith.constant 0 : index
    %c23 = arith.constant 23 : index
    %272 = memref.load %arg8[%c0_59, %c23] : memref<1x32xf32, #tpu.memory_space<smem>>
    %cst_60 = arith.constant 0.000000e+00 : f32
    %273 = vector.broadcast %cst_60 : f32 to vector<16x16xf32>
    %274 = arith.maximumf %271, %273 : vector<16x16xf32>
    %275 = vector.broadcast %272 : f32 to vector<16x16xf32>
    %276 = arith.mulf %275, %274 : vector<16x16xf32>
    %277 = arith.addf %266, %276 : vector<16x16xf32>
    %278 = vector.extract_strided_slice %9 {offsets = [0, 24], sizes = [16, 1], strides = [1, 1]} : vector<16x32xf32> to vector<16x1xf32>
    %279 = vector.extract_strided_slice %7 {offsets = [24, 0], sizes = [1, 16], strides = [1, 1]} : vector<32x16xf32> to vector<1x16xf32>
    %280 = vector.broadcast %278 : vector<16x1xf32> to vector<16x16xf32>
    %281 = vector.broadcast %279 : vector<1x16xf32> to vector<16x16xf32>
    %282 = arith.addf %280, %281 : vector<16x16xf32>
    %c0_61 = arith.constant 0 : index
    %c24 = arith.constant 24 : index
    %283 = memref.load %arg8[%c0_61, %c24] : memref<1x32xf32, #tpu.memory_space<smem>>
    %cst_62 = arith.constant 0.000000e+00 : f32
    %284 = vector.broadcast %cst_62 : f32 to vector<16x16xf32>
    %285 = arith.maximumf %282, %284 : vector<16x16xf32>
    %286 = vector.broadcast %283 : f32 to vector<16x16xf32>
    %287 = arith.mulf %286, %285 : vector<16x16xf32>
    %288 = arith.addf %277, %287 : vector<16x16xf32>
    %289 = vector.extract_strided_slice %9 {offsets = [0, 25], sizes = [16, 1], strides = [1, 1]} : vector<16x32xf32> to vector<16x1xf32>
    %290 = vector.extract_strided_slice %7 {offsets = [25, 0], sizes = [1, 16], strides = [1, 1]} : vector<32x16xf32> to vector<1x16xf32>
    %291 = vector.broadcast %289 : vector<16x1xf32> to vector<16x16xf32>
    %292 = vector.broadcast %290 : vector<1x16xf32> to vector<16x16xf32>
    %293 = arith.addf %291, %292 : vector<16x16xf32>
    %c0_63 = arith.constant 0 : index
    %c25 = arith.constant 25 : index
    %294 = memref.load %arg8[%c0_63, %c25] : memref<1x32xf32, #tpu.memory_space<smem>>
    %cst_64 = arith.constant 0.000000e+00 : f32
    %295 = vector.broadcast %cst_64 : f32 to vector<16x16xf32>
    %296 = arith.maximumf %293, %295 : vector<16x16xf32>
    %297 = vector.broadcast %294 : f32 to vector<16x16xf32>
    %298 = arith.mulf %297, %296 : vector<16x16xf32>
    %299 = arith.addf %288, %298 : vector<16x16xf32>
    %300 = vector.extract_strided_slice %9 {offsets = [0, 26], sizes = [16, 1], strides = [1, 1]} : vector<16x32xf32> to vector<16x1xf32>
    %301 = vector.extract_strided_slice %7 {offsets = [26, 0], sizes = [1, 16], strides = [1, 1]} : vector<32x16xf32> to vector<1x16xf32>
    %302 = vector.broadcast %300 : vector<16x1xf32> to vector<16x16xf32>
    %303 = vector.broadcast %301 : vector<1x16xf32> to vector<16x16xf32>
    %304 = arith.addf %302, %303 : vector<16x16xf32>
    %c0_65 = arith.constant 0 : index
    %c26 = arith.constant 26 : index
    %305 = memref.load %arg8[%c0_65, %c26] : memref<1x32xf32, #tpu.memory_space<smem>>
    %cst_66 = arith.constant 0.000000e+00 : f32
    %306 = vector.broadcast %cst_66 : f32 to vector<16x16xf32>
    %307 = arith.maximumf %304, %306 : vector<16x16xf32>
    %308 = vector.broadcast %305 : f32 to vector<16x16xf32>
    %309 = arith.mulf %308, %307 : vector<16x16xf32>
    %310 = arith.addf %299, %309 : vector<16x16xf32>
    %311 = vector.extract_strided_slice %9 {offsets = [0, 27], sizes = [16, 1], strides = [1, 1]} : vector<16x32xf32> to vector<16x1xf32>
    %312 = vector.extract_strided_slice %7 {offsets = [27, 0], sizes = [1, 16], strides = [1, 1]} : vector<32x16xf32> to vector<1x16xf32>
    %313 = vector.broadcast %311 : vector<16x1xf32> to vector<16x16xf32>
    %314 = vector.broadcast %312 : vector<1x16xf32> to vector<16x16xf32>
    %315 = arith.addf %313, %314 : vector<16x16xf32>
    %c0_67 = arith.constant 0 : index
    %c27 = arith.constant 27 : index
    %316 = memref.load %arg8[%c0_67, %c27] : memref<1x32xf32, #tpu.memory_space<smem>>
    %cst_68 = arith.constant 0.000000e+00 : f32
    %317 = vector.broadcast %cst_68 : f32 to vector<16x16xf32>
    %318 = arith.maximumf %315, %317 : vector<16x16xf32>
    %319 = vector.broadcast %316 : f32 to vector<16x16xf32>
    %320 = arith.mulf %319, %318 : vector<16x16xf32>
    %321 = arith.addf %310, %320 : vector<16x16xf32>
    %322 = vector.extract_strided_slice %9 {offsets = [0, 28], sizes = [16, 1], strides = [1, 1]} : vector<16x32xf32> to vector<16x1xf32>
    %323 = vector.extract_strided_slice %7 {offsets = [28, 0], sizes = [1, 16], strides = [1, 1]} : vector<32x16xf32> to vector<1x16xf32>
    %324 = vector.broadcast %322 : vector<16x1xf32> to vector<16x16xf32>
    %325 = vector.broadcast %323 : vector<1x16xf32> to vector<16x16xf32>
    %326 = arith.addf %324, %325 : vector<16x16xf32>
    %c0_69 = arith.constant 0 : index
    %c28 = arith.constant 28 : index
    %327 = memref.load %arg8[%c0_69, %c28] : memref<1x32xf32, #tpu.memory_space<smem>>
    %cst_70 = arith.constant 0.000000e+00 : f32
    %328 = vector.broadcast %cst_70 : f32 to vector<16x16xf32>
    %329 = arith.maximumf %326, %328 : vector<16x16xf32>
    %330 = vector.broadcast %327 : f32 to vector<16x16xf32>
    %331 = arith.mulf %330, %329 : vector<16x16xf32>
    %332 = arith.addf %321, %331 : vector<16x16xf32>
    %333 = vector.extract_strided_slice %9 {offsets = [0, 29], sizes = [16, 1], strides = [1, 1]} : vector<16x32xf32> to vector<16x1xf32>
    %334 = vector.extract_strided_slice %7 {offsets = [29, 0], sizes = [1, 16], strides = [1, 1]} : vector<32x16xf32> to vector<1x16xf32>
    %335 = vector.broadcast %333 : vector<16x1xf32> to vector<16x16xf32>
    %336 = vector.broadcast %334 : vector<1x16xf32> to vector<16x16xf32>
    %337 = arith.addf %335, %336 : vector<16x16xf32>
    %c0_71 = arith.constant 0 : index
    %c29 = arith.constant 29 : index
    %338 = memref.load %arg8[%c0_71, %c29] : memref<1x32xf32, #tpu.memory_space<smem>>
    %cst_72 = arith.constant 0.000000e+00 : f32
    %339 = vector.broadcast %cst_72 : f32 to vector<16x16xf32>
    %340 = arith.maximumf %337, %339 : vector<16x16xf32>
    %341 = vector.broadcast %338 : f32 to vector<16x16xf32>
    %342 = arith.mulf %341, %340 : vector<16x16xf32>
    %343 = arith.addf %332, %342 : vector<16x16xf32>
    %344 = vector.extract_strided_slice %9 {offsets = [0, 30], sizes = [16, 1], strides = [1, 1]} : vector<16x32xf32> to vector<16x1xf32>
    %345 = vector.extract_strided_slice %7 {offsets = [30, 0], sizes = [1, 16], strides = [1, 1]} : vector<32x16xf32> to vector<1x16xf32>
    %346 = vector.broadcast %344 : vector<16x1xf32> to vector<16x16xf32>
    %347 = vector.broadcast %345 : vector<1x16xf32> to vector<16x16xf32>
    %348 = arith.addf %346, %347 : vector<16x16xf32>
    %c0_73 = arith.constant 0 : index
    %c30 = arith.constant 30 : index
    %349 = memref.load %arg8[%c0_73, %c30] : memref<1x32xf32, #tpu.memory_space<smem>>
    %cst_74 = arith.constant 0.000000e+00 : f32
    %350 = vector.broadcast %cst_74 : f32 to vector<16x16xf32>
    %351 = arith.maximumf %348, %350 : vector<16x16xf32>
    %352 = vector.broadcast %349 : f32 to vector<16x16xf32>
    %353 = arith.mulf %352, %351 : vector<16x16xf32>
    %354 = arith.addf %343, %353 : vector<16x16xf32>
    %355 = vector.extract_strided_slice %9 {offsets = [0, 31], sizes = [16, 1], strides = [1, 1]} : vector<16x32xf32> to vector<16x1xf32>
    %356 = vector.extract_strided_slice %7 {offsets = [31, 0], sizes = [1, 16], strides = [1, 1]} : vector<32x16xf32> to vector<1x16xf32>
    %357 = vector.broadcast %355 : vector<16x1xf32> to vector<16x16xf32>
    %358 = vector.broadcast %356 : vector<1x16xf32> to vector<16x16xf32>
    %359 = arith.addf %357, %358 : vector<16x16xf32>
    %c0_75 = arith.constant 0 : index
    %c31 = arith.constant 31 : index
    %360 = memref.load %arg8[%c0_75, %c31] : memref<1x32xf32, #tpu.memory_space<smem>>
    %cst_76 = arith.constant 0.000000e+00 : f32
    %361 = vector.broadcast %cst_76 : f32 to vector<16x16xf32>
    %362 = arith.maximumf %359, %361 : vector<16x16xf32>
    %363 = vector.broadcast %360 : f32 to vector<16x16xf32>
    %364 = arith.mulf %363, %362 : vector<16x16xf32>
    %365 = arith.addf %354, %364 : vector<16x16xf32>
    %366 = vector.broadcast %11 : vector<16x1xf32> to vector<16x16xf32>
    %367 = vector.broadcast %10 : vector<1x16xf32> to vector<16x16xf32>
    %368 = arith.addf %366, %367 : vector<16x16xf32>
    %cst_77 = arith.constant 2.000000e-01 : f32
    %369 = vector.broadcast %cst_77 : f32 to vector<16x16xf32>
    %370 = arith.mulf %369, %368 : vector<16x16xf32>
    %cst_78 = arith.constant 8.000000e-01 : f32
    %371 = vector.broadcast %cst_78 : f32 to vector<16x16xf32>
    %372 = arith.mulf %371, %365 : vector<16x16xf32>
    %373 = arith.addf %370, %372 : vector<16x16xf32>
    %cst_79 = arith.constant -1.000000e+30 : f32
    %374 = vector.broadcast %cst_79 : f32 to vector<16x16xf32>
    %375 = arith.select %5, %373, %374 : vector<16x16xi1>, vector<16x16xf32>
    %c0_80 = arith.constant 0 : index
    %c0_81 = arith.constant 0 : index
    %376 = vector.load %arg11[%c0_80, %c0_81] : memref<16x1xf32, #tpu.memory_space<vmem>>, vector<16x1xf32>
    %cst_82 = arith.constant dense<0xFF800000> : vector<16xf32>
    %377 = vector.multi_reduction <maximumf>, %375, %cst_82 [1] : vector<16x16xf32> to vector<16xf32>
    %378 = vector.shape_cast %377 : vector<16xf32> to vector<16x1xf32>
    %379 = arith.maximumf %376, %378 : vector<16x1xf32>
    %380 = arith.subf %376, %379 : vector<16x1xf32>
    %381 = math.exp %380 : vector<16x1xf32>
    %382 = vector.broadcast %379 : vector<16x1xf32> to vector<16x16xf32>
    %383 = arith.subf %375, %382 : vector<16x16xf32>
    %384 = math.exp %383 : vector<16x16xf32>
    %cst_83 = arith.constant 0.000000e+00 : f32
    %385 = vector.broadcast %cst_83 : f32 to vector<16x16xf32>
    %386 = arith.select %5, %384, %385 : vector<16x16xi1>, vector<16x16xf32>
    %c0_84 = arith.constant 0 : index
    %c0_85 = arith.constant 0 : index
    %387 = vector.load %arg12[%c0_84, %c0_85] : memref<16x1xf32, #tpu.memory_space<vmem>>, vector<16x1xf32>
    %388 = arith.mulf %381, %387 : vector<16x1xf32>
    %cst_86 = arith.constant dense<0.000000e+00> : vector<16xf32>
    %389 = vector.multi_reduction <add>, %386, %cst_86 [1] : vector<16x16xf32> to vector<16xf32>
    %390 = vector.shape_cast %389 : vector<16xf32> to vector<16x1xf32>
    %391 = arith.addf %388, %390 : vector<16x1xf32>
    %c0_87 = arith.constant 0 : index
    %c0_88 = arith.constant 0 : index
    %392 = vector.load %arg12[%c0_87, %c0_88] : memref<16x1xf32, #tpu.memory_space<vmem>>, vector<16x1xf32>
    tpu.vector_store %arg12[%c0_87, %c0_88], %391 {strides = array<i32>} : memref<16x1xf32, #tpu.memory_space<vmem>>, vector<16x1xf32>,
    %c0_89 = arith.constant 0 : index
    %c0_90 = arith.constant 0 : index
    %393 = vector.load %arg13[%c0_89, %c0_90] : memref<16x32xf32, #tpu.memory_space<vmem>>, vector<16x32xf32>
    %394 = vector.broadcast %381 : vector<16x1xf32> to vector<16x32xf32>
    %395 = arith.mulf %394, %393 : vector<16x32xf32>
    %396 = arith.truncf %386 : vector<16x16xf32> to vector<16x16xbf16>
    %cst_91 = arith.constant dense<0.000000e+00> : vector<16x32xf32>
    %397 = tpu.matmul %396, %12, %cst_91 {dimension_numbers = #tpu.dot_dimension_numbers<[1], [0], [0], [1], [0, 0, 1, 1], [], []>} : vector<16x16xbf16>, vector<16x32xbf16>, vector<16x32xf32> -> vector<16x32xf32>
    %398 = arith.addf %395, %397 : vector<16x32xf32>
    %c0_92 = arith.constant 0 : index
    %c0_93 = arith.constant 0 : index
    %399 = vector.load %arg13[%c0_92, %c0_93] : memref<16x32xf32, #tpu.memory_space<vmem>>, vector<16x32xf32>
    tpu.vector_store %arg13[%c0_92, %c0_93], %398 {strides = array<i32>} : memref<16x32xf32, #tpu.memory_space<vmem>>, vector<16x32xf32>,
    %c0_94 = arith.constant 0 : index
    %c0_95 = arith.constant 0 : index
    %400 = vector.load %arg11[%c0_94, %c0_95] : memref<16x1xf32, #tpu.memory_space<vmem>>, vector<16x1xf32>
    tpu.vector_store %arg11[%c0_94, %c0_95], %379 {strides = array<i32>} : memref<16x1xf32, #tpu.memory_space<vmem>>, vector<16x1xf32>,
    %c0_i32_96 = arith.constant 0 : i32
    %401 = arith.cmpi eq, %arg1, %c0_i32_96 : i32
    %402 = arith.extui %401 : i1 to i32
    %c0_i32_97 = arith.constant 0 : i32
    %403 = arith.cmpi ne, %402, %c0_i32_97 : i32
    scf.if %403 {
      %c0_98 = arith.constant 0 : index
      %c0_99 = arith.constant 0 : index
      %404 = vector.load %arg12[%c0_98, %c0_99] : memref<16x1xf32, #tpu.memory_space<vmem>>, vector<16x1xf32>
      %cst_100 = arith.constant 1.000000e+00 : f32
      %405 = vector.broadcast %cst_100 : f32 to vector<16x1xf32>
      %406 = arith.divf %405, %404 : vector<16x1xf32>
      %c0_101 = arith.constant 0 : index
      %c0_102 = arith.constant 0 : index
      %407 = vector.load %arg13[%c0_101, %c0_102] : memref<16x32xf32, #tpu.memory_space<vmem>>, vector<16x32xf32>
      %408 = vector.broadcast %406 : vector<16x1xf32> to vector<16x32xf32>
      %409 = arith.mulf %407, %408 : vector<16x32xf32>
      %c0_103 = arith.constant 0 : index
      %c0_104 = arith.constant 0 : index
      %410 = vector.load %arg9[%c0_103, %c0_104] : memref<1x32xf32, #tpu.memory_space<vmem>>, vector<1x32xf32>
      %411 = vector.broadcast %410 : vector<1x32xf32> to vector<16x32xf32>
      %412 = arith.addf %409, %411 : vector<16x32xf32>
      %cst_105 = arith.constant 0.000000e+00 : f32
      %413 = vector.broadcast %cst_105 : f32 to vector<16x32xf32>
      %414 = arith.cmpf ogt, %412, %413 : vector<16x32xf32>
      %cst_106 = arith.constant 0.00999999977 : f32
      %415 = vector.broadcast %cst_106 : f32 to vector<16x32xf32>
      %416 = arith.mulf %415, %412 : vector<16x32xf32>
      %417 = arith.select %414, %412, %416 : vector<16x32xi1>, vector<16x32xf32>
      %418 = arith.truncf %417 : vector<16x32xf32> to vector<16x32xbf16>
      %c0_107 = arith.constant 0 : index
      %c0_108 = arith.constant 0 : index
      %419 = vector.load %arg10[%c0_107, %c0_108] : memref<16x32xbf16, #tpu.memory_space<vmem>>, vector<16x32xbf16>
      tpu.vector_store %arg10[%c0_107, %c0_108], %418 {strides = array<i32>} : memref<16x32xbf16, #tpu.memory_space<vmem>>, vector<16x32xbf16>,
    } else {
    }
    return
  }
  func.func @transform_0(%arg0: i32, %arg1: i32) -> (i32, i32) {
    %c0_i32 = arith.constant 0 : i32
    return %arg0, %arg1 : i32, i32
  }
  func.func @transform_1(%arg0: i32, %arg1: i32) -> (i32, i32) {
    %c0_i32 = arith.constant 0 : i32
    %c0_i32_0 = arith.constant 0 : i32
    return %arg1, %c0_i32 : i32, i32
  }
  func.func @transform_2(%arg0: i32, %arg1: i32) -> (i32, i32) {
    %c0_i32 = arith.constant 0 : i32
    %c0_i32_0 = arith.constant 0 : i32
    return %c0_i32, %arg1 : i32, i32
  }
  func.func @transform_3(%arg0: i32, %arg1: i32) -> (i32, i32) {
    %c0_i32 = arith.constant 0 : i32
    %c0_i32_0 = arith.constant 0 : i32
    return %arg0, %c0_i32 : i32, i32
  }
  func.func @transform_4(%arg0: i32, %arg1: i32) -> (i32, i32) {
    %c0_i32 = arith.constant 0 : i32
    %c0_i32_0 = arith.constant 0 : i32
    return %c0_i32, %arg1 : i32, i32
  }
  func.func @transform_5(%arg0: i32, %arg1: i32) -> (i32, i32) {
    %c0_i32 = arith.constant 0 : i32
    %c0_i32_0 = arith.constant 0 : i32
    return %arg0, %c0_i32 : i32, i32
  }
  func.func @transform_6(%arg0: i32, %arg1: i32) -> (i32, i32) {
    %c0_i32 = arith.constant 0 : i32
    %c0_i32_0 = arith.constant 0 : i32
    %c0_i32_1 = arith.constant 0 : i32
    return %c0_i32, %c0_i32_0 : i32, i32
  }
  func.func @transform_7(%arg0: i32, %arg1: i32) -> (i32, i32) {
    %c0_i32 = arith.constant 0 : i32
    %c0_i32_0 = arith.constant 0 : i32
    %c0_i32_1 = arith.constant 0 : i32
    return %c0_i32, %c0_i32_0 : i32, i32
  }
  func.func @transform_8(%arg0: i32, %arg1: i32) -> (i32, i32) {
    %c0_i32 = arith.constant 0 : i32
    %c0_i32_0 = arith.constant 0 : i32
    return %arg0, %c0_i32 : i32, i32
  }
}

module attributes {stable_mosaic.version = 11 : i64} {
  func.func @_pool_mlp_kernel(%arg0: i32, %arg1: memref<2x16xf32, #tpu.memory_space<vmem>>, %arg2: memref<16x32xbf16, #tpu.memory_space<vmem>>, %arg3: memref<32x32xf32, #tpu.memory_space<vmem>>, %arg4: memref<1x32xf32, #tpu.memory_space<vmem>>, %arg5: memref<32x16xf32, #tpu.memory_space<vmem>>, %arg6: memref<1x16xf32, #tpu.memory_space<vmem>>, %arg7: memref<2x16xf32, #tpu.memory_space<vmem>>, %arg8: memref<2x32xf32, #tpu.memory_space<vmem>>) attributes {dimension_semantics = [#tpu.dimension_semantics<arbitrary>], iteration_bounds = array<i64: 1>, scalar_prefetch = 0 : i64, scratch_operands = 1 : i64, tpu.core_type = #tpu.core_type<tc>, window_params = [{transform_indices = @transform_0, window_bounds = array<i64: 2, 16>}, {transform_indices = @transform_1, window_bounds = array<i64: 16, 32>}, {pipeline_mode = #tpu.pipeline_mode<synchronous>, transform_indices = @transform_2, window_bounds = array<i64: 32, 32>}, {pipeline_mode = #tpu.pipeline_mode<synchronous>, transform_indices = @transform_3, window_bounds = array<i64: 1, 32>}, {pipeline_mode = #tpu.pipeline_mode<synchronous>, transform_indices = @transform_4, window_bounds = array<i64: 32, 16>}, {pipeline_mode = #tpu.pipeline_mode<synchronous>, transform_indices = @transform_5, window_bounds = array<i64: 1, 16>}, {pipeline_mode = #tpu.pipeline_mode<synchronous>, transform_indices = @transform_6, window_bounds = array<i64: 2, 16>}]} {
    %c0_i32 = arith.constant 0 : i32
    %0 = arith.cmpi eq, %arg0, %c0_i32 : i32
    %1 = arith.extui %0 : i1 to i32
    %c0_i32_0 = arith.constant 0 : i32
    %2 = arith.cmpi ne, %1, %c0_i32_0 : i32
    scf.if %2 {
      %cst_10 = arith.constant 0.000000e+00 : f32
      %13 = vector.broadcast %cst_10 : f32 to vector<2x32xf32>
      %c0_11 = arith.constant 0 : index
      %c0_12 = arith.constant 0 : index
      %14 = vector.load %arg8[%c0_11, %c0_12] : memref<2x32xf32, #tpu.memory_space<vmem>>, vector<2x32xf32>
      tpu.vector_store %arg8[%c0_11, %c0_12], %13 {strides = array<i32>} : memref<2x32xf32, #tpu.memory_space<vmem>>, vector<2x32xf32>,
    } else {
    }
    %c0 = arith.constant 0 : index
    %c0_1 = arith.constant 0 : index
    %3 = vector.load %arg8[%c0, %c0_1] : memref<2x32xf32, #tpu.memory_space<vmem>>, vector<2x32xf32>
    %c0_2 = arith.constant 0 : index
    %c0_3 = arith.constant 0 : index
    %4 = vector.load %arg1[%c0_2, %c0_3] : memref<2x16xf32, #tpu.memory_space<vmem>>, vector<2x16xf32>
    %5 = arith.truncf %4 : vector<2x16xf32> to vector<2x16xbf16>
    %c0_4 = arith.constant 0 : index
    %c0_5 = arith.constant 0 : index
    %6 = vector.load %arg2[%c0_4, %c0_5] : memref<16x32xbf16, #tpu.memory_space<vmem>>, vector<16x32xbf16>
    %cst = arith.constant dense<0.000000e+00> : vector<2x32xf32>
    %7 = tpu.matmul %5, %6, %cst {dimension_numbers = #tpu.dot_dimension_numbers<[1], [0], [0], [1], [0, 0, 1, 1], [], []>} : vector<2x16xbf16>, vector<16x32xbf16>, vector<2x32xf32> -> vector<2x32xf32>
    %8 = arith.addf %3, %7 : vector<2x32xf32>
    %c0_6 = arith.constant 0 : index
    %c0_7 = arith.constant 0 : index
    %9 = vector.load %arg8[%c0_6, %c0_7] : memref<2x32xf32, #tpu.memory_space<vmem>>, vector<2x32xf32>
    tpu.vector_store %arg8[%c0_6, %c0_7], %8 {strides = array<i32>} : memref<2x32xf32, #tpu.memory_space<vmem>>, vector<2x32xf32>,
    %c0_i32_8 = arith.constant 0 : i32
    %10 = arith.cmpi eq, %arg0, %c0_i32_8 : i32
    %11 = arith.extui %10 : i1 to i32
    %c0_i32_9 = arith.constant 0 : i32
    %12 = arith.cmpi ne, %11, %c0_i32_9 : i32
    scf.if %12 {
      %c0_10 = arith.constant 0 : index
      %c0_11 = arith.constant 0 : index
      %13 = vector.load %arg8[%c0_10, %c0_11] : memref<2x32xf32, #tpu.memory_space<vmem>>, vector<2x32xf32>
      %c0_12 = arith.constant 0 : index
      %c0_13 = arith.constant 0 : index
      %14 = vector.load %arg3[%c0_12, %c0_13] : memref<32x32xf32, #tpu.memory_space<vmem>>, vector<32x32xf32>
      %cst_14 = arith.constant dense<0.000000e+00> : vector<2x32xf32>
      %15 = tpu.matmul %13, %14, %cst_14 {dimension_numbers = #tpu.dot_dimension_numbers<[1], [0], [0], [1], [0, 0, 1, 1], [], []>} : vector<2x32xf32>, vector<32x32xf32>, vector<2x32xf32> -> vector<2x32xf32>
      %c0_15 = arith.constant 0 : index
      %c0_16 = arith.constant 0 : index
      %16 = vector.load %arg4[%c0_15, %c0_16] : memref<1x32xf32, #tpu.memory_space<vmem>>, vector<1x32xf32>
      %17 = vector.broadcast %16 : vector<1x32xf32> to vector<2x32xf32>
      %18 = arith.addf %15, %17 : vector<2x32xf32>
      %cst_17 = arith.constant 0.000000e+00 : f32
      %19 = vector.broadcast %cst_17 : f32 to vector<2x32xf32>
      %20 = arith.cmpf ogt, %18, %19 : vector<2x32xf32>
      %cst_18 = arith.constant 0.00999999977 : f32
      %21 = vector.broadcast %cst_18 : f32 to vector<2x32xf32>
      %22 = arith.mulf %21, %18 : vector<2x32xf32>
      %23 = arith.select %20, %18, %22 : vector<2x32xi1>, vector<2x32xf32>
      %c0_19 = arith.constant 0 : index
      %c0_20 = arith.constant 0 : index
      %24 = vector.load %arg5[%c0_19, %c0_20] : memref<32x16xf32, #tpu.memory_space<vmem>>, vector<32x16xf32>
      %cst_21 = arith.constant dense<0.000000e+00> : vector<2x16xf32>
      %25 = tpu.matmul %23, %24, %cst_21 {dimension_numbers = #tpu.dot_dimension_numbers<[1], [0], [0], [1], [0, 0, 1, 1], [], []>} : vector<2x32xf32>, vector<32x16xf32>, vector<2x16xf32> -> vector<2x16xf32>
      %c0_22 = arith.constant 0 : index
      %c0_23 = arith.constant 0 : index
      %26 = vector.load %arg6[%c0_22, %c0_23] : memref<1x16xf32, #tpu.memory_space<vmem>>, vector<1x16xf32>
      %27 = vector.broadcast %26 : vector<1x16xf32> to vector<2x16xf32>
      %28 = arith.addf %25, %27 : vector<2x16xf32>
      %c0_24 = arith.constant 0 : index
      %c0_25 = arith.constant 0 : index
      %29 = vector.load %arg7[%c0_24, %c0_25] : memref<2x16xf32, #tpu.memory_space<vmem>>, vector<2x16xf32>
      tpu.vector_store %arg7[%c0_24, %c0_25], %28 {strides = array<i32>} : memref<2x16xf32, #tpu.memory_space<vmem>>, vector<2x16xf32>,
    } else {
    }
    return
  }
  func.func @transform_0(%arg0: i32) -> (i32, i32) {
    %c0_i32 = arith.constant 0 : i32
    %c0_i32_0 = arith.constant 0 : i32
    return %c0_i32, %arg0 : i32, i32
  }
  func.func @transform_1(%arg0: i32) -> (i32, i32) {
    %c0_i32 = arith.constant 0 : i32
    %c0_i32_0 = arith.constant 0 : i32
    return %arg0, %c0_i32 : i32, i32
  }
  func.func @transform_2(%arg0: i32) -> (i32, i32) {
    %c0_i32 = arith.constant 0 : i32
    %c0_i32_0 = arith.constant 0 : i32
    %c0_i32_1 = arith.constant 0 : i32
    return %c0_i32, %c0_i32_0 : i32, i32
  }
  func.func @transform_3(%arg0: i32) -> (i32, i32) {
    %c0_i32 = arith.constant 0 : i32
    %c0_i32_0 = arith.constant 0 : i32
    %c0_i32_1 = arith.constant 0 : i32
    return %c0_i32, %c0_i32_0 : i32, i32
  }
  func.func @transform_4(%arg0: i32) -> (i32, i32) {
    %c0_i32 = arith.constant 0 : i32
    %c0_i32_0 = arith.constant 0 : i32
    %c0_i32_1 = arith.constant 0 : i32
    return %c0_i32, %c0_i32_0 : i32, i32
  }
  func.func @transform_5(%arg0: i32) -> (i32, i32) {
    %c0_i32 = arith.constant 0 : i32
    %c0_i32_0 = arith.constant 0 : i32
    %c0_i32_1 = arith.constant 0 : i32
    return %c0_i32, %c0_i32_0 : i32, i32
  }
  func.func @transform_6(%arg0: i32) -> (i32, i32) {
    %c0_i32 = arith.constant 0 : i32
    %c0_i32_0 = arith.constant 0 : i32
    %c0_i32_1 = arith.constant 0 : i32
    return %c0_i32, %c0_i32_0 : i32, i32
  }
}

</mosaic_0001>

<llo_original>
// kernel: gat_perso_forward.5
$region0: #{gat_perso_forward.5}
  #allocation0 [shape = 'u32[]', space=smem, size = 0x4, offset = 0x4, fixed_abs, tag = 'smem constant byte address 0x4 - core index']
  #allocation1 [shape = 'u32[144,128]{1,0:T(1,128)}', space=vmem, size = 0x12000, scoped, tag = 'internal scratch']
  %s0 = inlined_call_operand.vmem [shape: f32[16,8], index: 0, kind: input, shape index: {}]
  %s1 = inlined_call_operand.vmem [shape: bf16[8,256], index: 1, kind: input, shape index: {}]
  %s2 = inlined_call_operand.vmem [shape: f32[1,256], index: 2, kind: input, shape index: {}]
  %s3 = inlined_call_operand.vmem [shape: bf16[16,256], index: 3, kind: output, shape index: {}]
  %s4 = sld [smem:[#allocation0]]
  $region22: #{gat_perso_forward.5} parent=0
    _
  %s6 = ssub.s32 1, %s4
  %s7 = scalar_select 0, %s6, %s4
  // Predicated region
  $region2: #{gat_perso_forward.5} parent=0 // pred_check
    _
  $region3: #{gat_perso_forward.5} parent=0 // pred_check_branch
    %9 = sbr.rel (0) target = $region5
  $region4: #{gat_perso_forward.5} parent=0 // pred_region
    _
  $region5: #{gat_perso_forward.5} parent=0 // pred_fallthru
    _
  // Predicated region
  $region6: #{gat_perso_forward.5} parent=0 // pred_check
    _
  $region7: #{gat_perso_forward.5} parent=0 // pred_check_branch
    %11 = sbr.rel (0) target = $region9
  $region8: #{gat_perso_forward.5} parent=0 // pred_region
    _
  $region9: #{gat_perso_forward.5} parent=0 // pred_fallthru
    _
  // Predicated region
  $region10: #{gat_perso_forward.5} parent=0 // pred_check
    _
  $region11: #{gat_perso_forward.5} parent=0 // pred_check_branch
    %13 = sbr.rel (0) target = $region13
  $region12: #{gat_perso_forward.5} parent=0 // pred_region
    _
  $region13: #{gat_perso_forward.5} parent=0 // pred_fallthru
    _
  %v15 = vld [vmem:[%s0] sm:$0xff]
  %v16 = vld [vmem:[%s0 + $0x8] sm:$0xff]
  %v17 = vpack.c.bf16 %v16, %v15
  %v18 = vld [vmem:[%s1] sm:$0xff]
  %v19 = vld [vmem:[%s2] sm:$0x3]
  %v21 = vlaneseq
  %v22 = vshrl.u32 %v21, 7
  %v23 = vsub.s32 0, %v22
  %v24 = vrot.slane %v19, %v23
  %v25 = vlaneseq
  %v26 = vshrl.u32 %v25, 7
  %v27 = vsub.s32 1, %v26
  %v28 = vrot.slane %v19, %v27
  %v32 = vunpack.c.l.b16 %v18
  %v33 = vunpack.c.h.b16 %v18
  %v34 = vpack.c.b16 %v32, %v32
  %v35 = vpack.c.b16 %v33, %v33
  %vm36 = vcmask 64512
  %v38 = vsel %vm36, %v17, 0
  %vm40 = vcmask 1043456
  %v42 = vsel %vm40, %v34, 0
  %v45 = vsel %vm40, %v35, 0
  %47 = vmatprep.subr.bf16.mxu0 %v45
  %48 = vmatpush1.bf16.msra.mxu0 %v42
  %49 = vmatprep.subr.bf16.mxu0 0
  %50 = vmatpush1.bf16.msra.mxu0 0
  %51 = vmatprep.subr.bf16.mxu0 0
  %52 = vmatpush1.bf16.msra.mxu0 0
  %53 = vmatprep.subr.bf16.mxu0 0
  %54 = vmatpush1.bf16.msra.mxu0 0
  %55 = vmatprep.subr.bf16.mxu0 0
  %56 = vmatpush1.bf16.msra.mxu0 0
  %57 = vmatprep.subr.bf16.mxu0 0
  %58 = vmatpush1.bf16.msra.mxu0 0
  %59 = vmatprep.subr.bf16.mxu0 0
  %60 = vmatpush1.bf16.msra.mxu0 0
  %61 = vmatprep.subr.bf16.mxu0 0
  %62 = vmatpush1.bf16.msra.mxu0 0
  %63 = vmatprep.subr.bf16.mxu0 0
  %64 = vmatpush1.bf16.msra.mxu0 0
  %65 = vmatprep.subr.bf16.mxu0 0
  %66 = vmatpush1.bf16.msra.mxu0 0
  %67 = vmatprep.subr.bf16.mxu0 0
  %68 = vmatpush1.bf16.msra.mxu0 0
  %69 = vmatprep.subr.bf16.mxu0 0
  %70 = vmatpush1.bf16.msra.mxu0 0
  %71 = vmatprep.subr.bf16.mxu0 0
  %72 = vmatpush1.bf16.msra.mxu0 0
  %73 = vmatprep.subr.bf16.mxu0 0
  %74 = vmatpush1.bf16.msra.mxu0 0
  %75 = vmatprep.subr.bf16.mxu0 0
  %76 = vmatpush1.bf16.msra.mxu0 0
  %77 = vmatprep.subr.bf16.mxu0 0
  %78 = vmatpush1.bf16.msra.mxu0 0
  %79 = vmatprep.mubr.bf16.mxu0 0
  %80 = vmatmul.mubr.bf16.gmra.mrb[0].mxu0 %v38
  %v81 = vpop.f32.mrb[0].mxu0
  %v82 = vadd.f32 %v24, %v81
  %v83 = vpop.f32.mrb[0].mxu0
  %v84 = vadd.f32 %v28, %v83
  %v85 = vpop.f32.mrb[0].mxu0
  %v86 = vadd.f32 %v24, %v85
  %v87 = vpop.f32.mrb[0].mxu0
  %v88 = vadd.f32 %v28, %v87
  %89 = vdwg.mxu0
  %v90 = vpack.c.bf16 %v86, %v82
  %v91 = vpack.c.bf16 %v88, %v84
  %v94 = vunpack.c.l.b16 %v90
  %v95 = vunpack.c.l.b16 %v91
  %v96 = vunpack.c.h.b16 %v90
  %v97 = vunpack.c.h.b16 %v91
  %v98 = vpack.c.b16 %v95, %v94
  %v99 = vpack.c.b16 %v97, %v96
  %102 = vst [vmem:[%s3] sm:$0xff] %v98
  %103 = vst [vmem:[%s3 + $0x8] sm:$0xff] %v99
  // Predicated region
  $region14: #{gat_perso_forward.5} parent=0 // pred_check
    _
  $region15: #{gat_perso_forward.5} parent=0 // pred_check_branch
    %105 = sbr.rel (0) target = $region17
  $region16: #{gat_perso_forward.5} parent=0 // pred_region
    _
  $region17: #{gat_perso_forward.5} parent=0 // pred_fallthru
    _
  // Predicated region
  $region18: #{gat_perso_forward.5} parent=0 // pred_check
    _
  $region19: #{gat_perso_forward.5} parent=0 // pred_check_branch
    %107 = sbr.rel (0) target = $region21
  $region20: #{gat_perso_forward.5} parent=0 // pred_region
    _
  $region21: #{gat_perso_forward.5} parent=0 // pred_fallthru
    _

// kernel: gat_perso_forward.7
$region0: #{gat_perso_forward.7}
  #allocation0 [shape = 'u32[]', space=smem, size = 0x4, offset = 0x4, fixed_abs, tag = 'smem constant byte address 0x4 - core index']
  #allocation1 [shape = 'u32[144,128]{1,0:T(1,128)}', space=vmem, size = 0x12000, scoped, tag = 'internal scratch']
  %s0 = inlined_call_operand.vmem [shape: bf16[16,128], index: 0, kind: input, shape index: {}]
  %s1 = inlined_call_operand.vmem [shape: bf16[128,64], index: 1, kind: input, shape index: {}]
  %s2 = inlined_call_operand.vmem [shape: f32[1,64], index: 2, kind: input, shape index: {}]
  %s3 = inlined_call_operand.vmem [shape: bf16[16,64], index: 3, kind: output, shape index: {}]
  %s4 = sld [smem:[#allocation0]]
  $region22: #{gat_perso_forward.7} parent=0
    _
  %s6 = ssub.s32 1, %s4
  %s7 = scalar_select 0, %s6, %s4
  // Predicated region
  $region2: #{gat_perso_forward.7} parent=0 // pred_check
    _
  $region3: #{gat_perso_forward.7} parent=0 // pred_check_branch
    %9 = sbr.rel (0) target = $region5
  $region4: #{gat_perso_forward.7} parent=0 // pred_region
    _
  $region5: #{gat_perso_forward.7} parent=0 // pred_fallthru
    _
  // Predicated region
  $region6: #{gat_perso_forward.7} parent=0 // pred_check
    _
  $region7: #{gat_perso_forward.7} parent=0 // pred_check_branch
    %11 = sbr.rel (0) target = $region9
  $region8: #{gat_perso_forward.7} parent=0 // pred_region
    _
  $region9: #{gat_perso_forward.7} parent=0 // pred_fallthru
    _
  // Predicated region
  $region10: #{gat_perso_forward.7} parent=0 // pred_check
    _
  $region11: #{gat_perso_forward.7} parent=0 // pred_check_branch
    %13 = sbr.rel (0) target = $region13
  $region12: #{gat_perso_forward.7} parent=0 // pred_region
    _
  $region13: #{gat_perso_forward.7} parent=0 // pred_fallthru
    _
  %v15 = vld [vmem:[%s0] sm:$0xf]
  %v16 = vld [vmem:[%s0 + $0x4] sm:$0xf]
  %v17 = vld [vmem:[%s1] sm:$0xf]
  %v18 = vld [vmem:[%s1 + $0x4] sm:$0xf]
  %v19 = vld [vmem:[%s1 + $0x8] sm:$0xf]
  %v20 = vld [vmem:[%s1 + $0xc] sm:$0xf]
  %v21 = vld [vmem:[%s1 + $0x10] sm:$0xf]
  %v22 = vld [vmem:[%s1 + $0x14] sm:$0xf]
  %v23 = vld [vmem:[%s1 + $0x18] sm:$0xf]
  %v24 = vld [vmem:[%s1 + $0x1c] sm:$0xf]
  %v25 = vld [vmem:[%s1 + $0x20] sm:$0xf]
  %v26 = vld [vmem:[%s1 + $0x24] sm:$0xf]
  %v27 = vld [vmem:[%s1 + $0x28] sm:$0xf]
  %v28 = vld [vmem:[%s1 + $0x2c] sm:$0xf]
  %v29 = vld [vmem:[%s1 + $0x30] sm:$0xf]
  %v30 = vld [vmem:[%s1 + $0x34] sm:$0xf]
  %v31 = vld [vmem:[%s1 + $0x38] sm:$0xf]
  %v32 = vld [vmem:[%s1 + $0x3c] sm:$0xf]
  %v33 = vld [vmem:[%s2] sm:$0x1]
  %v35 = vlaneseq
  %v36 = vshrl.u32 %v35, 7
  %v37 = vsub.s32 0, %v36
  %v38 = vrot.slane %v33, %v37
  %v42 = vunpack.c.l.b16 %v15
  %v43 = vunpack.c.l.b16 %v16
  %v44 = vpack.c.b16 %v43, %v42
  %v62 = vunpack.c.l.b16 %v17
  %v63 = vunpack.c.l.b16 %v18
  %v64 = vunpack.c.l.b16 %v19
  %v65 = vunpack.c.l.b16 %v20
  %v66 = vunpack.c.l.b16 %v21
  %v67 = vunpack.c.l.b16 %v22
  %v68 = vunpack.c.l.b16 %v23
  %v69 = vunpack.c.l.b16 %v24
  %v70 = vunpack.c.l.b16 %v25
  %v71 = vunpack.c.l.b16 %v26
  %v72 = vunpack.c.l.b16 %v27
  %v73 = vunpack.c.l.b16 %v28
  %v74 = vunpack.c.l.b16 %v29
  %v75 = vunpack.c.l.b16 %v30
  %v76 = vunpack.c.l.b16 %v31
  %v77 = vunpack.c.l.b16 %v32
  %v78 = vpack.c.b16 %v63, %v62
  %v79 = vpack.c.b16 %v65, %v64
  %v80 = vpack.c.b16 %v67, %v66
  %v81 = vpack.c.b16 %v69, %v68
  %v82 = vpack.c.b16 %v71, %v70
  %v83 = vpack.c.b16 %v73, %v72
  %v84 = vpack.c.b16 %v75, %v74
  %v85 = vpack.c.b16 %v77, %v76
  %94 = vmatprep.subr.bf16.mxu0 0
  %95 = vmatpush1.bf16.msra.mxu0 %v78
  %96 = vmatprep.subr.bf16.mxu0 0
  %97 = vmatpush1.bf16.msra.mxu0 %v79
  %98 = vmatprep.subr.bf16.mxu0 0
  %99 = vmatpush1.bf16.msra.mxu0 %v80
  %100 = vmatprep.subr.bf16.mxu0 0
  %101 = vmatpush1.bf16.msra.mxu0 %v81
  %102 = vmatprep.subr.bf16.mxu0 0
  %103 = vmatpush1.bf16.msra.mxu0 %v82
  %104 = vmatprep.subr.bf16.mxu0 0
  %105 = vmatpush1.bf16.msra.mxu0 %v83
  %106 = vmatprep.subr.bf16.mxu0 0
  %107 = vmatpush1.bf16.msra.mxu0 %v84
  %108 = vmatprep.subr.bf16.mxu0 0
  %109 = vmatpush1.bf16.msra.mxu0 %v85
  %110 = vmatprep.subr.bf16.mxu0 0
  %111 = vmatpush1.bf16.msra.mxu0 0
  %112 = vmatprep.subr.bf16.mxu0 0
  %113 = vmatpush1.bf16.msra.mxu0 0
  %114 = vmatprep.subr.bf16.mxu0 0
  %115 = vmatpush1.bf16.msra.mxu0 0
  %116 = vmatprep.subr.bf16.mxu0 0
  %117 = vmatpush1.bf16.msra.mxu0 0
  %118 = vmatprep.subr.bf16.mxu0 0
  %119 = vmatpush1.bf16.msra.mxu0 0
  %120 = vmatprep.subr.bf16.mxu0 0
  %121 = vmatpush1.bf16.msra.mxu0 0
  %122 = vmatprep.subr.bf16.mxu0 0
  %123 = vmatpush1.bf16.msra.mxu0 0
  %124 = vmatprep.subr.bf16.mxu0 0
  %125 = vmatpush1.bf16.msra.mxu0 0
  %126 = vmatprep.mubr.bf16.mxu0 0
  %127 = vmatmul.mubr.bf16.gmra.mrb[0].mxu0 %v44
  %v128 = vpop.f32.mrb[0].mxu0
  %v129 = vadd.f32 %v38, %v128
  %v130 = vpop.f32.mrb[0].mxu0
  %v131 = vpop.f32.mrb[0].mxu0
  %v132 = vadd.f32 %v38, %v131
  %v133 = vpop.f32.mrb[0].mxu0
  %134 = vdwg.mxu0
  %v135 = vpack.c.bf16 %v132, %v129
  %v137 = vunpack.c.l.b16 %v135
  %v138 = vunpack.c.h.b16 %v135
  %v139 = vpack.c.b16 %v137, %v137
  %v140 = vpack.c.b16 %v138, %v138
  %vm143 = vcmask 519168
  %144 = vst.msk [vmem:[%s3] sm:$0xf] %vm143, %v139
  %145 = vst.msk [vmem:[%s3 + $0x4] sm:$0xf] %vm143, %v140
  // Predicated region
  $region14: #{gat_perso_forward.7} parent=0 // pred_check
    _
  $region15: #{gat_perso_forward.7} parent=0 // pred_check_branch
    %147 = sbr.rel (0) target = $region17
  $region16: #{gat_perso_forward.7} parent=0 // pred_region
    _
  $region17: #{gat_perso_forward.7} parent=0 // pred_fallthru
    _
  // Predicated region
  $region18: #{gat_perso_forward.7} parent=0 // pred_check
    _
  $region19: #{gat_perso_forward.7} parent=0 // pred_check_branch
    %149 = sbr.rel (0) target = $region21
  $region20: #{gat_perso_forward.7} parent=0 // pred_region
    _
  $region21: #{gat_perso_forward.7} parent=0 // pred_fallthru
    _

// kernel: gat_perso_forward.9
$region0: #{gat_perso_forward.9}
  #allocation0 [shape = 'u32[]', space=smem, size = 0x4, offset = 0x4, fixed_abs, tag = 'smem constant byte address 0x4 - core index']
  #allocation1 [shape = 'u32[144,128]{1,0:T(1,128)}', space=vmem, size = 0x12000, scoped, tag = 'internal scratch']
  #allocation2 [shape = 'f32[2,32]{1,0:T(2,128)}', space=vmem, size = 0x400, scoped, tag = 'scratch operand']
  %s0 = inlined_call_operand.vmem [shape: f32[2,16], index: 0, kind: input, shape index: {}]
  %s1 = inlined_call_operand.vmem [shape: bf16[16,32], index: 1, kind: input, shape index: {}]
  %s2 = inlined_call_operand.vmem [shape: f32[32,32], index: 2, kind: input, shape index: {}]
  %s3 = inlined_call_operand.vmem [shape: f32[1,32], index: 3, kind: input, shape index: {}]
  %s4 = inlined_call_operand.vmem [shape: f32[32,16], index: 4, kind: input, shape index: {}]
  %s5 = inlined_call_operand.vmem [shape: f32[1,16], index: 5, kind: input, shape index: {}]
  %s6 = inlined_call_operand.hbm [shape: f32[2,16], index: 6, kind: output, shape index: {}]
  %s7 = sld [smem:[#allocation0]]
  $region42: #{gat_perso_forward.9} parent=0
    _
  %s9 = ssub.s32 1, %s7
  %s10 = scalar_select 0, %s9, %s7
  $region1: #{gat_perso_forward.9} parent=0
    #allocation3 [shape = 'u8[1024]{0}', space=vmem, size = 0x400, scoped, tag = 'output window, operand 0, single buffered']
    #allocation4 [shape = 's32[1]{0}', space=sflag, size = 0x4, scoped, tag = 'scoped memory for gat_perso_forward.9']
    %11 = vsyncpa [#allocation4], 0
    // Predicated region
    $region2: #{gat_perso_forward.9} parent=1 // pred_check
      _
    $region3: #{gat_perso_forward.9} parent=1 // pred_check_branch
      %13 = sbr.rel (0) target = $region5
    $region4: #{gat_perso_forward.9} parent=1 // pred_region
      _
    $region5: #{gat_perso_forward.9} parent=1 // pred_fallthru
      _
    // Predicated region
    $region6: #{gat_perso_forward.9} parent=1 // pred_check
      _
    $region7: #{gat_perso_forward.9} parent=1 // pred_check_branch
      %15 = sbr.rel (0) target = $region9
    $region8: #{gat_perso_forward.9} parent=1 // pred_region
      _
    $region9: #{gat_perso_forward.9} parent=1 // pred_fallthru
      _
    // Predicated region
    $region10: #{gat_perso_forward.9} parent=1 // pred_check
      _
    $region11: #{gat_perso_forward.9} parent=1 // pred_check_branch
      %17 = sbr.rel (0) target = $region13
    $region12: #{gat_perso_forward.9} parent=1 // pred_region
      _
    $region13: #{gat_perso_forward.9} parent=1 // pred_fallthru
      _
    // Predicated region
    $region14: #{gat_perso_forward.9} parent=1 // pred_check
      _
    $region15: #{gat_perso_forward.9} parent=1 // pred_check_branch
      %19 = sbr.rel (0) target = $region17
    $region16: #{gat_perso_forward.9} parent=1 // pred_region
      _
    $region17: #{gat_perso_forward.9} parent=1 // pred_fallthru
      _
    // Predicated region
    $region18: #{gat_perso_forward.9} parent=1 // pred_check
      _
    $region19: #{gat_perso_forward.9} parent=1 // pred_check_branch
      %21 = sbr.rel (0) target = $region21
    $region20: #{gat_perso_forward.9} parent=1 // pred_region
      _
    $region21: #{gat_perso_forward.9} parent=1 // pred_fallthru
      _
    // Predicated region
    $region22: #{gat_perso_forward.9} parent=1 // pred_check
      _
    $region23: #{gat_perso_forward.9} parent=1 // pred_check_branch
      %23 = sbr.rel (0) target = $region25
    $region24: #{gat_perso_forward.9} parent=1 // pred_region
      _
    $region25: #{gat_perso_forward.9} parent=1 // pred_fallthru
      _
    %p25 = scmp.eq.s32.totalorder 0, 0
    // Predicated region
    $region26: #{gat_perso_forward.9} parent=1 // pred_check
      %p26 = pneg %p25
    $region27: #{gat_perso_forward.9} parent=1 // pred_check_branch
      %28 = sbr.rel (%p26) target = $region29
    $region28: #{gat_perso_forward.9} parent=1 // pred_region
      %vm29 = vcmask 254976
      %30 = vst.msk [vmem:[#allocation2] sm:$0x3] %vm29, 0.0
    $region29: #{gat_perso_forward.9} parent=1 // pred_fallthru
      _
    %v31 = vld [vmem:[#allocation2] sm:$0x3]
    %v32 = vld [vmem:[%s0] sm:$0x3]
    %v33 = vpack.c.bf16 %v32, %v32
    %v34 = vld [vmem:[%s1] sm:$0xf]
    %v35 = vld [vmem:[%s1 + $0x4] sm:$0xf]
    %v38 = vunpack.c.l.b16 %v34
    %v39 = vunpack.c.l.b16 %v35
    %v40 = vpack.c.b16 %v39, %v38
    %vm42 = vcmask 130048
    %v44 = vsel %vm42, %v33, 0
    %46 = vmatprep.subr.bf16.mxu0 0
    %47 = vmatpush1.bf16.msra.mxu0 %v40
    %48 = vmatprep.subr.bf16.mxu0 0
    %49 = vmatpush1.bf16.msra.mxu0 0
    %50 = vmatprep.subr.bf16.mxu0 0
    %51 = vmatpush1.bf16.msra.mxu0 0
    %52 = vmatprep.subr.bf16.mxu0 0
    %53 = vmatpush1.bf16.msra.mxu0 0
    %54 = vmatprep.subr.bf16.mxu0 0
    %55 = vmatpush1.bf16.msra.mxu0 0
    %56 = vmatprep.subr.bf16.mxu0 0
    %57 = vmatpush1.bf16.msra.mxu0 0
    %58 = vmatprep.subr.bf16.mxu0 0
    %59 = vmatpush1.bf16.msra.mxu0 0
    %60 = vmatprep.subr.bf16.mxu0 0
    %61 = vmatpush1.bf16.msra.mxu0 0
    %62 = vmatprep.subr.bf16.mxu0 0
    %63 = vmatpush1.bf16.msra.mxu0 0
    %64 = vmatprep.subr.bf16.mxu0 0
    %65 = vmatpush1.bf16.msra.mxu0 0
    %66 = vmatprep.subr.bf16.mxu0 0
    %67 = vmatpush1.bf16.msra.mxu0 0
    %68 = vmatprep.subr.bf16.mxu0 0
    %69 = vmatpush1.bf16.msra.mxu0 0
    %70 = vmatprep.subr.bf16.mxu0 0
    %71 = vmatpush1.bf16.msra.mxu0 0
    %72 = vmatprep.subr.bf16.mxu0 0
    %73 = vmatpush1.bf16.msra.mxu0 0
    %74 = vmatprep.subr.bf16.mxu0 0
    %75 = vmatpush1.bf16.msra.mxu0 0
    %76 = vmatprep.subr.bf16.mxu0 0
    %77 = vmatpush1.bf16.msra.mxu0 0
    %78 = vmatprep.mubr.bf16.mxu0 0
    %79 = vmatmul.mubr.bf16.gmra.mrb[0].mxu0 %v44
    %v80 = vpop.f32.mrb[0].mxu0
    %v81 = vadd.f32 0.0, %v80
    %v82 = vpop.f32.mrb[0].mxu0
    %v83 = vpop.f32.mrb[0].mxu0
    %v84 = vpop.f32.mrb[0].mxu0
    %85 = vdwg.mxu0
    %v86 = vadd.f32 %v31, %v81
    %vm87 = vcmask 254976
    %88 = vst.msk [vmem:[#allocation2] sm:$0x3] %vm87, %v86
    // Predicated region
    $region30: #{gat_perso_forward.9} parent=1 // pred_check
      %p89 = pneg %p25
    $region31: #{gat_perso_forward.9} parent=1 // pred_check_branch
      %91 = sbr.rel (%p89) target = $region33
    $region32: #{gat_perso_forward.9} parent=1 // pred_region
      %v92 = vld [vmem:[#allocation2] sm:$0x3]
      %v93 = vld [vmem:[%s2] sm:$0xff]
      %v94 = vld [vmem:[%s2 + $0x8] sm:$0xff]
      %v95 = vld [vmem:[%s2 + $0x10] sm:$0xff]
      %v96 = vld [vmem:[%s2 + $0x18] sm:$0xff]
      %v97 = vld [vmem:[%s3] sm:$0x1]
      %v99 = vlaneseq
      %v100 = vshrl.u32 %v99, 7
      %v101 = vsub.s32 0, %v100
      %v102 = vrot.slane %v97, %v101
      %vm104 = vcmask 261120
      %v106 = vsel %vm104, %v92, 0
      %108 = vmatprep.subr.mxu0 0.0
      %109 = vmatpush1.msra.mxu0 %v93
      %110 = vmatprep.subr.mxu0 0.0
      %111 = vmatpush1.msra.mxu0 %v94
      %112 = vmatprep.subr.mxu0 0.0
      %113 = vmatpush1.msra.mxu0 %v95
      %114 = vmatprep.subr.mxu0 0.0
      %115 = vmatpush1.msra.mxu0 %v96
      %116 = vmatprep.subr.mxu0 0.0
      %117 = vmatpush1.msra.mxu0 0.0
      %118 = vmatprep.subr.mxu0 0.0
      %119 = vmatpush1.msra.mxu0 0.0
      %120 = vmatprep.subr.mxu0 0.0
      %121 = vmatpush1.msra.mxu0 0.0
      %122 = vmatprep.subr.mxu0 0.0
      %123 = vmatpush1.msra.mxu0 0.0
      %124 = vmatprep.subr.mxu0 0.0
      %125 = vmatpush1.msra.mxu0 0.0
      %126 = vmatprep.subr.mxu0 0.0
      %127 = vmatpush1.msra.mxu0 0.0
      %128 = vmatprep.subr.mxu0 0.0
      %129 = vmatpush1.msra.mxu0 0.0
      %130 = vmatprep.subr.mxu0 0.0
      %131 = vmatpush1.msra.mxu0 0.0
      %132 = vmatprep.subr.mxu0 0.0
      %133 = vmatpush1.msra.mxu0 0.0
      %134 = vmatprep.subr.mxu0 0.0
      %135 = vmatpush1.msra.mxu0 0.0
      %136 = vmatprep.subr.mxu0 0.0
      %137 = vmatpush1.msra.mxu0 0.0
      %138 = vmatprep.subr.mxu0 0.0
      %139 = vmatpush1.msra.mxu0 0.0
      %140 = vmatprep.subr.mxu0 0.0
      %141 = vmatpush1.msra.mxu0 0.0
      %142 = vmatprep.subr.mxu0 0.0
      %143 = vmatpush1.msra.mxu0 0.0
      %144 = vmatprep.subr.mxu0 0.0
      %145 = vmatpush1.msra.mxu0 0.0
      %146 = vmatprep.subr.mxu0 0.0
      %147 = vmatpush1.msra.mxu0 0.0
      %148 = vmatprep.subr.mxu0 0.0
      %149 = vmatpush1.msra.mxu0 0.0
      %150 = vmatprep.subr.mxu0 0.0
      %151 = vmatpush1.msra.mxu0 0.0
      %152 = vmatprep.subr.mxu0 0.0
      %153 = vmatpush1.msra.mxu0 0.0
      %154 = vmatprep.subr.mxu0 0.0
      %155 = vmatpush1.msra.mxu0 0.0
      %156 = vmatprep.subr.mxu0 0.0
      %157 = vmatpush1.msra.mxu0 0.0
      %158 = vmatprep.subr.mxu0 0.0
      %159 = vmatpush1.msra.mxu0 0.0
      %160 = vmatprep.subr.mxu0 0.0
      %161 = vmatpush1.msra.mxu0 0.0
      %162 = vmatprep.subr.mxu0 0.0
      %163 = vmatpush1.msra.mxu0 0.0
      %164 = vmatprep.subr.mxu0 0.0
      %165 = vmatpush1.msra.mxu0 0.0
      %166 = vmatprep.subr.mxu0 0.0
      %167 = vmatpush1.msra.mxu0 0.0
      %168 = vmatprep.subr.mxu0 0.0
      %169 = vmatpush1.msra.mxu0 0.0
      %170 = vmatprep.subr.mxu0 0.0
      %171 = vmatpush1.msra.mxu0 0.0
      %172 = vmatprep.mubr.f32.mxu0 0.0
      %173 = vmatmul.mubr.f32.gmra.mrb[0].mxu0 %v106
      %v174 = vpop.f32.mrb[0].mxu0
      %v175 = vadd.f32 %v102, %v174
      %v176 = vpop.f32.mrb[0].mxu0
      %177 = vdwg.mxu0
      %vm178 = vcmp.gt.f32.partialorder %v175, 0.0
      %v179 = vmul.f32 %v175, 0.01
      %v180 = vsel %vm178, %v175, %v179
      %v181 = vld [vmem:[%s4] sm:$0xff]
      %v182 = vld [vmem:[%s4 + $0x8] sm:$0xff]
      %v183 = vld [vmem:[%s4 + $0x10] sm:$0xff]
      %v184 = vld [vmem:[%s4 + $0x18] sm:$0xff]
      %v185 = vld [vmem:[%s5] sm:$0x1]
      %v187 = vlaneseq
      %v188 = vshrl.u32 %v187, 7
      %v189 = vsub.s32 0, %v188
      %v190 = vrot.slane %v185, %v189
      %v193 = vsel %vm104, %v180, 0
      %195 = vmatprep.subr.mxu0 0.0
      %196 = vmatpush1.msra.mxu0 %v181
      %197 = vmatprep.subr.mxu0 0.0
      %198 = vmatpush1.msra.mxu0 %v182
      %199 = vmatprep.subr.mxu0 0.0
      %200 = vmatpush1.msra.mxu0 %v183
      %201 = vmatprep.subr.mxu0 0.0
      %202 = vmatpush1.msra.mxu0 %v184
      %203 = vmatprep.subr.mxu0 0.0
      %204 = vmatpush1.msra.mxu0 0.0
      %205 = vmatprep.subr.mxu0 0.0
      %206 = vmatpush1.msra.mxu0 0.0
      %207 = vmatprep.subr.mxu0 0.0
      %208 = vmatpush1.msra.mxu0 0.0
      %209 = vmatprep.subr.mxu0 0.0
      %210 = vmatpush1.msra.mxu0 0.0
      %211 = vmatprep.subr.mxu0 0.0
      %212 = vmatpush1.msra.mxu0 0.0
      %213 = vmatprep.subr.mxu0 0.0
      %214 = vmatpush1.msra.mxu0 0.0
      %215 = vmatprep.subr.mxu0 0.0
      %216 = vmatpush1.msra.mxu0 0.0
      %217 = vmatprep.subr.mxu0 0.0
      %218 = vmatpush1.msra.mxu0 0.0
      %219 = vmatprep.subr.mxu0 0.0
      %220 = vmatpush1.msra.mxu0 0.0
      %221 = vmatprep.subr.mxu0 0.0
      %222 = vmatpush1.msra.mxu0 0.0
      %223 = vmatprep.subr.mxu0 0.0
      %224 = vmatpush1.msra.mxu0 0.0
      %225 = vmatprep.subr.mxu0 0.0
      %226 = vmatpush1.msra.mxu0 0.0
      %227 = vmatprep.subr.mxu0 0.0
      %228 = vmatpush1.msra.mxu0 0.0
      %229 = vmatprep.subr.mxu0 0.0
      %230 = vmatpush1.msra.mxu0 0.0
      %231 = vmatprep.subr.mxu0 0.0
      %232 = vmatpush1.msra.mxu0 0.0
      %233 = vmatprep.subr.mxu0 0.0
      %234 = vmatpush1.msra.mxu0 0.0
      %235 = vmatprep.subr.mxu0 0.0
      %236 = vmatpush1.msra.mxu0 0.0
      %237 = vmatprep.subr.mxu0 0.0
      %238 = vmatpush1.msra.mxu0 0.0
      %239 = vmatprep.subr.mxu0 0.0
      %240 = vmatpush1.msra.mxu0 0.0
      %241 = vmatprep.subr.mxu0 0.0
      %242 = vmatpush1.msra.mxu0 0.0
      %243 = vmatprep.subr.mxu0 0.0
      %244 = vmatpush1.msra.mxu0 0.0
      %245 = vmatprep.subr.mxu0 0.0
      %246 = vmatpush1.msra.mxu0 0.0
      %247 = vmatprep.subr.mxu0 0.0
      %248 = vmatpush1.msra.mxu0 0.0
      %249 = vmatprep.subr.mxu0 0.0
      %250 = vmatpush1.msra.mxu0 0.0
      %251 = vmatprep.subr.mxu0 0.0
      %252 = vmatpush1.msra.mxu0 0.0
      %253 = vmatprep.subr.mxu0 0.0
      %254 = vmatpush1.msra.mxu0 0.0
      %255 = vmatprep.subr.mxu0 0.0
      %256 = vmatpush1.msra.mxu0 0.0
      %257 = vmatprep.subr.mxu0 0.0
      %258 = vmatpush1.msra.mxu0 0.0
      %259 = vmatprep.mubr.f32.mxu0 0.0
      %260 = vmatmul.mubr.f32.gmra.mrb[0].mxu0 %v193
      %v261 = vpop.f32.mrb[0].mxu0
      %v262 = vadd.f32 %v190, %v261
      %v263 = vpop.f32.mrb[0].mxu0
      %264 = vdwg.mxu0
      %vm265 = vcmask 123904
      %266 = vst.msk [vmem:[#allocation3] sm:$0x3] %vm265, %v262
    $region33: #{gat_perso_forward.9} parent=1 // pred_fallthru
      _
    // Predicated region
    $region34: #{gat_perso_forward.9} parent=1 // pred_check
      _
    $region35: #{gat_perso_forward.9} parent=1 // pred_check_branch
      %268 = sbr.rel (0) target = $region37
    $region36: #{gat_perso_forward.9} parent=1 // pred_region
      %s270 = ssub.s32 32, 32
      %271 = vsyncadd [#allocation4], %s270
      %s273 = sshll.u32 [#allocation3], 4
      %s274 = int_to_ptr.vmem [resolvable:$true] %s273
      %276 = dma.vmem_to_hbm [thread:$0]  %s274, 32, %s6, [#allocation4]
    $region37: #{gat_perso_forward.9} parent=1 // pred_fallthru
      _
    // Predicated region
    $region38: #{gat_perso_forward.9} parent=1 // pred_check
      _
    $region39: #{gat_perso_forward.9} parent=1 // pred_check_branch
      %278 = sbr.rel (0) target = $region41
    $region40: #{gat_perso_forward.9} parent=1 // pred_region
      %279 = dma.done [#allocation4], 32
    $region41: #{gat_perso_forward.9} parent=1 // pred_fallthru
      _
    %280 = vsyncpa [#allocation4], 1

// kernel: gat_perso_forward.8
$region0: #{gat_perso_forward.8}
  #allocation0 [shape = 'u32[]', space=smem, size = 0x4, offset = 0x4, fixed_abs, tag = 'smem constant byte address 0x4 - core index']
  #allocation1 [shape = 'u32[144,128]{1,0:T(1,128)}', space=vmem, size = 0x12000, scoped, tag = 'internal scratch']
  #allocation2 [shape = 'f32[16,1]{1,0:T(8,128)}', space=vmem, size = 0x2000, scoped, tag = 'scratch operand']
  #allocation3 [shape = 'f32[16,1]{1,0:T(8,128)}', space=vmem, size = 0x2000, scoped, tag = 'scratch operand']
  #allocation4 [shape = 'f32[16,32]{1,0:T(8,128)}', space=vmem, size = 0x2000, scoped, tag = 'scratch operand']
  %s0 = inlined_call_operand.vmem [shape: s8[16,16], index: 0, kind: input, shape index: {}]
  %s1 = inlined_call_operand.vmem [shape: bf16[16,32], index: 1, kind: input, shape index: {}]
  %s2 = inlined_call_operand.vmem [shape: bf16[32,16], index: 2, kind: input, shape index: {}]
  %s3 = inlined_call_operand.vmem [shape: bf16[16,32], index: 3, kind: input, shape index: {}]
  %s4 = inlined_call_operand.vmem [shape: f32[1,16], index: 4, kind: input, shape index: {}]
  %s5 = inlined_call_operand.vmem [shape: f32[16,1], index: 5, kind: input, shape index: {}]
  %s6 = inlined_call_operand.vmem [shape: f32[1,32], index: 6, kind: input, shape index: {}]
  %s7 = inlined_call_operand.vmem [shape: f32[1,32], index: 7, kind: input, shape index: {}]
  %s8 = inlined_call_operand.vmem [shape: bf16[16,32], index: 8, kind: output, shape index: {}]
  %s9 = sld [smem:[#allocation0]]
  $region54: #{gat_perso_forward.8} parent=0
    _
  %s11 = ssub.s32 1, %s9
  %s12 = scalar_select 0, %s11, %s9
  $region1: #{gat_perso_forward.8} parent=0
    #allocation5 [shape = 'u8[512]{0}', space=smem, size = 0x200, scoped, tag = 'input window, operand 6, single buffered']
    #allocation6 [shape = 's32[1]{0}', space=sflag, size = 0x4, scoped, tag = 'scoped memory for gat_perso_forward.8']
    %13 = vsyncpa [#allocation6], 0
    // Predicated region
    $region2: #{gat_perso_forward.8} parent=1 // pred_check
      _
    $region3: #{gat_perso_forward.8} parent=1 // pred_check_branch
      %15 = sbr.rel (0) target = $region5
    $region4: #{gat_perso_forward.8} parent=1 // pred_region
      _
    $region5: #{gat_perso_forward.8} parent=1 // pred_fallthru
      _
    // Predicated region
    $region6: #{gat_perso_forward.8} parent=1 // pred_check
      _
    $region7: #{gat_perso_forward.8} parent=1 // pred_check_branch
      %17 = sbr.rel (0) target = $region9
    $region8: #{gat_perso_forward.8} parent=1 // pred_region
      _
    $region9: #{gat_perso_forward.8} parent=1 // pred_fallthru
      _
    // Predicated region
    $region10: #{gat_perso_forward.8} parent=1 // pred_check
      _
    $region11: #{gat_perso_forward.8} parent=1 // pred_check_branch
      %19 = sbr.rel (0) target = $region13
    $region12: #{gat_perso_forward.8} parent=1 // pred_region
      _
    $region13: #{gat_perso_forward.8} parent=1 // pred_fallthru
      _
    // Predicated region
    $region14: #{gat_perso_forward.8} parent=1 // pred_check
      _
    $region15: #{gat_perso_forward.8} parent=1 // pred_check_branch
      %21 = sbr.rel (0) target = $region17
    $region16: #{gat_perso_forward.8} parent=1 // pred_region
      _
    $region17: #{gat_perso_forward.8} parent=1 // pred_fallthru
      _
    // Predicated region
    $region18: #{gat_perso_forward.8} parent=1 // pred_check
      _
    $region19: #{gat_perso_forward.8} parent=1 // pred_check_branch
      %23 = sbr.rel (0) target = $region21
    $region20: #{gat_perso_forward.8} parent=1 // pred_region
      _
    $region21: #{gat_perso_forward.8} parent=1 // pred_fallthru
      _
    // Predicated region
    $region22: #{gat_perso_forward.8} parent=1 // pred_check
      _
    $region23: #{gat_perso_forward.8} parent=1 // pred_check_branch
      %25 = sbr.rel (0) target = $region25
    $region24: #{gat_perso_forward.8} parent=1 // pred_region
      _
    $region25: #{gat_perso_forward.8} parent=1 // pred_fallthru
      _
    // Predicated region
    $region26: #{gat_perso_forward.8} parent=1 // pred_check
      _
    $region27: #{gat_perso_forward.8} parent=1 // pred_check_branch
      %27 = sbr.rel (0) target = $region29
    $region28: #{gat_perso_forward.8} parent=1 // pred_region
      %s29 = ssub.s32 16, 16
      %30 = vsyncadd [#allocation6], %s29
      %s32 = sshll.u32 %s6, 4
      %s33 = int_to_ptr.vmem [resolvable:$true] %s32
      %35 = dma.vmem_to_smem %s33, 16, [#allocation5], [#allocation6]
    $region29: #{gat_perso_forward.8} parent=1 // pred_fallthru
      _
    // Predicated region
    $region30: #{gat_perso_forward.8} parent=1 // pred_check
      _
    $region31: #{gat_perso_forward.8} parent=1 // pred_check_branch
      %37 = sbr.rel (0) target = $region33
    $region32: #{gat_perso_forward.8} parent=1 // pred_region
      _
    $region33: #{gat_perso_forward.8} parent=1 // pred_fallthru
      _
    // Predicated region
    $region34: #{gat_perso_forward.8} parent=1 // pred_check
      _
    $region35: #{gat_perso_forward.8} parent=1 // pred_check_branch
      %39 = sbr.rel (0) target = $region37
    $region36: #{gat_perso_forward.8} parent=1 // pred_region
      %40 = dma.done [#allocation6], 16
    $region37: #{gat_perso_forward.8} parent=1 // pred_fallthru
      _
    %41 = sfence
    %p45 = scmp.eq.s32.totalorder 0, 0
    // Predicated region
    $region38: #{gat_perso_forward.8} parent=1 // pred_check
      %p46 = pneg %p45
    $region39: #{gat_perso_forward.8} parent=1 // pred_check_branch
      %48 = sbr.rel (%p46) target = $region41
    $region40: #{gat_perso_forward.8} parent=1 // pred_region
      %vm49 = vcmask 7168
      %50 = vst.msk [vmem:[#allocation2] sm:$0xff] %vm49, -1e+30
      %51 = vst.msk [vmem:[#allocation2 + $0x8] sm:$0xff] %vm49, -1e+30
      %52 = vst.msk [vmem:[#allocation3] sm:$0xff] %vm49, 0.0
      %53 = vst.msk [vmem:[#allocation3 + $0x8] sm:$0xff] %vm49, 0.0
      %vm54 = vcmask 261120
      %55 = vst.msk [vmem:[#allocation4] sm:$0xff] %vm54, 0.0
      %56 = vst.msk [vmem:[#allocation4 + $0x8] sm:$0xff] %vm54, 0.0
    $region41: #{gat_perso_forward.8} parent=1 // pred_fallthru
      _
    %v57 = vld [vmem:[%s0] sm:$0x3]
    %v58 = vld [vmem:[%s0 + $0x2] sm:$0x3]
    %vm59 = vnez %v57
    %vm60 = vnez %v58
    %v61 = vld [vmem:[%s2] sm:$0xf]
    %v62 = vld [vmem:[%s2 + $0x4] sm:$0xf]
    %v63 = vld [vmem:[%s2 + $0x8] sm:$0xf]
    %v64 = vld [vmem:[%s2 + $0xc] sm:$0xf]
    %v65 = vunpack.c.l.bf16 %v61
    %v66 = vunpack.c.l.bf16 %v62
    %v67 = vunpack.c.l.bf16 %v63
    %v68 = vunpack.c.l.bf16 %v64
    %v69 = vld [vmem:[%s3] sm:$0xf]
    %v70 = vld [vmem:[%s3 + $0x4] sm:$0xf]
    %v71 = vunpack.c.l.bf16 %v69
    %v72 = vunpack.c.l.bf16 %v70
    %v73 = vld [vmem:[%s4] sm:$0x1]
    %v74 = vld [vmem:[%s5] sm:$0xff]
    %v75 = vld [vmem:[%s5 + $0x8] sm:$0xff]
    %v76 = vld [vmem:[%s1] sm:$0xf]
    %v77 = vld [vmem:[%s1 + $0x4] sm:$0xf]
    %79 = vset.pattern.permute.xlu0 0
    %80 = vperm.xlu0 %79, %v71
    %v81 = vpop.permute.xlu0 %80
    %84 = vset.pattern.permute.xlu0 0
    %85 = vperm.xlu0 %84, %v72
    %v86 = vpop.permute.xlu0 %85
    %v88 = vlaneseq
    %v89 = vshrl.u32 %v88, 7
    %v90 = vsub.s32 0, %v89
    %v91 = vrot.slane %v65, %v90
    %v92 = vadd.f32 %v81, %v91
    %v93 = vadd.f32 %v86, %v91
    %s94 = sld [smem:[#allocation5]]
    %v95 = vmax.f32 %v92, 0.0
    %v96 = vmax.f32 %v93, 0.0
    %v97 = vstv %s94
    %v98 = vmul.f32 %v97, %v95
    %v99 = vmul.f32 %v97, %v96
    %v100 = vadd.f32 %v98, 0.0
    %v101 = vadd.f32 %v99, 0.0
    %102 = vset.pattern.permute.xlu0 1
    %103 = vperm.xlu0 %102, %v71
    %v104 = vpop.permute.xlu0 %103
    %106 = vset.pattern.permute.xlu0 1
    %107 = vperm.xlu0 %106, %v72
    %v108 = vpop.permute.xlu0 %107
    %v110 = vlaneseq
    %v111 = vshrl.u32 %v110, 7
    %v112 = vsub.s32 1, %v111
    %v113 = vrot.slane %v65, %v112
    %v114 = vadd.f32 %v104, %v113
    %v115 = vadd.f32 %v108, %v113
    %s116 = sld [smem:[#allocation5 + $0x1]]
    %v117 = vmax.f32 %v114, 0.0
    %v118 = vmax.f32 %v115, 0.0
    %v119 = vstv %s116
    %v120 = vmul.f32 %v119, %v117
    %v121 = vmul.f32 %v119, %v118
    %v122 = vadd.f32 %v100, %v120
    %v123 = vadd.f32 %v101, %v121
    %124 = vset.pattern.permute.xlu0 2
    %125 = vperm.xlu0 %124, %v71
    %v126 = vpop.permute.xlu0 %125
    %128 = vset.pattern.permute.xlu0 2
    %129 = vperm.xlu0 %128, %v72
    %v130 = vpop.permute.xlu0 %129
    %v132 = vlaneseq
    %v133 = vshrl.u32 %v132, 7
    %v134 = vsub.s32 2, %v133
    %v135 = vrot.slane %v65, %v134
    %v136 = vadd.f32 %v126, %v135
    %v137 = vadd.f32 %v130, %v135
    %s138 = sld [smem:[#allocation5 + $0x2]]
    %v139 = vmax.f32 %v136, 0.0
    %v140 = vmax.f32 %v137, 0.0
    %v141 = vstv %s138
    %v142 = vmul.f32 %v141, %v139
    %v143 = vmul.f32 %v141, %v140
    %v144 = vadd.f32 %v122, %v142
    %v145 = vadd.f32 %v123, %v143
    %146 = vset.pattern.permute.xlu0 3
    %147 = vperm.xlu0 %146, %v71
    %v148 = vpop.permute.xlu0 %147
    %150 = vset.pattern.permute.xlu0 3
    %151 = vperm.xlu0 %150, %v72
    %v152 = vpop.permute.xlu0 %151
    %v154 = vlaneseq
    %v155 = vshrl.u32 %v154, 7
    %v156 = vsub.s32 3, %v155
    %v157 = vrot.slane %v65, %v156
    %v158 = vadd.f32 %v148, %v157
    %v159 = vadd.f32 %v152, %v157
    %s160 = sld [smem:[#allocation5 + $0x3]]
    %v161 = vmax.f32 %v158, 0.0
    %v162 = vmax.f32 %v159, 0.0
    %v163 = vstv %s160
    %v164 = vmul.f32 %v163, %v161
    %v165 = vmul.f32 %v163, %v162
    %v166 = vadd.f32 %v144, %v164
    %v167 = vadd.f32 %v145, %v165
    %168 = vset.pattern.permute.xlu0 4
    %169 = vperm.xlu0 %168, %v71
    %v170 = vpop.permute.xlu0 %169
    %172 = vset.pattern.permute.xlu0 4
    %173 = vperm.xlu0 %172, %v72
    %v174 = vpop.permute.xlu0 %173
    %v176 = vlaneseq
    %v177 = vshrl.u32 %v176, 7
    %v178 = vsub.s32 4, %v177
    %v179 = vrot.slane %v65, %v178
    %v180 = vadd.f32 %v170, %v179
    %v181 = vadd.f32 %v174, %v179
    %s182 = sld [smem:[#allocation5 + $0x4]]
    %v183 = vmax.f32 %v180, 0.0
    %v184 = vmax.f32 %v181, 0.0
    %v185 = vstv %s182
    %v186 = vmul.f32 %v185, %v183
    %v187 = vmul.f32 %v185, %v184
    %v188 = vadd.f32 %v166, %v186
    %v189 = vadd.f32 %v167, %v187
    %190 = vset.pattern.permute.xlu0 5
    %191 = vperm.xlu0 %190, %v71
    %v192 = vpop.permute.xlu0 %191
    %194 = vset.pattern.permute.xlu0 5
    %195 = vperm.xlu0 %194, %v72
    %v196 = vpop.permute.xlu0 %195
    %v198 = vlaneseq
    %v199 = vshrl.u32 %v198, 7
    %v200 = vsub.s32 5, %v199
    %v201 = vrot.slane %v65, %v200
    %v202 = vadd.f32 %v192, %v201
    %v203 = vadd.f32 %v196, %v201
    %s204 = sld [smem:[#allocation5 + $0x5]]
    %v205 = vmax.f32 %v202, 0.0
    %v206 = vmax.f32 %v203, 0.0
    %v207 = vstv %s204
    %v208 = vmul.f32 %v207, %v205
    %v209 = vmul.f32 %v207, %v206
    %v210 = vadd.f32 %v188, %v208
    %v211 = vadd.f32 %v189, %v209
    %212 = vset.pattern.permute.xlu0 6
    %213 = vperm.xlu0 %212, %v71
    %v214 = vpop.permute.xlu0 %213
    %216 = vset.pattern.permute.xlu0 6
    %217 = vperm.xlu0 %216, %v72
    %v218 = vpop.permute.xlu0 %217
    %v220 = vlaneseq
    %v221 = vshrl.u32 %v220, 7
    %v222 = vsub.s32 6, %v221
    %v223 = vrot.slane %v65, %v222
    %v224 = vadd.f32 %v214, %v223
    %v225 = vadd.f32 %v218, %v223
    %s226 = sld [smem:[#allocation5 + $0x6]]
    %v227 = vmax.f32 %v224, 0.0
    %v228 = vmax.f32 %v225, 0.0
    %v229 = vstv %s226
    %v230 = vmul.f32 %v229, %v227
    %v231 = vmul.f32 %v229, %v228
    %v232 = vadd.f32 %v210, %v230
    %v233 = vadd.f32 %v211, %v231
    %234 = vset.pattern.permute.xlu0 7
    %235 = vperm.xlu0 %234, %v71
    %v236 = vpop.permute.xlu0 %235
    %238 = vset.pattern.permute.xlu0 7
    %239 = vperm.xlu0 %238, %v72
    %v240 = vpop.permute.xlu0 %239
    %v242 = vlaneseq
    %v243 = vshrl.u32 %v242, 7
    %v244 = vsub.s32 7, %v243
    %v245 = vrot.slane %v65, %v244
    %v246 = vadd.f32 %v236, %v245
    %v247 = vadd.f32 %v240, %v245
    %s248 = sld [smem:[#allocation5 + $0x7]]
    %v249 = vmax.f32 %v246, 0.0
    %v250 = vmax.f32 %v247, 0.0
    %v251 = vstv %s248
    %v252 = vmul.f32 %v251, %v249
    %v253 = vmul.f32 %v251, %v250
    %v254 = vadd.f32 %v232, %v252
    %v255 = vadd.f32 %v233, %v253
    %256 = vset.pattern.permute.xlu0 8
    %257 = vperm.xlu0 %256, %v71
    %v258 = vpop.permute.xlu0 %257
    %260 = vset.pattern.permute.xlu0 8
    %261 = vperm.xlu0 %260, %v72
    %v262 = vpop.permute.xlu0 %261
    %v264 = vlaneseq
    %v265 = vshrl.u32 %v264, 7
    %v266 = vsub.s32 0, %v265
    %v267 = vrot.slane %v66, %v266
    %v268 = vadd.f32 %v258, %v267
    %v269 = vadd.f32 %v262, %v267
    %s270 = sld [smem:[#allocation5 + $0x8]]
    %v271 = vmax.f32 %v268, 0.0
    %v272 = vmax.f32 %v269, 0.0
    %v273 = vstv %s270
    %v274 = vmul.f32 %v273, %v271
    %v275 = vmul.f32 %v273, %v272
    %v276 = vadd.f32 %v254, %v274
    %v277 = vadd.f32 %v255, %v275
    %278 = vset.pattern.permute.xlu0 9
    %279 = vperm.xlu0 %278, %v71
    %v280 = vpop.permute.xlu0 %279
    %282 = vset.pattern.permute.xlu0 9
    %283 = vperm.xlu0 %282, %v72
    %v284 = vpop.permute.xlu0 %283
    %v286 = vlaneseq
    %v287 = vshrl.u32 %v286, 7
    %v288 = vsub.s32 1, %v287
    %v289 = vrot.slane %v66, %v288
    %v290 = vadd.f32 %v280, %v289
    %v291 = vadd.f32 %v284, %v289
    %s292 = sld [smem:[#allocation5 + $0x9]]
    %v293 = vmax.f32 %v290, 0.0
    %v294 = vmax.f32 %v291, 0.0
    %v295 = vstv %s292
    %v296 = vmul.f32 %v295, %v293
    %v297 = vmul.f32 %v295, %v294
    %v298 = vadd.f32 %v276, %v296
    %v299 = vadd.f32 %v277, %v297
    %300 = vset.pattern.permute.xlu0 10
    %301 = vperm.xlu0 %300, %v71
    %v302 = vpop.permute.xlu0 %301
    %304 = vset.pattern.permute.xlu0 10
    %305 = vperm.xlu0 %304, %v72
    %v306 = vpop.permute.xlu0 %305
    %v308 = vlaneseq
    %v309 = vshrl.u32 %v308, 7
    %v310 = vsub.s32 2, %v309
    %v311 = vrot.slane %v66, %v310
    %v312 = vadd.f32 %v302, %v311
    %v313 = vadd.f32 %v306, %v311
    %s314 = sld [smem:[#allocation5 + $0xa]]
    %v315 = vmax.f32 %v312, 0.0
    %v316 = vmax.f32 %v313, 0.0
    %v317 = vstv %s314
    %v318 = vmul.f32 %v317, %v315
    %v319 = vmul.f32 %v317, %v316
    %v320 = vadd.f32 %v298, %v318
    %v321 = vadd.f32 %v299, %v319
    %322 = vset.pattern.permute.xlu0 11
    %323 = vperm.xlu0 %322, %v71
    %v324 = vpop.permute.xlu0 %323
    %326 = vset.pattern.permute.xlu0 11
    %327 = vperm.xlu0 %326, %v72
    %v328 = vpop.permute.xlu0 %327
    %v330 = vlaneseq
    %v331 = vshrl.u32 %v330, 7
    %v332 = vsub.s32 3, %v331
    %v333 = vrot.slane %v66, %v332
    %v334 = vadd.f32 %v324, %v333
    %v335 = vadd.f32 %v328, %v333
    %s336 = sld [smem:[#allocation5 + $0xb]]
    %v337 = vmax.f32 %v334, 0.0
    %v338 = vmax.f32 %v335, 0.0
    %v339 = vstv %s336
    %v340 = vmul.f32 %v339, %v337
    %v341 = vmul.f32 %v339, %v338
    %v342 = vadd.f32 %v320, %v340
    %v343 = vadd.f32 %v321, %v341
    %344 = vset.pattern.permute.xlu0 12
    %345 = vperm.xlu0 %344, %v71
    %v346 = vpop.permute.xlu0 %345
    %348 = vset.pattern.permute.xlu0 12
    %349 = vperm.xlu0 %348, %v72
    %v350 = vpop.permute.xlu0 %349
    %v352 = vlaneseq
    %v353 = vshrl.u32 %v352, 7
    %v354 = vsub.s32 4, %v353
    %v355 = vrot.slane %v66, %v354
    %v356 = vadd.f32 %v346, %v355
    %v357 = vadd.f32 %v350, %v355
    %s358 = sld [smem:[#allocation5 + $0xc]]
    %v359 = vmax.f32 %v356, 0.0
    %v360 = vmax.f32 %v357, 0.0
    %v361 = vstv %s358
    %v362 = vmul.f32 %v361, %v359
    %v363 = vmul.f32 %v361, %v360
    %v364 = vadd.f32 %v342, %v362
    %v365 = vadd.f32 %v343, %v363
    %366 = vset.pattern.permute.xlu0 13
    %367 = vperm.xlu0 %366, %v71
    %v368 = vpop.permute.xlu0 %367
    %370 = vset.pattern.permute.xlu0 13
    %371 = vperm.xlu0 %370, %v72
    %v372 = vpop.permute.xlu0 %371
    %v374 = vlaneseq
    %v375 = vshrl.u32 %v374, 7
    %v376 = vsub.s32 5, %v375
    %v377 = vrot.slane %v66, %v376
    %v378 = vadd.f32 %v368, %v377
    %v379 = vadd.f32 %v372, %v377
    %s380 = sld [smem:[#allocation5 + $0xd]]
    %v381 = vmax.f32 %v378, 0.0
    %v382 = vmax.f32 %v379, 0.0
    %v383 = vstv %s380
    %v384 = vmul.f32 %v383, %v381
    %v385 = vmul.f32 %v383, %v382
    %v386 = vadd.f32 %v364, %v384
    %v387 = vadd.f32 %v365, %v385
    %388 = vset.pattern.permute.xlu0 14
    %389 = vperm.xlu0 %388, %v71
    %v390 = vpop.permute.xlu0 %389
    %392 = vset.pattern.permute.xlu0 14
    %393 = vperm.xlu0 %392, %v72
    %v394 = vpop.permute.xlu0 %393
    %v396 = vlaneseq
    %v397 = vshrl.u32 %v396, 7
    %v398 = vsub.s32 6, %v397
    %v399 = vrot.slane %v66, %v398
    %v400 = vadd.f32 %v390, %v399
    %v401 = vadd.f32 %v394, %v399
    %s402 = sld [smem:[#allocation5 + $0xe]]
    %v403 = vmax.f32 %v400, 0.0
    %v404 = vmax.f32 %v401, 0.0
    %v405 = vstv %s402
    %v406 = vmul.f32 %v405, %v403
    %v407 = vmul.f32 %v405, %v404
    %v408 = vadd.f32 %v386, %v406
    %v409 = vadd.f32 %v387, %v407
    %410 = vset.pattern.permute.xlu0 15
    %411 = vperm.xlu0 %410, %v71
    %v412 = vpop.permute.xlu0 %411
    %414 = vset.pattern.permute.xlu0 15
    %415 = vperm.xlu0 %414, %v72
    %v416 = vpop.permute.xlu0 %415
    %v418 = vlaneseq
    %v419 = vshrl.u32 %v418, 7
    %v420 = vsub.s32 7, %v419
    %v421 = vrot.slane %v66, %v420
    %v422 = vadd.f32 %v412, %v421
    %v423 = vadd.f32 %v416, %v421
    %s424 = sld [smem:[#allocation5 + $0xf]]
    %v425 = vmax.f32 %v422, 0.0
    %v426 = vmax.f32 %v423, 0.0
    %v427 = vstv %s424
    %v428 = vmul.f32 %v427, %v425
    %v429 = vmul.f32 %v427, %v426
    %v430 = vadd.f32 %v408, %v428
    %v431 = vadd.f32 %v409, %v429
    %432 = vset.pattern.permute.xlu0 16
    %433 = vperm.xlu0 %432, %v71
    %v434 = vpop.permute.xlu0 %433
    %436 = vset.pattern.permute.xlu0 16
    %437 = vperm.xlu0 %436, %v72
    %v438 = vpop.permute.xlu0 %437
    %v440 = vlaneseq
    %v441 = vshrl.u32 %v440, 7
    %v442 = vsub.s32 0, %v441
    %v443 = vrot.slane %v67, %v442
    %v444 = vadd.f32 %v434, %v443
    %v445 = vadd.f32 %v438, %v443
    %s446 = sld [smem:[#allocation5 + $0x10]]
    %v447 = vmax.f32 %v444, 0.0
    %v448 = vmax.f32 %v445, 0.0
    %v449 = vstv %s446
    %v450 = vmul.f32 %v449, %v447
    %v451 = vmul.f32 %v449, %v448
    %v452 = vadd.f32 %v430, %v450
    %v453 = vadd.f32 %v431, %v451
    %454 = vset.pattern.permute.xlu0 17
    %455 = vperm.xlu0 %454, %v71
    %v456 = vpop.permute.xlu0 %455
    %458 = vset.pattern.permute.xlu0 17
    %459 = vperm.xlu0 %458, %v72
    %v460 = vpop.permute.xlu0 %459
    %v462 = vlaneseq
    %v463 = vshrl.u32 %v462, 7
    %v464 = vsub.s32 1, %v463
    %v465 = vrot.slane %v67, %v464
    %v466 = vadd.f32 %v456, %v465
    %v467 = vadd.f32 %v460, %v465
    %s468 = sld [smem:[#allocation5 + $0x11]]
    %v469 = vmax.f32 %v466, 0.0
    %v470 = vmax.f32 %v467, 0.0
    %v471 = vstv %s468
    %v472 = vmul.f32 %v471, %v469
    %v473 = vmul.f32 %v471, %v470
    %v474 = vadd.f32 %v452, %v472
    %v475 = vadd.f32 %v453, %v473
    %476 = vset.pattern.permute.xlu0 18
    %477 = vperm.xlu0 %476, %v71
    %v478 = vpop.permute.xlu0 %477
    %480 = vset.pattern.permute.xlu0 18
    %481 = vperm.xlu0 %480, %v72
    %v482 = vpop.permute.xlu0 %481
    %v484 = vlaneseq
    %v485 = vshrl.u32 %v484, 7
    %v486 = vsub.s32 2, %v485
    %v487 = vrot.slane %v67, %v486
    %v488 = vadd.f32 %v478, %v487
    %v489 = vadd.f32 %v482, %v487
    %s490 = sld [smem:[#allocation5 + $0x12]]
    %v491 = vmax.f32 %v488, 0.0
    %v492 = vmax.f32 %v489, 0.0
    %v493 = vstv %s490
    %v494 = vmul.f32 %v493, %v491
    %v495 = vmul.f32 %v493, %v492
    %v496 = vadd.f32 %v474, %v494
    %v497 = vadd.f32 %v475, %v495
    %498 = vset.pattern.permute.xlu0 19
    %499 = vperm.xlu0 %498, %v71
    %v500 = vpop.permute.xlu0 %499
    %502 = vset.pattern.permute.xlu0 19
    %503 = vperm.xlu0 %502, %v72
    %v504 = vpop.permute.xlu0 %503
    %v506 = vlaneseq
    %v507 = vshrl.u32 %v506, 7
    %v508 = vsub.s32 3, %v507
    %v509 = vrot.slane %v67, %v508
    %v510 = vadd.f32 %v500, %v509
    %v511 = vadd.f32 %v504, %v509
    %s512 = sld [smem:[#allocation5 + $0x13]]
    %v513 = vmax.f32 %v510, 0.0
    %v514 = vmax.f32 %v511, 0.0
    %v515 = vstv %s512
    %v516 = vmul.f32 %v515, %v513
    %v517 = vmul.f32 %v515, %v514
    %v518 = vadd.f32 %v496, %v516
    %v519 = vadd.f32 %v497, %v517
    %520 = vset.pattern.permute.xlu0 20
    %521 = vperm.xlu0 %520, %v71
    %v522 = vpop.permute.xlu0 %521
    %524 = vset.pattern.permute.xlu0 20
    %525 = vperm.xlu0 %524, %v72
    %v526 = vpop.permute.xlu0 %525
    %v528 = vlaneseq
    %v529 = vshrl.u32 %v528, 7
    %v530 = vsub.s32 4, %v529
    %v531 = vrot.slane %v67, %v530
    %v532 = vadd.f32 %v522, %v531
    %v533 = vadd.f32 %v526, %v531
    %s534 = sld [smem:[#allocation5 + $0x14]]
    %v535 = vmax.f32 %v532, 0.0
    %v536 = vmax.f32 %v533, 0.0
    %v537 = vstv %s534
    %v538 = vmul.f32 %v537, %v535
    %v539 = vmul.f32 %v537, %v536
    %v540 = vadd.f32 %v518, %v538
    %v541 = vadd.f32 %v519, %v539
    %542 = vset.pattern.permute.xlu0 21
    %543 = vperm.xlu0 %542, %v71
    %v544 = vpop.permute.xlu0 %543
    %546 = vset.pattern.permute.xlu0 21
    %547 = vperm.xlu0 %546, %v72
    %v548 = vpop.permute.xlu0 %547
    %v550 = vlaneseq
    %v551 = vshrl.u32 %v550, 7
    %v552 = vsub.s32 5, %v551
    %v553 = vrot.slane %v67, %v552
    %v554 = vadd.f32 %v544, %v553
    %v555 = vadd.f32 %v548, %v553
    %s556 = sld [smem:[#allocation5 + $0x15]]
    %v557 = vmax.f32 %v554, 0.0
    %v558 = vmax.f32 %v555, 0.0
    %v559 = vstv %s556
    %v560 = vmul.f32 %v559, %v557
    %v561 = vmul.f32 %v559, %v558
    %v562 = vadd.f32 %v540, %v560
    %v563 = vadd.f32 %v541, %v561
    %564 = vset.pattern.permute.xlu0 22
    %565 = vperm.xlu0 %564, %v71
    %v566 = vpop.permute.xlu0 %565
    %568 = vset.pattern.permute.xlu0 22
    %569 = vperm.xlu0 %568, %v72
    %v570 = vpop.permute.xlu0 %569
    %v572 = vlaneseq
    %v573 = vshrl.u32 %v572, 7
    %v574 = vsub.s32 6, %v573
    %v575 = vrot.slane %v67, %v574
    %v576 = vadd.f32 %v566, %v575
    %v577 = vadd.f32 %v570, %v575
    %s578 = sld [smem:[#allocation5 + $0x16]]
    %v579 = vmax.f32 %v576, 0.0
    %v580 = vmax.f32 %v577, 0.0
    %v581 = vstv %s578
    %v582 = vmul.f32 %v581, %v579
    %v583 = vmul.f32 %v581, %v580
    %v584 = vadd.f32 %v562, %v582
    %v585 = vadd.f32 %v563, %v583
    %586 = vset.pattern.permute.xlu0 23
    %587 = vperm.xlu0 %586, %v71
    %v588 = vpop.permute.xlu0 %587
    %590 = vset.pattern.permute.xlu0 23
    %591 = vperm.xlu0 %590, %v72
    %v592 = vpop.permute.xlu0 %591
    %v594 = vlaneseq
    %v595 = vshrl.u32 %v594, 7
    %v596 = vsub.s32 7, %v595
    %v597 = vrot.slane %v67, %v596
    %v598 = vadd.f32 %v588, %v597
    %v599 = vadd.f32 %v592, %v597
    %s600 = sld [smem:[#allocation5 + $0x17]]
    %v601 = vmax.f32 %v598, 0.0
    %v602 = vmax.f32 %v599, 0.0
    %v603 = vstv %s600
    %v604 = vmul.f32 %v603, %v601
    %v605 = vmul.f32 %v603, %v602
    %v606 = vadd.f32 %v584, %v604
    %v607 = vadd.f32 %v585, %v605
    %608 = vset.pattern.permute.xlu0 24
    %609 = vperm.xlu0 %608, %v71
    %v610 = vpop.permute.xlu0 %609
    %612 = vset.pattern.permute.xlu0 24
    %613 = vperm.xlu0 %612, %v72
    %v614 = vpop.permute.xlu0 %613
    %v616 = vlaneseq
    %v617 = vshrl.u32 %v616, 7
    %v618 = vsub.s32 0, %v617
    %v619 = vrot.slane %v68, %v618
    %v620 = vadd.f32 %v610, %v619
    %v621 = vadd.f32 %v614, %v619
    %s622 = sld [smem:[#allocation5 + $0x18]]
    %v623 = vmax.f32 %v620, 0.0
    %v624 = vmax.f32 %v621, 0.0
    %v625 = vstv %s622
    %v626 = vmul.f32 %v625, %v623
    %v627 = vmul.f32 %v625, %v624
    %v628 = vadd.f32 %v606, %v626
    %v629 = vadd.f32 %v607, %v627
    %630 = vset.pattern.permute.xlu0 25
    %631 = vperm.xlu0 %630, %v71
    %v632 = vpop.permute.xlu0 %631
    %634 = vset.pattern.permute.xlu0 25
    %635 = vperm.xlu0 %634, %v72
    %v636 = vpop.permute.xlu0 %635
    %v638 = vlaneseq
    %v639 = vshrl.u32 %v638, 7
    %v640 = vsub.s32 1, %v639
    %v641 = vrot.slane %v68, %v640
    %v642 = vadd.f32 %v632, %v641
    %v643 = vadd.f32 %v636, %v641
    %s644 = sld [smem:[#allocation5 + $0x19]]
    %v645 = vmax.f32 %v642, 0.0
    %v646 = vmax.f32 %v643, 0.0
    %v647 = vstv %s644
    %v648 = vmul.f32 %v647, %v645
    %v649 = vmul.f32 %v647, %v646
    %v650 = vadd.f32 %v628, %v648
    %v651 = vadd.f32 %v629, %v649
    %652 = vset.pattern.permute.xlu0 26
    %653 = vperm.xlu0 %652, %v71
    %v654 = vpop.permute.xlu0 %653
    %656 = vset.pattern.permute.xlu0 26
    %657 = vperm.xlu0 %656, %v72
    %v658 = vpop.permute.xlu0 %657
    %v660 = vlaneseq
    %v661 = vshrl.u32 %v660, 7
    %v662 = vsub.s32 2, %v661
    %v663 = vrot.slane %v68, %v662
    %v664 = vadd.f32 %v654, %v663
    %v665 = vadd.f32 %v658, %v663
    %s666 = sld [smem:[#allocation5 + $0x1a]]
    %v667 = vmax.f32 %v664, 0.0
    %v668 = vmax.f32 %v665, 0.0
    %v669 = vstv %s666
    %v670 = vmul.f32 %v669, %v667
    %v671 = vmul.f32 %v669, %v668
    %v672 = vadd.f32 %v650, %v670
    %v673 = vadd.f32 %v651, %v671
    %674 = vset.pattern.permute.xlu0 27
    %675 = vperm.xlu0 %674, %v71
    %v676 = vpop.permute.xlu0 %675
    %678 = vset.pattern.permute.xlu0 27
    %679 = vperm.xlu0 %678, %v72
    %v680 = vpop.permute.xlu0 %679
    %v682 = vlaneseq
    %v683 = vshrl.u32 %v682, 7
    %v684 = vsub.s32 3, %v683
    %v685 = vrot.slane %v68, %v684
    %v686 = vadd.f32 %v676, %v685
    %v687 = vadd.f32 %v680, %v685
    %s688 = sld [smem:[#allocation5 + $0x1b]]
    %v689 = vmax.f32 %v686, 0.0
    %v690 = vmax.f32 %v687, 0.0
    %v691 = vstv %s688
    %v692 = vmul.f32 %v691, %v689
    %v693 = vmul.f32 %v691, %v690
    %v694 = vadd.f32 %v672, %v692
    %v695 = vadd.f32 %v673, %v693
    %696 = vset.pattern.permute.xlu0 28
    %697 = vperm.xlu0 %696, %v71
    %v698 = vpop.permute.xlu0 %697
    %700 = vset.pattern.permute.xlu0 28
    %701 = vperm.xlu0 %700, %v72
    %v702 = vpop.permute.xlu0 %701
    %v704 = vlaneseq
    %v705 = vshrl.u32 %v704, 7
    %v706 = vsub.s32 4, %v705
    %v707 = vrot.slane %v68, %v706
    %v708 = vadd.f32 %v698, %v707
    %v709 = vadd.f32 %v702, %v707
    %s710 = sld [smem:[#allocation5 + $0x1c]]
    %v711 = vmax.f32 %v708, 0.0
    %v712 = vmax.f32 %v709, 0.0
    %v713 = vstv %s710
    %v714 = vmul.f32 %v713, %v711
    %v715 = vmul.f32 %v713, %v712
    %v716 = vadd.f32 %v694, %v714
    %v717 = vadd.f32 %v695, %v715
    %718 = vset.pattern.permute.xlu0 29
    %719 = vperm.xlu0 %718, %v71
    %v720 = vpop.permute.xlu0 %719
    %722 = vset.pattern.permute.xlu0 29
    %723 = vperm.xlu0 %722, %v72
    %v724 = vpop.permute.xlu0 %723
    %v726 = vlaneseq
    %v727 = vshrl.u32 %v726, 7
    %v728 = vsub.s32 5, %v727
    %v729 = vrot.slane %v68, %v728
    %v730 = vadd.f32 %v720, %v729
    %v731 = vadd.f32 %v724, %v729
    %s732 = sld [smem:[#allocation5 + $0x1d]]
    %v733 = vmax.f32 %v730, 0.0
    %v734 = vmax.f32 %v731, 0.0
    %v735 = vstv %s732
    %v736 = vmul.f32 %v735, %v733
    %v737 = vmul.f32 %v735, %v734
    %v738 = vadd.f32 %v716, %v736
    %v739 = vadd.f32 %v717, %v737
    %740 = vset.pattern.permute.xlu0 30
    %741 = vperm.xlu0 %740, %v71
    %v742 = vpop.permute.xlu0 %741
    %744 = vset.pattern.permute.xlu0 30
    %745 = vperm.xlu0 %744, %v72
    %v746 = vpop.permute.xlu0 %745
    %v748 = vlaneseq
    %v749 = vshrl.u32 %v748, 7
    %v750 = vsub.s32 6, %v749
    %v751 = vrot.slane %v68, %v750
    %v752 = vadd.f32 %v742, %v751
    %v753 = vadd.f32 %v746, %v751
    %s754 = sld [smem:[#allocation5 + $0x1e]]
    %v755 = vmax.f32 %v752, 0.0
    %v756 = vmax.f32 %v753, 0.0
    %v757 = vstv %s754
    %v758 = vmul.f32 %v757, %v755
    %v759 = vmul.f32 %v757, %v756
    %v760 = vadd.f32 %v738, %v758
    %v761 = vadd.f32 %v739, %v759
    %762 = vset.pattern.permute.xlu0 31
    %763 = vperm.xlu0 %762, %v71
    %v764 = vpop.permute.xlu0 %763
    %766 = vset.pattern.permute.xlu0 31
    %767 = vperm.xlu0 %766, %v72
    %v768 = vpop.permute.xlu0 %767
    %v770 = vlaneseq
    %v771 = vshrl.u32 %v770, 7
    %v772 = vsub.s32 7, %v771
    %v773 = vrot.slane %v68, %v772
    %v774 = vadd.f32 %v764, %v773
    %v775 = vadd.f32 %v768, %v773
    %s776 = sld [smem:[#allocation5 + $0x1f]]
    %v777 = vmax.f32 %v774, 0.0
    %v778 = vmax.f32 %v775, 0.0
    %v779 = vstv %s776
    %v780 = vmul.f32 %v779, %v777
    %v781 = vmul.f32 %v779, %v778
    %v782 = vadd.f32 %v760, %v780
    %v783 = vadd.f32 %v761, %v781
    %785 = vset.pattern.permute.xlu0 0
    %786 = vperm.xlu0 %785, %v74
    %v787 = vpop.permute.xlu0 %786
    %790 = vset.pattern.permute.xlu0 0
    %791 = vperm.xlu0 %790, %v75
    %v792 = vpop.permute.xlu0 %791
    %v795 = vlaneseq
    %v796 = vshrl.u32 %v795, 7
    %v797 = vsub.s32 0, %v796
    %v798 = vrot.slane %v73, %v797
    %v800 = vadd.f32 %v787, %v798
    %v801 = vadd.f32 %v792, %v798
    %v802 = vmul.f32 %v800, 0.2
    %v803 = vmul.f32 %v801, 0.2
    %v804 = vmul.f32 %v782, 0.8
    %v805 = vmul.f32 %v783, 0.8
    %v806 = vadd.f32 %v802, %v804
    %v807 = vadd.f32 %v803, %v805
    %v808 = vsel %vm59, 16843009, 0
    %v809 = vsel %vm60, 16843009, 0
    %v810 = vunpack.c.0.s8 %v808
    %v811 = vunpack.c.0.s8 %v809
    %vm812 = vcmp.ne.s32.totalorder %v810, 0
    %vm813 = vcmp.ne.s32.totalorder %v811, 0
    %v814 = vsel %vm812, %v806, -1e+30
    %v815 = vsel %vm813, %v807, -1e+30
    %v816 = vld [vmem:[#allocation2] sm:$0xff]
    %v817 = vld [vmem:[#allocation2 + $0x8] sm:$0xff]
    %vm818 = vcmask 130048
    %v819 = vsel %vm818, %v814, -inf
    %820 = vmax.xlane.f32.xlu0 %v819
    %v821 = vpop.xlane.xlu0 %820
    %v822 = vsel %vm818, %v815, -inf
    %823 = vmax.xlane.f32.xlu0 %v822
    %v824 = vpop.xlane.xlu0 %823
    %v825 = vmax.f32 %v816, %v821
    %v826 = vmax.f32 %v817, %v824
    %v827 = vsub.f32 %v816, %v825
    %v828 = vsub.f32 %v817, %v826
    %v829 = vmul.f32 %v827, 1.442695
    %v830 = vpow.pop %v829
    %v831 = vmul.f32 %v828, 1.442695
    %v832 = vpow.pop %v831
    %834 = vset.pattern.permute.xlu0 0
    %835 = vperm.xlu0 %834, %v825
    %v836 = vpop.permute.xlu0 %835
    %839 = vset.pattern.permute.xlu0 0
    %840 = vperm.xlu0 %839, %v826
    %v841 = vpop.permute.xlu0 %840
    %v843 = vsub.f32 %v814, %v836
    %v844 = vsub.f32 %v815, %v841
    %v845 = vmul.f32 %v843, 1.442695
    %v846 = vpow.pop %v845
    %v847 = vmul.f32 %v844, 1.442695
    %v848 = vpow.pop %v847
    %v849 = vsel %vm812, %v846, 0.0
    %v850 = vsel %vm813, %v848, 0.0
    %v851 = vld [vmem:[#allocation3] sm:$0xff]
    %v852 = vld [vmem:[#allocation3 + $0x8] sm:$0xff]
    %v853 = vmul.f32 %v830, %v851
    %v854 = vmul.f32 %v832, %v852
    %v855 = vsel %vm818, %v849, 0.0
    %856 = vadd.xlane.f32.xlu0 %v855
    %v857 = vpop.xlane.xlu0 %856
    %v858 = vsel %vm818, %v850, 0.0
    %859 = vadd.xlane.f32.xlu0 %v858
    %v860 = vpop.xlane.xlu0 %859
    %v861 = vadd.f32 %v853, %v857
    %v862 = vadd.f32 %v854, %v860
    %vm863 = vcmask 7168
    %864 = vst.msk [vmem:[#allocation3] sm:$0xff] %vm863, %v861
    %865 = vst.msk [vmem:[#allocation3 + $0x8] sm:$0xff] %vm863, %v862
    %v866 = vld [vmem:[#allocation4] sm:$0xff]
    %v867 = vld [vmem:[#allocation4 + $0x8] sm:$0xff]
    %869 = vset.pattern.permute.xlu0 0
    %870 = vperm.xlu0 %869, %v830
    %v871 = vpop.permute.xlu0 %870
    %874 = vset.pattern.permute.xlu0 0
    %875 = vperm.xlu0 %874, %v832
    %v876 = vpop.permute.xlu0 %875
    %v878 = vmul.f32 %v871, %v866
    %v879 = vmul.f32 %v876, %v867
    %v880 = vpack.c.bf16 %v850, %v849
    %v883 = vunpack.c.l.b16 %v76
    %v884 = vunpack.c.l.b16 %v77
    %v885 = vpack.c.b16 %v884, %v883
    %v888 = vsel %vm818, %v880, 0
    %890 = vmatprep.subr.bf16.mxu0 0
    %891 = vmatpush1.bf16.msra.mxu0 %v885
    %892 = vmatprep.subr.bf16.mxu0 0
    %893 = vmatpush1.bf16.msra.mxu0 0
    %894 = vmatprep.subr.bf16.mxu0 0
    %895 = vmatpush1.bf16.msra.mxu0 0
    %896 = vmatprep.subr.bf16.mxu0 0
    %897 = vmatpush1.bf16.msra.mxu0 0
    %898 = vmatprep.subr.bf16.mxu0 0
    %899 = vmatpush1.bf16.msra.mxu0 0
    %900 = vmatprep.subr.bf16.mxu0 0
    %901 = vmatpush1.bf16.msra.mxu0 0
    %902 = vmatprep.subr.bf16.mxu0 0
    %903 = vmatpush1.bf16.msra.mxu0 0
    %904 = vmatprep.subr.bf16.mxu0 0
    %905 = vmatpush1.bf16.msra.mxu0 0
    %906 = vmatprep.subr.bf16.mxu0 0
    %907 = vmatpush1.bf16.msra.mxu0 0
    %908 = vmatprep.subr.bf16.mxu0 0
    %909 = vmatpush1.bf16.msra.mxu0 0
    %910 = vmatprep.subr.bf16.mxu0 0
    %911 = vmatpush1.bf16.msra.mxu0 0
    %912 = vmatprep.subr.bf16.mxu0 0
    %913 = vmatpush1.bf16.msra.mxu0 0
    %914 = vmatprep.subr.bf16.mxu0 0
    %915 = vmatpush1.bf16.msra.mxu0 0
    %916 = vmatprep.subr.bf16.mxu0 0
    %917 = vmatpush1.bf16.msra.mxu0 0
    %918 = vmatprep.subr.bf16.mxu0 0
    %919 = vmatpush1.bf16.msra.mxu0 0
    %920 = vmatprep.subr.bf16.mxu0 0
    %921 = vmatpush1.bf16.msra.mxu0 0
    %922 = vmatprep.mubr.bf16.mxu0 0
    %923 = vmatmul.mubr.bf16.gmra.mrb[0].mxu0 %v888
    %v924 = vpop.f32.mrb[0].mxu0
    %v925 = vadd.f32 0.0, %v924
    %v926 = vpop.f32.mrb[0].mxu0
    %v927 = vpop.f32.mrb[0].mxu0
    %v928 = vadd.f32 0.0, %v927
    %v929 = vpop.f32.mrb[0].mxu0
    %930 = vdwg.mxu0
    %v931 = vadd.f32 %v878, %v925
    %v932 = vadd.f32 %v879, %v928
    %vm933 = vcmask 261120
    %934 = vst.msk [vmem:[#allocation4] sm:$0xff] %vm933, %v931
    %935 = vst.msk [vmem:[#allocation4 + $0x8] sm:$0xff] %vm933, %v932
    %936 = vst.msk [vmem:[#allocation2] sm:$0xff] %vm863, %v825
    %937 = vst.msk [vmem:[#allocation2 + $0x8] sm:$0xff] %vm863, %v826
    // Predicated region
    $region42: #{gat_perso_forward.8} parent=1 // pred_check
      %p938 = pneg %p45
    $region43: #{gat_perso_forward.8} parent=1 // pred_check_branch
      %940 = sbr.rel (%p938) target = $region45
    $region44: #{gat_perso_forward.8} parent=1 // pred_region
      %v941 = vld [vmem:[#allocation3] sm:$0xff]
      %v942 = vld [vmem:[#allocation3 + $0x8] sm:$0xff]
      %v943 = vrcp.pop %v941
      %v944 = vmul.f32 1.0, %v943
      %v945 = vrcp.pop %v942
      %v946 = vmul.f32 1.0, %v945
      %v947 = vld [vmem:[#allocation4] sm:$0xff]
      %v948 = vld [vmem:[#allocation4 + $0x8] sm:$0xff]
      %950 = vset.pattern.permute.xlu0 0
      %951 = vperm.xlu0 %950, %v944
      %v952 = vpop.permute.xlu0 %951
      %955 = vset.pattern.permute.xlu0 0
      %956 = vperm.xlu0 %955, %v946
      %v957 = vpop.permute.xlu0 %956
      %v959 = vmul.f32 %v947, %v952
      %v960 = vmul.f32 %v948, %v957
      %v961 = vld [vmem:[%s7] sm:$0x1]
      %v963 = vlaneseq
      %v964 = vshrl.u32 %v963, 7
      %v965 = vsub.s32 0, %v964
      %v966 = vrot.slane %v961, %v965
      %v968 = vadd.f32 %v959, %v966
      %v969 = vadd.f32 %v960, %v966
      %vm970 = vcmp.gt.f32.partialorder %v968, 0.0
      %vm971 = vcmp.gt.f32.partialorder %v969, 0.0
      %v972 = vmul.f32 %v968, 0.01
      %v973 = vmul.f32 %v969, 0.01
      %v974 = vsel %vm970, %v968, %v972
      %v975 = vsel %vm971, %v969, %v973
      %v976 = vpack.c.bf16 %v975, %v974
      %v978 = vunpack.c.l.b16 %v976
      %v979 = vunpack.c.h.b16 %v976
      %v980 = vpack.c.b16 %v978, %v978
      %v981 = vpack.c.b16 %v979, %v979
      %vm984 = vcmask 257024
      %985 = vst.msk [vmem:[%s8] sm:$0xf] %vm984, %v980
      %986 = vst.msk [vmem:[%s8 + $0x4] sm:$0xf] %vm984, %v981
    $region45: #{gat_perso_forward.8} parent=1 // pred_fallthru
      _
    // Predicated region
    $region46: #{gat_perso_forward.8} parent=1 // pred_check
      _
    $region47: #{gat_perso_forward.8} parent=1 // pred_check_branch
      %988 = sbr.rel (0) target = $region49
    $region48: #{gat_perso_forward.8} parent=1 // pred_region
      _
    $region49: #{gat_perso_forward.8} parent=1 // pred_fallthru
      _
    // Predicated region
    $region50: #{gat_perso_forward.8} parent=1 // pred_check
      _
    $region51: #{gat_perso_forward.8} parent=1 // pred_check_branch
      %990 = sbr.rel (0) target = $region53
    $region52: #{gat_perso_forward.8} parent=1 // pred_region
      _
    $region53: #{gat_perso_forward.8} parent=1 // pred_fallthru
      _
    %991 = vsyncpa [#allocation6], 1

// kernel: gat_perso_forward.6
$region0: #{gat_perso_forward.6}
  #allocation0 [shape = 'u32[]', space=smem, size = 0x4, offset = 0x4, fixed_abs, tag = 'smem constant byte address 0x4 - core index']
  #allocation1 [shape = 'u32[144,128]{1,0:T(1,128)}', space=vmem, size = 0x12000, scoped, tag = 'internal scratch']
  #allocation2 [shape = 'f32[16,4]{1,0:T(8,128)}', space=vmem, size = 0x2000, scoped, tag = 'scratch operand']
  #allocation3 [shape = 'f32[16,4]{1,0:T(8,128)}', space=vmem, size = 0x2000, scoped, tag = 'scratch operand']
  #allocation4 [shape = 'f32[16,128]{1,0:T(8,128)}', space=vmem, size = 0x2000, scoped, tag = 'scratch operand']
  %s0 = inlined_call_operand.vmem [shape: s8[16,16], index: 0, kind: input, shape index: {}]
  %s1 = inlined_call_operand.vmem [shape: bf16[16,128], index: 1, kind: input, shape index: {}]
  %s2 = inlined_call_operand.vmem [shape: bf16[128,16], index: 2, kind: input, shape index: {}]
  %s3 = inlined_call_operand.vmem [shape: bf16[16,128], index: 3, kind: input, shape index: {}]
  %s4 = inlined_call_operand.vmem [shape: f32[4,16], index: 4, kind: input, shape index: {}]
  %s5 = inlined_call_operand.vmem [shape: f32[16,4], index: 5, kind: input, shape index: {}]
  %s6 = inlined_call_operand.vmem [shape: f32[4,32], index: 6, kind: input, shape index: {}]
  %s7 = inlined_call_operand.vmem [shape: f32[1,128], index: 7, kind: input, shape index: {}]
  %s8 = inlined_call_operand.vmem [shape: bf16[16,128], index: 8, kind: output, shape index: {}]
  %s9 = sld [smem:[#allocation0]]
  $region54: #{gat_perso_forward.6} parent=0
    _
  %s11 = ssub.s32 1, %s9
  %s12 = scalar_select 0, %s11, %s9
  $region1: #{gat_perso_forward.6} parent=0
    #allocation5 [shape = 'u8[2048]{0}', space=smem, size = 0x800, scoped, tag = 'input window, operand 6, single buffered']
    #allocation6 [shape = 's32[1]{0}', space=sflag, size = 0x4, scoped, tag = 'scoped memory for gat_perso_forward.6']
    %13 = vsyncpa [#allocation6], 0
    // Predicated region
    $region2: #{gat_perso_forward.6} parent=1 // pred_check
      _
    $region3: #{gat_perso_forward.6} parent=1 // pred_check_branch
      %15 = sbr.rel (0) target = $region5
    $region4: #{gat_perso_forward.6} parent=1 // pred_region
      _
    $region5: #{gat_perso_forward.6} parent=1 // pred_fallthru
      _
    // Predicated region
    $region6: #{gat_perso_forward.6} parent=1 // pred_check
      _
    $region7: #{gat_perso_forward.6} parent=1 // pred_check_branch
      %17 = sbr.rel (0) target = $region9
    $region8: #{gat_perso_forward.6} parent=1 // pred_region
      _
    $region9: #{gat_perso_forward.6} parent=1 // pred_fallthru
      _
    // Predicated region
    $region10: #{gat_perso_forward.6} parent=1 // pred_check
      _
    $region11: #{gat_perso_forward.6} parent=1 // pred_check_branch
      %19 = sbr.rel (0) target = $region13
    $region12: #{gat_perso_forward.6} parent=1 // pred_region
      _
    $region13: #{gat_perso_forward.6} parent=1 // pred_fallthru
      _
    // Predicated region
    $region14: #{gat_perso_forward.6} parent=1 // pred_check
      _
    $region15: #{gat_perso_forward.6} parent=1 // pred_check_branch
      %21 = sbr.rel (0) target = $region17
    $region16: #{gat_perso_forward.6} parent=1 // pred_region
      _
    $region17: #{gat_perso_forward.6} parent=1 // pred_fallthru
      _
    // Predicated region
    $region18: #{gat_perso_forward.6} parent=1 // pred_check
      _
    $region19: #{gat_perso_forward.6} parent=1 // pred_check_branch
      %23 = sbr.rel (0) target = $region21
    $region20: #{gat_perso_forward.6} parent=1 // pred_region
      _
    $region21: #{gat_perso_forward.6} parent=1 // pred_fallthru
      _
    // Predicated region
    $region22: #{gat_perso_forward.6} parent=1 // pred_check
      _
    $region23: #{gat_perso_forward.6} parent=1 // pred_check_branch
      %25 = sbr.rel (0) target = $region25
    $region24: #{gat_perso_forward.6} parent=1 // pred_region
      _
    $region25: #{gat_perso_forward.6} parent=1 // pred_fallthru
      _
    // Predicated region
    $region26: #{gat_perso_forward.6} parent=1 // pred_check
      _
    $region27: #{gat_perso_forward.6} parent=1 // pred_check_branch
      %27 = sbr.rel (0) target = $region29
    $region28: #{gat_perso_forward.6} parent=1 // pred_region
      %s29 = ssub.s32 64, 64
      %30 = vsyncadd [#allocation6], %s29
      %s32 = sshll.u32 %s6, 4
      %s33 = int_to_ptr.vmem [resolvable:$true] %s32
      %35 = dma.vmem_to_smem %s33, 64, [#allocation5], [#allocation6]
    $region29: #{gat_perso_forward.6} parent=1 // pred_fallthru
      _
    // Predicated region
    $region30: #{gat_perso_forward.6} parent=1 // pred_check
      _
    $region31: #{gat_perso_forward.6} parent=1 // pred_check_branch
      %37 = sbr.rel (0) target = $region33
    $region32: #{gat_perso_forward.6} parent=1 // pred_region
      _
    $region33: #{gat_perso_forward.6} parent=1 // pred_fallthru
      _
    // Predicated region
    $region34: #{gat_perso_forward.6} parent=1 // pred_check
      _
    $region35: #{gat_perso_forward.6} parent=1 // pred_check_branch
      %39 = sbr.rel (0) target = $region37
    $region36: #{gat_perso_forward.6} parent=1 // pred_region
      %40 = dma.done [#allocation6], 64
    $region37: #{gat_perso_forward.6} parent=1 // pred_fallthru
      _
    %41 = sfence
    %p45 = scmp.eq.s32.totalorder 0, 0
    // Predicated region
    $region38: #{gat_perso_forward.6} parent=1 // pred_check
      %p46 = pneg %p45
    $region39: #{gat_perso_forward.6} parent=1 // pred_check_branch
      %48 = sbr.rel (%p46) target = $region41
    $region40: #{gat_perso_forward.6} parent=1 // pred_region
      %vm49 = vcmask 31744
      %50 = vst.msk [vmem:[#allocation2] sm:$0xff] %vm49, -1e+30
      %51 = vst.msk [vmem:[#allocation2 + $0x8] sm:$0xff] %vm49, -1e+30
      %52 = vst.msk [vmem:[#allocation3] sm:$0xff] %vm49, 0.0
      %53 = vst.msk [vmem:[#allocation3 + $0x8] sm:$0xff] %vm49, 0.0
      %54 = vst [vmem:[#allocation4] sm:$0xff] 0.0
      %55 = vst [vmem:[#allocation4 + $0x8] sm:$0xff] 0.0
    $region41: #{gat_perso_forward.6} parent=1 // pred_fallthru
      _
    %v56 = vld [vmem:[%s0] sm:$0x3]
    %v57 = vld [vmem:[%s0 + $0x2] sm:$0x3]
    %vm58 = vnez %v56
    %vm59 = vnez %v57
    %v60 = vld [vmem:[%s2] sm:$0xf]
    %v61 = vld [vmem:[%s2 + $0x4] sm:$0xf]
    %v62 = vld [vmem:[%s2 + $0x8] sm:$0xf]
    %v63 = vld [vmem:[%s2 + $0xc] sm:$0xf]
    %v64 = vld [vmem:[%s2 + $0x10] sm:$0xf]
    %v65 = vld [vmem:[%s2 + $0x14] sm:$0xf]
    %v66 = vld [vmem:[%s2 + $0x18] sm:$0xf]
    %v67 = vld [vmem:[%s2 + $0x1c] sm:$0xf]
    %v68 = vld [vmem:[%s2 + $0x20] sm:$0xf]
    %v69 = vld [vmem:[%s2 + $0x24] sm:$0xf]
    %v70 = vld [vmem:[%s2 + $0x28] sm:$0xf]
    %v71 = vld [vmem:[%s2 + $0x2c] sm:$0xf]
    %v72 = vld [vmem:[%s2 + $0x30] sm:$0xf]
    %v73 = vld [vmem:[%s2 + $0x34] sm:$0xf]
    %v74 = vld [vmem:[%s2 + $0x38] sm:$0xf]
    %v75 = vld [vmem:[%s2 + $0x3c] sm:$0xf]
    %v76 = vunpack.c.l.bf16 %v60
    %v77 = vunpack.c.l.bf16 %v61
    %v78 = vunpack.c.l.bf16 %v62
    %v79 = vunpack.c.l.bf16 %v63
    %v80 = vunpack.c.l.bf16 %v64
    %v81 = vunpack.c.l.bf16 %v65
    %v82 = vunpack.c.l.bf16 %v66
    %v83 = vunpack.c.l.bf16 %v67
    %v84 = vunpack.c.l.bf16 %v68
    %v85 = vunpack.c.l.bf16 %v69
    %v86 = vunpack.c.l.bf16 %v70
    %v87 = vunpack.c.l.bf16 %v71
    %v88 = vunpack.c.l.bf16 %v72
    %v89 = vunpack.c.l.bf16 %v73
    %v90 = vunpack.c.l.bf16 %v74
    %v91 = vunpack.c.l.bf16 %v75
    %v92 = vld [vmem:[%s3] sm:$0xf]
    %v93 = vld [vmem:[%s3 + $0x4] sm:$0xf]
    %v94 = vunpack.c.l.bf16 %v92
    %v95 = vunpack.c.l.bf16 %v93
    %v96 = vld [vmem:[%s4] sm:$0xf]
    %v97 = vld [vmem:[%s5] sm:$0xff]
    %v98 = vld [vmem:[%s5 + $0x8] sm:$0xff]
    %v99 = vld [vmem:[%s1] sm:$0xf]
    %v100 = vld [vmem:[%s1 + $0x4] sm:$0xf]
    %102 = vset.pattern.permute.xlu0 0
    %103 = vperm.xlu0 %102, %v94
    %v104 = vpop.permute.xlu0 %103
    %107 = vset.pattern.permute.xlu0 0
    %108 = vperm.xlu0 %107, %v95
    %v109 = vpop.permute.xlu0 %108
    %v111 = vlaneseq
    %v112 = vshrl.u32 %v111, 7
    %v113 = vsub.s32 0, %v112
    %v114 = vrot.slane %v76, %v113
    %v115 = vadd.f32 %v104, %v114
    %v116 = vadd.f32 %v109, %v114
    %s117 = sld [smem:[#allocation5]]
    %v118 = vmax.f32 %v115, 0.0
    %v119 = vmax.f32 %v116, 0.0
    %v120 = vstv %s117
    %v121 = vmul.f32 %v120, %v118
    %v122 = vmul.f32 %v120, %v119
    %v123 = vadd.f32 %v121, 0.0
    %v124 = vadd.f32 %v122, 0.0
    %125 = vset.pattern.permute.xlu0 1
    %126 = vperm.xlu0 %125, %v94
    %v127 = vpop.permute.xlu0 %126
    %129 = vset.pattern.permute.xlu0 1
    %130 = vperm.xlu0 %129, %v95
    %v131 = vpop.permute.xlu0 %130
    %v133 = vlaneseq
    %v134 = vshrl.u32 %v133, 7
    %v135 = vsub.s32 1, %v134
    %v136 = vrot.slane %v76, %v135
    %v137 = vadd.f32 %v127, %v136
    %v138 = vadd.f32 %v131, %v136
    %s139 = sld [smem:[#allocation5 + $0x1]]
    %v140 = vmax.f32 %v137, 0.0
    %v141 = vmax.f32 %v138, 0.0
    %v142 = vstv %s139
    %v143 = vmul.f32 %v142, %v140
    %v144 = vmul.f32 %v142, %v141
    %v145 = vadd.f32 %v123, %v143
    %v146 = vadd.f32 %v124, %v144
    %147 = vset.pattern.permute.xlu0 2
    %148 = vperm.xlu0 %147, %v94
    %v149 = vpop.permute.xlu0 %148
    %151 = vset.pattern.permute.xlu0 2
    %152 = vperm.xlu0 %151, %v95
    %v153 = vpop.permute.xlu0 %152
    %v155 = vlaneseq
    %v156 = vshrl.u32 %v155, 7
    %v157 = vsub.s32 2, %v156
    %v158 = vrot.slane %v76, %v157
    %v159 = vadd.f32 %v149, %v158
    %v160 = vadd.f32 %v153, %v158
    %s161 = sld [smem:[#allocation5 + $0x2]]
    %v162 = vmax.f32 %v159, 0.0
    %v163 = vmax.f32 %v160, 0.0
    %v164 = vstv %s161
    %v165 = vmul.f32 %v164, %v162
    %v166 = vmul.f32 %v164, %v163
    %v167 = vadd.f32 %v145, %v165
    %v168 = vadd.f32 %v146, %v166
    %169 = vset.pattern.permute.xlu0 3
    %170 = vperm.xlu0 %169, %v94
    %v171 = vpop.permute.xlu0 %170
    %173 = vset.pattern.permute.xlu0 3
    %174 = vperm.xlu0 %173, %v95
    %v175 = vpop.permute.xlu0 %174
    %v177 = vlaneseq
    %v178 = vshrl.u32 %v177, 7
    %v179 = vsub.s32 3, %v178
    %v180 = vrot.slane %v76, %v179
    %v181 = vadd.f32 %v171, %v180
    %v182 = vadd.f32 %v175, %v180
    %s183 = sld [smem:[#allocation5 + $0x3]]
    %v184 = vmax.f32 %v181, 0.0
    %v185 = vmax.f32 %v182, 0.0
    %v186 = vstv %s183
    %v187 = vmul.f32 %v186, %v184
    %v188 = vmul.f32 %v186, %v185
    %v189 = vadd.f32 %v167, %v187
    %v190 = vadd.f32 %v168, %v188
    %191 = vset.pattern.permute.xlu0 4
    %192 = vperm.xlu0 %191, %v94
    %v193 = vpop.permute.xlu0 %192
    %195 = vset.pattern.permute.xlu0 4
    %196 = vperm.xlu0 %195, %v95
    %v197 = vpop.permute.xlu0 %196
    %v199 = vlaneseq
    %v200 = vshrl.u32 %v199, 7
    %v201 = vsub.s32 4, %v200
    %v202 = vrot.slane %v76, %v201
    %v203 = vadd.f32 %v193, %v202
    %v204 = vadd.f32 %v197, %v202
    %s205 = sld [smem:[#allocation5 + $0x4]]
    %v206 = vmax.f32 %v203, 0.0
    %v207 = vmax.f32 %v204, 0.0
    %v208 = vstv %s205
    %v209 = vmul.f32 %v208, %v206
    %v210 = vmul.f32 %v208, %v207
    %v211 = vadd.f32 %v189, %v209
    %v212 = vadd.f32 %v190, %v210
    %213 = vset.pattern.permute.xlu0 5
    %214 = vperm.xlu0 %213, %v94
    %v215 = vpop.permute.xlu0 %214
    %217 = vset.pattern.permute.xlu0 5
    %218 = vperm.xlu0 %217, %v95
    %v219 = vpop.permute.xlu0 %218
    %v221 = vlaneseq
    %v222 = vshrl.u32 %v221, 7
    %v223 = vsub.s32 5, %v222
    %v224 = vrot.slane %v76, %v223
    %v225 = vadd.f32 %v215, %v224
    %v226 = vadd.f32 %v219, %v224
    %s227 = sld [smem:[#allocation5 + $0x5]]
    %v228 = vmax.f32 %v225, 0.0
    %v229 = vmax.f32 %v226, 0.0
    %v230 = vstv %s227
    %v231 = vmul.f32 %v230, %v228
    %v232 = vmul.f32 %v230, %v229
    %v233 = vadd.f32 %v211, %v231
    %v234 = vadd.f32 %v212, %v232
    %235 = vset.pattern.permute.xlu0 6
    %236 = vperm.xlu0 %235, %v94
    %v237 = vpop.permute.xlu0 %236
    %239 = vset.pattern.permute.xlu0 6
    %240 = vperm.xlu0 %239, %v95
    %v241 = vpop.permute.xlu0 %240
    %v243 = vlaneseq
    %v244 = vshrl.u32 %v243, 7
    %v245 = vsub.s32 6, %v244
    %v246 = vrot.slane %v76, %v245
    %v247 = vadd.f32 %v237, %v246
    %v248 = vadd.f32 %v241, %v246
    %s249 = sld [smem:[#allocation5 + $0x6]]
    %v250 = vmax.f32 %v247, 0.0
    %v251 = vmax.f32 %v248, 0.0
    %v252 = vstv %s249
    %v253 = vmul.f32 %v252, %v250
    %v254 = vmul.f32 %v252, %v251
    %v255 = vadd.f32 %v233, %v253
    %v256 = vadd.f32 %v234, %v254
    %257 = vset.pattern.permute.xlu0 7
    %258 = vperm.xlu0 %257, %v94
    %v259 = vpop.permute.xlu0 %258
    %261 = vset.pattern.permute.xlu0 7
    %262 = vperm.xlu0 %261, %v95
    %v263 = vpop.permute.xlu0 %262
    %v265 = vlaneseq
    %v266 = vshrl.u32 %v265, 7
    %v267 = vsub.s32 7, %v266
    %v268 = vrot.slane %v76, %v267
    %v269 = vadd.f32 %v259, %v268
    %v270 = vadd.f32 %v263, %v268
    %s271 = sld [smem:[#allocation5 + $0x7]]
    %v272 = vmax.f32 %v269, 0.0
    %v273 = vmax.f32 %v270, 0.0
    %v274 = vstv %s271
    %v275 = vmul.f32 %v274, %v272
    %v276 = vmul.f32 %v274, %v273
    %v277 = vadd.f32 %v255, %v275
    %v278 = vadd.f32 %v256, %v276
    %279 = vset.pattern.permute.xlu0 8
    %280 = vperm.xlu0 %279, %v94
    %v281 = vpop.permute.xlu0 %280
    %283 = vset.pattern.permute.xlu0 8
    %284 = vperm.xlu0 %283, %v95
    %v285 = vpop.permute.xlu0 %284
    %v287 = vlaneseq
    %v288 = vshrl.u32 %v287, 7
    %v289 = vsub.s32 0, %v288
    %v290 = vrot.slane %v77, %v289
    %v291 = vadd.f32 %v281, %v290
    %v292 = vadd.f32 %v285, %v290
    %s293 = sld [smem:[#allocation5 + $0x8]]
    %v294 = vmax.f32 %v291, 0.0
    %v295 = vmax.f32 %v292, 0.0
    %v296 = vstv %s293
    %v297 = vmul.f32 %v296, %v294
    %v298 = vmul.f32 %v296, %v295
    %v299 = vadd.f32 %v277, %v297
    %v300 = vadd.f32 %v278, %v298
    %301 = vset.pattern.permute.xlu0 9
    %302 = vperm.xlu0 %301, %v94
    %v303 = vpop.permute.xlu0 %302
    %305 = vset.pattern.permute.xlu0 9
    %306 = vperm.xlu0 %305, %v95
    %v307 = vpop.permute.xlu0 %306
    %v309 = vlaneseq
    %v310 = vshrl.u32 %v309, 7
    %v311 = vsub.s32 1, %v310
    %v312 = vrot.slane %v77, %v311
    %v313 = vadd.f32 %v303, %v312
    %v314 = vadd.f32 %v307, %v312
    %s315 = sld [smem:[#allocation5 + $0x9]]
    %v316 = vmax.f32 %v313, 0.0
    %v317 = vmax.f32 %v314, 0.0
    %v318 = vstv %s315
    %v319 = vmul.f32 %v318, %v316
    %v320 = vmul.f32 %v318, %v317
    %v321 = vadd.f32 %v299, %v319
    %v322 = vadd.f32 %v300, %v320
    %323 = vset.pattern.permute.xlu0 10
    %324 = vperm.xlu0 %323, %v94
    %v325 = vpop.permute.xlu0 %324
    %327 = vset.pattern.permute.xlu0 10
    %328 = vperm.xlu0 %327, %v95
    %v329 = vpop.permute.xlu0 %328
    %v331 = vlaneseq
    %v332 = vshrl.u32 %v331, 7
    %v333 = vsub.s32 2, %v332
    %v334 = vrot.slane %v77, %v333
    %v335 = vadd.f32 %v325, %v334
    %v336 = vadd.f32 %v329, %v334
    %s337 = sld [smem:[#allocation5 + $0xa]]
    %v338 = vmax.f32 %v335, 0.0
    %v339 = vmax.f32 %v336, 0.0
    %v340 = vstv %s337
    %v341 = vmul.f32 %v340, %v338
    %v342 = vmul.f32 %v340, %v339
    %v343 = vadd.f32 %v321, %v341
    %v344 = vadd.f32 %v322, %v342
    %345 = vset.pattern.permute.xlu0 11
    %346 = vperm.xlu0 %345, %v94
    %v347 = vpop.permute.xlu0 %346
    %349 = vset.pattern.permute.xlu0 11
    %350 = vperm.xlu0 %349, %v95
    %v351 = vpop.permute.xlu0 %350
    %v353 = vlaneseq
    %v354 = vshrl.u32 %v353, 7
    %v355 = vsub.s32 3, %v354
    %v356 = vrot.slane %v77, %v355
    %v357 = vadd.f32 %v347, %v356
    %v358 = vadd.f32 %v351, %v356
    %s359 = sld [smem:[#allocation5 + $0xb]]
    %v360 = vmax.f32 %v357, 0.0
    %v361 = vmax.f32 %v358, 0.0
    %v362 = vstv %s359
    %v363 = vmul.f32 %v362, %v360
    %v364 = vmul.f32 %v362, %v361
    %v365 = vadd.f32 %v343, %v363
    %v366 = vadd.f32 %v344, %v364
    %367 = vset.pattern.permute.xlu0 12
    %368 = vperm.xlu0 %367, %v94
    %v369 = vpop.permute.xlu0 %368
    %371 = vset.pattern.permute.xlu0 12
    %372 = vperm.xlu0 %371, %v95
    %v373 = vpop.permute.xlu0 %372
    %v375 = vlaneseq
    %v376 = vshrl.u32 %v375, 7
    %v377 = vsub.s32 4, %v376
    %v378 = vrot.slane %v77, %v377
    %v379 = vadd.f32 %v369, %v378
    %v380 = vadd.f32 %v373, %v378
    %s381 = sld [smem:[#allocation5 + $0xc]]
    %v382 = vmax.f32 %v379, 0.0
    %v383 = vmax.f32 %v380, 0.0
    %v384 = vstv %s381
    %v385 = vmul.f32 %v384, %v382
    %v386 = vmul.f32 %v384, %v383
    %v387 = vadd.f32 %v365, %v385
    %v388 = vadd.f32 %v366, %v386
    %389 = vset.pattern.permute.xlu0 13
    %390 = vperm.xlu0 %389, %v94
    %v391 = vpop.permute.xlu0 %390
    %393 = vset.pattern.permute.xlu0 13
    %394 = vperm.xlu0 %393, %v95
    %v395 = vpop.permute.xlu0 %394
    %v397 = vlaneseq
    %v398 = vshrl.u32 %v397, 7
    %v399 = vsub.s32 5, %v398
    %v400 = vrot.slane %v77, %v399
    %v401 = vadd.f32 %v391, %v400
    %v402 = vadd.f32 %v395, %v400
    %s403 = sld [smem:[#allocation5 + $0xd]]
    %v404 = vmax.f32 %v401, 0.0
    %v405 = vmax.f32 %v402, 0.0
    %v406 = vstv %s403
    %v407 = vmul.f32 %v406, %v404
    %v408 = vmul.f32 %v406, %v405
    %v409 = vadd.f32 %v387, %v407
    %v410 = vadd.f32 %v388, %v408
    %411 = vset.pattern.permute.xlu0 14
    %412 = vperm.xlu0 %411, %v94
    %v413 = vpop.permute.xlu0 %412
    %415 = vset.pattern.permute.xlu0 14
    %416 = vperm.xlu0 %415, %v95
    %v417 = vpop.permute.xlu0 %416
    %v419 = vlaneseq
    %v420 = vshrl.u32 %v419, 7
    %v421 = vsub.s32 6, %v420
    %v422 = vrot.slane %v77, %v421
    %v423 = vadd.f32 %v413, %v422
    %v424 = vadd.f32 %v417, %v422
    %s425 = sld [smem:[#allocation5 + $0xe]]
    %v426 = vmax.f32 %v423, 0.0
    %v427 = vmax.f32 %v424, 0.0
    %v428 = vstv %s425
    %v429 = vmul.f32 %v428, %v426
    %v430 = vmul.f32 %v428, %v427
    %v431 = vadd.f32 %v409, %v429
    %v432 = vadd.f32 %v410, %v430
    %433 = vset.pattern.permute.xlu0 15
    %434 = vperm.xlu0 %433, %v94
    %v435 = vpop.permute.xlu0 %434
    %437 = vset.pattern.permute.xlu0 15
    %438 = vperm.xlu0 %437, %v95
    %v439 = vpop.permute.xlu0 %438
    %v441 = vlaneseq
    %v442 = vshrl.u32 %v441, 7
    %v443 = vsub.s32 7, %v442
    %v444 = vrot.slane %v77, %v443
    %v445 = vadd.f32 %v435, %v444
    %v446 = vadd.f32 %v439, %v444
    %s447 = sld [smem:[#allocation5 + $0xf]]
    %v448 = vmax.f32 %v445, 0.0
    %v449 = vmax.f32 %v446, 0.0
    %v450 = vstv %s447
    %v451 = vmul.f32 %v450, %v448
    %v452 = vmul.f32 %v450, %v449
    %v453 = vadd.f32 %v431, %v451
    %v454 = vadd.f32 %v432, %v452
    %455 = vset.pattern.permute.xlu0 16
    %456 = vperm.xlu0 %455, %v94
    %v457 = vpop.permute.xlu0 %456
    %459 = vset.pattern.permute.xlu0 16
    %460 = vperm.xlu0 %459, %v95
    %v461 = vpop.permute.xlu0 %460
    %v463 = vlaneseq
    %v464 = vshrl.u32 %v463, 7
    %v465 = vsub.s32 0, %v464
    %v466 = vrot.slane %v78, %v465
    %v467 = vadd.f32 %v457, %v466
    %v468 = vadd.f32 %v461, %v466
    %s469 = sld [smem:[#allocation5 + $0x10]]
    %v470 = vmax.f32 %v467, 0.0
    %v471 = vmax.f32 %v468, 0.0
    %v472 = vstv %s469
    %v473 = vmul.f32 %v472, %v470
    %v474 = vmul.f32 %v472, %v471
    %v475 = vadd.f32 %v453, %v473
    %v476 = vadd.f32 %v454, %v474
    %477 = vset.pattern.permute.xlu0 17
    %478 = vperm.xlu0 %477, %v94
    %v479 = vpop.permute.xlu0 %478
    %481 = vset.pattern.permute.xlu0 17
    %482 = vperm.xlu0 %481, %v95
    %v483 = vpop.permute.xlu0 %482
    %v485 = vlaneseq
    %v486 = vshrl.u32 %v485, 7
    %v487 = vsub.s32 1, %v486
    %v488 = vrot.slane %v78, %v487
    %v489 = vadd.f32 %v479, %v488
    %v490 = vadd.f32 %v483, %v488
    %s491 = sld [smem:[#allocation5 + $0x11]]
    %v492 = vmax.f32 %v489, 0.0
    %v493 = vmax.f32 %v490, 0.0
    %v494 = vstv %s491
    %v495 = vmul.f32 %v494, %v492
    %v496 = vmul.f32 %v494, %v493
    %v497 = vadd.f32 %v475, %v495
    %v498 = vadd.f32 %v476, %v496
    %499 = vset.pattern.permute.xlu0 18
    %500 = vperm.xlu0 %499, %v94
    %v501 = vpop.permute.xlu0 %500
    %503 = vset.pattern.permute.xlu0 18
    %504 = vperm.xlu0 %503, %v95
    %v505 = vpop.permute.xlu0 %504
    %v507 = vlaneseq
    %v508 = vshrl.u32 %v507, 7
    %v509 = vsub.s32 2, %v508
    %v510 = vrot.slane %v78, %v509
    %v511 = vadd.f32 %v501, %v510
    %v512 = vadd.f32 %v505, %v510
    %s513 = sld [smem:[#allocation5 + $0x12]]
    %v514 = vmax.f32 %v511, 0.0
    %v515 = vmax.f32 %v512, 0.0
    %v516 = vstv %s513
    %v517 = vmul.f32 %v516, %v514
    %v518 = vmul.f32 %v516, %v515
    %v519 = vadd.f32 %v497, %v517
    %v520 = vadd.f32 %v498, %v518
    %521 = vset.pattern.permute.xlu0 19
    %522 = vperm.xlu0 %521, %v94
    %v523 = vpop.permute.xlu0 %522
    %525 = vset.pattern.permute.xlu0 19
    %526 = vperm.xlu0 %525, %v95
    %v527 = vpop.permute.xlu0 %526
    %v529 = vlaneseq
    %v530 = vshrl.u32 %v529, 7
    %v531 = vsub.s32 3, %v530
    %v532 = vrot.slane %v78, %v531
    %v533 = vadd.f32 %v523, %v532
    %v534 = vadd.f32 %v527, %v532
    %s535 = sld [smem:[#allocation5 + $0x13]]
    %v536 = vmax.f32 %v533, 0.0
    %v537 = vmax.f32 %v534, 0.0
    %v538 = vstv %s535
    %v539 = vmul.f32 %v538, %v536
    %v540 = vmul.f32 %v538, %v537
    %v541 = vadd.f32 %v519, %v539
    %v542 = vadd.f32 %v520, %v540
    %543 = vset.pattern.permute.xlu0 20
    %544 = vperm.xlu0 %543, %v94
    %v545 = vpop.permute.xlu0 %544
    %547 = vset.pattern.permute.xlu0 20
    %548 = vperm.xlu0 %547, %v95
    %v549 = vpop.permute.xlu0 %548
    %v551 = vlaneseq
    %v552 = vshrl.u32 %v551, 7
    %v553 = vsub.s32 4, %v552
    %v554 = vrot.slane %v78, %v553
    %v555 = vadd.f32 %v545, %v554
    %v556 = vadd.f32 %v549, %v554
    %s557 = sld [smem:[#allocation5 + $0x14]]
    %v558 = vmax.f32 %v555, 0.0
    %v559 = vmax.f32 %v556, 0.0
    %v560 = vstv %s557
    %v561 = vmul.f32 %v560, %v558
    %v562 = vmul.f32 %v560, %v559
    %v563 = vadd.f32 %v541, %v561
    %v564 = vadd.f32 %v542, %v562
    %565 = vset.pattern.permute.xlu0 21
    %566 = vperm.xlu0 %565, %v94
    %v567 = vpop.permute.xlu0 %566
    %569 = vset.pattern.permute.xlu0 21
    %570 = vperm.xlu0 %569, %v95
    %v571 = vpop.permute.xlu0 %570
    %v573 = vlaneseq
    %v574 = vshrl.u32 %v573, 7
    %v575 = vsub.s32 5, %v574
    %v576 = vrot.slane %v78, %v575
    %v577 = vadd.f32 %v567, %v576
    %v578 = vadd.f32 %v571, %v576
    %s579 = sld [smem:[#allocation5 + $0x15]]
    %v580 = vmax.f32 %v577, 0.0
    %v581 = vmax.f32 %v578, 0.0
    %v582 = vstv %s579
    %v583 = vmul.f32 %v582, %v580
    %v584 = vmul.f32 %v582, %v581
    %v585 = vadd.f32 %v563, %v583
    %v586 = vadd.f32 %v564, %v584
    %587 = vset.pattern.permute.xlu0 22
    %588 = vperm.xlu0 %587, %v94
    %v589 = vpop.permute.xlu0 %588
    %591 = vset.pattern.permute.xlu0 22
    %592 = vperm.xlu0 %591, %v95
    %v593 = vpop.permute.xlu0 %592
    %v595 = vlaneseq
    %v596 = vshrl.u32 %v595, 7
    %v597 = vsub.s32 6, %v596
    %v598 = vrot.slane %v78, %v597
    %v599 = vadd.f32 %v589, %v598
    %v600 = vadd.f32 %v593, %v598
    %s601 = sld [smem:[#allocation5 + $0x16]]
    %v602 = vmax.f32 %v599, 0.0
    %v603 = vmax.f32 %v600, 0.0
    %v604 = vstv %s601
    %v605 = vmul.f32 %v604, %v602
    %v606 = vmul.f32 %v604, %v603
    %v607 = vadd.f32 %v585, %v605
    %v608 = vadd.f32 %v586, %v606
    %609 = vset.pattern.permute.xlu0 23
    %610 = vperm.xlu0 %609, %v94
    %v611 = vpop.permute.xlu0 %610
    %613 = vset.pattern.permute.xlu0 23
    %614 = vperm.xlu0 %613, %v95
    %v615 = vpop.permute.xlu0 %614
    %v617 = vlaneseq
    %v618 = vshrl.u32 %v617, 7
    %v619 = vsub.s32 7, %v618
    %v620 = vrot.slane %v78, %v619
    %v621 = vadd.f32 %v611, %v620
    %v622 = vadd.f32 %v615, %v620
    %s623 = sld [smem:[#allocation5 + $0x17]]
    %v624 = vmax.f32 %v621, 0.0
    %v625 = vmax.f32 %v622, 0.0
    %v626 = vstv %s623
    %v627 = vmul.f32 %v626, %v624
    %v628 = vmul.f32 %v626, %v625
    %v629 = vadd.f32 %v607, %v627
    %v630 = vadd.f32 %v608, %v628
    %631 = vset.pattern.permute.xlu0 24
    %632 = vperm.xlu0 %631, %v94
    %v633 = vpop.permute.xlu0 %632
    %635 = vset.pattern.permute.xlu0 24
    %636 = vperm.xlu0 %635, %v95
    %v637 = vpop.permute.xlu0 %636
    %v639 = vlaneseq
    %v640 = vshrl.u32 %v639, 7
    %v641 = vsub.s32 0, %v640
    %v642 = vrot.slane %v79, %v641
    %v643 = vadd.f32 %v633, %v642
    %v644 = vadd.f32 %v637, %v642
    %s645 = sld [smem:[#allocation5 + $0x18]]
    %v646 = vmax.f32 %v643, 0.0
    %v647 = vmax.f32 %v644, 0.0
    %v648 = vstv %s645
    %v649 = vmul.f32 %v648, %v646
    %v650 = vmul.f32 %v648, %v647
    %v651 = vadd.f32 %v629, %v649
    %v652 = vadd.f32 %v630, %v650
    %653 = vset.pattern.permute.xlu0 25
    %654 = vperm.xlu0 %653, %v94
    %v655 = vpop.permute.xlu0 %654
    %657 = vset.pattern.permute.xlu0 25
    %658 = vperm.xlu0 %657, %v95
    %v659 = vpop.permute.xlu0 %658
    %v661 = vlaneseq
    %v662 = vshrl.u32 %v661, 7
    %v663 = vsub.s32 1, %v662
    %v664 = vrot.slane %v79, %v663
    %v665 = vadd.f32 %v655, %v664
    %v666 = vadd.f32 %v659, %v664
    %s667 = sld [smem:[#allocation5 + $0x19]]
    %v668 = vmax.f32 %v665, 0.0
    %v669 = vmax.f32 %v666, 0.0
    %v670 = vstv %s667
    %v671 = vmul.f32 %v670, %v668
    %v672 = vmul.f32 %v670, %v669
    %v673 = vadd.f32 %v651, %v671
    %v674 = vadd.f32 %v652, %v672
    %675 = vset.pattern.permute.xlu0 26
    %676 = vperm.xlu0 %675, %v94
    %v677 = vpop.permute.xlu0 %676
    %679 = vset.pattern.permute.xlu0 26
    %680 = vperm.xlu0 %679, %v95
    %v681 = vpop.permute.xlu0 %680
    %v683 = vlaneseq
    %v684 = vshrl.u32 %v683, 7
    %v685 = vsub.s32 2, %v684
    %v686 = vrot.slane %v79, %v685
    %v687 = vadd.f32 %v677, %v686
    %v688 = vadd.f32 %v681, %v686
    %s689 = sld [smem:[#allocation5 + $0x1a]]
    %v690 = vmax.f32 %v687, 0.0
    %v691 = vmax.f32 %v688, 0.0
    %v692 = vstv %s689
    %v693 = vmul.f32 %v692, %v690
    %v694 = vmul.f32 %v692, %v691
    %v695 = vadd.f32 %v673, %v693
    %v696 = vadd.f32 %v674, %v694
    %697 = vset.pattern.permute.xlu0 27
    %698 = vperm.xlu0 %697, %v94
    %v699 = vpop.permute.xlu0 %698
    %701 = vset.pattern.permute.xlu0 27
    %702 = vperm.xlu0 %701, %v95
    %v703 = vpop.permute.xlu0 %702
    %v705 = vlaneseq
    %v706 = vshrl.u32 %v705, 7
    %v707 = vsub.s32 3, %v706
    %v708 = vrot.slane %v79, %v707
    %v709 = vadd.f32 %v699, %v708
    %v710 = vadd.f32 %v703, %v708
    %s711 = sld [smem:[#allocation5 + $0x1b]]
    %v712 = vmax.f32 %v709, 0.0
    %v713 = vmax.f32 %v710, 0.0
    %v714 = vstv %s711
    %v715 = vmul.f32 %v714, %v712
    %v716 = vmul.f32 %v714, %v713
    %v717 = vadd.f32 %v695, %v715
    %v718 = vadd.f32 %v696, %v716
    %719 = vset.pattern.permute.xlu0 28
    %720 = vperm.xlu0 %719, %v94
    %v721 = vpop.permute.xlu0 %720
    %723 = vset.pattern.permute.xlu0 28
    %724 = vperm.xlu0 %723, %v95
    %v725 = vpop.permute.xlu0 %724
    %v727 = vlaneseq
    %v728 = vshrl.u32 %v727, 7
    %v729 = vsub.s32 4, %v728
    %v730 = vrot.slane %v79, %v729
    %v731 = vadd.f32 %v721, %v730
    %v732 = vadd.f32 %v725, %v730
    %s733 = sld [smem:[#allocation5 + $0x1c]]
    %v734 = vmax.f32 %v731, 0.0
    %v735 = vmax.f32 %v732, 0.0
    %v736 = vstv %s733
    %v737 = vmul.f32 %v736, %v734
    %v738 = vmul.f32 %v736, %v735
    %v739 = vadd.f32 %v717, %v737
    %v740 = vadd.f32 %v718, %v738
    %741 = vset.pattern.permute.xlu0 29
    %742 = vperm.xlu0 %741, %v94
    %v743 = vpop.permute.xlu0 %742
    %745 = vset.pattern.permute.xlu0 29
    %746 = vperm.xlu0 %745, %v95
    %v747 = vpop.permute.xlu0 %746
    %v749 = vlaneseq
    %v750 = vshrl.u32 %v749, 7
    %v751 = vsub.s32 5, %v750
    %v752 = vrot.slane %v79, %v751
    %v753 = vadd.f32 %v743, %v752
    %v754 = vadd.f32 %v747, %v752
    %s755 = sld [smem:[#allocation5 + $0x1d]]
    %v756 = vmax.f32 %v753, 0.0
    %v757 = vmax.f32 %v754, 0.0
    %v758 = vstv %s755
    %v759 = vmul.f32 %v758, %v756
    %v760 = vmul.f32 %v758, %v757
    %v761 = vadd.f32 %v739, %v759
    %v762 = vadd.f32 %v740, %v760
    %763 = vset.pattern.permute.xlu0 30
    %764 = vperm.xlu0 %763, %v94
    %v765 = vpop.permute.xlu0 %764
    %767 = vset.pattern.permute.xlu0 30
    %768 = vperm.xlu0 %767, %v95
    %v769 = vpop.permute.xlu0 %768
    %v771 = vlaneseq
    %v772 = vshrl.u32 %v771, 7
    %v773 = vsub.s32 6, %v772
    %v774 = vrot.slane %v79, %v773
    %v775 = vadd.f32 %v765, %v774
    %v776 = vadd.f32 %v769, %v774
    %s777 = sld [smem:[#allocation5 + $0x1e]]
    %v778 = vmax.f32 %v775, 0.0
    %v779 = vmax.f32 %v776, 0.0
    %v780 = vstv %s777
    %v781 = vmul.f32 %v780, %v778
    %v782 = vmul.f32 %v780, %v779
    %v783 = vadd.f32 %v761, %v781
    %v784 = vadd.f32 %v762, %v782
    %785 = vset.pattern.permute.xlu0 31
    %786 = vperm.xlu0 %785, %v94
    %v787 = vpop.permute.xlu0 %786
    %789 = vset.pattern.permute.xlu0 31
    %790 = vperm.xlu0 %789, %v95
    %v791 = vpop.permute.xlu0 %790
    %v793 = vlaneseq
    %v794 = vshrl.u32 %v793, 7
    %v795 = vsub.s32 7, %v794
    %v796 = vrot.slane %v79, %v795
    %v797 = vadd.f32 %v787, %v796
    %v798 = vadd.f32 %v791, %v796
    %s799 = sld [smem:[#allocation5 + $0x1f]]
    %v800 = vmax.f32 %v797, 0.0
    %v801 = vmax.f32 %v798, 0.0
    %v802 = vstv %s799
    %v803 = vmul.f32 %v802, %v800
    %v804 = vmul.f32 %v802, %v801
    %v805 = vadd.f32 %v783, %v803
    %v806 = vadd.f32 %v784, %v804
    %808 = vset.pattern.permute.xlu0 0
    %809 = vperm.xlu0 %808, %v97
    %v810 = vpop.permute.xlu0 %809
    %813 = vset.pattern.permute.xlu0 0
    %814 = vperm.xlu0 %813, %v98
    %v815 = vpop.permute.xlu0 %814
    %v817 = vlaneseq
    %v818 = vshrl.u32 %v817, 7
    %v819 = vsub.s32 0, %v818
    %v820 = vrot.slane %v96, %v819
    %v821 = vadd.f32 %v810, %v820
    %v822 = vadd.f32 %v815, %v820
    %v823 = vmul.f32 %v821, 0.2
    %v824 = vmul.f32 %v822, 0.2
    %v825 = vmul.f32 %v805, 0.8
    %v826 = vmul.f32 %v806, 0.8
    %v827 = vadd.f32 %v823, %v825
    %v828 = vadd.f32 %v824, %v826
    %v829 = vsel %vm58, 16843009, 0
    %v830 = vsel %vm59, 16843009, 0
    %v831 = vunpack.c.0.s8 %v829
    %v832 = vunpack.c.0.s8 %v830
    %vm833 = vcmp.ne.s32.totalorder %v831, 0
    %vm834 = vcmp.ne.s32.totalorder %v832, 0
    %v835 = vsel %vm833, %v827, -1e+30
    %v836 = vsel %vm834, %v828, -1e+30
    %v837 = vld [vmem:[#allocation2] sm:$0xff]
    %v838 = vld [vmem:[#allocation2 + $0x8] sm:$0xff]
    %vm839 = vcmask 130048
    %v840 = vsel %vm839, %v835, -inf
    %841 = vmax.xlane.f32.xlu0 %v840
    %v842 = vpop.xlane.xlu0 %841
    %v843 = vsel %vm839, %v836, -inf
    %844 = vmax.xlane.f32.xlu0 %v843
    %v845 = vpop.xlane.xlu0 %844
    %v846 = vmax.f32 %v837, %v842
    %v847 = vmax.f32 %v838, %v845
    %v848 = vsub.f32 %v837, %v846
    %v849 = vsub.f32 %v838, %v847
    %v850 = vmul.f32 %v848, 1.442695
    %v851 = vpow.pop %v850
    %v852 = vmul.f32 %v849, 1.442695
    %v853 = vpow.pop %v852
    %855 = vset.pattern.permute.xlu0 0
    %856 = vperm.xlu0 %855, %v846
    %v857 = vpop.permute.xlu0 %856
    %860 = vset.pattern.permute.xlu0 0
    %861 = vperm.xlu0 %860, %v847
    %v862 = vpop.permute.xlu0 %861
    %v864 = vsub.f32 %v835, %v857
    %v865 = vsub.f32 %v836, %v862
    %v866 = vmul.f32 %v864, 1.442695
    %v867 = vpow.pop %v866
    %v868 = vmul.f32 %v865, 1.442695
    %v869 = vpow.pop %v868
    %v870 = vsel %vm833, %v867, 0.0
    %v871 = vsel %vm834, %v869, 0.0
    %v872 = vld [vmem:[#allocation3] sm:$0xff]
    %v873 = vld [vmem:[#allocation3 + $0x8] sm:$0xff]
    %v874 = vmul.f32 %v851, %v872
    %v875 = vmul.f32 %v853, %v873
    %v876 = vsel %vm839, %v870, 0.0
    %877 = vadd.xlane.f32.xlu0 %v876
    %v878 = vpop.xlane.xlu0 %877
    %v879 = vsel %vm839, %v871, 0.0
    %880 = vadd.xlane.f32.xlu0 %v879
    %v881 = vpop.xlane.xlu0 %880
    %v882 = vadd.f32 %v874, %v878
    %v883 = vadd.f32 %v875, %v881
    %vm884 = vcmask 7168
    %885 = vst.msk [vmem:[#allocation3] sm:$0xff] %vm884, %v882
    %886 = vst.msk [vmem:[#allocation3 + $0x8] sm:$0xff] %vm884, %v883
    %v887 = vld [vmem:[#allocation4] sm:$0xff]
    %v888 = vld [vmem:[#allocation4 + $0x8] sm:$0xff]
    %890 = vset.pattern.permute.xlu0 0
    %891 = vperm.xlu0 %890, %v851
    %v892 = vpop.permute.xlu0 %891
    %895 = vset.pattern.permute.xlu0 0
    %896 = vperm.xlu0 %895, %v853
    %v897 = vpop.permute.xlu0 %896
    %v899 = vmul.f32 %v892, %v887
    %v900 = vmul.f32 %v897, %v888
    %v901 = vpack.c.bf16 %v871, %v870
    %v904 = vunpack.c.l.b16 %v99
    %v905 = vunpack.c.l.b16 %v100
    %v906 = vpack.c.b16 %v905, %v904
    %v909 = vsel %vm839, %v901, 0
    %911 = vmatprep.subr.bf16.mxu0 0
    %912 = vmatpush1.bf16.msra.mxu0 %v906
    %913 = vmatprep.subr.bf16.mxu0 0
    %914 = vmatpush1.bf16.msra.mxu0 0
    %915 = vmatprep.subr.bf16.mxu0 0
    %916 = vmatpush1.bf16.msra.mxu0 0
    %917 = vmatprep.subr.bf16.mxu0 0
    %918 = vmatpush1.bf16.msra.mxu0 0
    %919 = vmatprep.subr.bf16.mxu0 0
    %920 = vmatpush1.bf16.msra.mxu0 0
    %921 = vmatprep.subr.bf16.mxu0 0
    %922 = vmatpush1.bf16.msra.mxu0 0
    %923 = vmatprep.subr.bf16.mxu0 0
    %924 = vmatpush1.bf16.msra.mxu0 0
    %925 = vmatprep.subr.bf16.mxu0 0
    %926 = vmatpush1.bf16.msra.mxu0 0
    %927 = vmatprep.subr.bf16.mxu0 0
    %928 = vmatpush1.bf16.msra.mxu0 0
    %929 = vmatprep.subr.bf16.mxu0 0
    %930 = vmatpush1.bf16.msra.mxu0 0
    %931 = vmatprep.subr.bf16.mxu0 0
    %932 = vmatpush1.bf16.msra.mxu0 0
    %933 = vmatprep.subr.bf16.mxu0 0
    %934 = vmatpush1.bf16.msra.mxu0 0
    %935 = vmatprep.subr.bf16.mxu0 0
    %936 = vmatpush1.bf16.msra.mxu0 0
    %937 = vmatprep.subr.bf16.mxu0 0
    %938 = vmatpush1.bf16.msra.mxu0 0
    %939 = vmatprep.subr.bf16.mxu0 0
    %940 = vmatpush1.bf16.msra.mxu0 0
    %941 = vmatprep.subr.bf16.mxu0 0
    %942 = vmatpush1.bf16.msra.mxu0 0
    %943 = vmatprep.mubr.bf16.mxu0 0
    %944 = vmatmul.mubr.bf16.gmra.mrb[0].mxu0 %v909
    %v945 = vpop.f32.mrb[0].mxu0
    %v946 = vadd.f32 0.0, %v945
    %v947 = vpop.f32.mrb[0].mxu0
    %v948 = vpop.f32.mrb[0].mxu0
    %v949 = vadd.f32 0.0, %v948
    %v950 = vpop.f32.mrb[0].mxu0
    %951 = vdwg.mxu0
    %v952 = vadd.f32 %v899, %v946
    %v953 = vadd.f32 %v900, %v949
    %vm954 = vcmask 261120
    %955 = vst.msk [vmem:[#allocation4] sm:$0xff] %vm954, %v952
    %956 = vst.msk [vmem:[#allocation4 + $0x8] sm:$0xff] %vm954, %v953
    %957 = vst.msk [vmem:[#allocation2] sm:$0xff] %vm884, %v846
    %958 = vst.msk [vmem:[#allocation2 + $0x8] sm:$0xff] %vm884, %v847
    %959 = vset.pattern.permute.xlu0 32
    %960 = vperm.xlu0 %959, %v94
    %v961 = vpop.permute.xlu0 %960
    %963 = vset.pattern.permute.xlu0 32
    %964 = vperm.xlu0 %963, %v95
    %v965 = vpop.permute.xlu0 %964
    %v967 = vlaneseq
    %v968 = vshrl.u32 %v967, 7
    %v969 = vsub.s32 0, %v968
    %v970 = vrot.slane %v80, %v969
    %v971 = vadd.f32 %v961, %v970
    %v972 = vadd.f32 %v965, %v970
    %s973 = sld [smem:[#allocation5 + $0x80]]
    %v974 = vmax.f32 %v971, 0.0
    %v975 = vmax.f32 %v972, 0.0
    %v976 = vstv %s973
    %v977 = vmul.f32 %v976, %v974
    %v978 = vmul.f32 %v976, %v975
    %v979 = vadd.f32 %v977, 0.0
    %v980 = vadd.f32 %v978, 0.0
    %981 = vset.pattern.permute.xlu0 33
    %982 = vperm.xlu0 %981, %v94
    %v983 = vpop.permute.xlu0 %982
    %985 = vset.pattern.permute.xlu0 33
    %986 = vperm.xlu0 %985, %v95
    %v987 = vpop.permute.xlu0 %986
    %v989 = vlaneseq
    %v990 = vshrl.u32 %v989, 7
    %v991 = vsub.s32 1, %v990
    %v992 = vrot.slane %v80, %v991
    %v993 = vadd.f32 %v983, %v992
    %v994 = vadd.f32 %v987, %v992
    %s995 = sld [smem:[#allocation5 + $0x81]]
    %v996 = vmax.f32 %v993, 0.0
    %v997 = vmax.f32 %v994, 0.0
    %v998 = vstv %s995
    %v999 = vmul.f32 %v998, %v996
    %v1000 = vmul.f32 %v998, %v997
    %v1001 = vadd.f32 %v979, %v999
    %v1002 = vadd.f32 %v980, %v1000
    %1003 = vset.pattern.permute.xlu0 34
    %1004 = vperm.xlu0 %1003, %v94
    %v1005 = vpop.permute.xlu0 %1004
    %1007 = vset.pattern.permute.xlu0 34
    %1008 = vperm.xlu0 %1007, %v95
    %v1009 = vpop.permute.xlu0 %1008
    %v1011 = vlaneseq
    %v1012 = vshrl.u32 %v1011, 7
    %v1013 = vsub.s32 2, %v1012
    %v1014 = vrot.slane %v80, %v1013
    %v1015 = vadd.f32 %v1005, %v1014
    %v1016 = vadd.f32 %v1009, %v1014
    %s1017 = sld [smem:[#allocation5 + $0x82]]
    %v1018 = vmax.f32 %v1015, 0.0
    %v1019 = vmax.f32 %v1016, 0.0
    %v1020 = vstv %s1017
    %v1021 = vmul.f32 %v1020, %v1018
    %v1022 = vmul.f32 %v1020, %v1019
    %v1023 = vadd.f32 %v1001, %v1021
    %v1024 = vadd.f32 %v1002, %v1022
    %1025 = vset.pattern.permute.xlu0 35
    %1026 = vperm.xlu0 %1025, %v94
    %v1027 = vpop.permute.xlu0 %1026
    %1029 = vset.pattern.permute.xlu0 35
    %1030 = vperm.xlu0 %1029, %v95
    %v1031 = vpop.permute.xlu0 %1030
    %v1033 = vlaneseq
    %v1034 = vshrl.u32 %v1033, 7
    %v1035 = vsub.s32 3, %v1034
    %v1036 = vrot.slane %v80, %v1035
    %v1037 = vadd.f32 %v1027, %v1036
    %v1038 = vadd.f32 %v1031, %v1036
    %s1039 = sld [smem:[#allocation5 + $0x83]]
    %v1040 = vmax.f32 %v1037, 0.0
    %v1041 = vmax.f32 %v1038, 0.0
    %v1042 = vstv %s1039
    %v1043 = vmul.f32 %v1042, %v1040
    %v1044 = vmul.f32 %v1042, %v1041
    %v1045 = vadd.f32 %v1023, %v1043
    %v1046 = vadd.f32 %v1024, %v1044
    %1047 = vset.pattern.permute.xlu0 36
    %1048 = vperm.xlu0 %1047, %v94
    %v1049 = vpop.permute.xlu0 %1048
    %1051 = vset.pattern.permute.xlu0 36
    %1052 = vperm.xlu0 %1051, %v95
    %v1053 = vpop.permute.xlu0 %1052
    %v1055 = vlaneseq
    %v1056 = vshrl.u32 %v1055, 7
    %v1057 = vsub.s32 4, %v1056
    %v1058 = vrot.slane %v80, %v1057
    %v1059 = vadd.f32 %v1049, %v1058
    %v1060 = vadd.f32 %v1053, %v1058
    %s1061 = sld [smem:[#allocation5 + $0x84]]
    %v1062 = vmax.f32 %v1059, 0.0
    %v1063 = vmax.f32 %v1060, 0.0
    %v1064 = vstv %s1061
    %v1065 = vmul.f32 %v1064, %v1062
    %v1066 = vmul.f32 %v1064, %v1063
    %v1067 = vadd.f32 %v1045, %v1065
    %v1068 = vadd.f32 %v1046, %v1066
    %1069 = vset.pattern.permute.xlu0 37
    %1070 = vperm.xlu0 %1069, %v94
    %v1071 = vpop.permute.xlu0 %1070
    %1073 = vset.pattern.permute.xlu0 37
    %1074 = vperm.xlu0 %1073, %v95
    %v1075 = vpop.permute.xlu0 %1074
    %v1077 = vlaneseq
    %v1078 = vshrl.u32 %v1077, 7
    %v1079 = vsub.s32 5, %v1078
    %v1080 = vrot.slane %v80, %v1079
    %v1081 = vadd.f32 %v1071, %v1080
    %v1082 = vadd.f32 %v1075, %v1080
    %s1083 = sld [smem:[#allocation5 + $0x85]]
    %v1084 = vmax.f32 %v1081, 0.0
    %v1085 = vmax.f32 %v1082, 0.0
    %v1086 = vstv %s1083
    %v1087 = vmul.f32 %v1086, %v1084
    %v1088 = vmul.f32 %v1086, %v1085
    %v1089 = vadd.f32 %v1067, %v1087
    %v1090 = vadd.f32 %v1068, %v1088
    %1091 = vset.pattern.permute.xlu0 38
    %1092 = vperm.xlu0 %1091, %v94
    %v1093 = vpop.permute.xlu0 %1092
    %1095 = vset.pattern.permute.xlu0 38
    %1096 = vperm.xlu0 %1095, %v95
    %v1097 = vpop.permute.xlu0 %1096
    %v1099 = vlaneseq
    %v1100 = vshrl.u32 %v1099, 7
    %v1101 = vsub.s32 6, %v1100
    %v1102 = vrot.slane %v80, %v1101
    %v1103 = vadd.f32 %v1093, %v1102
    %v1104 = vadd.f32 %v1097, %v1102
    %s1105 = sld [smem:[#allocation5 + $0x86]]
    %v1106 = vmax.f32 %v1103, 0.0
    %v1107 = vmax.f32 %v1104, 0.0
    %v1108 = vstv %s1105
    %v1109 = vmul.f32 %v1108, %v1106
    %v1110 = vmul.f32 %v1108, %v1107
    %v1111 = vadd.f32 %v1089, %v1109
    %v1112 = vadd.f32 %v1090, %v1110
    %1113 = vset.pattern.permute.xlu0 39
    %1114 = vperm.xlu0 %1113, %v94
    %v1115 = vpop.permute.xlu0 %1114
    %1117 = vset.pattern.permute.xlu0 39
    %1118 = vperm.xlu0 %1117, %v95
    %v1119 = vpop.permute.xlu0 %1118
    %v1121 = vlaneseq
    %v1122 = vshrl.u32 %v1121, 7
    %v1123 = vsub.s32 7, %v1122
    %v1124 = vrot.slane %v80, %v1123
    %v1125 = vadd.f32 %v1115, %v1124
    %v1126 = vadd.f32 %v1119, %v1124
    %s1127 = sld [smem:[#allocation5 + $0x87]]
    %v1128 = vmax.f32 %v1125, 0.0
    %v1129 = vmax.f32 %v1126, 0.0
    %v1130 = vstv %s1127
    %v1131 = vmul.f32 %v1130, %v1128
    %v1132 = vmul.f32 %v1130, %v1129
    %v1133 = vadd.f32 %v1111, %v1131
    %v1134 = vadd.f32 %v1112, %v1132
    %1135 = vset.pattern.permute.xlu0 40
    %1136 = vperm.xlu0 %1135, %v94
    %v1137 = vpop.permute.xlu0 %1136
    %1139 = vset.pattern.permute.xlu0 40
    %1140 = vperm.xlu0 %1139, %v95
    %v1141 = vpop.permute.xlu0 %1140
    %v1143 = vlaneseq
    %v1144 = vshrl.u32 %v1143, 7
    %v1145 = vsub.s32 0, %v1144
    %v1146 = vrot.slane %v81, %v1145
    %v1147 = vadd.f32 %v1137, %v1146
    %v1148 = vadd.f32 %v1141, %v1146
    %s1149 = sld [smem:[#allocation5 + $0x88]]
    %v1150 = vmax.f32 %v1147, 0.0
    %v1151 = vmax.f32 %v1148, 0.0
    %v1152 = vstv %s1149
    %v1153 = vmul.f32 %v1152, %v1150
    %v1154 = vmul.f32 %v1152, %v1151
    %v1155 = vadd.f32 %v1133, %v1153
    %v1156 = vadd.f32 %v1134, %v1154
    %1157 = vset.pattern.permute.xlu0 41
    %1158 = vperm.xlu0 %1157, %v94
    %v1159 = vpop.permute.xlu0 %1158
    %1161 = vset.pattern.permute.xlu0 41
    %1162 = vperm.xlu0 %1161, %v95
    %v1163 = vpop.permute.xlu0 %1162
    %v1165 = vlaneseq
    %v1166 = vshrl.u32 %v1165, 7
    %v1167 = vsub.s32 1, %v1166
    %v1168 = vrot.slane %v81, %v1167
    %v1169 = vadd.f32 %v1159, %v1168
    %v1170 = vadd.f32 %v1163, %v1168
    %s1171 = sld [smem:[#allocation5 + $0x89]]
    %v1172 = vmax.f32 %v1169, 0.0
    %v1173 = vmax.f32 %v1170, 0.0
    %v1174 = vstv %s1171
    %v1175 = vmul.f32 %v1174, %v1172
    %v1176 = vmul.f32 %v1174, %v1173
    %v1177 = vadd.f32 %v1155, %v1175
    %v1178 = vadd.f32 %v1156, %v1176
    %1179 = vset.pattern.permute.xlu0 42
    %1180 = vperm.xlu0 %1179, %v94
    %v1181 = vpop.permute.xlu0 %1180
    %1183 = vset.pattern.permute.xlu0 42
    %1184 = vperm.xlu0 %1183, %v95
    %v1185 = vpop.permute.xlu0 %1184
    %v1187 = vlaneseq
    %v1188 = vshrl.u32 %v1187, 7
    %v1189 = vsub.s32 2, %v1188
    %v1190 = vrot.slane %v81, %v1189
    %v1191 = vadd.f32 %v1181, %v1190
    %v1192 = vadd.f32 %v1185, %v1190
    %s1193 = sld [smem:[#allocation5 + $0x8a]]
    %v1194 = vmax.f32 %v1191, 0.0
    %v1195 = vmax.f32 %v1192, 0.0
    %v1196 = vstv %s1193
    %v1197 = vmul.f32 %v1196, %v1194
    %v1198 = vmul.f32 %v1196, %v1195
    %v1199 = vadd.f32 %v1177, %v1197
    %v1200 = vadd.f32 %v1178, %v1198
    %1201 = vset.pattern.permute.xlu0 43
    %1202 = vperm.xlu0 %1201, %v94
    %v1203 = vpop.permute.xlu0 %1202
    %1205 = vset.pattern.permute.xlu0 43
    %1206 = vperm.xlu0 %1205, %v95
    %v1207 = vpop.permute.xlu0 %1206
    %v1209 = vlaneseq
    %v1210 = vshrl.u32 %v1209, 7
    %v1211 = vsub.s32 3, %v1210
    %v1212 = vrot.slane %v81, %v1211
    %v1213 = vadd.f32 %v1203, %v1212
    %v1214 = vadd.f32 %v1207, %v1212
    %s1215 = sld [smem:[#allocation5 + $0x8b]]
    %v1216 = vmax.f32 %v1213, 0.0
    %v1217 = vmax.f32 %v1214, 0.0
    %v1218 = vstv %s1215
    %v1219 = vmul.f32 %v1218, %v1216
    %v1220 = vmul.f32 %v1218, %v1217
    %v1221 = vadd.f32 %v1199, %v1219
    %v1222 = vadd.f32 %v1200, %v1220
    %1223 = vset.pattern.permute.xlu0 44
    %1224 = vperm.xlu0 %1223, %v94
    %v1225 = vpop.permute.xlu0 %1224
    %1227 = vset.pattern.permute.xlu0 44
    %1228 = vperm.xlu0 %1227, %v95
    %v1229 = vpop.permute.xlu0 %1228
    %v1231 = vlaneseq
    %v1232 = vshrl.u32 %v1231, 7
    %v1233 = vsub.s32 4, %v1232
    %v1234 = vrot.slane %v81, %v1233
    %v1235 = vadd.f32 %v1225, %v1234
    %v1236 = vadd.f32 %v1229, %v1234
    %s1237 = sld [smem:[#allocation5 + $0x8c]]
    %v1238 = vmax.f32 %v1235, 0.0
    %v1239 = vmax.f32 %v1236, 0.0
    %v1240 = vstv %s1237
    %v1241 = vmul.f32 %v1240, %v1238
    %v1242 = vmul.f32 %v1240, %v1239
    %v1243 = vadd.f32 %v1221, %v1241
    %v1244 = vadd.f32 %v1222, %v1242
    %1245 = vset.pattern.permute.xlu0 45
    %1246 = vperm.xlu0 %1245, %v94
    %v1247 = vpop.permute.xlu0 %1246
    %1249 = vset.pattern.permute.xlu0 45
    %1250 = vperm.xlu0 %1249, %v95
    %v1251 = vpop.permute.xlu0 %1250
    %v1253 = vlaneseq
    %v1254 = vshrl.u32 %v1253, 7
    %v1255 = vsub.s32 5, %v1254
    %v1256 = vrot.slane %v81, %v1255
    %v1257 = vadd.f32 %v1247, %v1256
    %v1258 = vadd.f32 %v1251, %v1256
    %s1259 = sld [smem:[#allocation5 + $0x8d]]
    %v1260 = vmax.f32 %v1257, 0.0
    %v1261 = vmax.f32 %v1258, 0.0
    %v1262 = vstv %s1259
    %v1263 = vmul.f32 %v1262, %v1260
    %v1264 = vmul.f32 %v1262, %v1261
    %v1265 = vadd.f32 %v1243, %v1263
    %v1266 = vadd.f32 %v1244, %v1264
    %1267 = vset.pattern.permute.xlu0 46
    %1268 = vperm.xlu0 %1267, %v94
    %v1269 = vpop.permute.xlu0 %1268
    %1271 = vset.pattern.permute.xlu0 46
    %1272 = vperm.xlu0 %1271, %v95
    %v1273 = vpop.permute.xlu0 %1272
    %v1275 = vlaneseq
    %v1276 = vshrl.u32 %v1275, 7
    %v1277 = vsub.s32 6, %v1276
    %v1278 = vrot.slane %v81, %v1277
    %v1279 = vadd.f32 %v1269, %v1278
    %v1280 = vadd.f32 %v1273, %v1278
    %s1281 = sld [smem:[#allocation5 + $0x8e]]
    %v1282 = vmax.f32 %v1279, 0.0
    %v1283 = vmax.f32 %v1280, 0.0
    %v1284 = vstv %s1281
    %v1285 = vmul.f32 %v1284, %v1282
    %v1286 = vmul.f32 %v1284, %v1283
    %v1287 = vadd.f32 %v1265, %v1285
    %v1288 = vadd.f32 %v1266, %v1286
    %1289 = vset.pattern.permute.xlu0 47
    %1290 = vperm.xlu0 %1289, %v94
    %v1291 = vpop.permute.xlu0 %1290
    %1293 = vset.pattern.permute.xlu0 47
    %1294 = vperm.xlu0 %1293, %v95
    %v1295 = vpop.permute.xlu0 %1294
    %v1297 = vlaneseq
    %v1298 = vshrl.u32 %v1297, 7
    %v1299 = vsub.s32 7, %v1298
    %v1300 = vrot.slane %v81, %v1299
    %v1301 = vadd.f32 %v1291, %v1300
    %v1302 = vadd.f32 %v1295, %v1300
    %s1303 = sld [smem:[#allocation5 + $0x8f]]
    %v1304 = vmax.f32 %v1301, 0.0
    %v1305 = vmax.f32 %v1302, 0.0
    %v1306 = vstv %s1303
    %v1307 = vmul.f32 %v1306, %v1304
    %v1308 = vmul.f32 %v1306, %v1305
    %v1309 = vadd.f32 %v1287, %v1307
    %v1310 = vadd.f32 %v1288, %v1308
    %1311 = vset.pattern.permute.xlu0 48
    %1312 = vperm.xlu0 %1311, %v94
    %v1313 = vpop.permute.xlu0 %1312
    %1315 = vset.pattern.permute.xlu0 48
    %1316 = vperm.xlu0 %1315, %v95
    %v1317 = vpop.permute.xlu0 %1316
    %v1319 = vlaneseq
    %v1320 = vshrl.u32 %v1319, 7
    %v1321 = vsub.s32 0, %v1320
    %v1322 = vrot.slane %v82, %v1321
    %v1323 = vadd.f32 %v1313, %v1322
    %v1324 = vadd.f32 %v1317, %v1322
    %s1325 = sld [smem:[#allocation5 + $0x90]]
    %v1326 = vmax.f32 %v1323, 0.0
    %v1327 = vmax.f32 %v1324, 0.0
    %v1328 = vstv %s1325
    %v1329 = vmul.f32 %v1328, %v1326
    %v1330 = vmul.f32 %v1328, %v1327
    %v1331 = vadd.f32 %v1309, %v1329
    %v1332 = vadd.f32 %v1310, %v1330
    %1333 = vset.pattern.permute.xlu0 49
    %1334 = vperm.xlu0 %1333, %v94
    %v1335 = vpop.permute.xlu0 %1334
    %1337 = vset.pattern.permute.xlu0 49
    %1338 = vperm.xlu0 %1337, %v95
    %v1339 = vpop.permute.xlu0 %1338
    %v1341 = vlaneseq
    %v1342 = vshrl.u32 %v1341, 7
    %v1343 = vsub.s32 1, %v1342
    %v1344 = vrot.slane %v82, %v1343
    %v1345 = vadd.f32 %v1335, %v1344
    %v1346 = vadd.f32 %v1339, %v1344
    %s1347 = sld [smem:[#allocation5 + $0x91]]
    %v1348 = vmax.f32 %v1345, 0.0
    %v1349 = vmax.f32 %v1346, 0.0
    %v1350 = vstv %s1347
    %v1351 = vmul.f32 %v1350, %v1348
    %v1352 = vmul.f32 %v1350, %v1349
    %v1353 = vadd.f32 %v1331, %v1351
    %v1354 = vadd.f32 %v1332, %v1352
    %1355 = vset.pattern.permute.xlu0 50
    %1356 = vperm.xlu0 %1355, %v94
    %v1357 = vpop.permute.xlu0 %1356
    %1359 = vset.pattern.permute.xlu0 50
    %1360 = vperm.xlu0 %1359, %v95
    %v1361 = vpop.permute.xlu0 %1360
    %v1363 = vlaneseq
    %v1364 = vshrl.u32 %v1363, 7
    %v1365 = vsub.s32 2, %v1364
    %v1366 = vrot.slane %v82, %v1365
    %v1367 = vadd.f32 %v1357, %v1366
    %v1368 = vadd.f32 %v1361, %v1366
    %s1369 = sld [smem:[#allocation5 + $0x92]]
    %v1370 = vmax.f32 %v1367, 0.0
    %v1371 = vmax.f32 %v1368, 0.0
    %v1372 = vstv %s1369
    %v1373 = vmul.f32 %v1372, %v1370
    %v1374 = vmul.f32 %v1372, %v1371
    %v1375 = vadd.f32 %v1353, %v1373
    %v1376 = vadd.f32 %v1354, %v1374
    %1377 = vset.pattern.permute.xlu0 51
    %1378 = vperm.xlu0 %1377, %v94
    %v1379 = vpop.permute.xlu0 %1378
    %1381 = vset.pattern.permute.xlu0 51
    %1382 = vperm.xlu0 %1381, %v95
    %v1383 = vpop.permute.xlu0 %1382
    %v1385 = vlaneseq
    %v1386 = vshrl.u32 %v1385, 7
    %v1387 = vsub.s32 3, %v1386
    %v1388 = vrot.slane %v82, %v1387
    %v1389 = vadd.f32 %v1379, %v1388
    %v1390 = vadd.f32 %v1383, %v1388
    %s1391 = sld [smem:[#allocation5 + $0x93]]
    %v1392 = vmax.f32 %v1389, 0.0
    %v1393 = vmax.f32 %v1390, 0.0
    %v1394 = vstv %s1391
    %v1395 = vmul.f32 %v1394, %v1392
    %v1396 = vmul.f32 %v1394, %v1393
    %v1397 = vadd.f32 %v1375, %v1395
    %v1398 = vadd.f32 %v1376, %v1396
    %1399 = vset.pattern.permute.xlu0 52
    %1400 = vperm.xlu0 %1399, %v94
    %v1401 = vpop.permute.xlu0 %1400
    %1403 = vset.pattern.permute.xlu0 52
    %1404 = vperm.xlu0 %1403, %v95
    %v1405 = vpop.permute.xlu0 %1404
    %v1407 = vlaneseq
    %v1408 = vshrl.u32 %v1407, 7
    %v1409 = vsub.s32 4, %v1408
    %v1410 = vrot.slane %v82, %v1409
    %v1411 = vadd.f32 %v1401, %v1410
    %v1412 = vadd.f32 %v1405, %v1410
    %s1413 = sld [smem:[#allocation5 + $0x94]]
    %v1414 = vmax.f32 %v1411, 0.0
    %v1415 = vmax.f32 %v1412, 0.0
    %v1416 = vstv %s1413
    %v1417 = vmul.f32 %v1416, %v1414
    %v1418 = vmul.f32 %v1416, %v1415
    %v1419 = vadd.f32 %v1397, %v1417
    %v1420 = vadd.f32 %v1398, %v1418
    %1421 = vset.pattern.permute.xlu0 53
    %1422 = vperm.xlu0 %1421, %v94
    %v1423 = vpop.permute.xlu0 %1422
    %1425 = vset.pattern.permute.xlu0 53
    %1426 = vperm.xlu0 %1425, %v95
    %v1427 = vpop.permute.xlu0 %1426
    %v1429 = vlaneseq
    %v1430 = vshrl.u32 %v1429, 7
    %v1431 = vsub.s32 5, %v1430
    %v1432 = vrot.slane %v82, %v1431
    %v1433 = vadd.f32 %v1423, %v1432
    %v1434 = vadd.f32 %v1427, %v1432
    %s1435 = sld [smem:[#allocation5 + $0x95]]
    %v1436 = vmax.f32 %v1433, 0.0
    %v1437 = vmax.f32 %v1434, 0.0
    %v1438 = vstv %s1435
    %v1439 = vmul.f32 %v1438, %v1436
    %v1440 = vmul.f32 %v1438, %v1437
    %v1441 = vadd.f32 %v1419, %v1439
    %v1442 = vadd.f32 %v1420, %v1440
    %1443 = vset.pattern.permute.xlu0 54
    %1444 = vperm.xlu0 %1443, %v94
    %v1445 = vpop.permute.xlu0 %1444
    %1447 = vset.pattern.permute.xlu0 54
    %1448 = vperm.xlu0 %1447, %v95
    %v1449 = vpop.permute.xlu0 %1448
    %v1451 = vlaneseq
    %v1452 = vshrl.u32 %v1451, 7
    %v1453 = vsub.s32 6, %v1452
    %v1454 = vrot.slane %v82, %v1453
    %v1455 = vadd.f32 %v1445, %v1454
    %v1456 = vadd.f32 %v1449, %v1454
    %s1457 = sld [smem:[#allocation5 + $0x96]]
    %v1458 = vmax.f32 %v1455, 0.0
    %v1459 = vmax.f32 %v1456, 0.0
    %v1460 = vstv %s1457
    %v1461 = vmul.f32 %v1460, %v1458
    %v1462 = vmul.f32 %v1460, %v1459
    %v1463 = vadd.f32 %v1441, %v1461
    %v1464 = vadd.f32 %v1442, %v1462
    %1465 = vset.pattern.permute.xlu0 55
    %1466 = vperm.xlu0 %1465, %v94
    %v1467 = vpop.permute.xlu0 %1466
    %1469 = vset.pattern.permute.xlu0 55
    %1470 = vperm.xlu0 %1469, %v95
    %v1471 = vpop.permute.xlu0 %1470
    %v1473 = vlaneseq
    %v1474 = vshrl.u32 %v1473, 7
    %v1475 = vsub.s32 7, %v1474
    %v1476 = vrot.slane %v82, %v1475
    %v1477 = vadd.f32 %v1467, %v1476
    %v1478 = vadd.f32 %v1471, %v1476
    %s1479 = sld [smem:[#allocation5 + $0x97]]
    %v1480 = vmax.f32 %v1477, 0.0
    %v1481 = vmax.f32 %v1478, 0.0
    %v1482 = vstv %s1479
    %v1483 = vmul.f32 %v1482, %v1480
    %v1484 = vmul.f32 %v1482, %v1481
    %v1485 = vadd.f32 %v1463, %v1483
    %v1486 = vadd.f32 %v1464, %v1484
    %1487 = vset.pattern.permute.xlu0 56
    %1488 = vperm.xlu0 %1487, %v94
    %v1489 = vpop.permute.xlu0 %1488
    %1491 = vset.pattern.permute.xlu0 56
    %1492 = vperm.xlu0 %1491, %v95
    %v1493 = vpop.permute.xlu0 %1492
    %v1495 = vlaneseq
    %v1496 = vshrl.u32 %v1495, 7
    %v1497 = vsub.s32 0, %v1496
    %v1498 = vrot.slane %v83, %v1497
    %v1499 = vadd.f32 %v1489, %v1498
    %v1500 = vadd.f32 %v1493, %v1498
    %s1501 = sld [smem:[#allocation5 + $0x98]]
    %v1502 = vmax.f32 %v1499, 0.0
    %v1503 = vmax.f32 %v1500, 0.0
    %v1504 = vstv %s1501
    %v1505 = vmul.f32 %v1504, %v1502
    %v1506 = vmul.f32 %v1504, %v1503
    %v1507 = vadd.f32 %v1485, %v1505
    %v1508 = vadd.f32 %v1486, %v1506
    %1509 = vset.pattern.permute.xlu0 57
    %1510 = vperm.xlu0 %1509, %v94
    %v1511 = vpop.permute.xlu0 %1510
    %1513 = vset.pattern.permute.xlu0 57
    %1514 = vperm.xlu0 %1513, %v95
    %v1515 = vpop.permute.xlu0 %1514
    %v1517 = vlaneseq
    %v1518 = vshrl.u32 %v1517, 7
    %v1519 = vsub.s32 1, %v1518
    %v1520 = vrot.slane %v83, %v1519
    %v1521 = vadd.f32 %v1511, %v1520
    %v1522 = vadd.f32 %v1515, %v1520
    %s1523 = sld [smem:[#allocation5 + $0x99]]
    %v1524 = vmax.f32 %v1521, 0.0
    %v1525 = vmax.f32 %v1522, 0.0
    %v1526 = vstv %s1523
    %v1527 = vmul.f32 %v1526, %v1524
    %v1528 = vmul.f32 %v1526, %v1525
    %v1529 = vadd.f32 %v1507, %v1527
    %v1530 = vadd.f32 %v1508, %v1528
    %1531 = vset.pattern.permute.xlu0 58
    %1532 = vperm.xlu0 %1531, %v94
    %v1533 = vpop.permute.xlu0 %1532
    %1535 = vset.pattern.permute.xlu0 58
    %1536 = vperm.xlu0 %1535, %v95
    %v1537 = vpop.permute.xlu0 %1536
    %v1539 = vlaneseq
    %v1540 = vshrl.u32 %v1539, 7
    %v1541 = vsub.s32 2, %v1540
    %v1542 = vrot.slane %v83, %v1541
    %v1543 = vadd.f32 %v1533, %v1542
    %v1544 = vadd.f32 %v1537, %v1542
    %s1545 = sld [smem:[#allocation5 + $0x9a]]
    %v1546 = vmax.f32 %v1543, 0.0
    %v1547 = vmax.f32 %v1544, 0.0
    %v1548 = vstv %s1545
    %v1549 = vmul.f32 %v1548, %v1546
    %v1550 = vmul.f32 %v1548, %v1547
    %v1551 = vadd.f32 %v1529, %v1549
    %v1552 = vadd.f32 %v1530, %v1550
    %1553 = vset.pattern.permute.xlu0 59
    %1554 = vperm.xlu0 %1553, %v94
    %v1555 = vpop.permute.xlu0 %1554
    %1557 = vset.pattern.permute.xlu0 59
    %1558 = vperm.xlu0 %1557, %v95
    %v1559 = vpop.permute.xlu0 %1558
    %v1561 = vlaneseq
    %v1562 = vshrl.u32 %v1561, 7
    %v1563 = vsub.s32 3, %v1562
    %v1564 = vrot.slane %v83, %v1563
    %v1565 = vadd.f32 %v1555, %v1564
    %v1566 = vadd.f32 %v1559, %v1564
    %s1567 = sld [smem:[#allocation5 + $0x9b]]
    %v1568 = vmax.f32 %v1565, 0.0
    %v1569 = vmax.f32 %v1566, 0.0
    %v1570 = vstv %s1567
    %v1571 = vmul.f32 %v1570, %v1568
    %v1572 = vmul.f32 %v1570, %v1569
    %v1573 = vadd.f32 %v1551, %v1571
    %v1574 = vadd.f32 %v1552, %v1572
    %1575 = vset.pattern.permute.xlu0 60
    %1576 = vperm.xlu0 %1575, %v94
    %v1577 = vpop.permute.xlu0 %1576
    %1579 = vset.pattern.permute.xlu0 60
    %1580 = vperm.xlu0 %1579, %v95
    %v1581 = vpop.permute.xlu0 %1580
    %v1583 = vlaneseq
    %v1584 = vshrl.u32 %v1583, 7
    %v1585 = vsub.s32 4, %v1584
    %v1586 = vrot.slane %v83, %v1585
    %v1587 = vadd.f32 %v1577, %v1586
    %v1588 = vadd.f32 %v1581, %v1586
    %s1589 = sld [smem:[#allocation5 + $0x9c]]
    %v1590 = vmax.f32 %v1587, 0.0
    %v1591 = vmax.f32 %v1588, 0.0
    %v1592 = vstv %s1589
    %v1593 = vmul.f32 %v1592, %v1590
    %v1594 = vmul.f32 %v1592, %v1591
    %v1595 = vadd.f32 %v1573, %v1593
    %v1596 = vadd.f32 %v1574, %v1594
    %1597 = vset.pattern.permute.xlu0 61
    %1598 = vperm.xlu0 %1597, %v94
    %v1599 = vpop.permute.xlu0 %1598
    %1601 = vset.pattern.permute.xlu0 61
    %1602 = vperm.xlu0 %1601, %v95
    %v1603 = vpop.permute.xlu0 %1602
    %v1605 = vlaneseq
    %v1606 = vshrl.u32 %v1605, 7
    %v1607 = vsub.s32 5, %v1606
    %v1608 = vrot.slane %v83, %v1607
    %v1609 = vadd.f32 %v1599, %v1608
    %v1610 = vadd.f32 %v1603, %v1608
    %s1611 = sld [smem:[#allocation5 + $0x9d]]
    %v1612 = vmax.f32 %v1609, 0.0
    %v1613 = vmax.f32 %v1610, 0.0
    %v1614 = vstv %s1611
    %v1615 = vmul.f32 %v1614, %v1612
    %v1616 = vmul.f32 %v1614, %v1613
    %v1617 = vadd.f32 %v1595, %v1615
    %v1618 = vadd.f32 %v1596, %v1616
    %1619 = vset.pattern.permute.xlu0 62
    %1620 = vperm.xlu0 %1619, %v94
    %v1621 = vpop.permute.xlu0 %1620
    %1623 = vset.pattern.permute.xlu0 62
    %1624 = vperm.xlu0 %1623, %v95
    %v1625 = vpop.permute.xlu0 %1624
    %v1627 = vlaneseq
    %v1628 = vshrl.u32 %v1627, 7
    %v1629 = vsub.s32 6, %v1628
    %v1630 = vrot.slane %v83, %v1629
    %v1631 = vadd.f32 %v1621, %v1630
    %v1632 = vadd.f32 %v1625, %v1630
    %s1633 = sld [smem:[#allocation5 + $0x9e]]
    %v1634 = vmax.f32 %v1631, 0.0
    %v1635 = vmax.f32 %v1632, 0.0
    %v1636 = vstv %s1633
    %v1637 = vmul.f32 %v1636, %v1634
    %v1638 = vmul.f32 %v1636, %v1635
    %v1639 = vadd.f32 %v1617, %v1637
    %v1640 = vadd.f32 %v1618, %v1638
    %1641 = vset.pattern.permute.xlu0 63
    %1642 = vperm.xlu0 %1641, %v94
    %v1643 = vpop.permute.xlu0 %1642
    %1645 = vset.pattern.permute.xlu0 63
    %1646 = vperm.xlu0 %1645, %v95
    %v1647 = vpop.permute.xlu0 %1646
    %v1649 = vlaneseq
    %v1650 = vshrl.u32 %v1649, 7
    %v1651 = vsub.s32 7, %v1650
    %v1652 = vrot.slane %v83, %v1651
    %v1653 = vadd.f32 %v1643, %v1652
    %v1654 = vadd.f32 %v1647, %v1652
    %s1655 = sld [smem:[#allocation5 + $0x9f]]
    %v1656 = vmax.f32 %v1653, 0.0
    %v1657 = vmax.f32 %v1654, 0.0
    %v1658 = vstv %s1655
    %v1659 = vmul.f32 %v1658, %v1656
    %v1660 = vmul.f32 %v1658, %v1657
    %v1661 = vadd.f32 %v1639, %v1659
    %v1662 = vadd.f32 %v1640, %v1660
    %1663 = vset.pattern.permute.xlu0 1
    %1664 = vperm.xlu0 %1663, %v97
    %v1665 = vpop.permute.xlu0 %1664
    %1667 = vset.pattern.permute.xlu0 1
    %1668 = vperm.xlu0 %1667, %v98
    %v1669 = vpop.permute.xlu0 %1668
    %v1671 = vlaneseq
    %v1672 = vshrl.u32 %v1671, 7
    %v1673 = vsub.s32 1, %v1672
    %v1674 = vrot.slane %v96, %v1673
    %v1675 = vadd.f32 %v1665, %v1674
    %v1676 = vadd.f32 %v1669, %v1674
    %v1677 = vmul.f32 %v1675, 0.2
    %v1678 = vmul.f32 %v1676, 0.2
    %v1679 = vmul.f32 %v1661, 0.8
    %v1680 = vmul.f32 %v1662, 0.8
    %v1681 = vadd.f32 %v1677, %v1679
    %v1682 = vadd.f32 %v1678, %v1680
    %v1683 = vsel %vm833, %v1681, -1e+30
    %v1684 = vsel %vm834, %v1682, -1e+30
    %v1685 = vld [vmem:[#allocation2] sm:$0xff]
    %v1686 = vld [vmem:[#allocation2 + $0x8] sm:$0xff]
    %v1687 = vsel %vm839, %v1683, -inf
    %1688 = vmax.xlane.f32.xlu0 %v1687
    %v1689 = vpop.xlane.xlu0 %1688
    %v1690 = vsel %vm839, %v1684, -inf
    %1691 = vmax.xlane.f32.xlu0 %v1690
    %v1692 = vpop.xlane.xlu0 %1691
    %v1693 = vmax.f32 %v1685, %v1689
    %v1694 = vmax.f32 %v1686, %v1692
    %v1695 = vsub.f32 %v1685, %v1693
    %v1696 = vsub.f32 %v1686, %v1694
    %v1697 = vmul.f32 %v1695, 1.442695
    %v1698 = vpow.pop %v1697
    %v1699 = vmul.f32 %v1696, 1.442695
    %v1700 = vpow.pop %v1699
    %1702 = vset.pattern.permute.xlu0 1
    %1703 = vperm.xlu0 %1702, %v1693
    %v1704 = vpop.permute.xlu0 %1703
    %1707 = vset.pattern.permute.xlu0 1
    %1708 = vperm.xlu0 %1707, %v1694
    %v1709 = vpop.permute.xlu0 %1708
    %v1711 = vsub.f32 %v1683, %v1704
    %v1712 = vsub.f32 %v1684, %v1709
    %v1713 = vmul.f32 %v1711, 1.442695
    %v1714 = vpow.pop %v1713
    %v1715 = vmul.f32 %v1712, 1.442695
    %v1716 = vpow.pop %v1715
    %v1717 = vsel %vm833, %v1714, 0.0
    %v1718 = vsel %vm834, %v1716, 0.0
    %v1719 = vld [vmem:[#allocation3] sm:$0xff]
    %v1720 = vld [vmem:[#allocation3 + $0x8] sm:$0xff]
    %v1721 = vmul.f32 %v1698, %v1719
    %v1722 = vmul.f32 %v1700, %v1720
    %v1723 = vsel %vm839, %v1717, 0.0
    %1724 = vadd.xlane.f32.xlu0 %v1723
    %v1725 = vpop.xlane.xlu0 %1724
    %v1726 = vsel %vm839, %v1718, 0.0
    %1727 = vadd.xlane.f32.xlu0 %v1726
    %v1728 = vpop.xlane.xlu0 %1727
    %v1729 = vadd.f32 %v1721, %v1725
    %v1730 = vadd.f32 %v1722, %v1728
    %vm1731 = vcmask 15368
    %1732 = vst.msk [vmem:[#allocation3] sm:$0xff] %vm1731, %v1729
    %1733 = vst.msk [vmem:[#allocation3 + $0x8] sm:$0xff] %vm1731, %v1730
    %v1734 = vld [vmem:[#allocation4] sm:$0xff]
    %v1735 = vld [vmem:[#allocation4 + $0x8] sm:$0xff]
    %1737 = vset.pattern.permute.xlu0 1
    %1738 = vperm.xlu0 %1737, %v1698
    %v1739 = vpop.permute.xlu0 %1738
    %1742 = vset.pattern.permute.xlu0 1
    %1743 = vperm.xlu0 %1742, %v1700
    %v1744 = vpop.permute.xlu0 %1743
    %v1746 = vmul.f32 %v1739, %v1734
    %v1747 = vmul.f32 %v1744, %v1735
    %v1748 = vpack.c.bf16 %v1718, %v1717
    %1749 = vrot.lane.b32.xlu0 %v906, 96
    %v1750 = vpop.permute.xlu0 %1749
    %v1753 = vsel %vm839, %v1748, 0
    %1755 = vmatprep.subr.bf16.mxu0 0
    %1756 = vmatpush1.bf16.msra.mxu0 %v1750
    %1757 = vmatprep.subr.bf16.mxu0 0
    %1758 = vmatpush1.bf16.msra.mxu0 0
    %1759 = vmatprep.subr.bf16.mxu0 0
    %1760 = vmatpush1.bf16.msra.mxu0 0
    %1761 = vmatprep.subr.bf16.mxu0 0
    %1762 = vmatpush1.bf16.msra.mxu0 0
    %1763 = vmatprep.subr.bf16.mxu0 0
    %1764 = vmatpush1.bf16.msra.mxu0 0
    %1765 = vmatprep.subr.bf16.mxu0 0
    %1766 = vmatpush1.bf16.msra.mxu0 0
    %1767 = vmatprep.subr.bf16.mxu0 0
    %1768 = vmatpush1.bf16.msra.mxu0 0
    %1769 = vmatprep.subr.bf16.mxu0 0
    %1770 = vmatpush1.bf16.msra.mxu0 0
    %1771 = vmatprep.subr.bf16.mxu0 0
    %1772 = vmatpush1.bf16.msra.mxu0 0
    %1773 = vmatprep.subr.bf16.mxu0 0
    %1774 = vmatpush1.bf16.msra.mxu0 0
    %1775 = vmatprep.subr.bf16.mxu0 0
    %1776 = vmatpush1.bf16.msra.mxu0 0
    %1777 = vmatprep.subr.bf16.mxu0 0
    %1778 = vmatpush1.bf16.msra.mxu0 0
    %1779 = vmatprep.subr.bf16.mxu0 0
    %1780 = vmatpush1.bf16.msra.mxu0 0
    %1781 = vmatprep.subr.bf16.mxu0 0
    %1782 = vmatpush1.bf16.msra.mxu0 0
    %1783 = vmatprep.subr.bf16.mxu0 0
    %1784 = vmatpush1.bf16.msra.mxu0 0
    %1785 = vmatprep.subr.bf16.mxu0 0
    %1786 = vmatpush1.bf16.msra.mxu0 0
    %1787 = vmatprep.mubr.bf16.mxu0 0
    %1788 = vmatmul.mubr.bf16.gmra.mrb[0].mxu0 %v1753
    %v1789 = vpop.f32.mrb[0].mxu0
    %v1790 = vadd.f32 0.0, %v1789
    %v1791 = vpop.f32.mrb[0].mxu0
    %v1792 = vpop.f32.mrb[0].mxu0
    %v1793 = vadd.f32 0.0, %v1792
    %v1794 = vpop.f32.mrb[0].mxu0
    %1795 = vdwg.mxu0
    %1798 = vrot.lane.b32.xlu0 %v1790, 32
    %v1799 = vpop.permute.xlu0 %1798
    %1800 = vrot.lane.b32.xlu0 %v1793, 32
    %v1801 = vpop.permute.xlu0 %1800
    %v1804 = vadd.f32 %v1746, %v1799
    %v1805 = vadd.f32 %v1747, %v1801
    %vm1806 = vcmask 523520
    %1807 = vst.msk [vmem:[#allocation4] sm:$0xff] %vm1806, %v1804
    %1808 = vst.msk [vmem:[#allocation4 + $0x8] sm:$0xff] %vm1806, %v1805
    %1809 = vst.msk [vmem:[#allocation2] sm:$0xff] %vm1731, %v1693
    %1810 = vst.msk [vmem:[#allocation2 + $0x8] sm:$0xff] %vm1731, %v1694
    %1811 = vset.pattern.permute.xlu0 64
    %1812 = vperm.xlu0 %1811, %v94
    %v1813 = vpop.permute.xlu0 %1812
    %1815 = vset.pattern.permute.xlu0 64
    %1816 = vperm.xlu0 %1815, %v95
    %v1817 = vpop.permute.xlu0 %1816
    %v1819 = vlaneseq
    %v1820 = vshrl.u32 %v1819, 7
    %v1821 = vsub.s32 0, %v1820
    %v1822 = vrot.slane %v84, %v1821
    %v1823 = vadd.f32 %v1813, %v1822
    %v1824 = vadd.f32 %v1817, %v1822
    %s1825 = sld [smem:[#allocation5 + $0x100]]
    %v1826 = vmax.f32 %v1823, 0.0
    %v1827 = vmax.f32 %v1824, 0.0
    %v1828 = vstv %s1825
    %v1829 = vmul.f32 %v1828, %v1826
    %v1830 = vmul.f32 %v1828, %v1827
    %v1831 = vadd.f32 %v1829, 0.0
    %v1832 = vadd.f32 %v1830, 0.0
    %1833 = vset.pattern.permute.xlu0 65
    %1834 = vperm.xlu0 %1833, %v94
    %v1835 = vpop.permute.xlu0 %1834
    %1837 = vset.pattern.permute.xlu0 65
    %1838 = vperm.xlu0 %1837, %v95
    %v1839 = vpop.permute.xlu0 %1838
    %v1841 = vlaneseq
    %v1842 = vshrl.u32 %v1841, 7
    %v1843 = vsub.s32 1, %v1842
    %v1844 = vrot.slane %v84, %v1843
    %v1845 = vadd.f32 %v1835, %v1844
    %v1846 = vadd.f32 %v1839, %v1844
    %s1847 = sld [smem:[#allocation5 + $0x101]]
    %v1848 = vmax.f32 %v1845, 0.0
    %v1849 = vmax.f32 %v1846, 0.0
    %v1850 = vstv %s1847
    %v1851 = vmul.f32 %v1850, %v1848
    %v1852 = vmul.f32 %v1850, %v1849
    %v1853 = vadd.f32 %v1831, %v1851
    %v1854 = vadd.f32 %v1832, %v1852
    %1855 = vset.pattern.permute.xlu0 66
    %1856 = vperm.xlu0 %1855, %v94
    %v1857 = vpop.permute.xlu0 %1856
    %1859 = vset.pattern.permute.xlu0 66
    %1860 = vperm.xlu0 %1859, %v95
    %v1861 = vpop.permute.xlu0 %1860
    %v1863 = vlaneseq
    %v1864 = vshrl.u32 %v1863, 7
    %v1865 = vsub.s32 2, %v1864
    %v1866 = vrot.slane %v84, %v1865
    %v1867 = vadd.f32 %v1857, %v1866
    %v1868 = vadd.f32 %v1861, %v1866
    %s1869 = sld [smem:[#allocation5 + $0x102]]
    %v1870 = vmax.f32 %v1867, 0.0
    %v1871 = vmax.f32 %v1868, 0.0
    %v1872 = vstv %s1869
    %v1873 = vmul.f32 %v1872, %v1870
    %v1874 = vmul.f32 %v1872, %v1871
    %v1875 = vadd.f32 %v1853, %v1873
    %v1876 = vadd.f32 %v1854, %v1874
    %1877 = vset.pattern.permute.xlu0 67
    %1878 = vperm.xlu0 %1877, %v94
    %v1879 = vpop.permute.xlu0 %1878
    %1881 = vset.pattern.permute.xlu0 67
    %1882 = vperm.xlu0 %1881, %v95
    %v1883 = vpop.permute.xlu0 %1882
    %v1885 = vlaneseq
    %v1886 = vshrl.u32 %v1885, 7
    %v1887 = vsub.s32 3, %v1886
    %v1888 = vrot.slane %v84, %v1887
    %v1889 = vadd.f32 %v1879, %v1888
    %v1890 = vadd.f32 %v1883, %v1888
    %s1891 = sld [smem:[#allocation5 + $0x103]]
    %v1892 = vmax.f32 %v1889, 0.0
    %v1893 = vmax.f32 %v1890, 0.0
    %v1894 = vstv %s1891
    %v1895 = vmul.f32 %v1894, %v1892
    %v1896 = vmul.f32 %v1894, %v1893
    %v1897 = vadd.f32 %v1875, %v1895
    %v1898 = vadd.f32 %v1876, %v1896
    %1899 = vset.pattern.permute.xlu0 68
    %1900 = vperm.xlu0 %1899, %v94
    %v1901 = vpop.permute.xlu0 %1900
    %1903 = vset.pattern.permute.xlu0 68
    %1904 = vperm.xlu0 %1903, %v95
    %v1905 = vpop.permute.xlu0 %1904
    %v1907 = vlaneseq
    %v1908 = vshrl.u32 %v1907, 7
    %v1909 = vsub.s32 4, %v1908
    %v1910 = vrot.slane %v84, %v1909
    %v1911 = vadd.f32 %v1901, %v1910
    %v1912 = vadd.f32 %v1905, %v1910
    %s1913 = sld [smem:[#allocation5 + $0x104]]
    %v1914 = vmax.f32 %v1911, 0.0
    %v1915 = vmax.f32 %v1912, 0.0
    %v1916 = vstv %s1913
    %v1917 = vmul.f32 %v1916, %v1914
    %v1918 = vmul.f32 %v1916, %v1915
    %v1919 = vadd.f32 %v1897, %v1917
    %v1920 = vadd.f32 %v1898, %v1918
    %1921 = vset.pattern.permute.xlu0 69
    %1922 = vperm.xlu0 %1921, %v94
    %v1923 = vpop.permute.xlu0 %1922
    %1925 = vset.pattern.permute.xlu0 69
    %1926 = vperm.xlu0 %1925, %v95
    %v1927 = vpop.permute.xlu0 %1926
    %v1929 = vlaneseq
    %v1930 = vshrl.u32 %v1929, 7
    %v1931 = vsub.s32 5, %v1930
    %v1932 = vrot.slane %v84, %v1931
    %v1933 = vadd.f32 %v1923, %v1932
    %v1934 = vadd.f32 %v1927, %v1932
    %s1935 = sld [smem:[#allocation5 + $0x105]]
    %v1936 = vmax.f32 %v1933, 0.0
    %v1937 = vmax.f32 %v1934, 0.0
    %v1938 = vstv %s1935
    %v1939 = vmul.f32 %v1938, %v1936
    %v1940 = vmul.f32 %v1938, %v1937
    %v1941 = vadd.f32 %v1919, %v1939
    %v1942 = vadd.f32 %v1920, %v1940
    %1943 = vset.pattern.permute.xlu0 70
    %1944 = vperm.xlu0 %1943, %v94
    %v1945 = vpop.permute.xlu0 %1944
    %1947 = vset.pattern.permute.xlu0 70
    %1948 = vperm.xlu0 %1947, %v95
    %v1949 = vpop.permute.xlu0 %1948
    %v1951 = vlaneseq
    %v1952 = vshrl.u32 %v1951, 7
    %v1953 = vsub.s32 6, %v1952
    %v1954 = vrot.slane %v84, %v1953
    %v1955 = vadd.f32 %v1945, %v1954
    %v1956 = vadd.f32 %v1949, %v1954
    %s1957 = sld [smem:[#allocation5 + $0x106]]
    %v1958 = vmax.f32 %v1955, 0.0
    %v1959 = vmax.f32 %v1956, 0.0
    %v1960 = vstv %s1957
    %v1961 = vmul.f32 %v1960, %v1958
    %v1962 = vmul.f32 %v1960, %v1959
    %v1963 = vadd.f32 %v1941, %v1961
    %v1964 = vadd.f32 %v1942, %v1962
    %1965 = vset.pattern.permute.xlu0 71
    %1966 = vperm.xlu0 %1965, %v94
    %v1967 = vpop.permute.xlu0 %1966
    %1969 = vset.pattern.permute.xlu0 71
    %1970 = vperm.xlu0 %1969, %v95
    %v1971 = vpop.permute.xlu0 %1970
    %v1973 = vlaneseq
    %v1974 = vshrl.u32 %v1973, 7
    %v1975 = vsub.s32 7, %v1974
    %v1976 = vrot.slane %v84, %v1975
    %v1977 = vadd.f32 %v1967, %v1976
    %v1978 = vadd.f32 %v1971, %v1976
    %s1979 = sld [smem:[#allocation5 + $0x107]]
    %v1980 = vmax.f32 %v1977, 0.0
    %v1981 = vmax.f32 %v1978, 0.0
    %v1982 = vstv %s1979
    %v1983 = vmul.f32 %v1982, %v1980
    %v1984 = vmul.f32 %v1982, %v1981
    %v1985 = vadd.f32 %v1963, %v1983
    %v1986 = vadd.f32 %v1964, %v1984
    %1987 = vset.pattern.permute.xlu0 72
    %1988 = vperm.xlu0 %1987, %v94
    %v1989 = vpop.permute.xlu0 %1988
    %1991 = vset.pattern.permute.xlu0 72
    %1992 = vperm.xlu0 %1991, %v95
    %v1993 = vpop.permute.xlu0 %1992
    %v1995 = vlaneseq
    %v1996 = vshrl.u32 %v1995, 7
    %v1997 = vsub.s32 0, %v1996
    %v1998 = vrot.slane %v85, %v1997
    %v1999 = vadd.f32 %v1989, %v1998
    %v2000 = vadd.f32 %v1993, %v1998
    %s2001 = sld [smem:[#allocation5 + $0x108]]
    %v2002 = vmax.f32 %v1999, 0.0
    %v2003 = vmax.f32 %v2000, 0.0
    %v2004 = vstv %s2001
    %v2005 = vmul.f32 %v2004, %v2002
    %v2006 = vmul.f32 %v2004, %v2003
    %v2007 = vadd.f32 %v1985, %v2005
    %v2008 = vadd.f32 %v1986, %v2006
    %2009 = vset.pattern.permute.xlu0 73
    %2010 = vperm.xlu0 %2009, %v94
    %v2011 = vpop.permute.xlu0 %2010
    %2013 = vset.pattern.permute.xlu0 73
    %2014 = vperm.xlu0 %2013, %v95
    %v2015 = vpop.permute.xlu0 %2014
    %v2017 = vlaneseq
    %v2018 = vshrl.u32 %v2017, 7
    %v2019 = vsub.s32 1, %v2018
    %v2020 = vrot.slane %v85, %v2019
    %v2021 = vadd.f32 %v2011, %v2020
    %v2022 = vadd.f32 %v2015, %v2020
    %s2023 = sld [smem:[#allocation5 + $0x109]]
    %v2024 = vmax.f32 %v2021, 0.0
    %v2025 = vmax.f32 %v2022, 0.0
    %v2026 = vstv %s2023
    %v2027 = vmul.f32 %v2026, %v2024
    %v2028 = vmul.f32 %v2026, %v2025
    %v2029 = vadd.f32 %v2007, %v2027
    %v2030 = vadd.f32 %v2008, %v2028
    %2031 = vset.pattern.permute.xlu0 74
    %2032 = vperm.xlu0 %2031, %v94
    %v2033 = vpop.permute.xlu0 %2032
    %2035 = vset.pattern.permute.xlu0 74
    %2036 = vperm.xlu0 %2035, %v95
    %v2037 = vpop.permute.xlu0 %2036
    %v2039 = vlaneseq
    %v2040 = vshrl.u32 %v2039, 7
    %v2041 = vsub.s32 2, %v2040
    %v2042 = vrot.slane %v85, %v2041
    %v2043 = vadd.f32 %v2033, %v2042
    %v2044 = vadd.f32 %v2037, %v2042
    %s2045 = sld [smem:[#allocation5 + $0x10a]]
    %v2046 = vmax.f32 %v2043, 0.0
    %v2047 = vmax.f32 %v2044, 0.0
    %v2048 = vstv %s2045
    %v2049 = vmul.f32 %v2048, %v2046
    %v2050 = vmul.f32 %v2048, %v2047
    %v2051 = vadd.f32 %v2029, %v2049
    %v2052 = vadd.f32 %v2030, %v2050
    %2053 = vset.pattern.permute.xlu0 75
    %2054 = vperm.xlu0 %2053, %v94
    %v2055 = vpop.permute.xlu0 %2054
    %2057 = vset.pattern.permute.xlu0 75
    %2058 = vperm.xlu0 %2057, %v95
    %v2059 = vpop.permute.xlu0 %2058
    %v2061 = vlaneseq
    %v2062 = vshrl.u32 %v2061, 7
    %v2063 = vsub.s32 3, %v2062
    %v2064 = vrot.slane %v85, %v2063
    %v2065 = vadd.f32 %v2055, %v2064
    %v2066 = vadd.f32 %v2059, %v2064
    %s2067 = sld [smem:[#allocation5 + $0x10b]]
    %v2068 = vmax.f32 %v2065, 0.0
    %v2069 = vmax.f32 %v2066, 0.0
    %v2070 = vstv %s2067
    %v2071 = vmul.f32 %v2070, %v2068
    %v2072 = vmul.f32 %v2070, %v2069
    %v2073 = vadd.f32 %v2051, %v2071
    %v2074 = vadd.f32 %v2052, %v2072
    %2075 = vset.pattern.permute.xlu0 76
    %2076 = vperm.xlu0 %2075, %v94
    %v2077 = vpop.permute.xlu0 %2076
    %2079 = vset.pattern.permute.xlu0 76
    %2080 = vperm.xlu0 %2079, %v95
    %v2081 = vpop.permute.xlu0 %2080
    %v2083 = vlaneseq
    %v2084 = vshrl.u32 %v2083, 7
    %v2085 = vsub.s32 4, %v2084
    %v2086 = vrot.slane %v85, %v2085
    %v2087 = vadd.f32 %v2077, %v2086
    %v2088 = vadd.f32 %v2081, %v2086
    %s2089 = sld [smem:[#allocation5 + $0x10c]]
    %v2090 = vmax.f32 %v2087, 0.0
    %v2091 = vmax.f32 %v2088, 0.0
    %v2092 = vstv %s2089
    %v2093 = vmul.f32 %v2092, %v2090
    %v2094 = vmul.f32 %v2092, %v2091
    %v2095 = vadd.f32 %v2073, %v2093
    %v2096 = vadd.f32 %v2074, %v2094
    %2097 = vset.pattern.permute.xlu0 77
    %2098 = vperm.xlu0 %2097, %v94
    %v2099 = vpop.permute.xlu0 %2098
    %2101 = vset.pattern.permute.xlu0 77
    %2102 = vperm.xlu0 %2101, %v95
    %v2103 = vpop.permute.xlu0 %2102
    %v2105 = vlaneseq
    %v2106 = vshrl.u32 %v2105, 7
    %v2107 = vsub.s32 5, %v2106
    %v2108 = vrot.slane %v85, %v2107
    %v2109 = vadd.f32 %v2099, %v2108
    %v2110 = vadd.f32 %v2103, %v2108
    %s2111 = sld [smem:[#allocation5 + $0x10d]]
    %v2112 = vmax.f32 %v2109, 0.0
    %v2113 = vmax.f32 %v2110, 0.0
    %v2114 = vstv %s2111
    %v2115 = vmul.f32 %v2114, %v2112
    %v2116 = vmul.f32 %v2114, %v2113
    %v2117 = vadd.f32 %v2095, %v2115
    %v2118 = vadd.f32 %v2096, %v2116
    %2119 = vset.pattern.permute.xlu0 78
    %2120 = vperm.xlu0 %2119, %v94
    %v2121 = vpop.permute.xlu0 %2120
    %2123 = vset.pattern.permute.xlu0 78
    %2124 = vperm.xlu0 %2123, %v95
    %v2125 = vpop.permute.xlu0 %2124
    %v2127 = vlaneseq
    %v2128 = vshrl.u32 %v2127, 7
    %v2129 = vsub.s32 6, %v2128
    %v2130 = vrot.slane %v85, %v2129
    %v2131 = vadd.f32 %v2121, %v2130
    %v2132 = vadd.f32 %v2125, %v2130
    %s2133 = sld [smem:[#allocation5 + $0x10e]]
    %v2134 = vmax.f32 %v2131, 0.0
    %v2135 = vmax.f32 %v2132, 0.0
    %v2136 = vstv %s2133
    %v2137 = vmul.f32 %v2136, %v2134
    %v2138 = vmul.f32 %v2136, %v2135
    %v2139 = vadd.f32 %v2117, %v2137
    %v2140 = vadd.f32 %v2118, %v2138
    %2141 = vset.pattern.permute.xlu0 79
    %2142 = vperm.xlu0 %2141, %v94
    %v2143 = vpop.permute.xlu0 %2142
    %2145 = vset.pattern.permute.xlu0 79
    %2146 = vperm.xlu0 %2145, %v95
    %v2147 = vpop.permute.xlu0 %2146
    %v2149 = vlaneseq
    %v2150 = vshrl.u32 %v2149, 7
    %v2151 = vsub.s32 7, %v2150
    %v2152 = vrot.slane %v85, %v2151
    %v2153 = vadd.f32 %v2143, %v2152
    %v2154 = vadd.f32 %v2147, %v2152
    %s2155 = sld [smem:[#allocation5 + $0x10f]]
    %v2156 = vmax.f32 %v2153, 0.0
    %v2157 = vmax.f32 %v2154, 0.0
    %v2158 = vstv %s2155
    %v2159 = vmul.f32 %v2158, %v2156
    %v2160 = vmul.f32 %v2158, %v2157
    %v2161 = vadd.f32 %v2139, %v2159
    %v2162 = vadd.f32 %v2140, %v2160
    %2163 = vset.pattern.permute.xlu0 80
    %2164 = vperm.xlu0 %2163, %v94
    %v2165 = vpop.permute.xlu0 %2164
    %2167 = vset.pattern.permute.xlu0 80
    %2168 = vperm.xlu0 %2167, %v95
    %v2169 = vpop.permute.xlu0 %2168
    %v2171 = vlaneseq
    %v2172 = vshrl.u32 %v2171, 7
    %v2173 = vsub.s32 0, %v2172
    %v2174 = vrot.slane %v86, %v2173
    %v2175 = vadd.f32 %v2165, %v2174
    %v2176 = vadd.f32 %v2169, %v2174
    %s2177 = sld [smem:[#allocation5 + $0x110]]
    %v2178 = vmax.f32 %v2175, 0.0
    %v2179 = vmax.f32 %v2176, 0.0
    %v2180 = vstv %s2177
    %v2181 = vmul.f32 %v2180, %v2178
    %v2182 = vmul.f32 %v2180, %v2179
    %v2183 = vadd.f32 %v2161, %v2181
    %v2184 = vadd.f32 %v2162, %v2182
    %2185 = vset.pattern.permute.xlu0 81
    %2186 = vperm.xlu0 %2185, %v94
    %v2187 = vpop.permute.xlu0 %2186
    %2189 = vset.pattern.permute.xlu0 81
    %2190 = vperm.xlu0 %2189, %v95
    %v2191 = vpop.permute.xlu0 %2190
    %v2193 = vlaneseq
    %v2194 = vshrl.u32 %v2193, 7
    %v2195 = vsub.s32 1, %v2194
    %v2196 = vrot.slane %v86, %v2195
    %v2197 = vadd.f32 %v2187, %v2196
    %v2198 = vadd.f32 %v2191, %v2196
    %s2199 = sld [smem:[#allocation5 + $0x111]]
    %v2200 = vmax.f32 %v2197, 0.0
    %v2201 = vmax.f32 %v2198, 0.0
    %v2202 = vstv %s2199
    %v2203 = vmul.f32 %v2202, %v2200
    %v2204 = vmul.f32 %v2202, %v2201
    %v2205 = vadd.f32 %v2183, %v2203
    %v2206 = vadd.f32 %v2184, %v2204
    %2207 = vset.pattern.permute.xlu0 82
    %2208 = vperm.xlu0 %2207, %v94
    %v2209 = vpop.permute.xlu0 %2208
    %2211 = vset.pattern.permute.xlu0 82
    %2212 = vperm.xlu0 %2211, %v95
    %v2213 = vpop.permute.xlu0 %2212
    %v2215 = vlaneseq
    %v2216 = vshrl.u32 %v2215, 7
    %v2217 = vsub.s32 2, %v2216
    %v2218 = vrot.slane %v86, %v2217
    %v2219 = vadd.f32 %v2209, %v2218
    %v2220 = vadd.f32 %v2213, %v2218
    %s2221 = sld [smem:[#allocation5 + $0x112]]
    %v2222 = vmax.f32 %v2219, 0.0
    %v2223 = vmax.f32 %v2220, 0.0
    %v2224 = vstv %s2221
    %v2225 = vmul.f32 %v2224, %v2222
    %v2226 = vmul.f32 %v2224, %v2223
    %v2227 = vadd.f32 %v2205, %v2225
    %v2228 = vadd.f32 %v2206, %v2226
    %2229 = vset.pattern.permute.xlu0 83
    %2230 = vperm.xlu0 %2229, %v94
    %v2231 = vpop.permute.xlu0 %2230
    %2233 = vset.pattern.permute.xlu0 83
    %2234 = vperm.xlu0 %2233, %v95
    %v2235 = vpop.permute.xlu0 %2234
    %v2237 = vlaneseq
    %v2238 = vshrl.u32 %v2237, 7
    %v2239 = vsub.s32 3, %v2238
    %v2240 = vrot.slane %v86, %v2239
    %v2241 = vadd.f32 %v2231, %v2240
    %v2242 = vadd.f32 %v2235, %v2240
    %s2243 = sld [smem:[#allocation5 + $0x113]]
    %v2244 = vmax.f32 %v2241, 0.0
    %v2245 = vmax.f32 %v2242, 0.0
    %v2246 = vstv %s2243
    %v2247 = vmul.f32 %v2246, %v2244
    %v2248 = vmul.f32 %v2246, %v2245
    %v2249 = vadd.f32 %v2227, %v2247
    %v2250 = vadd.f32 %v2228, %v2248
    %2251 = vset.pattern.permute.xlu0 84
    %2252 = vperm.xlu0 %2251, %v94
    %v2253 = vpop.permute.xlu0 %2252
    %2255 = vset.pattern.permute.xlu0 84
    %2256 = vperm.xlu0 %2255, %v95
    %v2257 = vpop.permute.xlu0 %2256
    %v2259 = vlaneseq
    %v2260 = vshrl.u32 %v2259, 7
    %v2261 = vsub.s32 4, %v2260
    %v2262 = vrot.slane %v86, %v2261
    %v2263 = vadd.f32 %v2253, %v2262
    %v2264 = vadd.f32 %v2257, %v2262
    %s2265 = sld [smem:[#allocation5 + $0x114]]
    %v2266 = vmax.f32 %v2263, 0.0
    %v2267 = vmax.f32 %v2264, 0.0
    %v2268 = vstv %s2265
    %v2269 = vmul.f32 %v2268, %v2266
    %v2270 = vmul.f32 %v2268, %v2267
    %v2271 = vadd.f32 %v2249, %v2269
    %v2272 = vadd.f32 %v2250, %v2270
    %2273 = vset.pattern.permute.xlu0 85
    %2274 = vperm.xlu0 %2273, %v94
    %v2275 = vpop.permute.xlu0 %2274
    %2277 = vset.pattern.permute.xlu0 85
    %2278 = vperm.xlu0 %2277, %v95
    %v2279 = vpop.permute.xlu0 %2278
    %v2281 = vlaneseq
    %v2282 = vshrl.u32 %v2281, 7
    %v2283 = vsub.s32 5, %v2282
    %v2284 = vrot.slane %v86, %v2283
    %v2285 = vadd.f32 %v2275, %v2284
    %v2286 = vadd.f32 %v2279, %v2284
    %s2287 = sld [smem:[#allocation5 + $0x115]]
    %v2288 = vmax.f32 %v2285, 0.0
    %v2289 = vmax.f32 %v2286, 0.0
    %v2290 = vstv %s2287
    %v2291 = vmul.f32 %v2290, %v2288
    %v2292 = vmul.f32 %v2290, %v2289
    %v2293 = vadd.f32 %v2271, %v2291
    %v2294 = vadd.f32 %v2272, %v2292
    %2295 = vset.pattern.permute.xlu0 86
    %2296 = vperm.xlu0 %2295, %v94
    %v2297 = vpop.permute.xlu0 %2296
    %2299 = vset.pattern.permute.xlu0 86
    %2300 = vperm.xlu0 %2299, %v95
    %v2301 = vpop.permute.xlu0 %2300
    %v2303 = vlaneseq
    %v2304 = vshrl.u32 %v2303, 7
    %v2305 = vsub.s32 6, %v2304
    %v2306 = vrot.slane %v86, %v2305
    %v2307 = vadd.f32 %v2297, %v2306
    %v2308 = vadd.f32 %v2301, %v2306
    %s2309 = sld [smem:[#allocation5 + $0x116]]
    %v2310 = vmax.f32 %v2307, 0.0
    %v2311 = vmax.f32 %v2308, 0.0
    %v2312 = vstv %s2309
    %v2313 = vmul.f32 %v2312, %v2310
    %v2314 = vmul.f32 %v2312, %v2311
    %v2315 = vadd.f32 %v2293, %v2313
    %v2316 = vadd.f32 %v2294, %v2314
    %2317 = vset.pattern.permute.xlu0 87
    %2318 = vperm.xlu0 %2317, %v94
    %v2319 = vpop.permute.xlu0 %2318
    %2321 = vset.pattern.permute.xlu0 87
    %2322 = vperm.xlu0 %2321, %v95
    %v2323 = vpop.permute.xlu0 %2322
    %v2325 = vlaneseq
    %v2326 = vshrl.u32 %v2325, 7
    %v2327 = vsub.s32 7, %v2326
    %v2328 = vrot.slane %v86, %v2327
    %v2329 = vadd.f32 %v2319, %v2328
    %v2330 = vadd.f32 %v2323, %v2328
    %s2331 = sld [smem:[#allocation5 + $0x117]]
    %v2332 = vmax.f32 %v2329, 0.0
    %v2333 = vmax.f32 %v2330, 0.0
    %v2334 = vstv %s2331
    %v2335 = vmul.f32 %v2334, %v2332
    %v2336 = vmul.f32 %v2334, %v2333
    %v2337 = vadd.f32 %v2315, %v2335
    %v2338 = vadd.f32 %v2316, %v2336
    %2339 = vset.pattern.permute.xlu0 88
    %2340 = vperm.xlu0 %2339, %v94
    %v2341 = vpop.permute.xlu0 %2340
    %2343 = vset.pattern.permute.xlu0 88
    %2344 = vperm.xlu0 %2343, %v95
    %v2345 = vpop.permute.xlu0 %2344
    %v2347 = vlaneseq
    %v2348 = vshrl.u32 %v2347, 7
    %v2349 = vsub.s32 0, %v2348
    %v2350 = vrot.slane %v87, %v2349
    %v2351 = vadd.f32 %v2341, %v2350
    %v2352 = vadd.f32 %v2345, %v2350
    %s2353 = sld [smem:[#allocation5 + $0x118]]
    %v2354 = vmax.f32 %v2351, 0.0
    %v2355 = vmax.f32 %v2352, 0.0
    %v2356 = vstv %s2353
    %v2357 = vmul.f32 %v2356, %v2354
    %v2358 = vmul.f32 %v2356, %v2355
    %v2359 = vadd.f32 %v2337, %v2357
    %v2360 = vadd.f32 %v2338, %v2358
    %2361 = vset.pattern.permute.xlu0 89
    %2362 = vperm.xlu0 %2361, %v94
    %v2363 = vpop.permute.xlu0 %2362
    %2365 = vset.pattern.permute.xlu0 89
    %2366 = vperm.xlu0 %2365, %v95
    %v2367 = vpop.permute.xlu0 %2366
    %v2369 = vlaneseq
    %v2370 = vshrl.u32 %v2369, 7
    %v2371 = vsub.s32 1, %v2370
    %v2372 = vrot.slane %v87, %v2371
    %v2373 = vadd.f32 %v2363, %v2372
    %v2374 = vadd.f32 %v2367, %v2372
    %s2375 = sld [smem:[#allocation5 + $0x119]]
    %v2376 = vmax.f32 %v2373, 0.0
    %v2377 = vmax.f32 %v2374, 0.0
    %v2378 = vstv %s2375
    %v2379 = vmul.f32 %v2378, %v2376
    %v2380 = vmul.f32 %v2378, %v2377
    %v2381 = vadd.f32 %v2359, %v2379
    %v2382 = vadd.f32 %v2360, %v2380
    %2383 = vset.pattern.permute.xlu0 90
    %2384 = vperm.xlu0 %2383, %v94
    %v2385 = vpop.permute.xlu0 %2384
    %2387 = vset.pattern.permute.xlu0 90
    %2388 = vperm.xlu0 %2387, %v95
    %v2389 = vpop.permute.xlu0 %2388
    %v2391 = vlaneseq
    %v2392 = vshrl.u32 %v2391, 7
    %v2393 = vsub.s32 2, %v2392
    %v2394 = vrot.slane %v87, %v2393
    %v2395 = vadd.f32 %v2385, %v2394
    %v2396 = vadd.f32 %v2389, %v2394
    %s2397 = sld [smem:[#allocation5 + $0x11a]]
    %v2398 = vmax.f32 %v2395, 0.0
    %v2399 = vmax.f32 %v2396, 0.0
    %v2400 = vstv %s2397
    %v2401 = vmul.f32 %v2400, %v2398
    %v2402 = vmul.f32 %v2400, %v2399
    %v2403 = vadd.f32 %v2381, %v2401
    %v2404 = vadd.f32 %v2382, %v2402
    %2405 = vset.pattern.permute.xlu0 91
    %2406 = vperm.xlu0 %2405, %v94
    %v2407 = vpop.permute.xlu0 %2406
    %2409 = vset.pattern.permute.xlu0 91
    %2410 = vperm.xlu0 %2409, %v95
    %v2411 = vpop.permute.xlu0 %2410
    %v2413 = vlaneseq
    %v2414 = vshrl.u32 %v2413, 7
    %v2415 = vsub.s32 3, %v2414
    %v2416 = vrot.slane %v87, %v2415
    %v2417 = vadd.f32 %v2407, %v2416
    %v2418 = vadd.f32 %v2411, %v2416
    %s2419 = sld [smem:[#allocation5 + $0x11b]]
    %v2420 = vmax.f32 %v2417, 0.0
    %v2421 = vmax.f32 %v2418, 0.0
    %v2422 = vstv %s2419
    %v2423 = vmul.f32 %v2422, %v2420
    %v2424 = vmul.f32 %v2422, %v2421
    %v2425 = vadd.f32 %v2403, %v2423
    %v2426 = vadd.f32 %v2404, %v2424
    %2427 = vset.pattern.permute.xlu0 92
    %2428 = vperm.xlu0 %2427, %v94
    %v2429 = vpop.permute.xlu0 %2428
    %2431 = vset.pattern.permute.xlu0 92
    %2432 = vperm.xlu0 %2431, %v95
    %v2433 = vpop.permute.xlu0 %2432
    %v2435 = vlaneseq
    %v2436 = vshrl.u32 %v2435, 7
    %v2437 = vsub.s32 4, %v2436
    %v2438 = vrot.slane %v87, %v2437
    %v2439 = vadd.f32 %v2429, %v2438
    %v2440 = vadd.f32 %v2433, %v2438
    %s2441 = sld [smem:[#allocation5 + $0x11c]]
    %v2442 = vmax.f32 %v2439, 0.0
    %v2443 = vmax.f32 %v2440, 0.0
    %v2444 = vstv %s2441
    %v2445 = vmul.f32 %v2444, %v2442
    %v2446 = vmul.f32 %v2444, %v2443
    %v2447 = vadd.f32 %v2425, %v2445
    %v2448 = vadd.f32 %v2426, %v2446
    %2449 = vset.pattern.permute.xlu0 93
    %2450 = vperm.xlu0 %2449, %v94
    %v2451 = vpop.permute.xlu0 %2450
    %2453 = vset.pattern.permute.xlu0 93
    %2454 = vperm.xlu0 %2453, %v95
    %v2455 = vpop.permute.xlu0 %2454
    %v2457 = vlaneseq
    %v2458 = vshrl.u32 %v2457, 7
    %v2459 = vsub.s32 5, %v2458
    %v2460 = vrot.slane %v87, %v2459
    %v2461 = vadd.f32 %v2451, %v2460
    %v2462 = vadd.f32 %v2455, %v2460
    %s2463 = sld [smem:[#allocation5 + $0x11d]]
    %v2464 = vmax.f32 %v2461, 0.0
    %v2465 = vmax.f32 %v2462, 0.0
    %v2466 = vstv %s2463
    %v2467 = vmul.f32 %v2466, %v2464
    %v2468 = vmul.f32 %v2466, %v2465
    %v2469 = vadd.f32 %v2447, %v2467
    %v2470 = vadd.f32 %v2448, %v2468
    %2471 = vset.pattern.permute.xlu0 94
    %2472 = vperm.xlu0 %2471, %v94
    %v2473 = vpop.permute.xlu0 %2472
    %2475 = vset.pattern.permute.xlu0 94
    %2476 = vperm.xlu0 %2475, %v95
    %v2477 = vpop.permute.xlu0 %2476
    %v2479 = vlaneseq
    %v2480 = vshrl.u32 %v2479, 7
    %v2481 = vsub.s32 6, %v2480
    %v2482 = vrot.slane %v87, %v2481
    %v2483 = vadd.f32 %v2473, %v2482
    %v2484 = vadd.f32 %v2477, %v2482
    %s2485 = sld [smem:[#allocation5 + $0x11e]]
    %v2486 = vmax.f32 %v2483, 0.0
    %v2487 = vmax.f32 %v2484, 0.0
    %v2488 = vstv %s2485
    %v2489 = vmul.f32 %v2488, %v2486
    %v2490 = vmul.f32 %v2488, %v2487
    %v2491 = vadd.f32 %v2469, %v2489
    %v2492 = vadd.f32 %v2470, %v2490
    %2493 = vset.pattern.permute.xlu0 95
    %2494 = vperm.xlu0 %2493, %v94
    %v2495 = vpop.permute.xlu0 %2494
    %2497 = vset.pattern.permute.xlu0 95
    %2498 = vperm.xlu0 %2497, %v95
    %v2499 = vpop.permute.xlu0 %2498
    %v2501 = vlaneseq
    %v2502 = vshrl.u32 %v2501, 7
    %v2503 = vsub.s32 7, %v2502
    %v2504 = vrot.slane %v87, %v2503
    %v2505 = vadd.f32 %v2495, %v2504
    %v2506 = vadd.f32 %v2499, %v2504
    %s2507 = sld [smem:[#allocation5 + $0x11f]]
    %v2508 = vmax.f32 %v2505, 0.0
    %v2509 = vmax.f32 %v2506, 0.0
    %v2510 = vstv %s2507
    %v2511 = vmul.f32 %v2510, %v2508
    %v2512 = vmul.f32 %v2510, %v2509
    %v2513 = vadd.f32 %v2491, %v2511
    %v2514 = vadd.f32 %v2492, %v2512
    %2515 = vset.pattern.permute.xlu0 2
    %2516 = vperm.xlu0 %2515, %v97
    %v2517 = vpop.permute.xlu0 %2516
    %2519 = vset.pattern.permute.xlu0 2
    %2520 = vperm.xlu0 %2519, %v98
    %v2521 = vpop.permute.xlu0 %2520
    %v2523 = vlaneseq
    %v2524 = vshrl.u32 %v2523, 7
    %v2525 = vsub.s32 2, %v2524
    %v2526 = vrot.slane %v96, %v2525
    %v2527 = vadd.f32 %v2517, %v2526
    %v2528 = vadd.f32 %v2521, %v2526
    %v2529 = vmul.f32 %v2527, 0.2
    %v2530 = vmul.f32 %v2528, 0.2
    %v2531 = vmul.f32 %v2513, 0.8
    %v2532 = vmul.f32 %v2514, 0.8
    %v2533 = vadd.f32 %v2529, %v2531
    %v2534 = vadd.f32 %v2530, %v2532
    %v2535 = vsel %vm833, %v2533, -1e+30
    %v2536 = vsel %vm834, %v2534, -1e+30
    %v2537 = vld [vmem:[#allocation2] sm:$0xff]
    %v2538 = vld [vmem:[#allocation2 + $0x8] sm:$0xff]
    %v2539 = vsel %vm839, %v2535, -inf
    %2540 = vmax.xlane.f32.xlu0 %v2539
    %v2541 = vpop.xlane.xlu0 %2540
    %v2542 = vsel %vm839, %v2536, -inf
    %2543 = vmax.xlane.f32.xlu0 %v2542
    %v2544 = vpop.xlane.xlu0 %2543
    %v2545 = vmax.f32 %v2537, %v2541
    %v2546 = vmax.f32 %v2538, %v2544
    %v2547 = vsub.f32 %v2537, %v2545
    %v2548 = vsub.f32 %v2538, %v2546
    %v2549 = vmul.f32 %v2547, 1.442695
    %v2550 = vpow.pop %v2549
    %v2551 = vmul.f32 %v2548, 1.442695
    %v2552 = vpow.pop %v2551
    %2554 = vset.pattern.permute.xlu0 2
    %2555 = vperm.xlu0 %2554, %v2545
    %v2556 = vpop.permute.xlu0 %2555
    %2559 = vset.pattern.permute.xlu0 2
    %2560 = vperm.xlu0 %2559, %v2546
    %v2561 = vpop.permute.xlu0 %2560
    %v2563 = vsub.f32 %v2535, %v2556
    %v2564 = vsub.f32 %v2536, %v2561
    %v2565 = vmul.f32 %v2563, 1.442695
    %v2566 = vpow.pop %v2565
    %v2567 = vmul.f32 %v2564, 1.442695
    %v2568 = vpow.pop %v2567
    %v2569 = vsel %vm833, %v2566, 0.0
    %v2570 = vsel %vm834, %v2568, 0.0
    %v2571 = vld [vmem:[#allocation3] sm:$0xff]
    %v2572 = vld [vmem:[#allocation3 + $0x8] sm:$0xff]
    %v2573 = vmul.f32 %v2550, %v2571
    %v2574 = vmul.f32 %v2552, %v2572
    %v2575 = vsel %vm839, %v2569, 0.0
    %2576 = vadd.xlane.f32.xlu0 %v2575
    %v2577 = vpop.xlane.xlu0 %2576
    %v2578 = vsel %vm839, %v2570, 0.0
    %2579 = vadd.xlane.f32.xlu0 %v2578
    %v2580 = vpop.xlane.xlu0 %2579
    %v2581 = vadd.f32 %v2573, %v2577
    %v2582 = vadd.f32 %v2574, %v2580
    %vm2583 = vcmask 23568
    %2584 = vst.msk [vmem:[#allocation3] sm:$0xff] %vm2583, %v2581
    %2585 = vst.msk [vmem:[#allocation3 + $0x8] sm:$0xff] %vm2583, %v2582
    %v2586 = vld [vmem:[#allocation4] sm:$0xff]
    %v2587 = vld [vmem:[#allocation4 + $0x8] sm:$0xff]
    %2589 = vset.pattern.permute.xlu0 2
    %2590 = vperm.xlu0 %2589, %v2550
    %v2591 = vpop.permute.xlu0 %2590
    %2594 = vset.pattern.permute.xlu0 2
    %2595 = vperm.xlu0 %2594, %v2552
    %v2596 = vpop.permute.xlu0 %2595
    %v2598 = vmul.f32 %v2591, %v2586
    %v2599 = vmul.f32 %v2596, %v2587
    %v2600 = vpack.c.bf16 %v2570, %v2569
    %2601 = vrot.lane.b32.xlu0 %v906, 64
    %v2602 = vpop.permute.xlu0 %2601
    %v2605 = vsel %vm839, %v2600, 0
    %2607 = vmatprep.subr.bf16.mxu0 0
    %2608 = vmatpush1.bf16.msra.mxu0 %v2602
    %2609 = vmatprep.subr.bf16.mxu0 0
    %2610 = vmatpush1.bf16.msra.mxu0 0
    %2611 = vmatprep.subr.bf16.mxu0 0
    %2612 = vmatpush1.bf16.msra.mxu0 0
    %2613 = vmatprep.subr.bf16.mxu0 0
    %2614 = vmatpush1.bf16.msra.mxu0 0
    %2615 = vmatprep.subr.bf16.mxu0 0
    %2616 = vmatpush1.bf16.msra.mxu0 0
    %2617 = vmatprep.subr.bf16.mxu0 0
    %2618 = vmatpush1.bf16.msra.mxu0 0
    %2619 = vmatprep.subr.bf16.mxu0 0
    %2620 = vmatpush1.bf16.msra.mxu0 0
    %2621 = vmatprep.subr.bf16.mxu0 0
    %2622 = vmatpush1.bf16.msra.mxu0 0
    %2623 = vmatprep.subr.bf16.mxu0 0
    %2624 = vmatpush1.bf16.msra.mxu0 0
    %2625 = vmatprep.subr.bf16.mxu0 0
    %2626 = vmatpush1.bf16.msra.mxu0 0
    %2627 = vmatprep.subr.bf16.mxu0 0
    %2628 = vmatpush1.bf16.msra.mxu0 0
    %2629 = vmatprep.subr.bf16.mxu0 0
    %2630 = vmatpush1.bf16.msra.mxu0 0
    %2631 = vmatprep.subr.bf16.mxu0 0
    %2632 = vmatpush1.bf16.msra.mxu0 0
    %2633 = vmatprep.subr.bf16.mxu0 0
    %2634 = vmatpush1.bf16.msra.mxu0 0
    %2635 = vmatprep.subr.bf16.mxu0 0
    %2636 = vmatpush1.bf16.msra.mxu0 0
    %2637 = vmatprep.subr.bf16.mxu0 0
    %2638 = vmatpush1.bf16.msra.mxu0 0
    %2639 = vmatprep.mubr.bf16.mxu0 0
    %2640 = vmatmul.mubr.bf16.gmra.mrb[0].mxu0 %v2605
    %v2641 = vpop.f32.mrb[0].mxu0
    %v2642 = vadd.f32 0.0, %v2641
    %v2643 = vpop.f32.mrb[0].mxu0
    %v2644 = vpop.f32.mrb[0].mxu0
    %v2645 = vadd.f32 0.0, %v2644
    %v2646 = vpop.f32.mrb[0].mxu0
    %2647 = vdwg.mxu0
    %2650 = vrot.lane.b32.xlu0 %v2642, 64
    %v2651 = vpop.permute.xlu0 %2650
    %2652 = vrot.lane.b32.xlu0 %v2645, 64
    %v2653 = vpop.permute.xlu0 %2652
    %v2656 = vadd.f32 %v2598, %v2651
    %v2657 = vadd.f32 %v2599, %v2653
    %vm2658 = vcmask 785920
    %2659 = vst.msk [vmem:[#allocation4] sm:$0xff] %vm2658, %v2656
    %2660 = vst.msk [vmem:[#allocation4 + $0x8] sm:$0xff] %vm2658, %v2657
    %2661 = vst.msk [vmem:[#allocation2] sm:$0xff] %vm2583, %v2545
    %2662 = vst.msk [vmem:[#allocation2 + $0x8] sm:$0xff] %vm2583, %v2546
    %2663 = vset.pattern.permute.xlu0 96
    %2664 = vperm.xlu0 %2663, %v94
    %v2665 = vpop.permute.xlu0 %2664
    %2667 = vset.pattern.permute.xlu0 96
    %2668 = vperm.xlu0 %2667, %v95
    %v2669 = vpop.permute.xlu0 %2668
    %v2671 = vlaneseq
    %v2672 = vshrl.u32 %v2671, 7
    %v2673 = vsub.s32 0, %v2672
    %v2674 = vrot.slane %v88, %v2673
    %v2675 = vadd.f32 %v2665, %v2674
    %v2676 = vadd.f32 %v2669, %v2674
    %s2677 = sld [smem:[#allocation5 + $0x180]]
    %v2678 = vmax.f32 %v2675, 0.0
    %v2679 = vmax.f32 %v2676, 0.0
    %v2680 = vstv %s2677
    %v2681 = vmul.f32 %v2680, %v2678
    %v2682 = vmul.f32 %v2680, %v2679
    %v2683 = vadd.f32 %v2681, 0.0
    %v2684 = vadd.f32 %v2682, 0.0
    %2685 = vset.pattern.permute.xlu0 97
    %2686 = vperm.xlu0 %2685, %v94
    %v2687 = vpop.permute.xlu0 %2686
    %2689 = vset.pattern.permute.xlu0 97
    %2690 = vperm.xlu0 %2689, %v95
    %v2691 = vpop.permute.xlu0 %2690
    %v2693 = vlaneseq
    %v2694 = vshrl.u32 %v2693, 7
    %v2695 = vsub.s32 1, %v2694
    %v2696 = vrot.slane %v88, %v2695
    %v2697 = vadd.f32 %v2687, %v2696
    %v2698 = vadd.f32 %v2691, %v2696
    %s2699 = sld [smem:[#allocation5 + $0x181]]
    %v2700 = vmax.f32 %v2697, 0.0
    %v2701 = vmax.f32 %v2698, 0.0
    %v2702 = vstv %s2699
    %v2703 = vmul.f32 %v2702, %v2700
    %v2704 = vmul.f32 %v2702, %v2701
    %v2705 = vadd.f32 %v2683, %v2703
    %v2706 = vadd.f32 %v2684, %v2704
    %2707 = vset.pattern.permute.xlu0 98
    %2708 = vperm.xlu0 %2707, %v94
    %v2709 = vpop.permute.xlu0 %2708
    %2711 = vset.pattern.permute.xlu0 98
    %2712 = vperm.xlu0 %2711, %v95
    %v2713 = vpop.permute.xlu0 %2712
    %v2715 = vlaneseq
    %v2716 = vshrl.u32 %v2715, 7
    %v2717 = vsub.s32 2, %v2716
    %v2718 = vrot.slane %v88, %v2717
    %v2719 = vadd.f32 %v2709, %v2718
    %v2720 = vadd.f32 %v2713, %v2718
    %s2721 = sld [smem:[#allocation5 + $0x182]]
    %v2722 = vmax.f32 %v2719, 0.0
    %v2723 = vmax.f32 %v2720, 0.0
    %v2724 = vstv %s2721
    %v2725 = vmul.f32 %v2724, %v2722
    %v2726 = vmul.f32 %v2724, %v2723
    %v2727 = vadd.f32 %v2705, %v2725
    %v2728 = vadd.f32 %v2706, %v2726
    %2729 = vset.pattern.permute.xlu0 99
    %2730 = vperm.xlu0 %2729, %v94
    %v2731 = vpop.permute.xlu0 %2730
    %2733 = vset.pattern.permute.xlu0 99
    %2734 = vperm.xlu0 %2733, %v95
    %v2735 = vpop.permute.xlu0 %2734
    %v2737 = vlaneseq
    %v2738 = vshrl.u32 %v2737, 7
    %v2739 = vsub.s32 3, %v2738
    %v2740 = vrot.slane %v88, %v2739
    %v2741 = vadd.f32 %v2731, %v2740
    %v2742 = vadd.f32 %v2735, %v2740
    %s2743 = sld [smem:[#allocation5 + $0x183]]
    %v2744 = vmax.f32 %v2741, 0.0
    %v2745 = vmax.f32 %v2742, 0.0
    %v2746 = vstv %s2743
    %v2747 = vmul.f32 %v2746, %v2744
    %v2748 = vmul.f32 %v2746, %v2745
    %v2749 = vadd.f32 %v2727, %v2747
    %v2750 = vadd.f32 %v2728, %v2748
    %2751 = vset.pattern.permute.xlu0 100
    %2752 = vperm.xlu0 %2751, %v94
    %v2753 = vpop.permute.xlu0 %2752
    %2755 = vset.pattern.permute.xlu0 100
    %2756 = vperm.xlu0 %2755, %v95
    %v2757 = vpop.permute.xlu0 %2756
    %v2759 = vlaneseq
    %v2760 = vshrl.u32 %v2759, 7
    %v2761 = vsub.s32 4, %v2760
    %v2762 = vrot.slane %v88, %v2761
    %v2763 = vadd.f32 %v2753, %v2762
    %v2764 = vadd.f32 %v2757, %v2762
    %s2765 = sld [smem:[#allocation5 + $0x184]]
    %v2766 = vmax.f32 %v2763, 0.0
    %v2767 = vmax.f32 %v2764, 0.0
    %v2768 = vstv %s2765
    %v2769 = vmul.f32 %v2768, %v2766
    %v2770 = vmul.f32 %v2768, %v2767
    %v2771 = vadd.f32 %v2749, %v2769
    %v2772 = vadd.f32 %v2750, %v2770
    %2773 = vset.pattern.permute.xlu0 101
    %2774 = vperm.xlu0 %2773, %v94
    %v2775 = vpop.permute.xlu0 %2774
    %2777 = vset.pattern.permute.xlu0 101
    %2778 = vperm.xlu0 %2777, %v95
    %v2779 = vpop.permute.xlu0 %2778
    %v2781 = vlaneseq
    %v2782 = vshrl.u32 %v2781, 7
    %v2783 = vsub.s32 5, %v2782
    %v2784 = vrot.slane %v88, %v2783
    %v2785 = vadd.f32 %v2775, %v2784
    %v2786 = vadd.f32 %v2779, %v2784
    %s2787 = sld [smem:[#allocation5 + $0x185]]
    %v2788 = vmax.f32 %v2785, 0.0
    %v2789 = vmax.f32 %v2786, 0.0
    %v2790 = vstv %s2787
    %v2791 = vmul.f32 %v2790, %v2788
    %v2792 = vmul.f32 %v2790, %v2789
    %v2793 = vadd.f32 %v2771, %v2791
    %v2794 = vadd.f32 %v2772, %v2792
    %2795 = vset.pattern.permute.xlu0 102
    %2796 = vperm.xlu0 %2795, %v94
    %v2797 = vpop.permute.xlu0 %2796
    %2799 = vset.pattern.permute.xlu0 102
    %2800 = vperm.xlu0 %2799, %v95
    %v2801 = vpop.permute.xlu0 %2800
    %v2803 = vlaneseq
    %v2804 = vshrl.u32 %v2803, 7
    %v2805 = vsub.s32 6, %v2804
    %v2806 = vrot.slane %v88, %v2805
    %v2807 = vadd.f32 %v2797, %v2806
    %v2808 = vadd.f32 %v2801, %v2806
    %s2809 = sld [smem:[#allocation5 + $0x186]]
    %v2810 = vmax.f32 %v2807, 0.0
    %v2811 = vmax.f32 %v2808, 0.0
    %v2812 = vstv %s2809
    %v2813 = vmul.f32 %v2812, %v2810
    %v2814 = vmul.f32 %v2812, %v2811
    %v2815 = vadd.f32 %v2793, %v2813
    %v2816 = vadd.f32 %v2794, %v2814
    %2817 = vset.pattern.permute.xlu0 103
    %2818 = vperm.xlu0 %2817, %v94
    %v2819 = vpop.permute.xlu0 %2818
    %2821 = vset.pattern.permute.xlu0 103
    %2822 = vperm.xlu0 %2821, %v95
    %v2823 = vpop.permute.xlu0 %2822
    %v2825 = vlaneseq
    %v2826 = vshrl.u32 %v2825, 7
    %v2827 = vsub.s32 7, %v2826
    %v2828 = vrot.slane %v88, %v2827
    %v2829 = vadd.f32 %v2819, %v2828
    %v2830 = vadd.f32 %v2823, %v2828
    %s2831 = sld [smem:[#allocation5 + $0x187]]
    %v2832 = vmax.f32 %v2829, 0.0
    %v2833 = vmax.f32 %v2830, 0.0
    %v2834 = vstv %s2831
    %v2835 = vmul.f32 %v2834, %v2832
    %v2836 = vmul.f32 %v2834, %v2833
    %v2837 = vadd.f32 %v2815, %v2835
    %v2838 = vadd.f32 %v2816, %v2836
    %2839 = vset.pattern.permute.xlu0 104
    %2840 = vperm.xlu0 %2839, %v94
    %v2841 = vpop.permute.xlu0 %2840
    %2843 = vset.pattern.permute.xlu0 104
    %2844 = vperm.xlu0 %2843, %v95
    %v2845 = vpop.permute.xlu0 %2844
    %v2847 = vlaneseq
    %v2848 = vshrl.u32 %v2847, 7
    %v2849 = vsub.s32 0, %v2848
    %v2850 = vrot.slane %v89, %v2849
    %v2851 = vadd.f32 %v2841, %v2850
    %v2852 = vadd.f32 %v2845, %v2850
    %s2853 = sld [smem:[#allocation5 + $0x188]]
    %v2854 = vmax.f32 %v2851, 0.0
    %v2855 = vmax.f32 %v2852, 0.0
    %v2856 = vstv %s2853
    %v2857 = vmul.f32 %v2856, %v2854
    %v2858 = vmul.f32 %v2856, %v2855
    %v2859 = vadd.f32 %v2837, %v2857
    %v2860 = vadd.f32 %v2838, %v2858
    %2861 = vset.pattern.permute.xlu0 105
    %2862 = vperm.xlu0 %2861, %v94
    %v2863 = vpop.permute.xlu0 %2862
    %2865 = vset.pattern.permute.xlu0 105
    %2866 = vperm.xlu0 %2865, %v95
    %v2867 = vpop.permute.xlu0 %2866
    %v2869 = vlaneseq
    %v2870 = vshrl.u32 %v2869, 7
    %v2871 = vsub.s32 1, %v2870
    %v2872 = vrot.slane %v89, %v2871
    %v2873 = vadd.f32 %v2863, %v2872
    %v2874 = vadd.f32 %v2867, %v2872
    %s2875 = sld [smem:[#allocation5 + $0x189]]
    %v2876 = vmax.f32 %v2873, 0.0
    %v2877 = vmax.f32 %v2874, 0.0
    %v2878 = vstv %s2875
    %v2879 = vmul.f32 %v2878, %v2876
    %v2880 = vmul.f32 %v2878, %v2877
    %v2881 = vadd.f32 %v2859, %v2879
    %v2882 = vadd.f32 %v2860, %v2880
    %2883 = vset.pattern.permute.xlu0 106
    %2884 = vperm.xlu0 %2883, %v94
    %v2885 = vpop.permute.xlu0 %2884
    %2887 = vset.pattern.permute.xlu0 106
    %2888 = vperm.xlu0 %2887, %v95
    %v2889 = vpop.permute.xlu0 %2888
    %v2891 = vlaneseq
    %v2892 = vshrl.u32 %v2891, 7
    %v2893 = vsub.s32 2, %v2892
    %v2894 = vrot.slane %v89, %v2893
    %v2895 = vadd.f32 %v2885, %v2894
    %v2896 = vadd.f32 %v2889, %v2894
    %s2897 = sld [smem:[#allocation5 + $0x18a]]
    %v2898 = vmax.f32 %v2895, 0.0
    %v2899 = vmax.f32 %v2896, 0.0
    %v2900 = vstv %s2897
    %v2901 = vmul.f32 %v2900, %v2898
    %v2902 = vmul.f32 %v2900, %v2899
    %v2903 = vadd.f32 %v2881, %v2901
    %v2904 = vadd.f32 %v2882, %v2902
    %2905 = vset.pattern.permute.xlu0 107
    %2906 = vperm.xlu0 %2905, %v94
    %v2907 = vpop.permute.xlu0 %2906
    %2909 = vset.pattern.permute.xlu0 107
    %2910 = vperm.xlu0 %2909, %v95
    %v2911 = vpop.permute.xlu0 %2910
    %v2913 = vlaneseq
    %v2914 = vshrl.u32 %v2913, 7
    %v2915 = vsub.s32 3, %v2914
    %v2916 = vrot.slane %v89, %v2915
    %v2917 = vadd.f32 %v2907, %v2916
    %v2918 = vadd.f32 %v2911, %v2916
    %s2919 = sld [smem:[#allocation5 + $0x18b]]
    %v2920 = vmax.f32 %v2917, 0.0
    %v2921 = vmax.f32 %v2918, 0.0
    %v2922 = vstv %s2919
    %v2923 = vmul.f32 %v2922, %v2920
    %v2924 = vmul.f32 %v2922, %v2921
    %v2925 = vadd.f32 %v2903, %v2923
    %v2926 = vadd.f32 %v2904, %v2924
    %2927 = vset.pattern.permute.xlu0 108
    %2928 = vperm.xlu0 %2927, %v94
    %v2929 = vpop.permute.xlu0 %2928
    %2931 = vset.pattern.permute.xlu0 108
    %2932 = vperm.xlu0 %2931, %v95
    %v2933 = vpop.permute.xlu0 %2932
    %v2935 = vlaneseq
    %v2936 = vshrl.u32 %v2935, 7
    %v2937 = vsub.s32 4, %v2936
    %v2938 = vrot.slane %v89, %v2937
    %v2939 = vadd.f32 %v2929, %v2938
    %v2940 = vadd.f32 %v2933, %v2938
    %s2941 = sld [smem:[#allocation5 + $0x18c]]
    %v2942 = vmax.f32 %v2939, 0.0
    %v2943 = vmax.f32 %v2940, 0.0
    %v2944 = vstv %s2941
    %v2945 = vmul.f32 %v2944, %v2942
    %v2946 = vmul.f32 %v2944, %v2943
    %v2947 = vadd.f32 %v2925, %v2945
    %v2948 = vadd.f32 %v2926, %v2946
    %2949 = vset.pattern.permute.xlu0 109
    %2950 = vperm.xlu0 %2949, %v94
    %v2951 = vpop.permute.xlu0 %2950
    %2953 = vset.pattern.permute.xlu0 109
    %2954 = vperm.xlu0 %2953, %v95
    %v2955 = vpop.permute.xlu0 %2954
    %v2957 = vlaneseq
    %v2958 = vshrl.u32 %v2957, 7
    %v2959 = vsub.s32 5, %v2958
    %v2960 = vrot.slane %v89, %v2959
    %v2961 = vadd.f32 %v2951, %v2960
    %v2962 = vadd.f32 %v2955, %v2960
    %s2963 = sld [smem:[#allocation5 + $0x18d]]
    %v2964 = vmax.f32 %v2961, 0.0
    %v2965 = vmax.f32 %v2962, 0.0
    %v2966 = vstv %s2963
    %v2967 = vmul.f32 %v2966, %v2964
    %v2968 = vmul.f32 %v2966, %v2965
    %v2969 = vadd.f32 %v2947, %v2967
    %v2970 = vadd.f32 %v2948, %v2968
    %2971 = vset.pattern.permute.xlu0 110
    %2972 = vperm.xlu0 %2971, %v94
    %v2973 = vpop.permute.xlu0 %2972
    %2975 = vset.pattern.permute.xlu0 110
    %2976 = vperm.xlu0 %2975, %v95
    %v2977 = vpop.permute.xlu0 %2976
    %v2979 = vlaneseq
    %v2980 = vshrl.u32 %v2979, 7
    %v2981 = vsub.s32 6, %v2980
    %v2982 = vrot.slane %v89, %v2981
    %v2983 = vadd.f32 %v2973, %v2982
    %v2984 = vadd.f32 %v2977, %v2982
    %s2985 = sld [smem:[#allocation5 + $0x18e]]
    %v2986 = vmax.f32 %v2983, 0.0
    %v2987 = vmax.f32 %v2984, 0.0
    %v2988 = vstv %s2985
    %v2989 = vmul.f32 %v2988, %v2986
    %v2990 = vmul.f32 %v2988, %v2987
    %v2991 = vadd.f32 %v2969, %v2989
    %v2992 = vadd.f32 %v2970, %v2990
    %2993 = vset.pattern.permute.xlu0 111
    %2994 = vperm.xlu0 %2993, %v94
    %v2995 = vpop.permute.xlu0 %2994
    %2997 = vset.pattern.permute.xlu0 111
    %2998 = vperm.xlu0 %2997, %v95
    %v2999 = vpop.permute.xlu0 %2998
    %v3001 = vlaneseq
    %v3002 = vshrl.u32 %v3001, 7
    %v3003 = vsub.s32 7, %v3002
    %v3004 = vrot.slane %v89, %v3003
    %v3005 = vadd.f32 %v2995, %v3004
    %v3006 = vadd.f32 %v2999, %v3004
    %s3007 = sld [smem:[#allocation5 + $0x18f]]
    %v3008 = vmax.f32 %v3005, 0.0
    %v3009 = vmax.f32 %v3006, 0.0
    %v3010 = vstv %s3007
    %v3011 = vmul.f32 %v3010, %v3008
    %v3012 = vmul.f32 %v3010, %v3009
    %v3013 = vadd.f32 %v2991, %v3011
    %v3014 = vadd.f32 %v2992, %v3012
    %3015 = vset.pattern.permute.xlu0 112
    %3016 = vperm.xlu0 %3015, %v94
    %v3017 = vpop.permute.xlu0 %3016
    %3019 = vset.pattern.permute.xlu0 112
    %3020 = vperm.xlu0 %3019, %v95
    %v3021 = vpop.permute.xlu0 %3020
    %v3023 = vlaneseq
    %v3024 = vshrl.u32 %v3023, 7
    %v3025 = vsub.s32 0, %v3024
    %v3026 = vrot.slane %v90, %v3025
    %v3027 = vadd.f32 %v3017, %v3026
    %v3028 = vadd.f32 %v3021, %v3026
    %s3029 = sld [smem:[#allocation5 + $0x190]]
    %v3030 = vmax.f32 %v3027, 0.0
    %v3031 = vmax.f32 %v3028, 0.0
    %v3032 = vstv %s3029
    %v3033 = vmul.f32 %v3032, %v3030
    %v3034 = vmul.f32 %v3032, %v3031
    %v3035 = vadd.f32 %v3013, %v3033
    %v3036 = vadd.f32 %v3014, %v3034
    %3037 = vset.pattern.permute.xlu0 113
    %3038 = vperm.xlu0 %3037, %v94
    %v3039 = vpop.permute.xlu0 %3038
    %3041 = vset.pattern.permute.xlu0 113
    %3042 = vperm.xlu0 %3041, %v95
    %v3043 = vpop.permute.xlu0 %3042
    %v3045 = vlaneseq
    %v3046 = vshrl.u32 %v3045, 7
    %v3047 = vsub.s32 1, %v3046
    %v3048 = vrot.slane %v90, %v3047
    %v3049 = vadd.f32 %v3039, %v3048
    %v3050 = vadd.f32 %v3043, %v3048
    %s3051 = sld [smem:[#allocation5 + $0x191]]
    %v3052 = vmax.f32 %v3049, 0.0
    %v3053 = vmax.f32 %v3050, 0.0
    %v3054 = vstv %s3051
    %v3055 = vmul.f32 %v3054, %v3052
    %v3056 = vmul.f32 %v3054, %v3053
    %v3057 = vadd.f32 %v3035, %v3055
    %v3058 = vadd.f32 %v3036, %v3056
    %3059 = vset.pattern.permute.xlu0 114
    %3060 = vperm.xlu0 %3059, %v94
    %v3061 = vpop.permute.xlu0 %3060
    %3063 = vset.pattern.permute.xlu0 114
    %3064 = vperm.xlu0 %3063, %v95
    %v3065 = vpop.permute.xlu0 %3064
    %v3067 = vlaneseq
    %v3068 = vshrl.u32 %v3067, 7
    %v3069 = vsub.s32 2, %v3068
    %v3070 = vrot.slane %v90, %v3069
    %v3071 = vadd.f32 %v3061, %v3070
    %v3072 = vadd.f32 %v3065, %v3070
    %s3073 = sld [smem:[#allocation5 + $0x192]]
    %v3074 = vmax.f32 %v3071, 0.0
    %v3075 = vmax.f32 %v3072, 0.0
    %v3076 = vstv %s3073
    %v3077 = vmul.f32 %v3076, %v3074
    %v3078 = vmul.f32 %v3076, %v3075
    %v3079 = vadd.f32 %v3057, %v3077
    %v3080 = vadd.f32 %v3058, %v3078
    %3081 = vset.pattern.permute.xlu0 115
    %3082 = vperm.xlu0 %3081, %v94
    %v3083 = vpop.permute.xlu0 %3082
    %3085 = vset.pattern.permute.xlu0 115
    %3086 = vperm.xlu0 %3085, %v95
    %v3087 = vpop.permute.xlu0 %3086
    %v3089 = vlaneseq
    %v3090 = vshrl.u32 %v3089, 7
    %v3091 = vsub.s32 3, %v3090
    %v3092 = vrot.slane %v90, %v3091
    %v3093 = vadd.f32 %v3083, %v3092
    %v3094 = vadd.f32 %v3087, %v3092
    %s3095 = sld [smem:[#allocation5 + $0x193]]
    %v3096 = vmax.f32 %v3093, 0.0
    %v3097 = vmax.f32 %v3094, 0.0
    %v3098 = vstv %s3095
    %v3099 = vmul.f32 %v3098, %v3096
    %v3100 = vmul.f32 %v3098, %v3097
    %v3101 = vadd.f32 %v3079, %v3099
    %v3102 = vadd.f32 %v3080, %v3100
    %3103 = vset.pattern.permute.xlu0 116
    %3104 = vperm.xlu0 %3103, %v94
    %v3105 = vpop.permute.xlu0 %3104
    %3107 = vset.pattern.permute.xlu0 116
    %3108 = vperm.xlu0 %3107, %v95
    %v3109 = vpop.permute.xlu0 %3108
    %v3111 = vlaneseq
    %v3112 = vshrl.u32 %v3111, 7
    %v3113 = vsub.s32 4, %v3112
    %v3114 = vrot.slane %v90, %v3113
    %v3115 = vadd.f32 %v3105, %v3114
    %v3116 = vadd.f32 %v3109, %v3114
    %s3117 = sld [smem:[#allocation5 + $0x194]]
    %v3118 = vmax.f32 %v3115, 0.0
    %v3119 = vmax.f32 %v3116, 0.0
    %v3120 = vstv %s3117
    %v3121 = vmul.f32 %v3120, %v3118
    %v3122 = vmul.f32 %v3120, %v3119
    %v3123 = vadd.f32 %v3101, %v3121
    %v3124 = vadd.f32 %v3102, %v3122
    %3125 = vset.pattern.permute.xlu0 117
    %3126 = vperm.xlu0 %3125, %v94
    %v3127 = vpop.permute.xlu0 %3126
    %3129 = vset.pattern.permute.xlu0 117
    %3130 = vperm.xlu0 %3129, %v95
    %v3131 = vpop.permute.xlu0 %3130
    %v3133 = vlaneseq
    %v3134 = vshrl.u32 %v3133, 7
    %v3135 = vsub.s32 5, %v3134
    %v3136 = vrot.slane %v90, %v3135
    %v3137 = vadd.f32 %v3127, %v3136
    %v3138 = vadd.f32 %v3131, %v3136
    %s3139 = sld [smem:[#allocation5 + $0x195]]
    %v3140 = vmax.f32 %v3137, 0.0
    %v3141 = vmax.f32 %v3138, 0.0
    %v3142 = vstv %s3139
    %v3143 = vmul.f32 %v3142, %v3140
    %v3144 = vmul.f32 %v3142, %v3141
    %v3145 = vadd.f32 %v3123, %v3143
    %v3146 = vadd.f32 %v3124, %v3144
    %3147 = vset.pattern.permute.xlu0 118
    %3148 = vperm.xlu0 %3147, %v94
    %v3149 = vpop.permute.xlu0 %3148
    %3151 = vset.pattern.permute.xlu0 118
    %3152 = vperm.xlu0 %3151, %v95
    %v3153 = vpop.permute.xlu0 %3152
    %v3155 = vlaneseq
    %v3156 = vshrl.u32 %v3155, 7
    %v3157 = vsub.s32 6, %v3156
    %v3158 = vrot.slane %v90, %v3157
    %v3159 = vadd.f32 %v3149, %v3158
    %v3160 = vadd.f32 %v3153, %v3158
    %s3161 = sld [smem:[#allocation5 + $0x196]]
    %v3162 = vmax.f32 %v3159, 0.0
    %v3163 = vmax.f32 %v3160, 0.0
    %v3164 = vstv %s3161
    %v3165 = vmul.f32 %v3164, %v3162
    %v3166 = vmul.f32 %v3164, %v3163
    %v3167 = vadd.f32 %v3145, %v3165
    %v3168 = vadd.f32 %v3146, %v3166
    %3169 = vset.pattern.permute.xlu0 119
    %3170 = vperm.xlu0 %3169, %v94
    %v3171 = vpop.permute.xlu0 %3170
    %3173 = vset.pattern.permute.xlu0 119
    %3174 = vperm.xlu0 %3173, %v95
    %v3175 = vpop.permute.xlu0 %3174
    %v3177 = vlaneseq
    %v3178 = vshrl.u32 %v3177, 7
    %v3179 = vsub.s32 7, %v3178
    %v3180 = vrot.slane %v90, %v3179
    %v3181 = vadd.f32 %v3171, %v3180
    %v3182 = vadd.f32 %v3175, %v3180
    %s3183 = sld [smem:[#allocation5 + $0x197]]
    %v3184 = vmax.f32 %v3181, 0.0
    %v3185 = vmax.f32 %v3182, 0.0
    %v3186 = vstv %s3183
    %v3187 = vmul.f32 %v3186, %v3184
    %v3188 = vmul.f32 %v3186, %v3185
    %v3189 = vadd.f32 %v3167, %v3187
    %v3190 = vadd.f32 %v3168, %v3188
    %3191 = vset.pattern.permute.xlu0 120
    %3192 = vperm.xlu0 %3191, %v94
    %v3193 = vpop.permute.xlu0 %3192
    %3195 = vset.pattern.permute.xlu0 120
    %3196 = vperm.xlu0 %3195, %v95
    %v3197 = vpop.permute.xlu0 %3196
    %v3199 = vlaneseq
    %v3200 = vshrl.u32 %v3199, 7
    %v3201 = vsub.s32 0, %v3200
    %v3202 = vrot.slane %v91, %v3201
    %v3203 = vadd.f32 %v3193, %v3202
    %v3204 = vadd.f32 %v3197, %v3202
    %s3205 = sld [smem:[#allocation5 + $0x198]]
    %v3206 = vmax.f32 %v3203, 0.0
    %v3207 = vmax.f32 %v3204, 0.0
    %v3208 = vstv %s3205
    %v3209 = vmul.f32 %v3208, %v3206
    %v3210 = vmul.f32 %v3208, %v3207
    %v3211 = vadd.f32 %v3189, %v3209
    %v3212 = vadd.f32 %v3190, %v3210
    %3213 = vset.pattern.permute.xlu0 121
    %3214 = vperm.xlu0 %3213, %v94
    %v3215 = vpop.permute.xlu0 %3214
    %3217 = vset.pattern.permute.xlu0 121
    %3218 = vperm.xlu0 %3217, %v95
    %v3219 = vpop.permute.xlu0 %3218
    %v3221 = vlaneseq
    %v3222 = vshrl.u32 %v3221, 7
    %v3223 = vsub.s32 1, %v3222
    %v3224 = vrot.slane %v91, %v3223
    %v3225 = vadd.f32 %v3215, %v3224
    %v3226 = vadd.f32 %v3219, %v3224
    %s3227 = sld [smem:[#allocation5 + $0x199]]
    %v3228 = vmax.f32 %v3225, 0.0
    %v3229 = vmax.f32 %v3226, 0.0
    %v3230 = vstv %s3227
    %v3231 = vmul.f32 %v3230, %v3228
    %v3232 = vmul.f32 %v3230, %v3229
    %v3233 = vadd.f32 %v3211, %v3231
    %v3234 = vadd.f32 %v3212, %v3232
    %3235 = vset.pattern.permute.xlu0 122
    %3236 = vperm.xlu0 %3235, %v94
    %v3237 = vpop.permute.xlu0 %3236
    %3239 = vset.pattern.permute.xlu0 122
    %3240 = vperm.xlu0 %3239, %v95
    %v3241 = vpop.permute.xlu0 %3240
    %v3243 = vlaneseq
    %v3244 = vshrl.u32 %v3243, 7
    %v3245 = vsub.s32 2, %v3244
    %v3246 = vrot.slane %v91, %v3245
    %v3247 = vadd.f32 %v3237, %v3246
    %v3248 = vadd.f32 %v3241, %v3246
    %s3249 = sld [smem:[#allocation5 + $0x19a]]
    %v3250 = vmax.f32 %v3247, 0.0
    %v3251 = vmax.f32 %v3248, 0.0
    %v3252 = vstv %s3249
    %v3253 = vmul.f32 %v3252, %v3250
    %v3254 = vmul.f32 %v3252, %v3251
    %v3255 = vadd.f32 %v3233, %v3253
    %v3256 = vadd.f32 %v3234, %v3254
    %3257 = vset.pattern.permute.xlu0 123
    %3258 = vperm.xlu0 %3257, %v94
    %v3259 = vpop.permute.xlu0 %3258
    %3261 = vset.pattern.permute.xlu0 123
    %3262 = vperm.xlu0 %3261, %v95
    %v3263 = vpop.permute.xlu0 %3262
    %v3265 = vlaneseq
    %v3266 = vshrl.u32 %v3265, 7
    %v3267 = vsub.s32 3, %v3266
    %v3268 = vrot.slane %v91, %v3267
    %v3269 = vadd.f32 %v3259, %v3268
    %v3270 = vadd.f32 %v3263, %v3268
    %s3271 = sld [smem:[#allocation5 + $0x19b]]
    %v3272 = vmax.f32 %v3269, 0.0
    %v3273 = vmax.f32 %v3270, 0.0
    %v3274 = vstv %s3271
    %v3275 = vmul.f32 %v3274, %v3272
    %v3276 = vmul.f32 %v3274, %v3273
    %v3277 = vadd.f32 %v3255, %v3275
    %v3278 = vadd.f32 %v3256, %v3276
    %3279 = vset.pattern.permute.xlu0 124
    %3280 = vperm.xlu0 %3279, %v94
    %v3281 = vpop.permute.xlu0 %3280
    %3283 = vset.pattern.permute.xlu0 124
    %3284 = vperm.xlu0 %3283, %v95
    %v3285 = vpop.permute.xlu0 %3284
    %v3287 = vlaneseq
    %v3288 = vshrl.u32 %v3287, 7
    %v3289 = vsub.s32 4, %v3288
    %v3290 = vrot.slane %v91, %v3289
    %v3291 = vadd.f32 %v3281, %v3290
    %v3292 = vadd.f32 %v3285, %v3290
    %s3293 = sld [smem:[#allocation5 + $0x19c]]
    %v3294 = vmax.f32 %v3291, 0.0
    %v3295 = vmax.f32 %v3292, 0.0
    %v3296 = vstv %s3293
    %v3297 = vmul.f32 %v3296, %v3294
    %v3298 = vmul.f32 %v3296, %v3295
    %v3299 = vadd.f32 %v3277, %v3297
    %v3300 = vadd.f32 %v3278, %v3298
    %3301 = vset.pattern.permute.xlu0 125
    %3302 = vperm.xlu0 %3301, %v94
    %v3303 = vpop.permute.xlu0 %3302
    %3305 = vset.pattern.permute.xlu0 125
    %3306 = vperm.xlu0 %3305, %v95
    %v3307 = vpop.permute.xlu0 %3306
    %v3309 = vlaneseq
    %v3310 = vshrl.u32 %v3309, 7
    %v3311 = vsub.s32 5, %v3310
    %v3312 = vrot.slane %v91, %v3311
    %v3313 = vadd.f32 %v3303, %v3312
    %v3314 = vadd.f32 %v3307, %v3312
    %s3315 = sld [smem:[#allocation5 + $0x19d]]
    %v3316 = vmax.f32 %v3313, 0.0
    %v3317 = vmax.f32 %v3314, 0.0
    %v3318 = vstv %s3315
    %v3319 = vmul.f32 %v3318, %v3316
    %v3320 = vmul.f32 %v3318, %v3317
    %v3321 = vadd.f32 %v3299, %v3319
    %v3322 = vadd.f32 %v3300, %v3320
    %3323 = vset.pattern.permute.xlu0 126
    %3324 = vperm.xlu0 %3323, %v94
    %v3325 = vpop.permute.xlu0 %3324
    %3327 = vset.pattern.permute.xlu0 126
    %3328 = vperm.xlu0 %3327, %v95
    %v3329 = vpop.permute.xlu0 %3328
    %v3331 = vlaneseq
    %v3332 = vshrl.u32 %v3331, 7
    %v3333 = vsub.s32 6, %v3332
    %v3334 = vrot.slane %v91, %v3333
    %v3335 = vadd.f32 %v3325, %v3334
    %v3336 = vadd.f32 %v3329, %v3334
    %s3337 = sld [smem:[#allocation5 + $0x19e]]
    %v3338 = vmax.f32 %v3335, 0.0
    %v3339 = vmax.f32 %v3336, 0.0
    %v3340 = vstv %s3337
    %v3341 = vmul.f32 %v3340, %v3338
    %v3342 = vmul.f32 %v3340, %v3339
    %v3343 = vadd.f32 %v3321, %v3341
    %v3344 = vadd.f32 %v3322, %v3342
    %3345 = vset.pattern.permute.xlu0 127
    %3346 = vperm.xlu0 %3345, %v94
    %v3347 = vpop.permute.xlu0 %3346
    %3349 = vset.pattern.permute.xlu0 127
    %3350 = vperm.xlu0 %3349, %v95
    %v3351 = vpop.permute.xlu0 %3350
    %v3353 = vlaneseq
    %v3354 = vshrl.u32 %v3353, 7
    %v3355 = vsub.s32 7, %v3354
    %v3356 = vrot.slane %v91, %v3355
    %v3357 = vadd.f32 %v3347, %v3356
    %v3358 = vadd.f32 %v3351, %v3356
    %s3359 = sld [smem:[#allocation5 + $0x19f]]
    %v3360 = vmax.f32 %v3357, 0.0
    %v3361 = vmax.f32 %v3358, 0.0
    %v3362 = vstv %s3359
    %v3363 = vmul.f32 %v3362, %v3360
    %v3364 = vmul.f32 %v3362, %v3361
    %v3365 = vadd.f32 %v3343, %v3363
    %v3366 = vadd.f32 %v3344, %v3364
    %3367 = vset.pattern.permute.xlu0 3
    %3368 = vperm.xlu0 %3367, %v97
    %v3369 = vpop.permute.xlu0 %3368
    %3371 = vset.pattern.permute.xlu0 3
    %3372 = vperm.xlu0 %3371, %v98
    %v3373 = vpop.permute.xlu0 %3372
    %v3375 = vlaneseq
    %v3376 = vshrl.u32 %v3375, 7
    %v3377 = vsub.s32 3, %v3376
    %v3378 = vrot.slane %v96, %v3377
    %v3379 = vadd.f32 %v3369, %v3378
    %v3380 = vadd.f32 %v3373, %v3378
    %v3381 = vmul.f32 %v3379, 0.2
    %v3382 = vmul.f32 %v3380, 0.2
    %v3383 = vmul.f32 %v3365, 0.8
    %v3384 = vmul.f32 %v3366, 0.8
    %v3385 = vadd.f32 %v3381, %v3383
    %v3386 = vadd.f32 %v3382, %v3384
    %v3387 = vsel %vm833, %v3385, -1e+30
    %v3388 = vsel %vm834, %v3386, -1e+30
    %v3389 = vld [vmem:[#allocation2] sm:$0xff]
    %v3390 = vld [vmem:[#allocation2 + $0x8] sm:$0xff]
    %v3391 = vsel %vm839, %v3387, -inf
    %3392 = vmax.xlane.f32.xlu0 %v3391
    %v3393 = vpop.xlane.xlu0 %3392
    %v3394 = vsel %vm839, %v3388, -inf
    %3395 = vmax.xlane.f32.xlu0 %v3394
    %v3396 = vpop.xlane.xlu0 %3395
    %v3397 = vmax.f32 %v3389, %v3393
    %v3398 = vmax.f32 %v3390, %v3396
    %v3399 = vsub.f32 %v3389, %v3397
    %v3400 = vsub.f32 %v3390, %v3398
    %v3401 = vmul.f32 %v3399, 1.442695
    %v3402 = vpow.pop %v3401
    %v3403 = vmul.f32 %v3400, 1.442695
    %v3404 = vpow.pop %v3403
    %3406 = vset.pattern.permute.xlu0 3
    %3407 = vperm.xlu0 %3406, %v3397
    %v3408 = vpop.permute.xlu0 %3407
    %3411 = vset.pattern.permute.xlu0 3
    %3412 = vperm.xlu0 %3411, %v3398
    %v3413 = vpop.permute.xlu0 %3412
    %v3415 = vsub.f32 %v3387, %v3408
    %v3416 = vsub.f32 %v3388, %v3413
    %v3417 = vmul.f32 %v3415, 1.442695
    %v3418 = vpow.pop %v3417
    %v3419 = vmul.f32 %v3416, 1.442695
    %v3420 = vpow.pop %v3419
    %v3421 = vsel %vm833, %v3418, 0.0
    %v3422 = vsel %vm834, %v3420, 0.0
    %v3423 = vld [vmem:[#allocation3] sm:$0xff]
    %v3424 = vld [vmem:[#allocation3 + $0x8] sm:$0xff]
    %v3425 = vmul.f32 %v3402, %v3423
    %v3426 = vmul.f32 %v3404, %v3424
    %v3427 = vsel %vm839, %v3421, 0.0
    %3428 = vadd.xlane.f32.xlu0 %v3427
    %v3429 = vpop.xlane.xlu0 %3428
    %v3430 = vsel %vm839, %v3422, 0.0
    %3431 = vadd.xlane.f32.xlu0 %v3430
    %v3432 = vpop.xlane.xlu0 %3431
    %v3433 = vadd.f32 %v3425, %v3429
    %v3434 = vadd.f32 %v3426, %v3432
    %vm3435 = vcmask 31768
    %3436 = vst.msk [vmem:[#allocation3] sm:$0xff] %vm3435, %v3433
    %3437 = vst.msk [vmem:[#allocation3 + $0x8] sm:$0xff] %vm3435, %v3434
    %v3438 = vld [vmem:[#allocation4] sm:$0xff]
    %v3439 = vld [vmem:[#allocation4 + $0x8] sm:$0xff]
    %3441 = vset.pattern.permute.xlu0 3
    %3442 = vperm.xlu0 %3441, %v3402
    %v3443 = vpop.permute.xlu0 %3442
    %3446 = vset.pattern.permute.xlu0 3
    %3447 = vperm.xlu0 %3446, %v3404
    %v3448 = vpop.permute.xlu0 %3447
    %v3450 = vmul.f32 %v3443, %v3438
    %v3451 = vmul.f32 %v3448, %v3439
    %v3452 = vpack.c.bf16 %v3422, %v3421
    %3453 = vrot.lane.b32.xlu0 %v906, 32
    %v3454 = vpop.permute.xlu0 %3453
    %v3457 = vsel %vm839, %v3452, 0
    %3459 = vmatprep.subr.bf16.mxu0 0
    %3460 = vmatpush1.bf16.msra.mxu0 %v3454
    %3461 = vmatprep.subr.bf16.mxu0 0
    %3462 = vmatpush1.bf16.msra.mxu0 0
    %3463 = vmatprep.subr.bf16.mxu0 0
    %3464 = vmatpush1.bf16.msra.mxu0 0
    %3465 = vmatprep.subr.bf16.mxu0 0
    %3466 = vmatpush1.bf16.msra.mxu0 0
    %3467 = vmatprep.subr.bf16.mxu0 0
    %3468 = vmatpush1.bf16.msra.mxu0 0
    %3469 = vmatprep.subr.bf16.mxu0 0
    %3470 = vmatpush1.bf16.msra.mxu0 0
    %3471 = vmatprep.subr.bf16.mxu0 0
    %3472 = vmatpush1.bf16.msra.mxu0 0
    %3473 = vmatprep.subr.bf16.mxu0 0
    %3474 = vmatpush1.bf16.msra.mxu0 0
    %3475 = vmatprep.subr.bf16.mxu0 0
    %3476 = vmatpush1.bf16.msra.mxu0 0
    %3477 = vmatprep.subr.bf16.mxu0 0
    %3478 = vmatpush1.bf16.msra.mxu0 0
    %3479 = vmatprep.subr.bf16.mxu0 0
    %3480 = vmatpush1.bf16.msra.mxu0 0
    %3481 = vmatprep.subr.bf16.mxu0 0
    %3482 = vmatpush1.bf16.msra.mxu0 0
    %3483 = vmatprep.subr.bf16.mxu0 0
    %3484 = vmatpush1.bf16.msra.mxu0 0
    %3485 = vmatprep.subr.bf16.mxu0 0
    %3486 = vmatpush1.bf16.msra.mxu0 0
    %3487 = vmatprep.subr.bf16.mxu0 0
    %3488 = vmatpush1.bf16.msra.mxu0 0
    %3489 = vmatprep.subr.bf16.mxu0 0
    %3490 = vmatpush1.bf16.msra.mxu0 0
    %3491 = vmatprep.mubr.bf16.mxu0 0
    %3492 = vmatmul.mubr.bf16.gmra.mrb[0].mxu0 %v3457
    %v3493 = vpop.f32.mrb[0].mxu0
    %v3494 = vadd.f32 0.0, %v3493
    %v3495 = vpop.f32.mrb[0].mxu0
    %v3496 = vpop.f32.mrb[0].mxu0
    %v3497 = vadd.f32 0.0, %v3496
    %v3498 = vpop.f32.mrb[0].mxu0
    %3499 = vdwg.mxu0
    %3502 = vrot.lane.b32.xlu0 %v3494, 96
    %v3503 = vpop.permute.xlu0 %3502
    %3504 = vrot.lane.b32.xlu0 %v3497, 96
    %v3505 = vpop.permute.xlu0 %3504
    %v3508 = vadd.f32 %v3450, %v3503
    %v3509 = vadd.f32 %v3451, %v3505
    %vm3510 = vcmask 1048320
    %3511 = vst.msk [vmem:[#allocation4] sm:$0xff] %vm3510, %v3508
    %3512 = vst.msk [vmem:[#allocation4 + $0x8] sm:$0xff] %vm3510, %v3509
    %3513 = vst.msk [vmem:[#allocation2] sm:$0xff] %vm3435, %v3397
    %3514 = vst.msk [vmem:[#allocation2 + $0x8] sm:$0xff] %vm3435, %v3398
    // Predicated region
    $region42: #{gat_perso_forward.6} parent=1 // pred_check
      %p3515 = pneg %p45
    $region43: #{gat_perso_forward.6} parent=1 // pred_check_branch
      %3517 = sbr.rel (%p3515) target = $region45
    $region44: #{gat_perso_forward.6} parent=1 // pred_region
      %v3518 = vld [vmem:[#allocation3] sm:$0xff]
      %v3519 = vld [vmem:[#allocation3 + $0x8] sm:$0xff]
      %v3520 = vrcp.pop %v3518
      %v3521 = vmul.f32 1.0, %v3520
      %v3522 = vrcp.pop %v3519
      %v3523 = vmul.f32 1.0, %v3522
      %v3524 = vld [vmem:[#allocation4] sm:$0xff]
      %v3525 = vld [vmem:[#allocation4 + $0x8] sm:$0xff]
      %3527 = vset.pattern.permute.xlu0 0
      %3528 = vperm.xlu0 %3527, %v3521
      %v3529 = vpop.permute.xlu0 %3528
      %3532 = vset.pattern.permute.xlu0 0
      %3533 = vperm.xlu0 %3532, %v3523
      %v3534 = vpop.permute.xlu0 %3533
      %v3536 = vmul.f32 %v3524, %v3529
      %v3537 = vmul.f32 %v3525, %v3534
      %3538 = vset.pattern.permute.xlu0 1
      %3539 = vperm.xlu0 %3538, %v3521
      %v3540 = vpop.permute.xlu0 %3539
      %3542 = vset.pattern.permute.xlu0 1
      %3543 = vperm.xlu0 %3542, %v3523
      %v3544 = vpop.permute.xlu0 %3543
      %v3546 = vmul.f32 %v3524, %v3540
      %v3547 = vmul.f32 %v3525, %v3544
      %3548 = vset.pattern.permute.xlu0 2
      %3549 = vperm.xlu0 %3548, %v3521
      %v3550 = vpop.permute.xlu0 %3549
      %3552 = vset.pattern.permute.xlu0 2
      %3553 = vperm.xlu0 %3552, %v3523
      %v3554 = vpop.permute.xlu0 %3553
      %v3556 = vmul.f32 %v3524, %v3550
      %v3557 = vmul.f32 %v3525, %v3554
      %3558 = vset.pattern.permute.xlu0 3
      %3559 = vperm.xlu0 %3558, %v3521
      %v3560 = vpop.permute.xlu0 %3559
      %3562 = vset.pattern.permute.xlu0 3
      %3563 = vperm.xlu0 %3562, %v3523
      %v3564 = vpop.permute.xlu0 %3563
      %v3566 = vmul.f32 %v3524, %v3560
      %v3567 = vmul.f32 %v3525, %v3564
      %v3568 = vsel %vm954, %v3536, %v3546
      %v3569 = vsel %vm954, %v3537, %v3547
      %vm3570 = vcmask 523264
      %v3571 = vsel %vm3570, %v3568, %v3556
      %v3572 = vsel %vm3570, %v3569, %v3557
      %vm3573 = vcmask 785408
      %v3574 = vsel %vm3573, %v3571, %v3566
      %v3575 = vsel %vm3573, %v3572, %v3567
      %v3576 = vld [vmem:[%s7] sm:$0x1]
      %v3578 = vlaneseq
      %v3579 = vshrl.u32 %v3578, 7
      %v3580 = vsub.s32 0, %v3579
      %v3581 = vrot.slane %v3576, %v3580
      %v3583 = vadd.f32 %v3574, %v3581
      %v3584 = vadd.f32 %v3575, %v3581
      %vm3585 = vcmp.gt.f32.partialorder %v3583, 0.0
      %vm3586 = vcmp.gt.f32.partialorder %v3584, 0.0
      %v3587 = vmul.f32 %v3583, 0.01
      %v3588 = vmul.f32 %v3584, 0.01
      %v3589 = vsel %vm3585, %v3583, %v3587
      %v3590 = vsel %vm3586, %v3584, %v3588
      %v3591 = vpack.c.bf16 %v3590, %v3589
      %v3593 = vunpack.c.l.b16 %v3591
      %v3594 = vunpack.c.h.b16 %v3591
      %v3595 = vpack.c.b16 %v3593, %v3593
      %v3596 = vpack.c.b16 %v3594, %v3594
      %3599 = vst [vmem:[%s8] sm:$0xf] %v3595
      %3600 = vst [vmem:[%s8 + $0x4] sm:$0xf] %v3596
    $region45: #{gat_perso_forward.6} parent=1 // pred_fallthru
      _
    // Predicated region
    $region46: #{gat_perso_forward.6} parent=1 // pred_check
      _
    $region47: #{gat_perso_forward.6} parent=1 // pred_check_branch
      %3602 = sbr.rel (0) target = $region49
    $region48: #{gat_perso_forward.6} parent=1 // pred_region
      _
    $region49: #{gat_perso_forward.6} parent=1 // pred_fallthru
      _
    // Predicated region
    $region50: #{gat_perso_forward.6} parent=1 // pred_check
      _
    $region51: #{gat_perso_forward.6} parent=1 // pred_check_branch
      %3604 = sbr.rel (0) target = $region53
    $region52: #{gat_perso_forward.6} parent=1 // pred_region
      _
    $region53: #{gat_perso_forward.6} parent=1 // pred_fallthru
      _
    %3605 = vsyncpa [#allocation6], 1

</llo_original>
